<compile_context>
chip_gen: v7x
topology: tpu7x:2x2x1
jax: 0.10.0
libtpu: 0.0.40
codegen_flags: <defaults>
</compile_context>

<pallas_src>
import functools
import math

import jax
import jax.numpy as jnp
from jax.experimental import pallas as pl
from jax.experimental.pallas import tpu as pltpu

_VMEM_LIMIT = 32 * 1024 * 1024  # safe headroom on v7x (64 MiB physical); tiny vs v5e/v6e (128 MiB)


def _round_up(x, m):
    return ((x + m - 1) // m) * m


def _pad2(a, rows, cols):
    pr, pc = rows - a.shape[0], cols - a.shape[1]
    if pr == 0 and pc == 0:
        return a
    return jnp.pad(a, ((0, pr), (0, pc)))


def _pick_tile(total, pref, unit):
    """Largest multiple of `unit` dividing `total` (a multiple of unit) that is <= pref."""
    best = unit
    t = unit
    while t <= min(pref, total):
        if total % t == 0:
            best = t
        t += unit
    return best


def _ln_rows(x, g, b, eps):
    mu = jnp.mean(x, axis=-1, keepdims=True)
    var = jnp.mean(jnp.square(x - mu), axis=-1, keepdims=True)
    return (x - mu) * jax.lax.rsqrt(var + eps) * g + b


# --------------------- fused tiled matmul (LN-prologue / bias / GELU / residual / LN-epilogue) ---------------------

def _matmul_kernel(*refs, act, has_residual, has_ln_in, has_ln_out, single_k, eps):
    it = iter(refs)
    x_ref = next(it)
    w_ref = next(it)
    b_ref = next(it)
    gin_ref = bin_ref = gout_ref = bout_ref = r_ref = None
    if has_ln_in:
        gin_ref, bin_ref = next(it), next(it)
    if has_ln_out:
        gout_ref, bout_ref = next(it), next(it)
    if has_residual:
        r_ref = next(it)
    o_ref = next(it)
    acc_ref = None if single_k else next(it)

    # prologue: optional LayerNorm over the (full, un-padded) K row, f32 vector math
    if has_ln_in:
        x = _ln_rows(x_ref[...].astype(jnp.float32),
                     gin_ref[...].astype(jnp.float32),
                     bin_ref[...].astype(jnp.float32), eps)
        xb = x.astype(jnp.bfloat16)
    else:
        xb = x_ref[...].astype(jnp.bfloat16)

    # bf16 MXU operands, f32 accumulation
    part = jnp.dot(xb, w_ref[...].astype(jnp.bfloat16), preferred_element_type=jnp.float32)

    def epilogue(acc):
        out = acc + b_ref[...].astype(jnp.float32)
        if act == "gelu":
            # tanh-approximate GELU (see TODO(synk) above); f32 on the VPU/EUP
            c = jnp.float32(math.sqrt(2.0 / math.pi))
            out = 0.5 * out * (1.0 + jnp.tanh(c * (out + 0.044715 * out * out * out)))
        if has_residual:
            out = out + r_ref[...].astype(jnp.float32)
        if has_ln_out:
            out = _ln_rows(out, gout_ref[...].astype(jnp.float32),
                           bout_ref[...].astype(jnp.float32), eps)
        o_ref[...] = out.astype(o_ref.dtype)

    if single_k:
        epilogue(part)
    else:
        k = pl.program_id(2)

        @pl.when(k == 0)
        def _():
            acc_ref[...] = jnp.zeros_like(acc_ref)

        acc_ref[...] += part

        @pl.when(k == pl.num_programs(2) - 1)
        def _():
            epilogue(acc_ref[...])


def matmul_bias(x, w, b=None, act=None, residual=None, ln_in=None, ln_out=None,
                out_dtype=jnp.bfloat16, tile_m=512, tile_n=1024, tile_k=1024, eps=1e-6):
    """y = epilogue(prologue(x) @ w).

    x: (M, K), w: (K, N), b: (N,)|None, residual: (M, N)|None,
    ln_in/ln_out: (gamma, beta) tuples for a fused row-LayerNorm on the input (over K) or on the
    output (over N, SAM LayerNorm2d). Inputs may be bf16 or f32; output dtype is `out_dtype`.
    Grid is (M/tm, N/tn, K/tk); the f32 accumulator scratch only exists when K spans >1 block."""
    M, K = x.shape
    K2, N = w.shape
    assert K == K2

    tm = min(tile_m, _round_up(M, 8))
    tn = min(tile_n, _round_up(N, 128))
    Kp = _round_up(K, 128)
    if ln_in is not None:
        assert K % 128 == 0, "ln_in fusion needs un-padded K (multiple of 128)"
        tk = Kp
    else:
        tk = _pick_tile(Kp, tile_k, 128)
    if ln_out is not None:
        assert N % 128 == 0, "ln_out fusion needs un-padded N (multiple of 128)"
        tn = N
    Mp, Np = _round_up(M, tm), _round_up(N, tn)
    single_k = (Kp == tk)

    xp = _pad2(x, Mp, Kp)
    wp = _pad2(w, Kp, Np)
    if b is None:
        bp = jnp.zeros((1, Np), jnp.float32)
    else:
        bp = _pad2(b.reshape(1, N).astype(jnp.float32), 1, Np)

    args = [xp, wp, bp]
    in_specs = [
        pl.BlockSpec((tm, tk), lambda i, j, k: (i, k)),
        pl.BlockSpec((tk, tn), lambda i, j, k: (k, j)),
        pl.BlockSpec((1, tn), lambda i, j, k: (0, j)),
    ]
    if ln_in is not None:
        g, bb = ln_in
        args += [g.reshape(1, K).astype(jnp.float32), bb.reshape(1, K).astype(jnp.float32)]
        in_specs += [pl.BlockSpec((1, tk), lambda i, j, k: (0, k))] * 2
    if ln_out is not None:
        g, bb = ln_out
        args += [g.reshape(1, N).astype(jnp.float32), bb.reshape(1, N).astype(jnp.float32)]
        in_specs += [pl.BlockSpec((1, tn), lambda i, j, k: (0, j))] * 2
    if residual is not None:
        args.append(_pad2(residual, Mp, Np))
        in_specs.append(pl.BlockSpec((tm, tn), lambda i, j, k: (i, j)))

    grid_spec = pltpu.PrefetchScalarGridSpec(
        num_scalar_prefetch=0,
        grid=(Mp // tm, Np // tn, Kp // tk),
        in_specs=in_specs,
        out_specs=pl.BlockSpec((tm, tn), lambda i, j, k: (i, j)),
        scratch_shapes=[] if single_k else [pltpu.VMEM((tm, tn), jnp.float32)],
    )
    out = pl.pallas_call(
        functools.partial(_matmul_kernel, act=act,
                          has_residual=residual is not None,
                          has_ln_in=ln_in is not None,
                          has_ln_out=ln_out is not None,
                          single_k=single_k, eps=eps),
        out_shape=jax.ShapeDtypeStruct((Mp, Np), out_dtype),
        grid_spec=grid_spec,
        compiler_params=pltpu.CompilerParams(
            dimension_semantics=("parallel", "parallel", "arbitrary"),
            vmem_limit_bytes=_VMEM_LIMIT),
    )(*args)
    if (Mp, Np) != (M, N):
        out = out[:M, :N]
    return out


# --------------------- flash attention straight from the fused qkv buffer ---------------------

def _flash_attn_kernel(q_ref, k_ref, v_ref, o_ref, m_ref, l_ref, acc_ref, *, G, dh):
    ki = pl.program_id(3)

    @pl.when(ki == 0)
    def _():
        m_ref[...] = jnp.full_like(m_ref, -jnp.inf)
        l_ref[...] = jnp.zeros_like(l_ref)
        acc_ref[...] = jnp.zeros_like(acc_ref)

    # 1/sqrt(dh) is already folded into the qkv weights/bias; blocks arrive in bf16.
    q = q_ref[0].astype(jnp.bfloat16)   # (tq, G*dh)
    k = k_ref[0].astype(jnp.bfloat16)   # (tkv, G*dh)
    v = v_ref[0].astype(jnp.bfloat16)   # (tkv, G*dh)

    for g in range(G):                  # static unroll over packed heads
        lo, hi = g * dh, (g + 1) * dh
        # q @ k.T without an explicit transpose; bf16 MXU, f32 accumulation
        s = jax.lax.dot_general(q[:, lo:hi], k[:, lo:hi], (((1,), (1,)), ((), ())),
                                preferred_element_type=jnp.float32)       # (tq, tkv)
        m_prev = m_ref[:, g:g + 1]                                        # (tq, 1)
        m_new = jnp.maximum(m_prev, jnp.max(s, axis=-1, keepdims=True))
        alpha = jnp.exp(m_prev - m_new)
        p = jnp.exp(s - m_new)
        l_ref[:, g:g + 1] = alpha * l_ref[:, g:g + 1] + jnp.sum(p, axis=-1, keepdims=True)
        acc_ref[:, lo:hi] = alpha * acc_ref[:, lo:hi] + jnp.dot(
            p.astype(jnp.bfloat16), v[:, lo:hi], preferred_element_type=jnp.float32)
        m_ref[:, g:g + 1] = m_new

    @pl.when(ki == pl.num_programs(3) - 1)
    def _():
        for g in range(G):
            lo, hi = g * dh, (g + 1) * dh
            inv = pl.reciprocal(l_ref[:, g:g + 1], approx=True)
            o_ref[0, :, lo:hi] = (acc_ref[:, lo:hi] * inv).astype(o_ref.dtype)


def attention_qkv(qkv, B, T, num_heads, dh, *, q_tile=512, kv_tile=512):
    """qkv: (B*T, 3*D) fused projection (bf16) -> (B*T, D) bf16 attention output.

    q/k/v blocks are read directly out of the fused buffer via index_map column offsets
    (component c, head-group hg -> column block c*HG + hg); output is written directly in
    (B, T, D) layout for the following proj matmul. Heads are packed into 128-lane groups."""
    D = num_heads * dh
    G = min(max(1, 128 // dh), num_heads)
    while num_heads % G != 0:
        G -= 1
    HG = num_heads // G
    gd = G * dh

    tq = q_tile if (T % q_tile == 0) else T
    tkv = kv_tile if (T % kv_tile == 0) else T
    tq, tkv = min(tq, T), min(tkv, T)

    qkv3 = qkv.reshape(B, T, 3 * D)
    grid = (B, HG, T // tq, T // tkv)

    grid_spec = pltpu.PrefetchScalarGridSpec(
        num_scalar_prefetch=0,
        grid=grid,
        in_specs=[
            pl.BlockSpec((1, tq, gd), lambda b, hg, qi, ki: (b, qi, hg)),
            pl.BlockSpec((1, tkv, gd), lambda b, hg, qi, ki: (b, ki, HG + hg)),
            pl.BlockSpec((1, tkv, gd), lambda b, hg, qi, ki: (b, ki, 2 * HG + hg)),
        ],
        out_specs=pl.BlockSpec((1, tq, gd), lambda b, hg, qi, ki: (b, qi, hg)),
        scratch_shapes=[
            pltpu.VMEM((tq, G), jnp.float32),      # m (running max per head)
            pltpu.VMEM((tq, G), jnp.float32),      # l (running denom per head)
            pltpu.VMEM((tq, gd), jnp.float32),     # acc (lane-dense: gd == 128)
        ],
    )
    out = pl.pallas_call(
        functools.partial(_flash_attn_kernel, G=G, dh=dh),
        out_shape=jax.ShapeDtypeStruct((B, T, D), jnp.bfloat16),
        grid_spec=grid_spec,
        compiler_params=pltpu.CompilerParams(
            dimension_semantics=("parallel", "parallel", "parallel", "arbitrary"),
            vmem_limit_bytes=_VMEM_LIMIT),
    )(qkv3, qkv3, qkv3)
    return out.reshape(B * T, D)


# --------------------- parameters (synthetic) ---------------------

def init_params(key, *, in_chans, ps, bsize, nout, dim, depth, num_heads, neck_chans):
    Hp = bsize // ps
    T = Hp * Hp
    hidden = 4 * dim
    dh = dim // num_heads
    ks = jax.random.split(key, 8 + depth)
    std = 0.02

    def w(k, shape):
        # weights stored in bf16 for the MXU; accumulation stays f32 in-kernel
        return (std * jax.random.normal(k, shape)).astype(jnp.bfloat16)

    p = {
        "patch_w": w(ks[0], (in_chans * ps * ps, dim)),
        "patch_b": jnp.zeros((dim,), jnp.float32),
        "pos_embed": (std * jax.random.normal(ks[1], (T, dim))).astype(jnp.bfloat16),
        "neck_conv1_w": w(ks[2], (dim, neck_chans)),
        "neck_ln1_g": jnp.ones((neck_chans,), jnp.float32),
        "neck_ln1_b": jnp.zeros((neck_chans,), jnp.float32),
        "neck_conv2_w": w(ks[3], (9, neck_chans, neck_chans)),   # tap t=dy*3+dx: (in, out)
        "neck_ln2_g": jnp.ones((neck_chans,), jnp.float32),
        "neck_ln2_b": jnp.zeros((neck_chans,), jnp.float32),
        "out_w": w(ks[4], (neck_chans, nout * ps * ps)),
        "out_b": jnp.zeros((nout * ps * ps,), jnp.float32),
        "blocks": [],
    }
    scale = 1.0 / math.sqrt(dh)
    for d in range(depth):
        bk = jax.random.split(ks[8 + d], 4)
        qkv_w = w(bk[0], (dim, 3 * dim))
        qkv_b = jnp.zeros((3 * dim,), jnp.float32)
        # fold the 1/sqrt(dh) attention scale into the q columns at parameter-prep time (free)
        qkv_w = qkv_w.at[:, :dim].multiply(scale)
        qkv_b = qkv_b.at[:dim].multiply(scale)
        p["blocks"].append({
            "ln1_g": jnp.ones((dim,), jnp.float32),
            "ln1_b": jnp.zeros((dim,), jnp.float32),
            "qkv_w": qkv_w,
            "qkv_b": qkv_b,
            "proj_w": w(bk[1], (dim, dim)),
            "proj_b": jnp.zeros((dim,), jnp.float32),
            "ln2_g": jnp.ones((dim,), jnp.float32),
            "ln2_b": jnp.zeros((dim,), jnp.float32),
            "fc1_w": w(bk[2], (dim, 4 * dim)),
            "fc1_b": jnp.zeros((4 * dim,), jnp.float32),
            "fc2_w": w(bk[3], (4 * dim, dim)),
            "fc2_b": jnp.zeros((dim,), jnp.float32),
        })
    return p


# --------------------- model (glue in plain JAX) ---------------------

def cellpose_sam_forward(params, x, *, cfg):
    """x: NCHW (B, 3, bsize, bsize) float32 -> (B, nout, bsize, bsize) float32."""
    ps, nout, num_heads = cfg["ps"], cfg["nout"], cfg["num_heads"]
    B, C, H, W = x.shape
    Hp, Wp = H // ps, W // ps
    T = Hp * Wp

    # patch embedding (Conv2d stride=ps as matmul); pos_embed add fused as the residual input
    xp = x.reshape(B, C, Hp, ps, Wp, ps).transpose(0, 2, 4, 1, 3, 5).reshape(B * T, C * ps * ps)
    D = params["pos_embed"].shape[-1]
    pos = jnp.broadcast_to(params["pos_embed"][None], (B, T, D)).reshape(B * T, D)
    tok = matmul_bias(xp, params["patch_w"], params["patch_b"], residual=pos)   # (B*T, D) bf16
    dh = D // num_heads

    # transformer blocks (pre-LN, global MHSA + MLP); LN fused into qkv/fc1 prologues,
    # GELU + residual adds fused into matmul epilogues; activations stay bf16 in HBM
    for blk in params["blocks"]:
        qkv = matmul_bias(tok, blk["qkv_w"], blk["qkv_b"],
                          ln_in=(blk["ln1_g"], blk["ln1_b"]))                   # (B*T, 3D)
        o = attention_qkv(qkv, B, T, num_heads, dh)                             # (B*T, D)
        tok = matmul_bias(o, blk["proj_w"], blk["proj_b"], residual=tok)

        h = matmul_bias(tok, blk["fc1_w"], blk["fc1_b"], act="gelu",
                        ln_in=(blk["ln2_g"], blk["ln2_b"]))                     # (B*T, 4D)
        tok = matmul_bias(h, blk["fc2_w"], blk["fc2_b"], residual=tok)

    # SAM-style neck: 1x1 conv + channel-LN fused; 3x3 conv (pad=1, no bias) + channel-LN via a
    # host-side 9-tap im2col (tiny: ~9x a (T, Cn) bf16 map) feeding the same fused matmul kernel.
    f = matmul_bias(tok, params["neck_conv1_w"], None,
                    ln_out=(params["neck_ln1_g"], params["neck_ln1_b"]))        # (B*T, Cn)
    Cn = f.shape[-1]
    fpad = jnp.pad(f.reshape(B, Hp, Wp, Cn), ((0, 0), (1, 1), (1, 1), (0, 0)))
    cols = [fpad[:, dy:dy + Hp, dx:dx + Wp, :] for dy in range(3) for dx in range(3)]
    im2col = jnp.concatenate(cols, axis=-1).reshape(B * T, 9 * Cn)
    f2 = matmul_bias(im2col, params["neck_conv2_w"].reshape(9 * Cn, Cn), None,
                     ln_out=(params["neck_ln2_g"], params["neck_ln2_b"]))       # (B*T, Cn)

    # output head: 1x1 conv Cn -> nout*ps^2, then pixel-shuffle to full resolution (f32 out)
    y = matmul_bias(f2, params["out_w"], params["out_b"], out_dtype=jnp.float32)
    y = y.reshape(B, Hp, Wp, nout, ps, ps).transpose(0, 3, 1, 4, 2, 5).reshape(B, nout, H, W)

    feats = f2.reshape(B, Hp, Wp, Cn).transpose(0, 3, 1, 2)                     # (B, Cn, Hp, Wp)
    # The underlying Transformer returns a tuple; CellposeSam.forward takes element [0].
    return y, feats


def cellpose_sam_apply(params, x, *, cfg):
    return cellpose_sam_forward(params, x, cfg=cfg)[0]


# --------------------- demo ---------------------

if __name__ == "__main__":
    # Small but structure-consistent config (module defaults: nout=5, ps=8, bsize=256,
    # ViT-L depth=24/dim=1024/heads=16 — scaled down here for a quick run).
    cfg = dict(in_chans=3, ps=8, bsize=64, nout=5, dim=128, depth=2, num_heads=2,
               neck_chans=128)

    key = jax.random.PRNGKey(0)
    pkey, xkey = jax.random.split(key)
    params = init_params(pkey, **cfg)

    B = 2
    x = jax.random.normal(xkey, (B, cfg["in_chans"], cfg["bsize"], cfg["bsize"]),
                          dtype=jnp.float32)

    fwd_cfg = dict(ps=cfg["ps"], nout=cfg["nout"], num_heads=cfg["num_heads"])
    fwd = jax.jit(functools.partial(cellpose_sam_apply, cfg=fwd_cfg))

    y = jax.block_until_ready(fwd(params, x))

    assert y.shape == (B, cfg["nout"], cfg["bsize"], cfg["bsize"]), y.shape
    assert y.dtype == jnp.float32
    assert bool(jnp.all(jnp.isfinite(y)))
    print("KERNEL_OK")
</pallas_src>

<mosaic_0001>
module attributes {stable_mosaic.version = 11 : i64} {
  func.func @_matmul_kernel(%arg0: i32, %arg1: i32, %arg2: i32, %arg3: memref<128x256xf32, #tpu.memory_space<vmem>>, %arg4: memref<256x128xbf16, #tpu.memory_space<vmem>>, %arg5: memref<1x128xf32, #tpu.memory_space<vmem>>, %arg6: memref<128x128xbf16, #tpu.memory_space<vmem>>, %arg7: memref<128x128xbf16, #tpu.memory_space<vmem>>) attributes {dimension_semantics = [#tpu.dimension_semantics<parallel>, #tpu.dimension_semantics<parallel>, #tpu.dimension_semantics<arbitrary>], iteration_bounds = array<i64: 1, 1, 1>, scalar_prefetch = 0 : i64, scratch_operands = 0 : i64, tpu.core_type = #tpu.core_type<tc>, window_params = [{transform_indices = @transform_0, window_bounds = array<i64: 128, 256>}, {transform_indices = @transform_1, window_bounds = array<i64: 256, 128>}, {transform_indices = @transform_2, window_bounds = array<i64: 1, 128>}, {transform_indices = @transform_3, window_bounds = array<i64: 128, 128>}, {transform_indices = @transform_4, window_bounds = array<i64: 128, 128>}]} {
    %c0 = arith.constant 0 : index
    %c0_0 = arith.constant 0 : index
    %0 = vector.load %arg3[%c0, %c0_0] : memref<128x256xf32, #tpu.memory_space<vmem>>, vector<128x256xf32>
    %1 = arith.truncf %0 : vector<128x256xf32> to vector<128x256xbf16>
    %c0_1 = arith.constant 0 : index
    %c0_2 = arith.constant 0 : index
    %2 = vector.load %arg4[%c0_1, %c0_2] : memref<256x128xbf16, #tpu.memory_space<vmem>>, vector<256x128xbf16>
    %cst = arith.constant dense<0.000000e+00> : vector<128x128xf32>
    %3 = tpu.matmul %1, %2, %cst {dimension_numbers = #tpu.dot_dimension_numbers<[1], [0], [0], [1], [0, 0, 1, 1], [], []>} : vector<128x256xbf16>, vector<256x128xbf16>, vector<128x128xf32> -> vector<128x128xf32>
    %c0_3 = arith.constant 0 : index
    %c0_4 = arith.constant 0 : index
    %4 = vector.load %arg5[%c0_3, %c0_4] : memref<1x128xf32, #tpu.memory_space<vmem>>, vector<1x128xf32>
    %5 = vector.broadcast %4 : vector<1x128xf32> to vector<128x128xf32>
    %6 = arith.addf %3, %5 : vector<128x128xf32>
    %c0_5 = arith.constant 0 : index
    %c0_6 = arith.constant 0 : index
    %7 = vector.load %arg6[%c0_5, %c0_6] : memref<128x128xbf16, #tpu.memory_space<vmem>>, vector<128x128xbf16>
    %8 = arith.extf %7 : vector<128x128xbf16> to vector<128x128xf32>
    %9 = arith.addf %6, %8 : vector<128x128xf32>
    %10 = arith.truncf %9 : vector<128x128xf32> to vector<128x128xbf16>
    %c0_7 = arith.constant 0 : index
    %c0_8 = arith.constant 0 : index
    %11 = vector.load %arg7[%c0_7, %c0_8] : memref<128x128xbf16, #tpu.memory_space<vmem>>, vector<128x128xbf16>
    tpu.vector_store %arg7[%c0_7, %c0_8], %10 {strides = array<i32>} : memref<128x128xbf16, #tpu.memory_space<vmem>>, vector<128x128xbf16>,
    return
  }
  func.func @transform_0(%arg0: i32, %arg1: i32, %arg2: i32) -> (i32, i32) {
    %c0_i32 = arith.constant 0 : i32
    return %arg0, %arg2 : i32, i32
  }
  func.func @transform_1(%arg0: i32, %arg1: i32, %arg2: i32) -> (i32, i32) {
    %c0_i32 = arith.constant 0 : i32
    return %arg2, %arg1 : i32, i32
  }
  func.func @transform_2(%arg0: i32, %arg1: i32, %arg2: i32) -> (i32, i32) {
    %c0_i32 = arith.constant 0 : i32
    %c0_i32_0 = arith.constant 0 : i32
    return %c0_i32, %arg1 : i32, i32
  }
  func.func @transform_3(%arg0: i32, %arg1: i32, %arg2: i32) -> (i32, i32) {
    %c0_i32 = arith.constant 0 : i32
    return %arg0, %arg1 : i32, i32
  }
  func.func @transform_4(%arg0: i32, %arg1: i32, %arg2: i32) -> (i32, i32) {
    %c0_i32 = arith.constant 0 : i32
    return %arg0, %arg1 : i32, i32
  }
}

module attributes {stable_mosaic.version = 11 : i64} {
  func.func @_matmul_kernel(%arg0: i32, %arg1: i32, %arg2: i32, %arg3: memref<128x128xbf16, #tpu.memory_space<vmem>>, %arg4: memref<128x384xbf16, #tpu.memory_space<vmem>>, %arg5: memref<1x384xf32, #tpu.memory_space<vmem>>, %arg6: memref<1x128xf32, #tpu.memory_space<vmem>>, %arg7: memref<1x128xf32, #tpu.memory_space<vmem>>, %arg8: memref<128x384xbf16, #tpu.memory_space<vmem>>) attributes {dimension_semantics = [#tpu.dimension_semantics<parallel>, #tpu.dimension_semantics<parallel>, #tpu.dimension_semantics<arbitrary>], iteration_bounds = array<i64: 1, 1, 1>, scalar_prefetch = 0 : i64, scratch_operands = 0 : i64, tpu.core_type = #tpu.core_type<tc>, window_params = [{transform_indices = @transform_0, window_bounds = array<i64: 128, 128>}, {transform_indices = @transform_1, window_bounds = array<i64: 128, 384>}, {transform_indices = @transform_2, window_bounds = array<i64: 1, 384>}, {transform_indices = @transform_3, window_bounds = array<i64: 1, 128>}, {transform_indices = @transform_4, window_bounds = array<i64: 1, 128>}, {transform_indices = @transform_5, window_bounds = array<i64: 128, 384>}]} {
    %c0 = arith.constant 0 : index
    %c0_0 = arith.constant 0 : index
    %0 = vector.load %arg3[%c0, %c0_0] : memref<128x128xbf16, #tpu.memory_space<vmem>>, vector<128x128xbf16>
    %1 = arith.extf %0 : vector<128x128xbf16> to vector<128x128xf32>
    %c0_1 = arith.constant 0 : index
    %c0_2 = arith.constant 0 : index
    %2 = vector.load %arg6[%c0_1, %c0_2] : memref<1x128xf32, #tpu.memory_space<vmem>>, vector<1x128xf32>
    %c0_3 = arith.constant 0 : index
    %c0_4 = arith.constant 0 : index
    %3 = vector.load %arg7[%c0_3, %c0_4] : memref<1x128xf32, #tpu.memory_space<vmem>>, vector<1x128xf32>
    %cst = arith.constant dense<0.000000e+00> : vector<128xf32>
    %4 = vector.multi_reduction <add>, %1, %cst [1] : vector<128x128xf32> to vector<128xf32>
    %5 = vector.shape_cast %4 : vector<128xf32> to vector<128x1xf32>
    %cst_5 = arith.constant 1.280000e+02 : f32
    %6 = vector.broadcast %cst_5 : f32 to vector<128x1xf32>
    %7 = arith.divf %5, %6 : vector<128x1xf32>
    %8 = vector.broadcast %7 : vector<128x1xf32> to vector<128x128xf32>
    %9 = arith.subf %1, %8 : vector<128x128xf32>
    %10 = arith.mulf %9, %9 : vector<128x128xf32>
    %cst_6 = arith.constant dense<0.000000e+00> : vector<128xf32>
    %11 = vector.multi_reduction <add>, %10, %cst_6 [1] : vector<128x128xf32> to vector<128xf32>
    %12 = vector.shape_cast %11 : vector<128xf32> to vector<128x1xf32>
    %cst_7 = arith.constant 1.280000e+02 : f32
    %13 = vector.broadcast %cst_7 : f32 to vector<128x1xf32>
    %14 = arith.divf %12, %13 : vector<128x1xf32>
    %15 = vector.broadcast %7 : vector<128x1xf32> to vector<128x128xf32>
    %16 = arith.subf %1, %15 : vector<128x128xf32>
    %cst_8 = arith.constant 9.99999997E-7 : f32
    %17 = vector.broadcast %cst_8 : f32 to vector<128x1xf32>
    %18 = arith.addf %14, %17 : vector<128x1xf32>
    %19 = math.rsqrt %18 : vector<128x1xf32>
    %20 = vector.broadcast %19 : vector<128x1xf32> to vector<128x128xf32>
    %21 = arith.mulf %16, %20 : vector<128x128xf32>
    %22 = vector.broadcast %2 : vector<1x128xf32> to vector<128x128xf32>
    %23 = arith.mulf %21, %22 : vector<128x128xf32>
    %24 = vector.broadcast %3 : vector<1x128xf32> to vector<128x128xf32>
    %25 = arith.addf %23, %24 : vector<128x128xf32>
    %26 = arith.truncf %25 : vector<128x128xf32> to vector<128x128xbf16>
    %c0_9 = arith.constant 0 : index
    %c0_10 = arith.constant 0 : index
    %27 = vector.load %arg4[%c0_9, %c0_10] : memref<128x384xbf16, #tpu.memory_space<vmem>>, vector<128x384xbf16>
    %cst_11 = arith.constant dense<0.000000e+00> : vector<128x384xf32>
    %28 = tpu.matmul %26, %27, %cst_11 {dimension_numbers = #tpu.dot_dimension_numbers<[1], [0], [0], [1], [0, 0, 1, 1], [], []>} : vector<128x128xbf16>, vector<128x384xbf16>, vector<128x384xf32> -> vector<128x384xf32>
    %c0_12 = arith.constant 0 : index
    %c0_13 = arith.constant 0 : index
    %29 = vector.load %arg5[%c0_12, %c0_13] : memref<1x384xf32, #tpu.memory_space<vmem>>, vector<1x384xf32>
    %30 = vector.broadcast %29 : vector<1x384xf32> to vector<128x384xf32>
    %31 = arith.addf %28, %30 : vector<128x384xf32>
    %32 = arith.truncf %31 : vector<128x384xf32> to vector<128x384xbf16>
    %c0_14 = arith.constant 0 : index
    %c0_15 = arith.constant 0 : index
    %33 = vector.load %arg8[%c0_14, %c0_15] : memref<128x384xbf16, #tpu.memory_space<vmem>>, vector<128x384xbf16>
    tpu.vector_store %arg8[%c0_14, %c0_15], %32 {strides = array<i32>} : memref<128x384xbf16, #tpu.memory_space<vmem>>, vector<128x384xbf16>,
    return
  }
  func.func @transform_0(%arg0: i32, %arg1: i32, %arg2: i32) -> (i32, i32) {
    %c0_i32 = arith.constant 0 : i32
    return %arg0, %arg2 : i32, i32
  }
  func.func @transform_1(%arg0: i32, %arg1: i32, %arg2: i32) -> (i32, i32) {
    %c0_i32 = arith.constant 0 : i32
    return %arg2, %arg1 : i32, i32
  }
  func.func @transform_2(%arg0: i32, %arg1: i32, %arg2: i32) -> (i32, i32) {
    %c0_i32 = arith.constant 0 : i32
    %c0_i32_0 = arith.constant 0 : i32
    return %c0_i32, %arg1 : i32, i32
  }
  func.func @transform_3(%arg0: i32, %arg1: i32, %arg2: i32) -> (i32, i32) {
    %c0_i32 = arith.constant 0 : i32
    %c0_i32_0 = arith.constant 0 : i32
    return %c0_i32, %arg2 : i32, i32
  }
  func.func @transform_4(%arg0: i32, %arg1: i32, %arg2: i32) -> (i32, i32) {
    %c0_i32 = arith.constant 0 : i32
    %c0_i32_0 = arith.constant 0 : i32
    return %c0_i32, %arg2 : i32, i32
  }
  func.func @transform_5(%arg0: i32, %arg1: i32, %arg2: i32) -> (i32, i32) {
    %c0_i32 = arith.constant 0 : i32
    return %arg0, %arg1 : i32, i32
  }
}

module attributes {stable_mosaic.version = 11 : i64} {
  func.func @_flash_attn_kernel(%arg0: i32, %arg1: i32, %arg2: i32, %arg3: i32, %arg4: memref<1x64x128xbf16, #tpu.memory_space<vmem>>, %arg5: memref<1x64x128xbf16, #tpu.memory_space<vmem>>, %arg6: memref<1x64x128xbf16, #tpu.memory_space<vmem>>, %arg7: memref<1x64x128xbf16, #tpu.memory_space<vmem>>, %arg8: memref<64x2xf32, #tpu.memory_space<vmem>>, %arg9: memref<64x2xf32, #tpu.memory_space<vmem>>, %arg10: memref<64x128xf32, #tpu.memory_space<vmem>>) attributes {dimension_semantics = [#tpu.dimension_semantics<parallel>, #tpu.dimension_semantics<parallel>, #tpu.dimension_semantics<parallel>, #tpu.dimension_semantics<arbitrary>], iteration_bounds = array<i64: 2, 1, 1, 1>, scalar_prefetch = 0 : i64, scratch_operands = 3 : i64, tpu.core_type = #tpu.core_type<tc>, window_params = [{transform_indices = @transform_0, window_bounds = array<i64: 1, 64, 128>}, {transform_indices = @transform_1, window_bounds = array<i64: 1, 64, 128>}, {transform_indices = @transform_2, window_bounds = array<i64: 1, 64, 128>}, {transform_indices = @transform_3, window_bounds = array<i64: 1, 64, 128>}]} {
    %c0_i32 = arith.constant 0 : i32
    %0 = arith.cmpi eq, %arg3, %c0_i32 : i32
    %1 = arith.extui %0 : i1 to i32
    %c0_i32_0 = arith.constant 0 : i32
    %2 = arith.cmpi ne, %1, %c0_i32_0 : i32
    scf.if %2 {
      %cst_40 = arith.constant 0xFF800000 : f32
      %66 = vector.broadcast %cst_40 : f32 to vector<64x2xf32>
      %c0_41 = arith.constant 0 : index
      %c0_42 = arith.constant 0 : index
      %67 = vector.load %arg8[%c0_41, %c0_42] : memref<64x2xf32, #tpu.memory_space<vmem>>, vector<64x2xf32>
      tpu.vector_store %arg8[%c0_41, %c0_42], %66 {strides = array<i32>} : memref<64x2xf32, #tpu.memory_space<vmem>>, vector<64x2xf32>,
      %cst_43 = arith.constant 0.000000e+00 : f32
      %68 = vector.broadcast %cst_43 : f32 to vector<64x2xf32>
      %c0_44 = arith.constant 0 : index
      %c0_45 = arith.constant 0 : index
      %69 = vector.load %arg9[%c0_44, %c0_45] : memref<64x2xf32, #tpu.memory_space<vmem>>, vector<64x2xf32>
      tpu.vector_store %arg9[%c0_44, %c0_45], %68 {strides = array<i32>} : memref<64x2xf32, #tpu.memory_space<vmem>>, vector<64x2xf32>,
      %cst_46 = arith.constant 0.000000e+00 : f32
      %70 = vector.broadcast %cst_46 : f32 to vector<64x128xf32>
      %c0_47 = arith.constant 0 : index
      %c0_48 = arith.constant 0 : index
      %71 = vector.load %arg10[%c0_47, %c0_48] : memref<64x128xf32, #tpu.memory_space<vmem>>, vector<64x128xf32>
      tpu.vector_store %arg10[%c0_47, %c0_48], %70 {strides = array<i32>} : memref<64x128xf32, #tpu.memory_space<vmem>>, vector<64x128xf32>,
    } else {
    }
    %c0 = arith.constant 0 : index
    %c0_1 = arith.constant 0 : index
    %c0_2 = arith.constant 0 : index
    %3 = vector.load %arg4[%c0, %c0_1, %c0_2] : memref<1x64x128xbf16, #tpu.memory_space<vmem>>, vector<1x64x128xbf16>
    %4 = vector.shape_cast %3 : vector<1x64x128xbf16> to vector<64x128xbf16>
    %c0_3 = arith.constant 0 : index
    %c0_4 = arith.constant 0 : index
    %c0_5 = arith.constant 0 : index
    %5 = vector.load %arg5[%c0_3, %c0_4, %c0_5] : memref<1x64x128xbf16, #tpu.memory_space<vmem>>, vector<1x64x128xbf16>
    %6 = vector.shape_cast %5 : vector<1x64x128xbf16> to vector<64x128xbf16>
    %c0_6 = arith.constant 0 : index
    %c0_7 = arith.constant 0 : index
    %c0_8 = arith.constant 0 : index
    %7 = vector.load %arg6[%c0_6, %c0_7, %c0_8] : memref<1x64x128xbf16, #tpu.memory_space<vmem>>, vector<1x64x128xbf16>
    %8 = vector.shape_cast %7 : vector<1x64x128xbf16> to vector<64x128xbf16>
    %9 = vector.extract_strided_slice %4 {offsets = [0, 0], sizes = [64, 64], strides = [1, 1]} : vector<64x128xbf16> to vector<64x64xbf16>
    %10 = vector.extract_strided_slice %6 {offsets = [0, 0], sizes = [64, 64], strides = [1, 1]} : vector<64x128xbf16> to vector<64x64xbf16>
    %cst = arith.constant dense<0.000000e+00> : vector<64x64xf32>
    %11 = tpu.matmul %9, %10, %cst {dimension_numbers = #tpu.dot_dimension_numbers<[1], [1], [0], [0], [0, 0, 1, 0], [], []>} : vector<64x64xbf16>, vector<64x64xbf16>, vector<64x64xf32> -> vector<64x64xf32>
    %c0_9 = arith.constant 0 : index
    %c0_10 = arith.constant 0 : index
    %12 = vector.load %arg8[%c0_9, %c0_10] : memref<64x2xf32, #tpu.memory_space<vmem>>, vector<64x1xf32>
    %cst_11 = arith.constant dense<0xFF800000> : vector<64xf32>
    %13 = vector.multi_reduction <maximumf>, %11, %cst_11 [1] : vector<64x64xf32> to vector<64xf32>
    %14 = vector.shape_cast %13 : vector<64xf32> to vector<64x1xf32>
    %15 = arith.maximumf %12, %14 : vector<64x1xf32>
    %16 = arith.subf %12, %15 : vector<64x1xf32>
    %17 = math.exp %16 : vector<64x1xf32>
    %18 = vector.broadcast %15 : vector<64x1xf32> to vector<64x64xf32>
    %19 = arith.subf %11, %18 : vector<64x64xf32>
    %20 = math.exp %19 : vector<64x64xf32>
    %c0_12 = arith.constant 0 : index
    %c0_13 = arith.constant 0 : index
    %21 = vector.load %arg9[%c0_12, %c0_13] : memref<64x2xf32, #tpu.memory_space<vmem>>, vector<64x1xf32>
    %22 = arith.mulf %17, %21 : vector<64x1xf32>
    %cst_14 = arith.constant dense<0.000000e+00> : vector<64xf32>
    %23 = vector.multi_reduction <add>, %20, %cst_14 [1] : vector<64x64xf32> to vector<64xf32>
    %24 = vector.shape_cast %23 : vector<64xf32> to vector<64x1xf32>
    %25 = arith.addf %22, %24 : vector<64x1xf32>
    %c0_15 = arith.constant 0 : index
    %c0_16 = arith.constant 0 : index
    %26 = vector.load %arg9[%c0_15, %c0_16] : memref<64x2xf32, #tpu.memory_space<vmem>>, vector<64x1xf32>
    tpu.vector_store %arg9[%c0_15, %c0_16], %25 {strides = array<i32>} : memref<64x2xf32, #tpu.memory_space<vmem>>, vector<64x1xf32>,
    %c0_17 = arith.constant 0 : index
    %c0_18 = arith.constant 0 : index
    %27 = vector.load %arg10[%c0_17, %c0_18] : memref<64x128xf32, #tpu.memory_space<vmem>>, vector<64x64xf32>
    %28 = vector.broadcast %17 : vector<64x1xf32> to vector<64x64xf32>
    %29 = arith.mulf %28, %27 : vector<64x64xf32>
    %30 = arith.truncf %20 : vector<64x64xf32> to vector<64x64xbf16>
    %31 = vector.extract_strided_slice %8 {offsets = [0, 0], sizes = [64, 64], strides = [1, 1]} : vector<64x128xbf16> to vector<64x64xbf16>
    %cst_19 = arith.constant dense<0.000000e+00> : vector<64x64xf32>
    %32 = tpu.matmul %30, %31, %cst_19 {dimension_numbers = #tpu.dot_dimension_numbers<[1], [0], [0], [1], [0, 0, 1, 1], [], []>} : vector<64x64xbf16>, vector<64x64xbf16>, vector<64x64xf32> -> vector<64x64xf32>
    %33 = arith.addf %29, %32 : vector<64x64xf32>
    %c0_20 = arith.constant 0 : index
    %c0_21 = arith.constant 0 : index
    %34 = vector.load %arg10[%c0_20, %c0_21] : memref<64x128xf32, #tpu.memory_space<vmem>>, vector<64x64xf32>
    tpu.vector_store %arg10[%c0_20, %c0_21], %33 {strides = array<i32>} : memref<64x128xf32, #tpu.memory_space<vmem>>, vector<64x64xf32>,
    %c0_22 = arith.constant 0 : index
    %c0_23 = arith.constant 0 : index
    %35 = vector.load %arg8[%c0_22, %c0_23] : memref<64x2xf32, #tpu.memory_space<vmem>>, vector<64x1xf32>
    tpu.vector_store %arg8[%c0_22, %c0_23], %15 {strides = array<i32>} : memref<64x2xf32, #tpu.memory_space<vmem>>, vector<64x1xf32>,
    %36 = vector.extract_strided_slice %4 {offsets = [0, 64], sizes = [64, 64], strides = [1, 1]} : vector<64x128xbf16> to vector<64x64xbf16>
    %37 = vector.extract_strided_slice %6 {offsets = [0, 64], sizes = [64, 64], strides = [1, 1]} : vector<64x128xbf16> to vector<64x64xbf16>
    %cst_24 = arith.constant dense<0.000000e+00> : vector<64x64xf32>
    %38 = tpu.matmul %36, %37, %cst_24 {dimension_numbers = #tpu.dot_dimension_numbers<[1], [1], [0], [0], [0, 0, 1, 0], [], []>} : vector<64x64xbf16>, vector<64x64xbf16>, vector<64x64xf32> -> vector<64x64xf32>
    %c0_25 = arith.constant 0 : index
    %c1 = arith.constant 1 : index
    %39 = vector.load %arg8[%c0_25, %c1] : memref<64x2xf32, #tpu.memory_space<vmem>>, vector<64x1xf32>
    %cst_26 = arith.constant dense<0xFF800000> : vector<64xf32>
    %40 = vector.multi_reduction <maximumf>, %38, %cst_26 [1] : vector<64x64xf32> to vector<64xf32>
    %41 = vector.shape_cast %40 : vector<64xf32> to vector<64x1xf32>
    %42 = arith.maximumf %39, %41 : vector<64x1xf32>
    %43 = arith.subf %39, %42 : vector<64x1xf32>
    %44 = math.exp %43 : vector<64x1xf32>
    %45 = vector.broadcast %42 : vector<64x1xf32> to vector<64x64xf32>
    %46 = arith.subf %38, %45 : vector<64x64xf32>
    %47 = math.exp %46 : vector<64x64xf32>
    %c0_27 = arith.constant 0 : index
    %c1_28 = arith.constant 1 : index
    %48 = vector.load %arg9[%c0_27, %c1_28] : memref<64x2xf32, #tpu.memory_space<vmem>>, vector<64x1xf32>
    %49 = arith.mulf %44, %48 : vector<64x1xf32>
    %cst_29 = arith.constant dense<0.000000e+00> : vector<64xf32>
    %50 = vector.multi_reduction <add>, %47, %cst_29 [1] : vector<64x64xf32> to vector<64xf32>
    %51 = vector.shape_cast %50 : vector<64xf32> to vector<64x1xf32>
    %52 = arith.addf %49, %51 : vector<64x1xf32>
    %c0_30 = arith.constant 0 : index
    %c1_31 = arith.constant 1 : index
    %53 = vector.load %arg9[%c0_30, %c1_31] : memref<64x2xf32, #tpu.memory_space<vmem>>, vector<64x1xf32>
    tpu.vector_store %arg9[%c0_30, %c1_31], %52 {strides = array<i32>} : memref<64x2xf32, #tpu.memory_space<vmem>>, vector<64x1xf32>,
    %c0_32 = arith.constant 0 : index
    %c64 = arith.constant 64 : index
    %54 = vector.load %arg10[%c0_32, %c64] : memref<64x128xf32, #tpu.memory_space<vmem>>, vector<64x64xf32>
    %55 = vector.broadcast %44 : vector<64x1xf32> to vector<64x64xf32>
    %56 = arith.mulf %55, %54 : vector<64x64xf32>
    %57 = arith.truncf %47 : vector<64x64xf32> to vector<64x64xbf16>
    %58 = vector.extract_strided_slice %8 {offsets = [0, 64], sizes = [64, 64], strides = [1, 1]} : vector<64x128xbf16> to vector<64x64xbf16>
    %cst_33 = arith.constant dense<0.000000e+00> : vector<64x64xf32>
    %59 = tpu.matmul %57, %58, %cst_33 {dimension_numbers = #tpu.dot_dimension_numbers<[1], [0], [0], [1], [0, 0, 1, 1], [], []>} : vector<64x64xbf16>, vector<64x64xbf16>, vector<64x64xf32> -> vector<64x64xf32>
    %60 = arith.addf %56, %59 : vector<64x64xf32>
    %c0_34 = arith.constant 0 : index
    %c64_35 = arith.constant 64 : index
    %61 = vector.load %arg10[%c0_34, %c64_35] : memref<64x128xf32, #tpu.memory_space<vmem>>, vector<64x64xf32>
    tpu.vector_store %arg10[%c0_34, %c64_35], %60 {strides = array<i32>} : memref<64x128xf32, #tpu.memory_space<vmem>>, vector<64x64xf32>,
    %c0_36 = arith.constant 0 : index
    %c1_37 = arith.constant 1 : index
    %62 = vector.load %arg8[%c0_36, %c1_37] : memref<64x2xf32, #tpu.memory_space<vmem>>, vector<64x1xf32>
    tpu.vector_store %arg8[%c0_36, %c1_37], %42 {strides = array<i32>} : memref<64x2xf32, #tpu.memory_space<vmem>>, vector<64x1xf32>,
    %c0_i32_38 = arith.constant 0 : i32
    %63 = arith.cmpi eq, %arg3, %c0_i32_38 : i32
    %64 = arith.extui %63 : i1 to i32
    %c0_i32_39 = arith.constant 0 : i32
    %65 = arith.cmpi ne, %64, %c0_i32_39 : i32
    scf.if %65 {
      %c0_40 = arith.constant 0 : index
      %c0_41 = arith.constant 0 : index
      %66 = vector.load %arg9[%c0_40, %c0_41] : memref<64x2xf32, #tpu.memory_space<vmem>>, vector<64x1xf32>
      %67 = tpu.reciprocal %66 {approx = true} : vector<64x1xf32> -> vector<64x1xf32>
      %c0_42 = arith.constant 0 : index
      %c0_43 = arith.constant 0 : index
      %68 = vector.load %arg10[%c0_42, %c0_43] : memref<64x128xf32, #tpu.memory_space<vmem>>, vector<64x64xf32>
      %69 = vector.broadcast %67 : vector<64x1xf32> to vector<64x64xf32>
      %70 = arith.mulf %68, %69 : vector<64x64xf32>
      %71 = arith.truncf %70 : vector<64x64xf32> to vector<64x64xbf16>
      %c0_44 = arith.constant 0 : index
      %c0_45 = arith.constant 0 : index
      %c0_46 = arith.constant 0 : index
      %72 = vector.load %arg7[%c0_44, %c0_45, %c0_46] : memref<1x64x128xbf16, #tpu.memory_space<vmem>>, vector<1x64x64xbf16>
      %73 = vector.shape_cast %72 : vector<1x64x64xbf16> to vector<64x64xbf16>
      %74 = vector.shape_cast %71 : vector<64x64xbf16> to vector<1x64x64xbf16>
      tpu.vector_store %arg7[%c0_44, %c0_45, %c0_46], %74 {strides = array<i32>} : memref<1x64x128xbf16, #tpu.memory_space<vmem>>, vector<1x64x64xbf16>,
      %c0_47 = arith.constant 0 : index
      %c1_48 = arith.constant 1 : index
      %75 = vector.load %arg9[%c0_47, %c1_48] : memref<64x2xf32, #tpu.memory_space<vmem>>, vector<64x1xf32>
      %76 = tpu.reciprocal %75 {approx = true} : vector<64x1xf32> -> vector<64x1xf32>
      %c0_49 = arith.constant 0 : index
      %c64_50 = arith.constant 64 : index
      %77 = vector.load %arg10[%c0_49, %c64_50] : memref<64x128xf32, #tpu.memory_space<vmem>>, vector<64x64xf32>
      %78 = vector.broadcast %76 : vector<64x1xf32> to vector<64x64xf32>
      %79 = arith.mulf %77, %78 : vector<64x64xf32>
      %80 = arith.truncf %79 : vector<64x64xf32> to vector<64x64xbf16>
      %c0_51 = arith.constant 0 : index
      %c0_52 = arith.constant 0 : index
      %c64_53 = arith.constant 64 : index
      %81 = vector.load %arg7[%c0_51, %c0_52, %c64_53] : memref<1x64x128xbf16, #tpu.memory_space<vmem>>, vector<1x64x64xbf16>
      %82 = vector.shape_cast %81 : vector<1x64x64xbf16> to vector<64x64xbf16>
      %83 = vector.shape_cast %80 : vector<64x64xbf16> to vector<1x64x64xbf16>
      tpu.vector_store %arg7[%c0_51, %c0_52, %c64_53], %83 {strides = array<i32>} : memref<1x64x128xbf16, #tpu.memory_space<vmem>>, vector<1x64x64xbf16>,
    } else {
    }
    return
  }
  func.func @transform_0(%arg0: i32, %arg1: i32, %arg2: i32, %arg3: i32) -> (i32, i32, i32) {
    %c0_i32 = arith.constant 0 : i32
    return %arg0, %arg2, %arg1 : i32, i32, i32
  }
  func.func @transform_1(%arg0: i32, %arg1: i32, %arg2: i32, %arg3: i32) -> (i32, i32, i32) {
    %c1_i32 = arith.constant 1 : i32
    %0 = arith.addi %c1_i32, %arg1 : i32
    %c0_i32 = arith.constant 0 : i32
    return %arg0, %arg3, %0 : i32, i32, i32
  }
  func.func @transform_2(%arg0: i32, %arg1: i32, %arg2: i32, %arg3: i32) -> (i32, i32, i32) {
    %c2_i32 = arith.constant 2 : i32
    %0 = arith.addi %c2_i32, %arg1 : i32
    %c0_i32 = arith.constant 0 : i32
    return %arg0, %arg3, %0 : i32, i32, i32
  }
  func.func @transform_3(%arg0: i32, %arg1: i32, %arg2: i32, %arg3: i32) -> (i32, i32, i32) {
    %c0_i32 = arith.constant 0 : i32
    return %arg0, %arg2, %arg1 : i32, i32, i32
  }
}

module attributes {stable_mosaic.version = 11 : i64} {
  func.func @_matmul_kernel(%arg0: i32, %arg1: i32, %arg2: i32, %arg3: memref<128x128xbf16, #tpu.memory_space<vmem>>, %arg4: memref<128x128xbf16, #tpu.memory_space<vmem>>, %arg5: memref<1x128xf32, #tpu.memory_space<vmem>>, %arg6: memref<128x128xbf16, #tpu.memory_space<vmem>>, %arg7: memref<128x128xbf16, #tpu.memory_space<vmem>>) attributes {dimension_semantics = [#tpu.dimension_semantics<parallel>, #tpu.dimension_semantics<parallel>, #tpu.dimension_semantics<arbitrary>], iteration_bounds = array<i64: 1, 1, 1>, scalar_prefetch = 0 : i64, scratch_operands = 0 : i64, tpu.core_type = #tpu.core_type<tc>, window_params = [{transform_indices = @transform_0, window_bounds = array<i64: 128, 128>}, {transform_indices = @transform_1, window_bounds = array<i64: 128, 128>}, {transform_indices = @transform_2, window_bounds = array<i64: 1, 128>}, {transform_indices = @transform_3, window_bounds = array<i64: 128, 128>}, {transform_indices = @transform_4, window_bounds = array<i64: 128, 128>}]} {
    %c0 = arith.constant 0 : index
    %c0_0 = arith.constant 0 : index
    %0 = vector.load %arg3[%c0, %c0_0] : memref<128x128xbf16, #tpu.memory_space<vmem>>, vector<128x128xbf16>
    %c0_1 = arith.constant 0 : index
    %c0_2 = arith.constant 0 : index
    %1 = vector.load %arg4[%c0_1, %c0_2] : memref<128x128xbf16, #tpu.memory_space<vmem>>, vector<128x128xbf16>
    %cst = arith.constant dense<0.000000e+00> : vector<128x128xf32>
    %2 = tpu.matmul %0, %1, %cst {dimension_numbers = #tpu.dot_dimension_numbers<[1], [0], [0], [1], [0, 0, 1, 1], [], []>} : vector<128x128xbf16>, vector<128x128xbf16>, vector<128x128xf32> -> vector<128x128xf32>
    %c0_3 = arith.constant 0 : index
    %c0_4 = arith.constant 0 : index
    %3 = vector.load %arg5[%c0_3, %c0_4] : memref<1x128xf32, #tpu.memory_space<vmem>>, vector<1x128xf32>
    %4 = vector.broadcast %3 : vector<1x128xf32> to vector<128x128xf32>
    %5 = arith.addf %2, %4 : vector<128x128xf32>
    %c0_5 = arith.constant 0 : index
    %c0_6 = arith.constant 0 : index
    %6 = vector.load %arg6[%c0_5, %c0_6] : memref<128x128xbf16, #tpu.memory_space<vmem>>, vector<128x128xbf16>
    %7 = arith.extf %6 : vector<128x128xbf16> to vector<128x128xf32>
    %8 = arith.addf %5, %7 : vector<128x128xf32>
    %9 = arith.truncf %8 : vector<128x128xf32> to vector<128x128xbf16>
    %c0_7 = arith.constant 0 : index
    %c0_8 = arith.constant 0 : index
    %10 = vector.load %arg7[%c0_7, %c0_8] : memref<128x128xbf16, #tpu.memory_space<vmem>>, vector<128x128xbf16>
    tpu.vector_store %arg7[%c0_7, %c0_8], %9 {strides = array<i32>} : memref<128x128xbf16, #tpu.memory_space<vmem>>, vector<128x128xbf16>,
    return
  }
  func.func @transform_0(%arg0: i32, %arg1: i32, %arg2: i32) -> (i32, i32) {
    %c0_i32 = arith.constant 0 : i32
    return %arg0, %arg2 : i32, i32
  }
  func.func @transform_1(%arg0: i32, %arg1: i32, %arg2: i32) -> (i32, i32) {
    %c0_i32 = arith.constant 0 : i32
    return %arg2, %arg1 : i32, i32
  }
  func.func @transform_2(%arg0: i32, %arg1: i32, %arg2: i32) -> (i32, i32) {
    %c0_i32 = arith.constant 0 : i32
    %c0_i32_0 = arith.constant 0 : i32
    return %c0_i32, %arg1 : i32, i32
  }
  func.func @transform_3(%arg0: i32, %arg1: i32, %arg2: i32) -> (i32, i32) {
    %c0_i32 = arith.constant 0 : i32
    return %arg0, %arg1 : i32, i32
  }
  func.func @transform_4(%arg0: i32, %arg1: i32, %arg2: i32) -> (i32, i32) {
    %c0_i32 = arith.constant 0 : i32
    return %arg0, %arg1 : i32, i32
  }
}

module attributes {stable_mosaic.version = 11 : i64} {
  func.func @_matmul_kernel(%arg0: i32, %arg1: i32, %arg2: i32, %arg3: memref<128x128xbf16, #tpu.memory_space<vmem>>, %arg4: memref<128x512xbf16, #tpu.memory_space<vmem>>, %arg5: memref<1x512xf32, #tpu.memory_space<vmem>>, %arg6: memref<1x128xf32, #tpu.memory_space<vmem>>, %arg7: memref<1x128xf32, #tpu.memory_space<vmem>>, %arg8: memref<128x512xbf16, #tpu.memory_space<vmem>>) attributes {dimension_semantics = [#tpu.dimension_semantics<parallel>, #tpu.dimension_semantics<parallel>, #tpu.dimension_semantics<arbitrary>], iteration_bounds = array<i64: 1, 1, 1>, scalar_prefetch = 0 : i64, scratch_operands = 0 : i64, tpu.core_type = #tpu.core_type<tc>, window_params = [{transform_indices = @transform_0, window_bounds = array<i64: 128, 128>}, {transform_indices = @transform_1, window_bounds = array<i64: 128, 512>}, {transform_indices = @transform_2, window_bounds = array<i64: 1, 512>}, {transform_indices = @transform_3, window_bounds = array<i64: 1, 128>}, {transform_indices = @transform_4, window_bounds = array<i64: 1, 128>}, {transform_indices = @transform_5, window_bounds = array<i64: 128, 512>}]} {
    %c0 = arith.constant 0 : index
    %c0_0 = arith.constant 0 : index
    %0 = vector.load %arg3[%c0, %c0_0] : memref<128x128xbf16, #tpu.memory_space<vmem>>, vector<128x128xbf16>
    %1 = arith.extf %0 : vector<128x128xbf16> to vector<128x128xf32>
    %c0_1 = arith.constant 0 : index
    %c0_2 = arith.constant 0 : index
    %2 = vector.load %arg6[%c0_1, %c0_2] : memref<1x128xf32, #tpu.memory_space<vmem>>, vector<1x128xf32>
    %c0_3 = arith.constant 0 : index
    %c0_4 = arith.constant 0 : index
    %3 = vector.load %arg7[%c0_3, %c0_4] : memref<1x128xf32, #tpu.memory_space<vmem>>, vector<1x128xf32>
    %cst = arith.constant dense<0.000000e+00> : vector<128xf32>
    %4 = vector.multi_reduction <add>, %1, %cst [1] : vector<128x128xf32> to vector<128xf32>
    %5 = vector.shape_cast %4 : vector<128xf32> to vector<128x1xf32>
    %cst_5 = arith.constant 1.280000e+02 : f32
    %6 = vector.broadcast %cst_5 : f32 to vector<128x1xf32>
    %7 = arith.divf %5, %6 : vector<128x1xf32>
    %8 = vector.broadcast %7 : vector<128x1xf32> to vector<128x128xf32>
    %9 = arith.subf %1, %8 : vector<128x128xf32>
    %10 = arith.mulf %9, %9 : vector<128x128xf32>
    %cst_6 = arith.constant dense<0.000000e+00> : vector<128xf32>
    %11 = vector.multi_reduction <add>, %10, %cst_6 [1] : vector<128x128xf32> to vector<128xf32>
    %12 = vector.shape_cast %11 : vector<128xf32> to vector<128x1xf32>
    %cst_7 = arith.constant 1.280000e+02 : f32
    %13 = vector.broadcast %cst_7 : f32 to vector<128x1xf32>
    %14 = arith.divf %12, %13 : vector<128x1xf32>
    %15 = vector.broadcast %7 : vector<128x1xf32> to vector<128x128xf32>
    %16 = arith.subf %1, %15 : vector<128x128xf32>
    %cst_8 = arith.constant 9.99999997E-7 : f32
    %17 = vector.broadcast %cst_8 : f32 to vector<128x1xf32>
    %18 = arith.addf %14, %17 : vector<128x1xf32>
    %19 = math.rsqrt %18 : vector<128x1xf32>
    %20 = vector.broadcast %19 : vector<128x1xf32> to vector<128x128xf32>
    %21 = arith.mulf %16, %20 : vector<128x128xf32>
    %22 = vector.broadcast %2 : vector<1x128xf32> to vector<128x128xf32>
    %23 = arith.mulf %21, %22 : vector<128x128xf32>
    %24 = vector.broadcast %3 : vector<1x128xf32> to vector<128x128xf32>
    %25 = arith.addf %23, %24 : vector<128x128xf32>
    %26 = arith.truncf %25 : vector<128x128xf32> to vector<128x128xbf16>
    %c0_9 = arith.constant 0 : index
    %c0_10 = arith.constant 0 : index
    %27 = vector.load %arg4[%c0_9, %c0_10] : memref<128x512xbf16, #tpu.memory_space<vmem>>, vector<128x512xbf16>
    %cst_11 = arith.constant dense<0.000000e+00> : vector<128x512xf32>
    %28 = tpu.matmul %26, %27, %cst_11 {dimension_numbers = #tpu.dot_dimension_numbers<[1], [0], [0], [1], [0, 0, 1, 1], [], []>} : vector<128x128xbf16>, vector<128x512xbf16>, vector<128x512xf32> -> vector<128x512xf32>
    %c0_12 = arith.constant 0 : index
    %c0_13 = arith.constant 0 : index
    %29 = vector.load %arg5[%c0_12, %c0_13] : memref<1x512xf32, #tpu.memory_space<vmem>>, vector<1x512xf32>
    %30 = vector.broadcast %29 : vector<1x512xf32> to vector<128x512xf32>
    %31 = arith.addf %28, %30 : vector<128x512xf32>
    %cst_14 = arith.constant 5.000000e-01 : f32
    %32 = vector.broadcast %cst_14 : f32 to vector<128x512xf32>
    %33 = arith.mulf %32, %31 : vector<128x512xf32>
    %cst_15 = arith.constant 4.471500e-02 : f32
    %34 = vector.broadcast %cst_15 : f32 to vector<128x512xf32>
    %35 = arith.mulf %34, %31 : vector<128x512xf32>
    %36 = arith.mulf %35, %31 : vector<128x512xf32>
    %37 = arith.mulf %36, %31 : vector<128x512xf32>
    %38 = arith.addf %31, %37 : vector<128x512xf32>
    %cst_16 = arith.constant 0.797884583 : f32
    %39 = vector.broadcast %cst_16 : f32 to vector<128x512xf32>
    %40 = arith.mulf %39, %38 : vector<128x512xf32>
    %41 = math.tanh %40 : vector<128x512xf32>
    %cst_17 = arith.constant 1.000000e+00 : f32
    %42 = vector.broadcast %cst_17 : f32 to vector<128x512xf32>
    %43 = arith.addf %42, %41 : vector<128x512xf32>
    %44 = arith.mulf %33, %43 : vector<128x512xf32>
    %45 = arith.truncf %44 : vector<128x512xf32> to vector<128x512xbf16>
    %c0_18 = arith.constant 0 : index
    %c0_19 = arith.constant 0 : index
    %46 = vector.load %arg8[%c0_18, %c0_19] : memref<128x512xbf16, #tpu.memory_space<vmem>>, vector<128x512xbf16>
    tpu.vector_store %arg8[%c0_18, %c0_19], %45 {strides = array<i32>} : memref<128x512xbf16, #tpu.memory_space<vmem>>, vector<128x512xbf16>,
    return
  }
  func.func @transform_0(%arg0: i32, %arg1: i32, %arg2: i32) -> (i32, i32) {
    %c0_i32 = arith.constant 0 : i32
    return %arg0, %arg2 : i32, i32
  }
  func.func @transform_1(%arg0: i32, %arg1: i32, %arg2: i32) -> (i32, i32) {
    %c0_i32 = arith.constant 0 : i32
    return %arg2, %arg1 : i32, i32
  }
  func.func @transform_2(%arg0: i32, %arg1: i32, %arg2: i32) -> (i32, i32) {
    %c0_i32 = arith.constant 0 : i32
    %c0_i32_0 = arith.constant 0 : i32
    return %c0_i32, %arg1 : i32, i32
  }
  func.func @transform_3(%arg0: i32, %arg1: i32, %arg2: i32) -> (i32, i32) {
    %c0_i32 = arith.constant 0 : i32
    %c0_i32_0 = arith.constant 0 : i32
    return %c0_i32, %arg2 : i32, i32
  }
  func.func @transform_4(%arg0: i32, %arg1: i32, %arg2: i32) -> (i32, i32) {
    %c0_i32 = arith.constant 0 : i32
    %c0_i32_0 = arith.constant 0 : i32
    return %c0_i32, %arg2 : i32, i32
  }
  func.func @transform_5(%arg0: i32, %arg1: i32, %arg2: i32) -> (i32, i32) {
    %c0_i32 = arith.constant 0 : i32
    return %arg0, %arg1 : i32, i32
  }
}

module attributes {stable_mosaic.version = 11 : i64} {
  func.func @_matmul_kernel(%arg0: i32, %arg1: i32, %arg2: i32, %arg3: memref<128x512xbf16, #tpu.memory_space<vmem>>, %arg4: memref<512x128xbf16, #tpu.memory_space<vmem>>, %arg5: memref<1x128xf32, #tpu.memory_space<vmem>>, %arg6: memref<128x128xbf16, #tpu.memory_space<vmem>>, %arg7: memref<128x128xbf16, #tpu.memory_space<vmem>>) attributes {dimension_semantics = [#tpu.dimension_semantics<parallel>, #tpu.dimension_semantics<parallel>, #tpu.dimension_semantics<arbitrary>], iteration_bounds = array<i64: 1, 1, 1>, scalar_prefetch = 0 : i64, scratch_operands = 0 : i64, tpu.core_type = #tpu.core_type<tc>, window_params = [{transform_indices = @transform_0, window_bounds = array<i64: 128, 512>}, {transform_indices = @transform_1, window_bounds = array<i64: 512, 128>}, {transform_indices = @transform_2, window_bounds = array<i64: 1, 128>}, {transform_indices = @transform_3, window_bounds = array<i64: 128, 128>}, {transform_indices = @transform_4, window_bounds = array<i64: 128, 128>}]} {
    %c0 = arith.constant 0 : index
    %c0_0 = arith.constant 0 : index
    %0 = vector.load %arg3[%c0, %c0_0] : memref<128x512xbf16, #tpu.memory_space<vmem>>, vector<128x512xbf16>
    %c0_1 = arith.constant 0 : index
    %c0_2 = arith.constant 0 : index
    %1 = vector.load %arg4[%c0_1, %c0_2] : memref<512x128xbf16, #tpu.memory_space<vmem>>, vector<512x128xbf16>
    %cst = arith.constant dense<0.000000e+00> : vector<128x128xf32>
    %2 = tpu.matmul %0, %1, %cst {dimension_numbers = #tpu.dot_dimension_numbers<[1], [0], [0], [1], [0, 0, 1, 1], [], []>} : vector<128x512xbf16>, vector<512x128xbf16>, vector<128x128xf32> -> vector<128x128xf32>
    %c0_3 = arith.constant 0 : index
    %c0_4 = arith.constant 0 : index
    %3 = vector.load %arg5[%c0_3, %c0_4] : memref<1x128xf32, #tpu.memory_space<vmem>>, vector<1x128xf32>
    %4 = vector.broadcast %3 : vector<1x128xf32> to vector<128x128xf32>
    %5 = arith.addf %2, %4 : vector<128x128xf32>
    %c0_5 = arith.constant 0 : index
    %c0_6 = arith.constant 0 : index
    %6 = vector.load %arg6[%c0_5, %c0_6] : memref<128x128xbf16, #tpu.memory_space<vmem>>, vector<128x128xbf16>
    %7 = arith.extf %6 : vector<128x128xbf16> to vector<128x128xf32>
    %8 = arith.addf %5, %7 : vector<128x128xf32>
    %9 = arith.truncf %8 : vector<128x128xf32> to vector<128x128xbf16>
    %c0_7 = arith.constant 0 : index
    %c0_8 = arith.constant 0 : index
    %10 = vector.load %arg7[%c0_7, %c0_8] : memref<128x128xbf16, #tpu.memory_space<vmem>>, vector<128x128xbf16>
    tpu.vector_store %arg7[%c0_7, %c0_8], %9 {strides = array<i32>} : memref<128x128xbf16, #tpu.memory_space<vmem>>, vector<128x128xbf16>,
    return
  }
  func.func @transform_0(%arg0: i32, %arg1: i32, %arg2: i32) -> (i32, i32) {
    %c0_i32 = arith.constant 0 : i32
    return %arg0, %arg2 : i32, i32
  }
  func.func @transform_1(%arg0: i32, %arg1: i32, %arg2: i32) -> (i32, i32) {
    %c0_i32 = arith.constant 0 : i32
    return %arg2, %arg1 : i32, i32
  }
  func.func @transform_2(%arg0: i32, %arg1: i32, %arg2: i32) -> (i32, i32) {
    %c0_i32 = arith.constant 0 : i32
    %c0_i32_0 = arith.constant 0 : i32
    return %c0_i32, %arg1 : i32, i32
  }
  func.func @transform_3(%arg0: i32, %arg1: i32, %arg2: i32) -> (i32, i32) {
    %c0_i32 = arith.constant 0 : i32
    return %arg0, %arg1 : i32, i32
  }
  func.func @transform_4(%arg0: i32, %arg1: i32, %arg2: i32) -> (i32, i32) {
    %c0_i32 = arith.constant 0 : i32
    return %arg0, %arg1 : i32, i32
  }
}

module attributes {stable_mosaic.version = 11 : i64} {
  func.func @_matmul_kernel(%arg0: i32, %arg1: i32, %arg2: i32, %arg3: memref<128x128xbf16, #tpu.memory_space<vmem>>, %arg4: memref<128x128xbf16, #tpu.memory_space<vmem>>, %arg5: memref<1x128xf32, #tpu.memory_space<vmem>>, %arg6: memref<1x128xf32, #tpu.memory_space<vmem>>, %arg7: memref<1x128xf32, #tpu.memory_space<vmem>>, %arg8: memref<128x128xbf16, #tpu.memory_space<vmem>>) attributes {dimension_semantics = [#tpu.dimension_semantics<parallel>, #tpu.dimension_semantics<parallel>, #tpu.dimension_semantics<arbitrary>], iteration_bounds = array<i64: 1, 1, 1>, scalar_prefetch = 0 : i64, scratch_operands = 0 : i64, tpu.core_type = #tpu.core_type<tc>, window_params = [{transform_indices = @transform_0, window_bounds = array<i64: 128, 128>}, {transform_indices = @transform_1, window_bounds = array<i64: 128, 128>}, {transform_indices = @transform_2, window_bounds = array<i64: 1, 128>}, {transform_indices = @transform_3, window_bounds = array<i64: 1, 128>}, {transform_indices = @transform_4, window_bounds = array<i64: 1, 128>}, {transform_indices = @transform_5, window_bounds = array<i64: 128, 128>}]} {
    %c0 = arith.constant 0 : index
    %c0_0 = arith.constant 0 : index
    %0 = vector.load %arg3[%c0, %c0_0] : memref<128x128xbf16, #tpu.memory_space<vmem>>, vector<128x128xbf16>
    %c0_1 = arith.constant 0 : index
    %c0_2 = arith.constant 0 : index
    %1 = vector.load %arg4[%c0_1, %c0_2] : memref<128x128xbf16, #tpu.memory_space<vmem>>, vector<128x128xbf16>
    %cst = arith.constant dense<0.000000e+00> : vector<128x128xf32>
    %2 = tpu.matmul %0, %1, %cst {dimension_numbers = #tpu.dot_dimension_numbers<[1], [0], [0], [1], [0, 0, 1, 1], [], []>} : vector<128x128xbf16>, vector<128x128xbf16>, vector<128x128xf32> -> vector<128x128xf32>
    %c0_3 = arith.constant 0 : index
    %c0_4 = arith.constant 0 : index
    %3 = vector.load %arg5[%c0_3, %c0_4] : memref<1x128xf32, #tpu.memory_space<vmem>>, vector<1x128xf32>
    %4 = vector.broadcast %3 : vector<1x128xf32> to vector<128x128xf32>
    %5 = arith.addf %2, %4 : vector<128x128xf32>
    %c0_5 = arith.constant 0 : index
    %c0_6 = arith.constant 0 : index
    %6 = vector.load %arg6[%c0_5, %c0_6] : memref<1x128xf32, #tpu.memory_space<vmem>>, vector<1x128xf32>
    %c0_7 = arith.constant 0 : index
    %c0_8 = arith.constant 0 : index
    %7 = vector.load %arg7[%c0_7, %c0_8] : memref<1x128xf32, #tpu.memory_space<vmem>>, vector<1x128xf32>
    %cst_9 = arith.constant dense<0.000000e+00> : vector<128xf32>
    %8 = vector.multi_reduction <add>, %5, %cst_9 [1] : vector<128x128xf32> to vector<128xf32>
    %9 = vector.shape_cast %8 : vector<128xf32> to vector<128x1xf32>
    %cst_10 = arith.constant 1.280000e+02 : f32
    %10 = vector.broadcast %cst_10 : f32 to vector<128x1xf32>
    %11 = arith.divf %9, %10 : vector<128x1xf32>
    %12 = vector.broadcast %11 : vector<128x1xf32> to vector<128x128xf32>
    %13 = arith.subf %5, %12 : vector<128x128xf32>
    %14 = arith.mulf %13, %13 : vector<128x128xf32>
    %cst_11 = arith.constant dense<0.000000e+00> : vector<128xf32>
    %15 = vector.multi_reduction <add>, %14, %cst_11 [1] : vector<128x128xf32> to vector<128xf32>
    %16 = vector.shape_cast %15 : vector<128xf32> to vector<128x1xf32>
    %cst_12 = arith.constant 1.280000e+02 : f32
    %17 = vector.broadcast %cst_12 : f32 to vector<128x1xf32>
    %18 = arith.divf %16, %17 : vector<128x1xf32>
    %19 = vector.broadcast %11 : vector<128x1xf32> to vector<128x128xf32>
    %20 = arith.subf %5, %19 : vector<128x128xf32>
    %cst_13 = arith.constant 9.99999997E-7 : f32
    %21 = vector.broadcast %cst_13 : f32 to vector<128x1xf32>
    %22 = arith.addf %18, %21 : vector<128x1xf32>
    %23 = math.rsqrt %22 : vector<128x1xf32>
    %24 = vector.broadcast %23 : vector<128x1xf32> to vector<128x128xf32>
    %25 = arith.mulf %20, %24 : vector<128x128xf32>
    %26 = vector.broadcast %6 : vector<1x128xf32> to vector<128x128xf32>
    %27 = arith.mulf %25, %26 : vector<128x128xf32>
    %28 = vector.broadcast %7 : vector<1x128xf32> to vector<128x128xf32>
    %29 = arith.addf %27, %28 : vector<128x128xf32>
    %30 = arith.truncf %29 : vector<128x128xf32> to vector<128x128xbf16>
    %c0_14 = arith.constant 0 : index
    %c0_15 = arith.constant 0 : index
    %31 = vector.load %arg8[%c0_14, %c0_15] : memref<128x128xbf16, #tpu.memory_space<vmem>>, vector<128x128xbf16>
    tpu.vector_store %arg8[%c0_14, %c0_15], %30 {strides = array<i32>} : memref<128x128xbf16, #tpu.memory_space<vmem>>, vector<128x128xbf16>,
    return
  }
  func.func @transform_0(%arg0: i32, %arg1: i32, %arg2: i32) -> (i32, i32) {
    %c0_i32 = arith.constant 0 : i32
    return %arg0, %arg2 : i32, i32
  }
  func.func @transform_1(%arg0: i32, %arg1: i32, %arg2: i32) -> (i32, i32) {
    %c0_i32 = arith.constant 0 : i32
    return %arg2, %arg1 : i32, i32
  }
  func.func @transform_2(%arg0: i32, %arg1: i32, %arg2: i32) -> (i32, i32) {
    %c0_i32 = arith.constant 0 : i32
    %c0_i32_0 = arith.constant 0 : i32
    return %c0_i32, %arg1 : i32, i32
  }
  func.func @transform_3(%arg0: i32, %arg1: i32, %arg2: i32) -> (i32, i32) {
    %c0_i32 = arith.constant 0 : i32
    %c0_i32_0 = arith.constant 0 : i32
    return %c0_i32, %arg1 : i32, i32
  }
  func.func @transform_4(%arg0: i32, %arg1: i32, %arg2: i32) -> (i32, i32) {
    %c0_i32 = arith.constant 0 : i32
    %c0_i32_0 = arith.constant 0 : i32
    return %c0_i32, %arg1 : i32, i32
  }
  func.func @transform_5(%arg0: i32, %arg1: i32, %arg2: i32) -> (i32, i32) {
    %c0_i32 = arith.constant 0 : i32
    return %arg0, %arg1 : i32, i32
  }
}

module attributes {stable_mosaic.version = 11 : i64} {
  func.func @_matmul_kernel(%arg0: i32, %arg1: i32, %arg2: i32, %arg3: memref<128x128xbf16, #tpu.memory_space<vmem>>, %arg4: memref<128x384xbf16, #tpu.memory_space<vmem>>, %arg5: memref<1x384xf32, #tpu.memory_space<vmem>>, %arg6: memref<128x384xf32, #tpu.memory_space<vmem>>) attributes {dimension_semantics = [#tpu.dimension_semantics<parallel>, #tpu.dimension_semantics<parallel>, #tpu.dimension_semantics<arbitrary>], iteration_bounds = array<i64: 1, 1, 1>, scalar_prefetch = 0 : i64, scratch_operands = 0 : i64, tpu.core_type = #tpu.core_type<tc>, window_params = [{transform_indices = @transform_0, window_bounds = array<i64: 128, 128>}, {transform_indices = @transform_1, window_bounds = array<i64: 128, 384>}, {transform_indices = @transform_2, window_bounds = array<i64: 1, 384>}, {transform_indices = @transform_3, window_bounds = array<i64: 128, 384>}]} {
    %c0 = arith.constant 0 : index
    %c0_0 = arith.constant 0 : index
    %0 = vector.load %arg3[%c0, %c0_0] : memref<128x128xbf16, #tpu.memory_space<vmem>>, vector<128x128xbf16>
    %c0_1 = arith.constant 0 : index
    %c0_2 = arith.constant 0 : index
    %1 = vector.load %arg4[%c0_1, %c0_2] : memref<128x384xbf16, #tpu.memory_space<vmem>>, vector<128x384xbf16>
    %cst = arith.constant dense<0.000000e+00> : vector<128x384xf32>
    %2 = tpu.matmul %0, %1, %cst {dimension_numbers = #tpu.dot_dimension_numbers<[1], [0], [0], [1], [0, 0, 1, 1], [], []>} : vector<128x128xbf16>, vector<128x384xbf16>, vector<128x384xf32> -> vector<128x384xf32>
    %c0_3 = arith.constant 0 : index
    %c0_4 = arith.constant 0 : index
    %3 = vector.load %arg5[%c0_3, %c0_4] : memref<1x384xf32, #tpu.memory_space<vmem>>, vector<1x384xf32>
    %4 = vector.broadcast %3 : vector<1x384xf32> to vector<128x384xf32>
    %5 = arith.addf %2, %4 : vector<128x384xf32>
    %c0_5 = arith.constant 0 : index
    %c0_6 = arith.constant 0 : index
    %6 = vector.load %arg6[%c0_5, %c0_6] : memref<128x384xf32, #tpu.memory_space<vmem>>, vector<128x384xf32>
    tpu.vector_store %arg6[%c0_5, %c0_6], %5 {strides = array<i32>} : memref<128x384xf32, #tpu.memory_space<vmem>>, vector<128x384xf32>,
    return
  }
  func.func @transform_0(%arg0: i32, %arg1: i32, %arg2: i32) -> (i32, i32) {
    %c0_i32 = arith.constant 0 : i32
    return %arg0, %arg2 : i32, i32
  }
  func.func @transform_1(%arg0: i32, %arg1: i32, %arg2: i32) -> (i32, i32) {
    %c0_i32 = arith.constant 0 : i32
    return %arg2, %arg1 : i32, i32
  }
  func.func @transform_2(%arg0: i32, %arg1: i32, %arg2: i32) -> (i32, i32) {
    %c0_i32 = arith.constant 0 : i32
    %c0_i32_0 = arith.constant 0 : i32
    return %c0_i32, %arg1 : i32, i32
  }
  func.func @transform_3(%arg0: i32, %arg1: i32, %arg2: i32) -> (i32, i32) {
    %c0_i32 = arith.constant 0 : i32
    return %arg0, %arg1 : i32, i32
  }
}

module attributes {stable_mosaic.version = 11 : i64} {
  func.func @_matmul_kernel(%arg0: i32, %arg1: i32, %arg2: i32, %arg3: memref<128x384xbf16, #tpu.memory_space<vmem>>, %arg4: memref<384x128xbf16, #tpu.memory_space<vmem>>, %arg5: memref<1x128xf32, #tpu.memory_space<vmem>>, %arg6: memref<1x128xf32, #tpu.memory_space<vmem>>, %arg7: memref<1x128xf32, #tpu.memory_space<vmem>>, %arg8: memref<128x128xbf16, #tpu.memory_space<vmem>>, %arg9: memref<128x128xf32, #tpu.memory_space<vmem>>) attributes {dimension_semantics = [#tpu.dimension_semantics<parallel>, #tpu.dimension_semantics<parallel>, #tpu.dimension_semantics<arbitrary>], iteration_bounds = array<i64: 1, 1, 3>, scalar_prefetch = 0 : i64, scratch_operands = 1 : i64, tpu.core_type = #tpu.core_type<tc>, window_params = [{transform_indices = @transform_0, window_bounds = array<i64: 128, 384>}, {transform_indices = @transform_1, window_bounds = array<i64: 384, 128>}, {transform_indices = @transform_2, window_bounds = array<i64: 1, 128>}, {transform_indices = @transform_3, window_bounds = array<i64: 1, 128>}, {transform_indices = @transform_4, window_bounds = array<i64: 1, 128>}, {transform_indices = @transform_5, window_bounds = array<i64: 128, 128>}]} {
    %c0 = arith.constant 0 : index
    %c0_0 = arith.constant 0 : index
    %0 = vector.load %arg3[%c0, %c0_0] : memref<128x384xbf16, #tpu.memory_space<vmem>>, vector<128x384xbf16>
    %c0_1 = arith.constant 0 : index
    %c0_2 = arith.constant 0 : index
    %1 = vector.load %arg4[%c0_1, %c0_2] : memref<384x128xbf16, #tpu.memory_space<vmem>>, vector<384x128xbf16>
    %cst = arith.constant dense<0.000000e+00> : vector<128x128xf32>
    %2 = tpu.matmul %0, %1, %cst {dimension_numbers = #tpu.dot_dimension_numbers<[1], [0], [0], [1], [0, 0, 1, 1], [], []>} : vector<128x384xbf16>, vector<384x128xbf16>, vector<128x128xf32> -> vector<128x128xf32>
    %c0_i32 = arith.constant 0 : i32
    %3 = arith.cmpi eq, %arg2, %c0_i32 : i32
    %4 = arith.extui %3 : i1 to i32
    %c0_i32_3 = arith.constant 0 : i32
    %5 = arith.cmpi ne, %4, %c0_i32_3 : i32
    scf.if %5 {
      %cst_9 = arith.constant 0.000000e+00 : f32
      %12 = vector.broadcast %cst_9 : f32 to vector<128x128xf32>
      %c0_10 = arith.constant 0 : index
      %c0_11 = arith.constant 0 : index
      %13 = vector.load %arg9[%c0_10, %c0_11] : memref<128x128xf32, #tpu.memory_space<vmem>>, vector<128x128xf32>
      tpu.vector_store %arg9[%c0_10, %c0_11], %12 {strides = array<i32>} : memref<128x128xf32, #tpu.memory_space<vmem>>, vector<128x128xf32>,
    } else {
    }
    %c0_4 = arith.constant 0 : index
    %c0_5 = arith.constant 0 : index
    %6 = vector.load %arg9[%c0_4, %c0_5] : memref<128x128xf32, #tpu.memory_space<vmem>>, vector<128x128xf32>
    %7 = arith.addf %6, %2 : vector<128x128xf32>
    %c0_6 = arith.constant 0 : index
    %c0_7 = arith.constant 0 : index
    %8 = vector.load %arg9[%c0_6, %c0_7] : memref<128x128xf32, #tpu.memory_space<vmem>>, vector<128x128xf32>
    tpu.vector_store %arg9[%c0_6, %c0_7], %7 {strides = array<i32>} : memref<128x128xf32, #tpu.memory_space<vmem>>, vector<128x128xf32>,
    %c2_i32 = arith.constant 2 : i32
    %9 = arith.cmpi eq, %arg2, %c2_i32 : i32
    %10 = arith.extui %9 : i1 to i32
    %c0_i32_8 = arith.constant 0 : i32
    %11 = arith.cmpi ne, %10, %c0_i32_8 : i32
    scf.if %11 {
      %c0_9 = arith.constant 0 : index
      %c0_10 = arith.constant 0 : index
      %12 = vector.load %arg9[%c0_9, %c0_10] : memref<128x128xf32, #tpu.memory_space<vmem>>, vector<128x128xf32>
      %c0_11 = arith.constant 0 : index
      %c0_12 = arith.constant 0 : index
      %13 = vector.load %arg5[%c0_11, %c0_12] : memref<1x128xf32, #tpu.memory_space<vmem>>, vector<1x128xf32>
      %14 = vector.broadcast %13 : vector<1x128xf32> to vector<128x128xf32>
      %15 = arith.addf %12, %14 : vector<128x128xf32>
      %c0_13 = arith.constant 0 : index
      %c0_14 = arith.constant 0 : index
      %16 = vector.load %arg6[%c0_13, %c0_14] : memref<1x128xf32, #tpu.memory_space<vmem>>, vector<1x128xf32>
      %c0_15 = arith.constant 0 : index
      %c0_16 = arith.constant 0 : index
      %17 = vector.load %arg7[%c0_15, %c0_16] : memref<1x128xf32, #tpu.memory_space<vmem>>, vector<1x128xf32>
      %cst_17 = arith.constant dense<0.000000e+00> : vector<128xf32>
      %18 = vector.multi_reduction <add>, %15, %cst_17 [1] : vector<128x128xf32> to vector<128xf32>
      %19 = vector.shape_cast %18 : vector<128xf32> to vector<128x1xf32>
      %cst_18 = arith.constant 1.280000e+02 : f32
      %20 = vector.broadcast %cst_18 : f32 to vector<128x1xf32>
      %21 = arith.divf %19, %20 : vector<128x1xf32>
      %22 = vector.broadcast %21 : vector<128x1xf32> to vector<128x128xf32>
      %23 = arith.subf %15, %22 : vector<128x128xf32>
      %24 = arith.mulf %23, %23 : vector<128x128xf32>
      %cst_19 = arith.constant dense<0.000000e+00> : vector<128xf32>
      %25 = vector.multi_reduction <add>, %24, %cst_19 [1] : vector<128x128xf32> to vector<128xf32>
      %26 = vector.shape_cast %25 : vector<128xf32> to vector<128x1xf32>
      %cst_20 = arith.constant 1.280000e+02 : f32
      %27 = vector.broadcast %cst_20 : f32 to vector<128x1xf32>
      %28 = arith.divf %26, %27 : vector<128x1xf32>
      %29 = vector.broadcast %21 : vector<128x1xf32> to vector<128x128xf32>
      %30 = arith.subf %15, %29 : vector<128x128xf32>
      %cst_21 = arith.constant 9.99999997E-7 : f32
      %31 = vector.broadcast %cst_21 : f32 to vector<128x1xf32>
      %32 = arith.addf %28, %31 : vector<128x1xf32>
      %33 = math.rsqrt %32 : vector<128x1xf32>
      %34 = vector.broadcast %33 : vector<128x1xf32> to vector<128x128xf32>
      %35 = arith.mulf %30, %34 : vector<128x128xf32>
      %36 = vector.broadcast %16 : vector<1x128xf32> to vector<128x128xf32>
      %37 = arith.mulf %35, %36 : vector<128x128xf32>
      %38 = vector.broadcast %17 : vector<1x128xf32> to vector<128x128xf32>
      %39 = arith.addf %37, %38 : vector<128x128xf32>
      %40 = arith.truncf %39 : vector<128x128xf32> to vector<128x128xbf16>
      %c0_22 = arith.constant 0 : index
      %c0_23 = arith.constant 0 : index
      %41 = vector.load %arg8[%c0_22, %c0_23] : memref<128x128xbf16, #tpu.memory_space<vmem>>, vector<128x128xbf16>
      tpu.vector_store %arg8[%c0_22, %c0_23], %40 {strides = array<i32>} : memref<128x128xbf16, #tpu.memory_space<vmem>>, vector<128x128xbf16>,
    } else {
    }
    return
  }
  func.func @transform_0(%arg0: i32, %arg1: i32, %arg2: i32) -> (i32, i32) {
    %c0_i32 = arith.constant 0 : i32
    return %arg0, %arg2 : i32, i32
  }
  func.func @transform_1(%arg0: i32, %arg1: i32, %arg2: i32) -> (i32, i32) {
    %c0_i32 = arith.constant 0 : i32
    return %arg2, %arg1 : i32, i32
  }
  func.func @transform_2(%arg0: i32, %arg1: i32, %arg2: i32) -> (i32, i32) {
    %c0_i32 = arith.constant 0 : i32
    %c0_i32_0 = arith.constant 0 : i32
    return %c0_i32, %arg1 : i32, i32
  }
  func.func @transform_3(%arg0: i32, %arg1: i32, %arg2: i32) -> (i32, i32) {
    %c0_i32 = arith.constant 0 : i32
    %c0_i32_0 = arith.constant 0 : i32
    return %c0_i32, %arg1 : i32, i32
  }
  func.func @transform_4(%arg0: i32, %arg1: i32, %arg2: i32) -> (i32, i32) {
    %c0_i32 = arith.constant 0 : i32
    %c0_i32_0 = arith.constant 0 : i32
    return %c0_i32, %arg1 : i32, i32
  }
  func.func @transform_5(%arg0: i32, %arg1: i32, %arg2: i32) -> (i32, i32) {
    %c0_i32 = arith.constant 0 : i32
    return %arg0, %arg1 : i32, i32
  }
}

</mosaic_0001>

<llo_original>
// kernel: cellpose_sam_apply.14
$region0: #{cellpose_sam_apply.14}
  #allocation0 [shape = 'u32[]', space=smem, size = 0x4, offset = 0x4, fixed_abs, tag = 'smem constant byte address 0x4 - core index']
  #allocation1 [shape = 'u32[144,128]{1,0:T(1,128)}', space=vmem, size = 0x12000, scoped, tag = 'internal scratch']
  %s0 = inlined_call_operand.vmem [shape: f32[128,256], index: 0, kind: input, shape index: {}]
  %s1 = inlined_call_operand.vmem [shape: bf16[256,128], index: 1, kind: input, shape index: {}]
  %s2 = inlined_call_operand.vmem [shape: f32[1,128], index: 2, kind: input, shape index: {}]
  %s3 = inlined_call_operand.vmem [shape: bf16[128,128], index: 3, kind: input, shape index: {}]
  %s4 = inlined_call_operand.vmem [shape: bf16[128,128], index: 4, kind: output, shape index: {}]
  %s5 = sld [smem:[#allocation0]]
  $region26: #{cellpose_sam_apply.14} parent=0
    _
  %s7 = ssub.s32 1, %s5
  %s8 = scalar_select 0, %s7, %s5
  // Predicated region
  $region2: #{cellpose_sam_apply.14} parent=0 // pred_check
    _
  $region3: #{cellpose_sam_apply.14} parent=0 // pred_check_branch
    %10 = sbr.rel (0) target = $region5
  $region4: #{cellpose_sam_apply.14} parent=0 // pred_region
    _
  $region5: #{cellpose_sam_apply.14} parent=0 // pred_fallthru
    _
  // Predicated region
  $region6: #{cellpose_sam_apply.14} parent=0 // pred_check
    _
  $region7: #{cellpose_sam_apply.14} parent=0 // pred_check_branch
    %12 = sbr.rel (0) target = $region9
  $region8: #{cellpose_sam_apply.14} parent=0 // pred_region
    _
  $region9: #{cellpose_sam_apply.14} parent=0 // pred_fallthru
    _
  // Predicated region
  $region10: #{cellpose_sam_apply.14} parent=0 // pred_check
    _
  $region11: #{cellpose_sam_apply.14} parent=0 // pred_check_branch
    %14 = sbr.rel (0) target = $region13
  $region12: #{cellpose_sam_apply.14} parent=0 // pred_region
    _
  $region13: #{cellpose_sam_apply.14} parent=0 // pred_fallthru
    _
  // Predicated region
  $region14: #{cellpose_sam_apply.14} parent=0 // pred_check
    _
  $region15: #{cellpose_sam_apply.14} parent=0 // pred_check_branch
    %16 = sbr.rel (0) target = $region17
  $region16: #{cellpose_sam_apply.14} parent=0 // pred_region
    _
  $region17: #{cellpose_sam_apply.14} parent=0 // pred_fallthru
    _
  %v18 = vld [vmem:[%s0] sm:$0xff]
  %v19 = vld [vmem:[%s0 + $0x8] sm:$0xff]
  %v20 = vld [vmem:[%s0 + $0x10] sm:$0xff]
  %v21 = vld [vmem:[%s0 + $0x18] sm:$0xff]
  %v22 = vld [vmem:[%s0 + $0x20] sm:$0xff]
  %v23 = vld [vmem:[%s0 + $0x28] sm:$0xff]
  %v24 = vld [vmem:[%s0 + $0x30] sm:$0xff]
  %v25 = vld [vmem:[%s0 + $0x38] sm:$0xff]
  %v26 = vld [vmem:[%s0 + $0x40] sm:$0xff]
  %v27 = vld [vmem:[%s0 + $0x48] sm:$0xff]
  %v28 = vld [vmem:[%s0 + $0x50] sm:$0xff]
  %v29 = vld [vmem:[%s0 + $0x58] sm:$0xff]
  %v30 = vld [vmem:[%s0 + $0x60] sm:$0xff]
  %v31 = vld [vmem:[%s0 + $0x68] sm:$0xff]
  %v32 = vld [vmem:[%s0 + $0x70] sm:$0xff]
  %v33 = vld [vmem:[%s0 + $0x78] sm:$0xff]
  %v34 = vld [vmem:[%s0 + $0x80] sm:$0xff]
  %v35 = vld [vmem:[%s0 + $0x88] sm:$0xff]
  %v36 = vld [vmem:[%s0 + $0x90] sm:$0xff]
  %v37 = vld [vmem:[%s0 + $0x98] sm:$0xff]
  %v38 = vld [vmem:[%s0 + $0xa0] sm:$0xff]
  %v39 = vld [vmem:[%s0 + $0xa8] sm:$0xff]
  %v40 = vld [vmem:[%s0 + $0xb0] sm:$0xff]
  %v41 = vld [vmem:[%s0 + $0xb8] sm:$0xff]
  %v42 = vld [vmem:[%s0 + $0xc0] sm:$0xff]
  %v43 = vld [vmem:[%s0 + $0xc8] sm:$0xff]
  %v44 = vld [vmem:[%s0 + $0xd0] sm:$0xff]
  %v45 = vld [vmem:[%s0 + $0xd8] sm:$0xff]
  %v46 = vld [vmem:[%s0 + $0xe0] sm:$0xff]
  %v47 = vld [vmem:[%s0 + $0xe8] sm:$0xff]
  %v48 = vld [vmem:[%s0 + $0xf0] sm:$0xff]
  %v49 = vld [vmem:[%s0 + $0xf8] sm:$0xff]
  %v50 = vpack.c.bf16 %v20, %v18
  %v51 = vpack.c.bf16 %v21, %v19
  %v52 = vpack.c.bf16 %v24, %v22
  %v53 = vpack.c.bf16 %v25, %v23
  %v54 = vpack.c.bf16 %v28, %v26
  %v55 = vpack.c.bf16 %v29, %v27
  %v56 = vpack.c.bf16 %v32, %v30
  %v57 = vpack.c.bf16 %v33, %v31
  %v58 = vpack.c.bf16 %v36, %v34
  %v59 = vpack.c.bf16 %v37, %v35
  %v60 = vpack.c.bf16 %v40, %v38
  %v61 = vpack.c.bf16 %v41, %v39
  %v62 = vpack.c.bf16 %v44, %v42
  %v63 = vpack.c.bf16 %v45, %v43
  %v64 = vpack.c.bf16 %v48, %v46
  %v65 = vpack.c.bf16 %v49, %v47
  %v66 = vld [vmem:[%s1] sm:$0xf]
  %v67 = vld [vmem:[%s1 + $0x4] sm:$0xf]
  %v68 = vld [vmem:[%s1 + $0x8] sm:$0xf]
  %v69 = vld [vmem:[%s1 + $0xc] sm:$0xf]
  %v70 = vld [vmem:[%s1 + $0x10] sm:$0xf]
  %v71 = vld [vmem:[%s1 + $0x14] sm:$0xf]
  %v72 = vld [vmem:[%s1 + $0x18] sm:$0xf]
  %v73 = vld [vmem:[%s1 + $0x1c] sm:$0xf]
  %v74 = vld [vmem:[%s1 + $0x20] sm:$0xf]
  %v75 = vld [vmem:[%s1 + $0x24] sm:$0xf]
  %v76 = vld [vmem:[%s1 + $0x28] sm:$0xf]
  %v77 = vld [vmem:[%s1 + $0x2c] sm:$0xf]
  %v78 = vld [vmem:[%s1 + $0x30] sm:$0xf]
  %v79 = vld [vmem:[%s1 + $0x34] sm:$0xf]
  %v80 = vld [vmem:[%s1 + $0x38] sm:$0xf]
  %v81 = vld [vmem:[%s1 + $0x3c] sm:$0xf]
  %v82 = vld [vmem:[%s1 + $0x40] sm:$0xf]
  %v83 = vld [vmem:[%s1 + $0x44] sm:$0xf]
  %v84 = vld [vmem:[%s1 + $0x48] sm:$0xf]
  %v85 = vld [vmem:[%s1 + $0x4c] sm:$0xf]
  %v86 = vld [vmem:[%s1 + $0x50] sm:$0xf]
  %v87 = vld [vmem:[%s1 + $0x54] sm:$0xf]
  %v88 = vld [vmem:[%s1 + $0x58] sm:$0xf]
  %v89 = vld [vmem:[%s1 + $0x5c] sm:$0xf]
  %v90 = vld [vmem:[%s1 + $0x60] sm:$0xf]
  %v91 = vld [vmem:[%s1 + $0x64] sm:$0xf]
  %v92 = vld [vmem:[%s1 + $0x68] sm:$0xf]
  %v93 = vld [vmem:[%s1 + $0x6c] sm:$0xf]
  %v94 = vld [vmem:[%s1 + $0x70] sm:$0xf]
  %v95 = vld [vmem:[%s1 + $0x74] sm:$0xf]
  %v96 = vld [vmem:[%s1 + $0x78] sm:$0xf]
  %v97 = vld [vmem:[%s1 + $0x7c] sm:$0xf]
  %v98 = vld [vmem:[%s2] sm:$0x1]
  %v100 = vlaneseq
  %v101 = vshrl.u32 %v100, 7
  %v102 = vsub.s32 0, %v101
  %v103 = vrot.slane %v98, %v102
  %v137 = vunpack.c.l.b16 %v66
  %v138 = vunpack.c.l.b16 %v67
  %v139 = vunpack.c.l.b16 %v68
  %v140 = vunpack.c.l.b16 %v69
  %v141 = vunpack.c.l.b16 %v70
  %v142 = vunpack.c.l.b16 %v71
  %v143 = vunpack.c.l.b16 %v72
  %v144 = vunpack.c.l.b16 %v73
  %v145 = vunpack.c.l.b16 %v74
  %v146 = vunpack.c.l.b16 %v75
  %v147 = vunpack.c.l.b16 %v76
  %v148 = vunpack.c.l.b16 %v77
  %v149 = vunpack.c.l.b16 %v78
  %v150 = vunpack.c.l.b16 %v79
  %v151 = vunpack.c.l.b16 %v80
  %v152 = vunpack.c.l.b16 %v81
  %v153 = vunpack.c.l.b16 %v82
  %v154 = vunpack.c.l.b16 %v83
  %v155 = vunpack.c.l.b16 %v84
  %v156 = vunpack.c.l.b16 %v85
  %v157 = vunpack.c.l.b16 %v86
  %v158 = vunpack.c.l.b16 %v87
  %v159 = vunpack.c.l.b16 %v88
  %v160 = vunpack.c.l.b16 %v89
  %v161 = vunpack.c.l.b16 %v90
  %v162 = vunpack.c.l.b16 %v91
  %v163 = vunpack.c.l.b16 %v92
  %v164 = vunpack.c.l.b16 %v93
  %v165 = vunpack.c.l.b16 %v94
  %v166 = vunpack.c.l.b16 %v95
  %v167 = vunpack.c.l.b16 %v96
  %v168 = vunpack.c.l.b16 %v97
  %v169 = vpack.c.b16 %v138, %v137
  %v170 = vpack.c.b16 %v140, %v139
  %v171 = vpack.c.b16 %v142, %v141
  %v172 = vpack.c.b16 %v144, %v143
  %v173 = vpack.c.b16 %v146, %v145
  %v174 = vpack.c.b16 %v148, %v147
  %v175 = vpack.c.b16 %v150, %v149
  %v176 = vpack.c.b16 %v152, %v151
  %v177 = vpack.c.b16 %v154, %v153
  %v178 = vpack.c.b16 %v156, %v155
  %v179 = vpack.c.b16 %v158, %v157
  %v180 = vpack.c.b16 %v160, %v159
  %v181 = vpack.c.b16 %v162, %v161
  %v182 = vpack.c.b16 %v164, %v163
  %v183 = vpack.c.b16 %v166, %v165
  %v184 = vpack.c.b16 %v168, %v167
  %201 = vmatprep.subr.bf16.mxu0 0
  %202 = vmatpush1.bf16.msra.mxu0 %v169
  %203 = vmatprep.subr.bf16.mxu0 0
  %204 = vmatpush1.bf16.msra.mxu0 %v170
  %205 = vmatprep.subr.bf16.mxu0 0
  %206 = vmatpush1.bf16.msra.mxu0 %v171
  %207 = vmatprep.subr.bf16.mxu0 0
  %208 = vmatpush1.bf16.msra.mxu0 %v172
  %209 = vmatprep.subr.bf16.mxu0 0
  %210 = vmatpush1.bf16.msra.mxu0 %v173
  %211 = vmatprep.subr.bf16.mxu0 0
  %212 = vmatpush1.bf16.msra.mxu0 %v174
  %213 = vmatprep.subr.bf16.mxu0 0
  %214 = vmatpush1.bf16.msra.mxu0 %v175
  %215 = vmatprep.subr.bf16.mxu0 0
  %216 = vmatpush1.bf16.msra.mxu0 %v176
  %217 = vmatprep.subr.bf16.mxu0 0
  %218 = vmatpush1.bf16.msra.mxu0 %v177
  %219 = vmatprep.subr.bf16.mxu0 0
  %220 = vmatpush1.bf16.msra.mxu0 %v178
  %221 = vmatprep.subr.bf16.mxu0 0
  %222 = vmatpush1.bf16.msra.mxu0 %v179
  %223 = vmatprep.subr.bf16.mxu0 0
  %224 = vmatpush1.bf16.msra.mxu0 %v180
  %225 = vmatprep.subr.bf16.mxu0 0
  %226 = vmatpush1.bf16.msra.mxu0 %v181
  %227 = vmatprep.subr.bf16.mxu0 0
  %228 = vmatpush1.bf16.msra.mxu0 %v182
  %229 = vmatprep.subr.bf16.mxu0 0
  %230 = vmatpush1.bf16.msra.mxu0 %v183
  %231 = vmatprep.subr.bf16.mxu0 0
  %232 = vmatpush1.bf16.msra.mxu0 %v184
  %233 = vmatprep.mubr.bf16.mxu0 %v51
  %234 = vmatmul.mubr.bf16.gmra.mrb[0].mxu0 %v50
  %v235 = vpop.f32.mrb[0].mxu0
  %v236 = vadd.f32 %v103, %v235
  %v237 = vpop.f32.mrb[0].mxu0
  %v238 = vpop.f32.mrb[0].mxu0
  %v239 = vadd.f32 %v103, %v238
  %v240 = vpop.f32.mrb[0].mxu0
  %241 = vmatprep.mubr.bf16.mxu0 %v53
  %242 = vmatmul.mubr.bf16.gmra.mrb[0].mxu0 %v52
  %v243 = vpop.f32.mrb[0].mxu0
  %v244 = vadd.f32 %v103, %v243
  %v245 = vpop.f32.mrb[0].mxu0
  %v246 = vpop.f32.mrb[0].mxu0
  %v247 = vadd.f32 %v103, %v246
  %v248 = vpop.f32.mrb[0].mxu0
  %249 = vmatprep.mubr.bf16.mxu0 %v55
  %250 = vmatmul.mubr.bf16.gmra.mrb[0].mxu0 %v54
  %v251 = vpop.f32.mrb[0].mxu0
  %v252 = vadd.f32 %v103, %v251
  %v253 = vpop.f32.mrb[0].mxu0
  %v254 = vpop.f32.mrb[0].mxu0
  %v255 = vadd.f32 %v103, %v254
  %v256 = vpop.f32.mrb[0].mxu0
  %257 = vmatprep.mubr.bf16.mxu0 %v57
  %258 = vmatmul.mubr.bf16.gmra.mrb[0].mxu0 %v56
  %v259 = vpop.f32.mrb[0].mxu0
  %v260 = vadd.f32 %v103, %v259
  %v261 = vpop.f32.mrb[0].mxu0
  %v262 = vpop.f32.mrb[0].mxu0
  %v263 = vadd.f32 %v103, %v262
  %v264 = vpop.f32.mrb[0].mxu0
  %265 = vmatprep.mubr.bf16.mxu0 %v59
  %266 = vmatmul.mubr.bf16.gmra.mrb[0].mxu0 %v58
  %v267 = vpop.f32.mrb[0].mxu0
  %v268 = vadd.f32 %v103, %v267
  %v269 = vpop.f32.mrb[0].mxu0
  %v270 = vpop.f32.mrb[0].mxu0
  %v271 = vadd.f32 %v103, %v270
  %v272 = vpop.f32.mrb[0].mxu0
  %273 = vmatprep.mubr.bf16.mxu0 %v61
  %274 = vmatmul.mubr.bf16.gmra.mrb[0].mxu0 %v60
  %v275 = vpop.f32.mrb[0].mxu0
  %v276 = vadd.f32 %v103, %v275
  %v277 = vpop.f32.mrb[0].mxu0
  %v278 = vpop.f32.mrb[0].mxu0
  %v279 = vadd.f32 %v103, %v278
  %v280 = vpop.f32.mrb[0].mxu0
  %281 = vmatprep.mubr.bf16.mxu0 %v63
  %282 = vmatmul.mubr.bf16.gmra.mrb[0].mxu0 %v62
  %v283 = vpop.f32.mrb[0].mxu0
  %v284 = vadd.f32 %v103, %v283
  %v285 = vpop.f32.mrb[0].mxu0
  %v286 = vpop.f32.mrb[0].mxu0
  %v287 = vadd.f32 %v103, %v286
  %v288 = vpop.f32.mrb[0].mxu0
  %289 = vmatprep.mubr.bf16.mxu0 %v65
  %290 = vmatmul.mubr.bf16.gmra.mrb[0].mxu0 %v64
  %v291 = vpop.f32.mrb[0].mxu0
  %v292 = vadd.f32 %v103, %v291
  %v293 = vpop.f32.mrb[0].mxu0
  %v294 = vpop.f32.mrb[0].mxu0
  %v295 = vadd.f32 %v103, %v294
  %v296 = vpop.f32.mrb[0].mxu0
  %297 = vdwg.mxu0
  %v298 = vld [vmem:[%s3] sm:$0xf]
  %v299 = vld [vmem:[%s3 + $0x4] sm:$0xf]
  %v300 = vld [vmem:[%s3 + $0x8] sm:$0xf]
  %v301 = vld [vmem:[%s3 + $0xc] sm:$0xf]
  %v302 = vld [vmem:[%s3 + $0x10] sm:$0xf]
  %v303 = vld [vmem:[%s3 + $0x14] sm:$0xf]
  %v304 = vld [vmem:[%s3 + $0x18] sm:$0xf]
  %v305 = vld [vmem:[%s3 + $0x1c] sm:$0xf]
  %v306 = vld [vmem:[%s3 + $0x20] sm:$0xf]
  %v307 = vld [vmem:[%s3 + $0x24] sm:$0xf]
  %v308 = vld [vmem:[%s3 + $0x28] sm:$0xf]
  %v309 = vld [vmem:[%s3 + $0x2c] sm:$0xf]
  %v310 = vld [vmem:[%s3 + $0x30] sm:$0xf]
  %v311 = vld [vmem:[%s3 + $0x34] sm:$0xf]
  %v312 = vld [vmem:[%s3 + $0x38] sm:$0xf]
  %v313 = vld [vmem:[%s3 + $0x3c] sm:$0xf]
  %v314 = vunpack.c.l.bf16 %v298
  %v315 = vunpack.c.l.bf16 %v299
  %v316 = vunpack.c.l.bf16 %v300
  %v317 = vunpack.c.l.bf16 %v301
  %v318 = vunpack.c.l.bf16 %v302
  %v319 = vunpack.c.l.bf16 %v303
  %v320 = vunpack.c.l.bf16 %v304
  %v321 = vunpack.c.l.bf16 %v305
  %v322 = vunpack.c.l.bf16 %v306
  %v323 = vunpack.c.l.bf16 %v307
  %v324 = vunpack.c.l.bf16 %v308
  %v325 = vunpack.c.l.bf16 %v309
  %v326 = vunpack.c.l.bf16 %v310
  %v327 = vunpack.c.l.bf16 %v311
  %v328 = vunpack.c.l.bf16 %v312
  %v329 = vunpack.c.l.bf16 %v313
  %v330 = vadd.f32 %v236, %v314
  %v331 = vadd.f32 %v239, %v315
  %v332 = vadd.f32 %v244, %v316
  %v333 = vadd.f32 %v247, %v317
  %v334 = vadd.f32 %v252, %v318
  %v335 = vadd.f32 %v255, %v319
  %v336 = vadd.f32 %v260, %v320
  %v337 = vadd.f32 %v263, %v321
  %v338 = vadd.f32 %v268, %v322
  %v339 = vadd.f32 %v271, %v323
  %v340 = vadd.f32 %v276, %v324
  %v341 = vadd.f32 %v279, %v325
  %v342 = vadd.f32 %v284, %v326
  %v343 = vadd.f32 %v287, %v327
  %v344 = vadd.f32 %v292, %v328
  %v345 = vadd.f32 %v295, %v329
  %v346 = vpack.c.bf16 %v331, %v330
  %v347 = vpack.c.bf16 %v333, %v332
  %v348 = vpack.c.bf16 %v335, %v334
  %v349 = vpack.c.bf16 %v337, %v336
  %v350 = vpack.c.bf16 %v339, %v338
  %v351 = vpack.c.bf16 %v341, %v340
  %v352 = vpack.c.bf16 %v343, %v342
  %v353 = vpack.c.bf16 %v345, %v344
  %v362 = vunpack.c.l.b16 %v346
  %v363 = vunpack.c.h.b16 %v346
  %v364 = vunpack.c.l.b16 %v347
  %v365 = vunpack.c.h.b16 %v347
  %v366 = vunpack.c.l.b16 %v348
  %v367 = vunpack.c.h.b16 %v348
  %v368 = vunpack.c.l.b16 %v349
  %v369 = vunpack.c.h.b16 %v349
  %v370 = vunpack.c.l.b16 %v350
  %v371 = vunpack.c.h.b16 %v350
  %v372 = vunpack.c.l.b16 %v351
  %v373 = vunpack.c.h.b16 %v351
  %v374 = vunpack.c.l.b16 %v352
  %v375 = vunpack.c.h.b16 %v352
  %v376 = vunpack.c.l.b16 %v353
  %v377 = vunpack.c.h.b16 %v353
  %v378 = vpack.c.b16 %v362, %v362
  %v379 = vpack.c.b16 %v363, %v363
  %v380 = vpack.c.b16 %v364, %v364
  %v381 = vpack.c.b16 %v365, %v365
  %v382 = vpack.c.b16 %v366, %v366
  %v383 = vpack.c.b16 %v367, %v367
  %v384 = vpack.c.b16 %v368, %v368
  %v385 = vpack.c.b16 %v369, %v369
  %v386 = vpack.c.b16 %v370, %v370
  %v387 = vpack.c.b16 %v371, %v371
  %v388 = vpack.c.b16 %v372, %v372
  %v389 = vpack.c.b16 %v373, %v373
  %v390 = vpack.c.b16 %v374, %v374
  %v391 = vpack.c.b16 %v375, %v375
  %v392 = vpack.c.b16 %v376, %v376
  %v393 = vpack.c.b16 %v377, %v377
  %410 = vst [vmem:[%s4] sm:$0xf] %v378
  %411 = vst [vmem:[%s4 + $0x4] sm:$0xf] %v379
  %412 = vst [vmem:[%s4 + $0x8] sm:$0xf] %v380
  %413 = vst [vmem:[%s4 + $0xc] sm:$0xf] %v381
  %414 = vst [vmem:[%s4 + $0x10] sm:$0xf] %v382
  %415 = vst [vmem:[%s4 + $0x14] sm:$0xf] %v383
  %416 = vst [vmem:[%s4 + $0x18] sm:$0xf] %v384
  %417 = vst [vmem:[%s4 + $0x1c] sm:$0xf] %v385
  %418 = vst [vmem:[%s4 + $0x20] sm:$0xf] %v386
  %419 = vst [vmem:[%s4 + $0x24] sm:$0xf] %v387
  %420 = vst [vmem:[%s4 + $0x28] sm:$0xf] %v388
  %421 = vst [vmem:[%s4 + $0x2c] sm:$0xf] %v389
  %422 = vst [vmem:[%s4 + $0x30] sm:$0xf] %v390
  %423 = vst [vmem:[%s4 + $0x34] sm:$0xf] %v391
  %424 = vst [vmem:[%s4 + $0x38] sm:$0xf] %v392
  %425 = vst [vmem:[%s4 + $0x3c] sm:$0xf] %v393
  // Predicated region
  $region18: #{cellpose_sam_apply.14} parent=0 // pred_check
    _
  $region19: #{cellpose_sam_apply.14} parent=0 // pred_check_branch
    %427 = sbr.rel (0) target = $region21
  $region20: #{cellpose_sam_apply.14} parent=0 // pred_region
    _
  $region21: #{cellpose_sam_apply.14} parent=0 // pred_fallthru
    _
  // Predicated region
  $region22: #{cellpose_sam_apply.14} parent=0 // pred_check
    _
  $region23: #{cellpose_sam_apply.14} parent=0 // pred_check_branch
    %429 = sbr.rel (0) target = $region25
  $region24: #{cellpose_sam_apply.14} parent=0 // pred_region
    _
  $region25: #{cellpose_sam_apply.14} parent=0 // pred_fallthru
    _

// kernel: cellpose_sam_apply.15
$region0: #{cellpose_sam_apply.15}
  #allocation0 [shape = 'u32[]', space=smem, size = 0x4, offset = 0x4, fixed_abs, tag = 'smem constant byte address 0x4 - core index']
  #allocation1 [shape = 'u32[144,128]{1,0:T(1,128)}', space=vmem, size = 0x12000, scoped, tag = 'internal scratch']
  %s0 = inlined_call_operand.vmem [shape: bf16[128,128], index: 0, kind: input, shape index: {}]
  %s1 = inlined_call_operand.vmem [shape: bf16[128,384], index: 1, kind: input, shape index: {}]
  %s2 = inlined_call_operand.vmem [shape: f32[1,384], index: 2, kind: input, shape index: {}]
  %s3 = inlined_call_operand.vmem [shape: f32[1,128], index: 3, kind: input, shape index: {}]
  %s4 = inlined_call_operand.vmem [shape: f32[1,128], index: 4, kind: input, shape index: {}]
  %s5 = inlined_call_operand.vmem [shape: bf16[128,384], index: 5, kind: output, shape index: {}]
  %s6 = sld [smem:[#allocation0]]
  $region30: #{cellpose_sam_apply.15} parent=0
    _
  %s8 = ssub.s32 1, %s6
  %s9 = scalar_select 0, %s8, %s6
  // Predicated region
  $region2: #{cellpose_sam_apply.15} parent=0 // pred_check
    _
  $region3: #{cellpose_sam_apply.15} parent=0 // pred_check_branch
    %11 = sbr.rel (0) target = $region5
  $region4: #{cellpose_sam_apply.15} parent=0 // pred_region
    _
  $region5: #{cellpose_sam_apply.15} parent=0 // pred_fallthru
    _
  // Predicated region
  $region6: #{cellpose_sam_apply.15} parent=0 // pred_check
    _
  $region7: #{cellpose_sam_apply.15} parent=0 // pred_check_branch
    %13 = sbr.rel (0) target = $region9
  $region8: #{cellpose_sam_apply.15} parent=0 // pred_region
    _
  $region9: #{cellpose_sam_apply.15} parent=0 // pred_fallthru
    _
  // Predicated region
  $region10: #{cellpose_sam_apply.15} parent=0 // pred_check
    _
  $region11: #{cellpose_sam_apply.15} parent=0 // pred_check_branch
    %15 = sbr.rel (0) target = $region13
  $region12: #{cellpose_sam_apply.15} parent=0 // pred_region
    _
  $region13: #{cellpose_sam_apply.15} parent=0 // pred_fallthru
    _
  // Predicated region
  $region14: #{cellpose_sam_apply.15} parent=0 // pred_check
    _
  $region15: #{cellpose_sam_apply.15} parent=0 // pred_check_branch
    %17 = sbr.rel (0) target = $region17
  $region16: #{cellpose_sam_apply.15} parent=0 // pred_region
    _
  $region17: #{cellpose_sam_apply.15} parent=0 // pred_fallthru
    _
  // Predicated region
  $region18: #{cellpose_sam_apply.15} parent=0 // pred_check
    _
  $region19: #{cellpose_sam_apply.15} parent=0 // pred_check_branch
    %19 = sbr.rel (0) target = $region21
  $region20: #{cellpose_sam_apply.15} parent=0 // pred_region
    _
  $region21: #{cellpose_sam_apply.15} parent=0 // pred_fallthru
    _
  %v21 = vld [vmem:[%s0] sm:$0xf]
  %v22 = vld [vmem:[%s0 + $0x4] sm:$0xf]
  %v23 = vld [vmem:[%s0 + $0x8] sm:$0xf]
  %v24 = vld [vmem:[%s0 + $0xc] sm:$0xf]
  %v25 = vld [vmem:[%s0 + $0x10] sm:$0xf]
  %v26 = vld [vmem:[%s0 + $0x14] sm:$0xf]
  %v27 = vld [vmem:[%s0 + $0x18] sm:$0xf]
  %v28 = vld [vmem:[%s0 + $0x1c] sm:$0xf]
  %v29 = vld [vmem:[%s0 + $0x20] sm:$0xf]
  %v30 = vld [vmem:[%s0 + $0x24] sm:$0xf]
  %v31 = vld [vmem:[%s0 + $0x28] sm:$0xf]
  %v32 = vld [vmem:[%s0 + $0x2c] sm:$0xf]
  %v33 = vld [vmem:[%s0 + $0x30] sm:$0xf]
  %v34 = vld [vmem:[%s0 + $0x34] sm:$0xf]
  %v35 = vld [vmem:[%s0 + $0x38] sm:$0xf]
  %v36 = vld [vmem:[%s0 + $0x3c] sm:$0xf]
  %v37 = vunpack.c.l.bf16 %v21
  %v38 = vunpack.c.l.bf16 %v22
  %v39 = vunpack.c.l.bf16 %v23
  %v40 = vunpack.c.l.bf16 %v24
  %v41 = vunpack.c.l.bf16 %v25
  %v42 = vunpack.c.l.bf16 %v26
  %v43 = vunpack.c.l.bf16 %v27
  %v44 = vunpack.c.l.bf16 %v28
  %v45 = vunpack.c.l.bf16 %v29
  %v46 = vunpack.c.l.bf16 %v30
  %v47 = vunpack.c.l.bf16 %v31
  %v48 = vunpack.c.l.bf16 %v32
  %v49 = vunpack.c.l.bf16 %v33
  %v50 = vunpack.c.l.bf16 %v34
  %v51 = vunpack.c.l.bf16 %v35
  %v52 = vunpack.c.l.bf16 %v36
  %v53 = vld [vmem:[%s3] sm:$0x1]
  %v54 = vld [vmem:[%s4] sm:$0x1]
  %55 = vadd.xlane.f32.xlu0 %v37
  %v56 = vpop.xlane.xlu0 %55
  %57 = vadd.xlane.f32.xlu0 %v38
  %v58 = vpop.xlane.xlu0 %57
  %59 = vadd.xlane.f32.xlu0 %v39
  %v60 = vpop.xlane.xlu0 %59
  %61 = vadd.xlane.f32.xlu0 %v40
  %v62 = vpop.xlane.xlu0 %61
  %63 = vadd.xlane.f32.xlu0 %v41
  %v64 = vpop.xlane.xlu0 %63
  %65 = vadd.xlane.f32.xlu0 %v42
  %v66 = vpop.xlane.xlu0 %65
  %67 = vadd.xlane.f32.xlu0 %v43
  %v68 = vpop.xlane.xlu0 %67
  %69 = vadd.xlane.f32.xlu0 %v44
  %v70 = vpop.xlane.xlu0 %69
  %71 = vadd.xlane.f32.xlu0 %v45
  %v72 = vpop.xlane.xlu0 %71
  %73 = vadd.xlane.f32.xlu0 %v46
  %v74 = vpop.xlane.xlu0 %73
  %75 = vadd.xlane.f32.xlu0 %v47
  %v76 = vpop.xlane.xlu0 %75
  %77 = vadd.xlane.f32.xlu0 %v48
  %v78 = vpop.xlane.xlu0 %77
  %79 = vadd.xlane.f32.xlu0 %v49
  %v80 = vpop.xlane.xlu0 %79
  %81 = vadd.xlane.f32.xlu0 %v50
  %v82 = vpop.xlane.xlu0 %81
  %83 = vadd.xlane.f32.xlu0 %v51
  %v84 = vpop.xlane.xlu0 %83
  %85 = vadd.xlane.f32.xlu0 %v52
  %v86 = vpop.xlane.xlu0 %85
  %v87 = vrcp.pop 128.0
  %v88 = vmul.f32 %v56, %v87
  %v89 = vmul.f32 %v58, %v87
  %v90 = vmul.f32 %v60, %v87
  %v91 = vmul.f32 %v62, %v87
  %v92 = vmul.f32 %v64, %v87
  %v93 = vmul.f32 %v66, %v87
  %v94 = vmul.f32 %v68, %v87
  %v95 = vmul.f32 %v70, %v87
  %v96 = vmul.f32 %v72, %v87
  %v97 = vmul.f32 %v74, %v87
  %v98 = vmul.f32 %v76, %v87
  %v99 = vmul.f32 %v78, %v87
  %v100 = vmul.f32 %v80, %v87
  %v101 = vmul.f32 %v82, %v87
  %v102 = vmul.f32 %v84, %v87
  %v103 = vmul.f32 %v86, %v87
  %v104 = vsub.f32 %v37, %v88
  %v105 = vsub.f32 %v38, %v89
  %v106 = vsub.f32 %v39, %v90
  %v107 = vsub.f32 %v40, %v91
  %v108 = vsub.f32 %v41, %v92
  %v109 = vsub.f32 %v42, %v93
  %v110 = vsub.f32 %v43, %v94
  %v111 = vsub.f32 %v44, %v95
  %v112 = vsub.f32 %v45, %v96
  %v113 = vsub.f32 %v46, %v97
  %v114 = vsub.f32 %v47, %v98
  %v115 = vsub.f32 %v48, %v99
  %v116 = vsub.f32 %v49, %v100
  %v117 = vsub.f32 %v50, %v101
  %v118 = vsub.f32 %v51, %v102
  %v119 = vsub.f32 %v52, %v103
  %v120 = vmul.f32 %v104, %v104
  %v121 = vmul.f32 %v105, %v105
  %v122 = vmul.f32 %v106, %v106
  %v123 = vmul.f32 %v107, %v107
  %v124 = vmul.f32 %v108, %v108
  %v125 = vmul.f32 %v109, %v109
  %v126 = vmul.f32 %v110, %v110
  %v127 = vmul.f32 %v111, %v111
  %v128 = vmul.f32 %v112, %v112
  %v129 = vmul.f32 %v113, %v113
  %v130 = vmul.f32 %v114, %v114
  %v131 = vmul.f32 %v115, %v115
  %v132 = vmul.f32 %v116, %v116
  %v133 = vmul.f32 %v117, %v117
  %v134 = vmul.f32 %v118, %v118
  %v135 = vmul.f32 %v119, %v119
  %136 = vadd.xlane.f32.xlu0 %v120
  %v137 = vpop.xlane.xlu0 %136
  %138 = vadd.xlane.f32.xlu0 %v121
  %v139 = vpop.xlane.xlu0 %138
  %140 = vadd.xlane.f32.xlu0 %v122
  %v141 = vpop.xlane.xlu0 %140
  %142 = vadd.xlane.f32.xlu0 %v123
  %v143 = vpop.xlane.xlu0 %142
  %144 = vadd.xlane.f32.xlu0 %v124
  %v145 = vpop.xlane.xlu0 %144
  %146 = vadd.xlane.f32.xlu0 %v125
  %v147 = vpop.xlane.xlu0 %146
  %148 = vadd.xlane.f32.xlu0 %v126
  %v149 = vpop.xlane.xlu0 %148
  %150 = vadd.xlane.f32.xlu0 %v127
  %v151 = vpop.xlane.xlu0 %150
  %152 = vadd.xlane.f32.xlu0 %v128
  %v153 = vpop.xlane.xlu0 %152
  %154 = vadd.xlane.f32.xlu0 %v129
  %v155 = vpop.xlane.xlu0 %154
  %156 = vadd.xlane.f32.xlu0 %v130
  %v157 = vpop.xlane.xlu0 %156
  %158 = vadd.xlane.f32.xlu0 %v131
  %v159 = vpop.xlane.xlu0 %158
  %160 = vadd.xlane.f32.xlu0 %v132
  %v161 = vpop.xlane.xlu0 %160
  %162 = vadd.xlane.f32.xlu0 %v133
  %v163 = vpop.xlane.xlu0 %162
  %164 = vadd.xlane.f32.xlu0 %v134
  %v165 = vpop.xlane.xlu0 %164
  %166 = vadd.xlane.f32.xlu0 %v135
  %v167 = vpop.xlane.xlu0 %166
  %v168 = vmul.f32 %v137, %v87
  %v169 = vmul.f32 %v139, %v87
  %v170 = vmul.f32 %v141, %v87
  %v171 = vmul.f32 %v143, %v87
  %v172 = vmul.f32 %v145, %v87
  %v173 = vmul.f32 %v147, %v87
  %v174 = vmul.f32 %v149, %v87
  %v175 = vmul.f32 %v151, %v87
  %v176 = vmul.f32 %v153, %v87
  %v177 = vmul.f32 %v155, %v87
  %v178 = vmul.f32 %v157, %v87
  %v179 = vmul.f32 %v159, %v87
  %v180 = vmul.f32 %v161, %v87
  %v181 = vmul.f32 %v163, %v87
  %v182 = vmul.f32 %v165, %v87
  %v183 = vmul.f32 %v167, %v87
  %v184 = vadd.f32 %v168, 1e-06
  %v185 = vadd.f32 %v169, 1e-06
  %v186 = vadd.f32 %v170, 1e-06
  %v187 = vadd.f32 %v171, 1e-06
  %v188 = vadd.f32 %v172, 1e-06
  %v189 = vadd.f32 %v173, 1e-06
  %v190 = vadd.f32 %v174, 1e-06
  %v191 = vadd.f32 %v175, 1e-06
  %v192 = vadd.f32 %v176, 1e-06
  %v193 = vadd.f32 %v177, 1e-06
  %v194 = vadd.f32 %v178, 1e-06
  %v195 = vadd.f32 %v179, 1e-06
  %v196 = vadd.f32 %v180, 1e-06
  %v197 = vadd.f32 %v181, 1e-06
  %v198 = vadd.f32 %v182, 1e-06
  %v199 = vadd.f32 %v183, 1e-06
  %v200 = vrsqrt.pop %v184
  %v201 = vrsqrt.pop %v185
  %v202 = vrsqrt.pop %v186
  %v203 = vrsqrt.pop %v187
  %v204 = vrsqrt.pop %v188
  %v205 = vrsqrt.pop %v189
  %v206 = vrsqrt.pop %v190
  %v207 = vrsqrt.pop %v191
  %v208 = vrsqrt.pop %v192
  %v209 = vrsqrt.pop %v193
  %v210 = vrsqrt.pop %v194
  %v211 = vrsqrt.pop %v195
  %v212 = vrsqrt.pop %v196
  %v213 = vrsqrt.pop %v197
  %v214 = vrsqrt.pop %v198
  %v215 = vrsqrt.pop %v199
  %v216 = vmul.f32 %v104, %v200
  %v217 = vmul.f32 %v105, %v201
  %v218 = vmul.f32 %v106, %v202
  %v219 = vmul.f32 %v107, %v203
  %v220 = vmul.f32 %v108, %v204
  %v221 = vmul.f32 %v109, %v205
  %v222 = vmul.f32 %v110, %v206
  %v223 = vmul.f32 %v111, %v207
  %v224 = vmul.f32 %v112, %v208
  %v225 = vmul.f32 %v113, %v209
  %v226 = vmul.f32 %v114, %v210
  %v227 = vmul.f32 %v115, %v211
  %v228 = vmul.f32 %v116, %v212
  %v229 = vmul.f32 %v117, %v213
  %v230 = vmul.f32 %v118, %v214
  %v231 = vmul.f32 %v119, %v215
  %v233 = vlaneseq
  %v234 = vshrl.u32 %v233, 7
  %v235 = vsub.s32 0, %v234
  %v236 = vrot.slane %v53, %v235
  %v238 = vmul.f32 %v216, %v236
  %v239 = vmul.f32 %v217, %v236
  %v240 = vmul.f32 %v218, %v236
  %v241 = vmul.f32 %v219, %v236
  %v242 = vmul.f32 %v220, %v236
  %v243 = vmul.f32 %v221, %v236
  %v244 = vmul.f32 %v222, %v236
  %v245 = vmul.f32 %v223, %v236
  %v246 = vmul.f32 %v224, %v236
  %v247 = vmul.f32 %v225, %v236
  %v248 = vmul.f32 %v226, %v236
  %v249 = vmul.f32 %v227, %v236
  %v250 = vmul.f32 %v228, %v236
  %v251 = vmul.f32 %v229, %v236
  %v252 = vmul.f32 %v230, %v236
  %v253 = vmul.f32 %v231, %v236
  %v255 = vlaneseq
  %v256 = vshrl.u32 %v255, 7
  %v257 = vsub.s32 0, %v256
  %v258 = vrot.slane %v54, %v257
  %v260 = vadd.f32 %v238, %v258
  %v261 = vadd.f32 %v239, %v258
  %v262 = vadd.f32 %v240, %v258
  %v263 = vadd.f32 %v241, %v258
  %v264 = vadd.f32 %v242, %v258
  %v265 = vadd.f32 %v243, %v258
  %v266 = vadd.f32 %v244, %v258
  %v267 = vadd.f32 %v245, %v258
  %v268 = vadd.f32 %v246, %v258
  %v269 = vadd.f32 %v247, %v258
  %v270 = vadd.f32 %v248, %v258
  %v271 = vadd.f32 %v249, %v258
  %v272 = vadd.f32 %v250, %v258
  %v273 = vadd.f32 %v251, %v258
  %v274 = vadd.f32 %v252, %v258
  %v275 = vadd.f32 %v253, %v258
  %v276 = vpack.c.bf16 %v261, %v260
  %v277 = vpack.c.bf16 %v263, %v262
  %v278 = vpack.c.bf16 %v265, %v264
  %v279 = vpack.c.bf16 %v267, %v266
  %v280 = vpack.c.bf16 %v269, %v268
  %v281 = vpack.c.bf16 %v271, %v270
  %v282 = vpack.c.bf16 %v273, %v272
  %v283 = vpack.c.bf16 %v275, %v274
  %v284 = vld [vmem:[%s1] sm:$0xff]
  %v285 = vld [vmem:[%s1 + $0x8] sm:$0xf]
  %v286 = vld [vmem:[%s1 + $0xc] sm:$0xff]
  %v287 = vld [vmem:[%s1 + $0x14] sm:$0xf]
  %v288 = vld [vmem:[%s1 + $0x18] sm:$0xff]
  %v289 = vld [vmem:[%s1 + $0x20] sm:$0xf]
  %v290 = vld [vmem:[%s1 + $0x24] sm:$0xff]
  %v291 = vld [vmem:[%s1 + $0x2c] sm:$0xf]
  %v292 = vld [vmem:[%s1 + $0x30] sm:$0xff]
  %v293 = vld [vmem:[%s1 + $0x38] sm:$0xf]
  %v294 = vld [vmem:[%s1 + $0x3c] sm:$0xff]
  %v295 = vld [vmem:[%s1 + $0x44] sm:$0xf]
  %v296 = vld [vmem:[%s1 + $0x48] sm:$0xff]
  %v297 = vld [vmem:[%s1 + $0x50] sm:$0xf]
  %v298 = vld [vmem:[%s1 + $0x54] sm:$0xff]
  %v299 = vld [vmem:[%s1 + $0x5c] sm:$0xf]
  %v300 = vld [vmem:[%s1 + $0x60] sm:$0xff]
  %v301 = vld [vmem:[%s1 + $0x68] sm:$0xf]
  %v302 = vld [vmem:[%s1 + $0x6c] sm:$0xff]
  %v303 = vld [vmem:[%s1 + $0x74] sm:$0xf]
  %v304 = vld [vmem:[%s1 + $0x78] sm:$0xff]
  %v305 = vld [vmem:[%s1 + $0x80] sm:$0xf]
  %v306 = vld [vmem:[%s1 + $0x84] sm:$0xff]
  %v307 = vld [vmem:[%s1 + $0x8c] sm:$0xf]
  %v308 = vld [vmem:[%s1 + $0x90] sm:$0xff]
  %v309 = vld [vmem:[%s1 + $0x98] sm:$0xf]
  %v310 = vld [vmem:[%s1 + $0x9c] sm:$0xff]
  %v311 = vld [vmem:[%s1 + $0xa4] sm:$0xf]
  %v312 = vld [vmem:[%s1 + $0xa8] sm:$0xff]
  %v313 = vld [vmem:[%s1 + $0xb0] sm:$0xf]
  %v314 = vld [vmem:[%s1 + $0xb4] sm:$0xff]
  %v315 = vld [vmem:[%s1 + $0xbc] sm:$0xf]
  %v316 = vld [vmem:[%s2] sm:$0x7]
  %v318 = vlaneseq
  %v319 = vshrl.u32 %v318, 7
  %v320 = vsub.s32 0, %v319
  %v321 = vrot.slane %v316, %v320
  %v322 = vlaneseq
  %v323 = vshrl.u32 %v322, 7
  %v324 = vsub.s32 1, %v323
  %v325 = vrot.slane %v316, %v324
  %v326 = vlaneseq
  %v327 = vshrl.u32 %v326, 7
  %v328 = vsub.s32 2, %v327
  %v329 = vrot.slane %v316, %v328
  %v365 = vunpack.c.l.b16 %v284
  %v366 = vunpack.c.h.b16 %v284
  %v367 = vunpack.c.l.b16 %v285
  %v368 = vunpack.c.l.b16 %v286
  %v369 = vunpack.c.h.b16 %v286
  %v370 = vunpack.c.l.b16 %v287
  %v371 = vunpack.c.l.b16 %v288
  %v372 = vunpack.c.h.b16 %v288
  %v373 = vunpack.c.l.b16 %v289
  %v374 = vunpack.c.l.b16 %v290
  %v375 = vunpack.c.h.b16 %v290
  %v376 = vunpack.c.l.b16 %v291
  %v377 = vunpack.c.l.b16 %v292
  %v378 = vunpack.c.h.b16 %v292
  %v379 = vunpack.c.l.b16 %v293
  %v380 = vunpack.c.l.b16 %v294
  %v381 = vunpack.c.h.b16 %v294
  %v382 = vunpack.c.l.b16 %v295
  %v383 = vunpack.c.l.b16 %v296
  %v384 = vunpack.c.h.b16 %v296
  %v385 = vunpack.c.l.b16 %v297
  %v386 = vunpack.c.l.b16 %v298
  %v387 = vunpack.c.h.b16 %v298
  %v388 = vunpack.c.l.b16 %v299
  %v389 = vunpack.c.l.b16 %v300
  %v390 = vunpack.c.h.b16 %v300
  %v391 = vunpack.c.l.b16 %v301
  %v392 = vunpack.c.l.b16 %v302
  %v393 = vunpack.c.h.b16 %v302
  %v394 = vunpack.c.l.b16 %v303
  %v395 = vunpack.c.l.b16 %v304
  %v396 = vunpack.c.h.b16 %v304
  %v397 = vunpack.c.l.b16 %v305
  %v398 = vunpack.c.l.b16 %v306
  %v399 = vunpack.c.h.b16 %v306
  %v400 = vunpack.c.l.b16 %v307
  %v401 = vunpack.c.l.b16 %v308
  %v402 = vunpack.c.h.b16 %v308
  %v403 = vunpack.c.l.b16 %v309
  %v404 = vunpack.c.l.b16 %v310
  %v405 = vunpack.c.h.b16 %v310
  %v406 = vunpack.c.l.b16 %v311
  %v407 = vunpack.c.l.b16 %v312
  %v408 = vunpack.c.h.b16 %v312
  %v409 = vunpack.c.l.b16 %v313
  %v410 = vunpack.c.l.b16 %v314
  %v411 = vunpack.c.h.b16 %v314
  %v412 = vunpack.c.l.b16 %v315
  %v413 = vpack.c.b16 %v368, %v365
  %v414 = vpack.c.b16 %v369, %v366
  %v415 = vpack.c.b16 %v370, %v367
  %v416 = vpack.c.b16 %v374, %v371
  %v417 = vpack.c.b16 %v375, %v372
  %v418 = vpack.c.b16 %v376, %v373
  %v419 = vpack.c.b16 %v380, %v377
  %v420 = vpack.c.b16 %v381, %v378
  %v421 = vpack.c.b16 %v382, %v379
  %v422 = vpack.c.b16 %v386, %v383
  %v423 = vpack.c.b16 %v387, %v384
  %v424 = vpack.c.b16 %v388, %v385
  %v425 = vpack.c.b16 %v392, %v389
  %v426 = vpack.c.b16 %v393, %v390
  %v427 = vpack.c.b16 %v394, %v391
  %v428 = vpack.c.b16 %v398, %v395
  %v429 = vpack.c.b16 %v399, %v396
  %v430 = vpack.c.b16 %v400, %v397
  %v431 = vpack.c.b16 %v404, %v401
  %v432 = vpack.c.b16 %v405, %v402
  %v433 = vpack.c.b16 %v406, %v403
  %v434 = vpack.c.b16 %v410, %v407
  %v435 = vpack.c.b16 %v411, %v408
  %v436 = vpack.c.b16 %v412, %v409
  %461 = vmatprep.subr.bf16.mxu0 %v414
  %462 = vmatpush1.bf16.msra.mxu0 %v413
  %463 = vmatprep.subr.bf16.mxu0 %v417
  %464 = vmatpush1.bf16.msra.mxu0 %v416
  %465 = vmatprep.subr.bf16.mxu0 %v420
  %466 = vmatpush1.bf16.msra.mxu0 %v419
  %467 = vmatprep.subr.bf16.mxu0 %v423
  %468 = vmatpush1.bf16.msra.mxu0 %v422
  %469 = vmatprep.subr.bf16.mxu0 %v426
  %470 = vmatpush1.bf16.msra.mxu0 %v425
  %471 = vmatprep.subr.bf16.mxu0 %v429
  %472 = vmatpush1.bf16.msra.mxu0 %v428
  %473 = vmatprep.subr.bf16.mxu0 %v432
  %474 = vmatpush1.bf16.msra.mxu0 %v431
  %475 = vmatprep.subr.bf16.mxu0 %v435
  %476 = vmatpush1.bf16.msra.mxu0 %v434
  %477 = vmatprep.subr.bf16.mxu0 0
  %478 = vmatpush1.bf16.msra.mxu0 0
  %479 = vmatprep.subr.bf16.mxu0 0
  %480 = vmatpush1.bf16.msra.mxu0 0
  %481 = vmatprep.subr.bf16.mxu0 0
  %482 = vmatpush1.bf16.msra.mxu0 0
  %483 = vmatprep.subr.bf16.mxu0 0
  %484 = vmatpush1.bf16.msra.mxu0 0
  %485 = vmatprep.subr.bf16.mxu0 0
  %486 = vmatpush1.bf16.msra.mxu0 0
  %487 = vmatprep.subr.bf16.mxu0 0
  %488 = vmatpush1.bf16.msra.mxu0 0
  %489 = vmatprep.subr.bf16.mxu0 0
  %490 = vmatpush1.bf16.msra.mxu0 0
  %491 = vmatprep.subr.bf16.mxu0 0
  %492 = vmatpush1.bf16.msra.mxu0 0
  %493 = vmatprep.mubr.bf16.mxu0 0
  %494 = vmatmul.mubr.bf16.gmra.mrb[0].mxu0 %v276
  %v495 = vpop.f32.mrb[0].mxu0
  %v496 = vadd.f32 %v321, %v495
  %v497 = vpop.f32.mrb[0].mxu0
  %v498 = vadd.f32 %v325, %v497
  %v499 = vpop.f32.mrb[0].mxu0
  %v500 = vadd.f32 %v321, %v499
  %v501 = vpop.f32.mrb[0].mxu0
  %v502 = vadd.f32 %v325, %v501
  %503 = vmatprep.mubr.bf16.mxu0 0
  %504 = vmatmul.mubr.bf16.gmra.mrb[0].mxu0 %v277
  %v505 = vpop.f32.mrb[0].mxu0
  %v506 = vadd.f32 %v321, %v505
  %v507 = vpop.f32.mrb[0].mxu0
  %v508 = vadd.f32 %v325, %v507
  %v509 = vpop.f32.mrb[0].mxu0
  %v510 = vadd.f32 %v321, %v509
  %v511 = vpop.f32.mrb[0].mxu0
  %v512 = vadd.f32 %v325, %v511
  %513 = vmatprep.mubr.bf16.mxu0 0
  %514 = vmatmul.mubr.bf16.gmra.mrb[0].mxu0 %v278
  %v515 = vpop.f32.mrb[0].mxu0
  %v516 = vadd.f32 %v321, %v515
  %v517 = vpop.f32.mrb[0].mxu0
  %v518 = vadd.f32 %v325, %v517
  %v519 = vpop.f32.mrb[0].mxu0
  %v520 = vadd.f32 %v321, %v519
  %v521 = vpop.f32.mrb[0].mxu0
  %v522 = vadd.f32 %v325, %v521
  %523 = vmatprep.mubr.bf16.mxu0 0
  %524 = vmatmul.mubr.bf16.gmra.mrb[0].mxu0 %v279
  %v525 = vpop.f32.mrb[0].mxu0
  %v526 = vadd.f32 %v321, %v525
  %v527 = vpop.f32.mrb[0].mxu0
  %v528 = vadd.f32 %v325, %v527
  %v529 = vpop.f32.mrb[0].mxu0
  %v530 = vadd.f32 %v321, %v529
  %v531 = vpop.f32.mrb[0].mxu0
  %v532 = vadd.f32 %v325, %v531
  %533 = vmatprep.mubr.bf16.mxu0 0
  %534 = vmatmul.mubr.bf16.gmra.mrb[0].mxu0 %v280
  %v535 = vpop.f32.mrb[0].mxu0
  %v536 = vadd.f32 %v321, %v535
  %v537 = vpop.f32.mrb[0].mxu0
  %v538 = vadd.f32 %v325, %v537
  %v539 = vpop.f32.mrb[0].mxu0
  %v540 = vadd.f32 %v321, %v539
  %v541 = vpop.f32.mrb[0].mxu0
  %v542 = vadd.f32 %v325, %v541
  %543 = vmatprep.mubr.bf16.mxu0 0
  %544 = vmatmul.mubr.bf16.gmra.mrb[0].mxu0 %v281
  %v545 = vpop.f32.mrb[0].mxu0
  %v546 = vadd.f32 %v321, %v545
  %v547 = vpop.f32.mrb[0].mxu0
  %v548 = vadd.f32 %v325, %v547
  %v549 = vpop.f32.mrb[0].mxu0
  %v550 = vadd.f32 %v321, %v549
  %v551 = vpop.f32.mrb[0].mxu0
  %v552 = vadd.f32 %v325, %v551
  %553 = vmatprep.mubr.bf16.mxu0 0
  %554 = vmatmul.mubr.bf16.gmra.mrb[0].mxu0 %v282
  %v555 = vpop.f32.mrb[0].mxu0
  %v556 = vadd.f32 %v321, %v555
  %v557 = vpop.f32.mrb[0].mxu0
  %v558 = vadd.f32 %v325, %v557
  %v559 = vpop.f32.mrb[0].mxu0
  %v560 = vadd.f32 %v321, %v559
  %v561 = vpop.f32.mrb[0].mxu0
  %v562 = vadd.f32 %v325, %v561
  %563 = vmatprep.mubr.bf16.mxu0 0
  %564 = vmatmul.mubr.bf16.gmra.mrb[0].mxu0 %v283
  %v565 = vpop.f32.mrb[0].mxu0
  %v566 = vadd.f32 %v321, %v565
  %v567 = vpop.f32.mrb[0].mxu0
  %v568 = vadd.f32 %v325, %v567
  %v569 = vpop.f32.mrb[0].mxu0
  %v570 = vadd.f32 %v321, %v569
  %v571 = vpop.f32.mrb[0].mxu0
  %v572 = vadd.f32 %v325, %v571
  %573 = vdwg.mxu0
  %574 = vmatprep.subr.bf16.mxu0 0
  %575 = vmatpush1.bf16.msra.mxu0 %v415
  %576 = vmatprep.subr.bf16.mxu0 0
  %577 = vmatpush1.bf16.msra.mxu0 %v418
  %578 = vmatprep.subr.bf16.mxu0 0
  %579 = vmatpush1.bf16.msra.mxu0 %v421
  %580 = vmatprep.subr.bf16.mxu0 0
  %581 = vmatpush1.bf16.msra.mxu0 %v424
  %582 = vmatprep.subr.bf16.mxu0 0
  %583 = vmatpush1.bf16.msra.mxu0 %v427
  %584 = vmatprep.subr.bf16.mxu0 0
  %585 = vmatpush1.bf16.msra.mxu0 %v430
  %586 = vmatprep.subr.bf16.mxu0 0
  %587 = vmatpush1.bf16.msra.mxu0 %v433
  %588 = vmatprep.subr.bf16.mxu0 0
  %589 = vmatpush1.bf16.msra.mxu0 %v436
  %590 = vmatprep.subr.bf16.mxu0 0
  %591 = vmatpush1.bf16.msra.mxu0 0
  %592 = vmatprep.subr.bf16.mxu0 0
  %593 = vmatpush1.bf16.msra.mxu0 0
  %594 = vmatprep.subr.bf16.mxu0 0
  %595 = vmatpush1.bf16.msra.mxu0 0
  %596 = vmatprep.subr.bf16.mxu0 0
  %597 = vmatpush1.bf16.msra.mxu0 0
  %598 = vmatprep.subr.bf16.mxu0 0
  %599 = vmatpush1.bf16.msra.mxu0 0
  %600 = vmatprep.subr.bf16.mxu0 0
  %601 = vmatpush1.bf16.msra.mxu0 0
  %602 = vmatprep.subr.bf16.mxu0 0
  %603 = vmatpush1.bf16.msra.mxu0 0
  %604 = vmatprep.subr.bf16.mxu0 0
  %605 = vmatpush1.bf16.msra.mxu0 0
  %606 = vmatprep.mubr.bf16.mxu0 0
  %607 = vmatmul.mubr.bf16.gmra.mrb[0].mxu0 %v276
  %v608 = vpop.f32.mrb[0].mxu0
  %v609 = vadd.f32 %v329, %v608
  %v610 = vpop.f32.mrb[0].mxu0
  %v611 = vpop.f32.mrb[0].mxu0
  %v612 = vadd.f32 %v329, %v611
  %v613 = vpop.f32.mrb[0].mxu0
  %614 = vmatprep.mubr.bf16.mxu0 0
  %615 = vmatmul.mubr.bf16.gmra.mrb[0].mxu0 %v277
  %v616 = vpop.f32.mrb[0].mxu0
  %v617 = vadd.f32 %v329, %v616
  %v618 = vpop.f32.mrb[0].mxu0
  %v619 = vpop.f32.mrb[0].mxu0
  %v620 = vadd.f32 %v329, %v619
  %v621 = vpop.f32.mrb[0].mxu0
  %622 = vmatprep.mubr.bf16.mxu0 0
  %623 = vmatmul.mubr.bf16.gmra.mrb[0].mxu0 %v278
  %v624 = vpop.f32.mrb[0].mxu0
  %v625 = vadd.f32 %v329, %v624
  %v626 = vpop.f32.mrb[0].mxu0
  %v627 = vpop.f32.mrb[0].mxu0
  %v628 = vadd.f32 %v329, %v627
  %v629 = vpop.f32.mrb[0].mxu0
  %630 = vmatprep.mubr.bf16.mxu0 0
  %631 = vmatmul.mubr.bf16.gmra.mrb[0].mxu0 %v279
  %v632 = vpop.f32.mrb[0].mxu0
  %v633 = vadd.f32 %v329, %v632
  %v634 = vpop.f32.mrb[0].mxu0
  %v635 = vpop.f32.mrb[0].mxu0
  %v636 = vadd.f32 %v329, %v635
  %v637 = vpop.f32.mrb[0].mxu0
  %638 = vmatprep.mubr.bf16.mxu0 0
  %639 = vmatmul.mubr.bf16.gmra.mrb[0].mxu0 %v280
  %v640 = vpop.f32.mrb[0].mxu0
  %v641 = vadd.f32 %v329, %v640
  %v642 = vpop.f32.mrb[0].mxu0
  %v643 = vpop.f32.mrb[0].mxu0
  %v644 = vadd.f32 %v329, %v643
  %v645 = vpop.f32.mrb[0].mxu0
  %646 = vmatprep.mubr.bf16.mxu0 0
  %647 = vmatmul.mubr.bf16.gmra.mrb[0].mxu0 %v281
  %v648 = vpop.f32.mrb[0].mxu0
  %v649 = vadd.f32 %v329, %v648
  %v650 = vpop.f32.mrb[0].mxu0
  %v651 = vpop.f32.mrb[0].mxu0
  %v652 = vadd.f32 %v329, %v651
  %v653 = vpop.f32.mrb[0].mxu0
  %654 = vmatprep.mubr.bf16.mxu0 0
  %655 = vmatmul.mubr.bf16.gmra.mrb[0].mxu0 %v282
  %v656 = vpop.f32.mrb[0].mxu0
  %v657 = vadd.f32 %v329, %v656
  %v658 = vpop.f32.mrb[0].mxu0
  %v659 = vpop.f32.mrb[0].mxu0
  %v660 = vadd.f32 %v329, %v659
  %v661 = vpop.f32.mrb[0].mxu0
  %662 = vmatprep.mubr.bf16.mxu0 0
  %663 = vmatmul.mubr.bf16.gmra.mrb[0].mxu0 %v283
  %v664 = vpop.f32.mrb[0].mxu0
  %v665 = vadd.f32 %v329, %v664
  %v666 = vpop.f32.mrb[0].mxu0
  %v667 = vpop.f32.mrb[0].mxu0
  %v668 = vadd.f32 %v329, %v667
  %v669 = vpop.f32.mrb[0].mxu0
  %670 = vdwg.mxu0
  %v671 = vpack.c.bf16 %v500, %v496
  %v672 = vpack.c.bf16 %v502, %v498
  %v673 = vpack.c.bf16 %v612, %v609
  %v674 = vpack.c.bf16 %v510, %v506
  %v675 = vpack.c.bf16 %v512, %v508
  %v676 = vpack.c.bf16 %v620, %v617
  %v677 = vpack.c.bf16 %v520, %v516
  %v678 = vpack.c.bf16 %v522, %v518
  %v679 = vpack.c.bf16 %v628, %v625
  %v680 = vpack.c.bf16 %v530, %v526
  %v681 = vpack.c.bf16 %v532, %v528
  %v682 = vpack.c.bf16 %v636, %v633
  %v683 = vpack.c.bf16 %v540, %v536
  %v684 = vpack.c.bf16 %v542, %v538
  %v685 = vpack.c.bf16 %v644, %v641
  %v686 = vpack.c.bf16 %v550, %v546
  %v687 = vpack.c.bf16 %v552, %v548
  %v688 = vpack.c.bf16 %v652, %v649
  %v689 = vpack.c.bf16 %v560, %v556
  %v690 = vpack.c.bf16 %v562, %v558
  %v691 = vpack.c.bf16 %v660, %v657
  %v692 = vpack.c.bf16 %v570, %v566
  %v693 = vpack.c.bf16 %v572, %v568
  %v694 = vpack.c.bf16 %v668, %v665
  %v719 = vunpack.c.l.b16 %v671
  %v720 = vunpack.c.l.b16 %v672
  %v721 = vunpack.c.l.b16 %v673
  %v722 = vunpack.c.h.b16 %v671
  %v723 = vunpack.c.h.b16 %v672
  %v724 = vunpack.c.h.b16 %v673
  %v725 = vunpack.c.l.b16 %v674
  %v726 = vunpack.c.l.b16 %v675
  %v727 = vunpack.c.l.b16 %v676
  %v728 = vunpack.c.h.b16 %v674
  %v729 = vunpack.c.h.b16 %v675
  %v730 = vunpack.c.h.b16 %v676
  %v731 = vunpack.c.l.b16 %v677
  %v732 = vunpack.c.l.b16 %v678
  %v733 = vunpack.c.l.b16 %v679
  %v734 = vunpack.c.h.b16 %v677
  %v735 = vunpack.c.h.b16 %v678
  %v736 = vunpack.c.h.b16 %v679
  %v737 = vunpack.c.l.b16 %v680
  %v738 = vunpack.c.l.b16 %v681
  %v739 = vunpack.c.l.b16 %v682
  %v740 = vunpack.c.h.b16 %v680
  %v741 = vunpack.c.h.b16 %v681
  %v742 = vunpack.c.h.b16 %v682
  %v743 = vunpack.c.l.b16 %v683
  %v744 = vunpack.c.l.b16 %v684
  %v745 = vunpack.c.l.b16 %v685
  %v746 = vunpack.c.h.b16 %v683
  %v747 = vunpack.c.h.b16 %v684
  %v748 = vunpack.c.h.b16 %v685
  %v749 = vunpack.c.l.b16 %v686
  %v750 = vunpack.c.l.b16 %v687
  %v751 = vunpack.c.l.b16 %v688
  %v752 = vunpack.c.h.b16 %v686
  %v753 = vunpack.c.h.b16 %v687
  %v754 = vunpack.c.h.b16 %v688
  %v755 = vunpack.c.l.b16 %v689
  %v756 = vunpack.c.l.b16 %v690
  %v757 = vunpack.c.l.b16 %v691
  %v758 = vunpack.c.h.b16 %v689
  %v759 = vunpack.c.h.b16 %v690
  %v760 = vunpack.c.h.b16 %v691
  %v761 = vunpack.c.l.b16 %v692
  %v762 = vunpack.c.l.b16 %v693
  %v763 = vunpack.c.l.b16 %v694
  %v764 = vunpack.c.h.b16 %v692
  %v765 = vunpack.c.h.b16 %v693
  %v766 = vunpack.c.h.b16 %v694
  %v767 = vpack.c.b16 %v720, %v719
  %v768 = vpack.c.b16 %v721, %v721
  %v769 = vpack.c.b16 %v723, %v722
  %v770 = vpack.c.b16 %v724, %v724
  %v771 = vpack.c.b16 %v726, %v725
  %v772 = vpack.c.b16 %v727, %v727
  %v773 = vpack.c.b16 %v729, %v728
  %v774 = vpack.c.b16 %v730, %v730
  %v775 = vpack.c.b16 %v732, %v731
  %v776 = vpack.c.b16 %v733, %v733
  %v777 = vpack.c.b16 %v735, %v734
  %v778 = vpack.c.b16 %v736, %v736
  %v779 = vpack.c.b16 %v738, %v737
  %v780 = vpack.c.b16 %v739, %v739
  %v781 = vpack.c.b16 %v741, %v740
  %v782 = vpack.c.b16 %v742, %v742
  %v783 = vpack.c.b16 %v744, %v743
  %v784 = vpack.c.b16 %v745, %v745
  %v785 = vpack.c.b16 %v747, %v746
  %v786 = vpack.c.b16 %v748, %v748
  %v787 = vpack.c.b16 %v750, %v749
  %v788 = vpack.c.b16 %v751, %v751
  %v789 = vpack.c.b16 %v753, %v752
  %v790 = vpack.c.b16 %v754, %v754
  %v791 = vpack.c.b16 %v756, %v755
  %v792 = vpack.c.b16 %v757, %v757
  %v793 = vpack.c.b16 %v759, %v758
  %v794 = vpack.c.b16 %v760, %v760
  %v795 = vpack.c.b16 %v762, %v761
  %v796 = vpack.c.b16 %v763, %v763
  %v797 = vpack.c.b16 %v765, %v764
  %v798 = vpack.c.b16 %v766, %v766
  %831 = vst [vmem:[%s5] sm:$0xff] %v767
  %832 = vst [vmem:[%s5 + $0x8] sm:$0xf] %v768
  %833 = vst [vmem:[%s5 + $0xc] sm:$0xff] %v769
  %834 = vst [vmem:[%s5 + $0x14] sm:$0xf] %v770
  %835 = vst [vmem:[%s5 + $0x18] sm:$0xff] %v771
  %836 = vst [vmem:[%s5 + $0x20] sm:$0xf] %v772
  %837 = vst [vmem:[%s5 + $0x24] sm:$0xff] %v773
  %838 = vst [vmem:[%s5 + $0x2c] sm:$0xf] %v774
  %839 = vst [vmem:[%s5 + $0x30] sm:$0xff] %v775
  %840 = vst [vmem:[%s5 + $0x38] sm:$0xf] %v776
  %841 = vst [vmem:[%s5 + $0x3c] sm:$0xff] %v777
  %842 = vst [vmem:[%s5 + $0x44] sm:$0xf] %v778
  %843 = vst [vmem:[%s5 + $0x48] sm:$0xff] %v779
  %844 = vst [vmem:[%s5 + $0x50] sm:$0xf] %v780
  %845 = vst [vmem:[%s5 + $0x54] sm:$0xff] %v781
  %846 = vst [vmem:[%s5 + $0x5c] sm:$0xf] %v782
  %847 = vst [vmem:[%s5 + $0x60] sm:$0xff] %v783
  %848 = vst [vmem:[%s5 + $0x68] sm:$0xf] %v784
  %849 = vst [vmem:[%s5 + $0x6c] sm:$0xff] %v785
  %850 = vst [vmem:[%s5 + $0x74] sm:$0xf] %v786
  %851 = vst [vmem:[%s5 + $0x78] sm:$0xff] %v787
  %852 = vst [vmem:[%s5 + $0x80] sm:$0xf] %v788
  %853 = vst [vmem:[%s5 + $0x84] sm:$0xff] %v789
  %854 = vst [vmem:[%s5 + $0x8c] sm:$0xf] %v790
  %855 = vst [vmem:[%s5 + $0x90] sm:$0xff] %v791
  %856 = vst [vmem:[%s5 + $0x98] sm:$0xf] %v792
  %857 = vst [vmem:[%s5 + $0x9c] sm:$0xff] %v793
  %858 = vst [vmem:[%s5 + $0xa4] sm:$0xf] %v794
  %859 = vst [vmem:[%s5 + $0xa8] sm:$0xff] %v795
  %860 = vst [vmem:[%s5 + $0xb0] sm:$0xf] %v796
  %861 = vst [vmem:[%s5 + $0xb4] sm:$0xff] %v797
  %862 = vst [vmem:[%s5 + $0xbc] sm:$0xf] %v798
  // Predicated region
  $region22: #{cellpose_sam_apply.15} parent=0 // pred_check
    _
  $region23: #{cellpose_sam_apply.15} parent=0 // pred_check_branch
    %864 = sbr.rel (0) target = $region25
  $region24: #{cellpose_sam_apply.15} parent=0 // pred_region
    _
  $region25: #{cellpose_sam_apply.15} parent=0 // pred_fallthru
    _
  // Predicated region
  $region26: #{cellpose_sam_apply.15} parent=0 // pred_check
    _
  $region27: #{cellpose_sam_apply.15} parent=0 // pred_check_branch
    %866 = sbr.rel (0) target = $region29
  $region28: #{cellpose_sam_apply.15} parent=0 // pred_region
    _
  $region29: #{cellpose_sam_apply.15} parent=0 // pred_fallthru
    _

// kernel: cellpose_sam_apply.16
$region0: #{cellpose_sam_apply.16}
  #allocation0 [shape = 'u32[]', space=smem, size = 0x4, offset = 0x4, fixed_abs, tag = 'smem constant byte address 0x4 - core index']
  #allocation1 [shape = 'u32[144,128]{1,0:T(1,128)}', space=vmem, size = 0x12000, scoped, tag = 'internal scratch']
  #allocation2 [shape = 'f32[64,2]{1,0:T(8,128)}', space=vmem, size = 0x8000, scoped, tag = 'scratch operand']
  #allocation3 [shape = 'f32[64,2]{1,0:T(8,128)}', space=vmem, size = 0x8000, scoped, tag = 'scratch operand']
  #allocation4 [shape = 'f32[64,128]{1,0:T(8,128)}', space=vmem, size = 0x8000, scoped, tag = 'scratch operand']
  %s0 = inlined_call_operand.vmem [shape: bf16[2,64,384], index: 0, kind: input, shape index: {}, may-alias: {0,1,2}]
  %s1 = inlined_call_operand.vmem [shape: bf16[2,64,384], index: 1, kind: input, shape index: {}, may-alias: {0,1,2}]
  %s2 = inlined_call_operand.vmem [shape: bf16[2,64,384], index: 2, kind: input, shape index: {}, may-alias: {0,1,2}]
  %s3 = inlined_call_operand.vmem [shape: bf16[2,64,128], index: 3, kind: output, shape index: {}]
  %s4 = sld [smem:[#allocation0]]
  $region176: #{cellpose_sam_apply.16} parent=0
    _
  %s6 = ssub.s32 1, %s4
  %s7 = scalar_select 0, %s6, %s4
  $region1: #{cellpose_sam_apply.16} parent=0
    #allocation5 [shape = 'u8[32768]{0}', space=vmem, size = 0x8000, scoped, tag = 'input window, operand 0']
    #allocation6 [shape = 'u8[32768]{0}', space=vmem, size = 0x8000, scoped, tag = 'input window, operand 1']
    #allocation7 [shape = 'u8[32768]{0}', space=vmem, size = 0x8000, scoped, tag = 'input window, operand 2']
    loop: start=0, step=1, limit=4
    $region2: #{cellpose_sam_apply.16} parent=1 // loop_pre_header
      _
    $region3: #{cellpose_sam_apply.16} parent=1 // loop_header
      %s9 = sphi 0, %s13
      %p10 = scmp.ge.s32.totalorder %s9, 4
      %s16 = sphi 0, %s42
      %s17 = sphi 0, %s38
      %s18 = sphi 0, %s34
      %s19 = sphi 0, %s30
      %s20 = sphi 0, %s16
      %s21 = sphi 0, %s17
      %s22 = sphi 0, %s18
      %s23 = sphi 0, %s19
      %s24 = sphi 0, %s20
      %s25 = sphi 0, %s21
      %s26 = sphi 0, %s22
      %s27 = sphi 0, %s23
      %s49 = sphi 0, %s51
      %s52 = sphi 0, %s49
      %s53 = sphi 0, %s52
      %s69 = sphi 0, %s53
      %s81 = sphi 0, %s83
      %s84 = sphi 0, %s81
      %s85 = sphi 0, %s84
      %s101 = sphi 0, %s85
      %s113 = sphi 0, %s115
      %s116 = sphi 0, %s113
      %s117 = sphi 0, %s116
      %s133 = sphi 0, %s117
      %s143 = sphi 0, %s145
      %s146 = sphi 0, %s143
      %s147 = sphi 0, %s146
      %s163 = sphi 0, %s147
    $region4: #{cellpose_sam_apply.16} parent=1 // loop_header_branch
      %12 = sbr.rel (%p10) target = $region8
    $region5: #{cellpose_sam_apply.16} parent=1 // loop_body
      %s14 = ssub.s32 %s9, 1
      %s15 = ssub.s32 %s9, 2
      %s28 = sadd.s32 1, %s19
      %p29 = scmp.ge.s32.totalorder %s28, 1
      %s30 = scalar_select %p29, 0, %s28
      %s31 = sadd.s32 1, %s18
      %s32 = scalar_select %p29, %s31, %s18
      %p33 = scmp.ge.s32.totalorder %s32, 1
      %s34 = scalar_select %p33, 0, %s32
      %s35 = sadd.s32 1, %s17
      %s36 = scalar_select %p33, %s35, %s17
      %p37 = scmp.ge.s32.totalorder %s36, 1
      %s38 = scalar_select %p37, 0, %s36
      %s39 = sadd.s32 1, %s16
      %s40 = scalar_select %p37, %s39, %s16
      %p41 = scmp.ge.s32.totalorder %s40, 2
      %s42 = scalar_select %p41, 0, %s40
      %s43 = ssub.s32 %s16, %s42
      %s44 = ssub.s32 %s18, %s34
      %s45 = sor.u32 %s43, %s44
      %s46 = ssub.s32 %s17, %s38
      %s47 = sor.u32 %s45, %s46
      %p48 = scmp.eq.s32.totalorder %s47, 0
      %s50 = sadd.s32 %s49, 1
      %s51 = scalar_select %p48, %s49, %s50
      %p54 = pneg %p48
      %p55 = scmp.eq.s32.totalorder %s9, 1
      %p56 = por %p54, %p55
      %p57 = scmp.ne.s32.totalorder %s49, %s52
      %p58 = scmp.eq.s32.totalorder %s9, 0
      %p59 = por %p57, %p58
      %p60 = scmp.ne.s32.totalorder %s49, %s52
      %p61 = scmp.eq.s32.totalorder %s14, 1
      %p62 = por %p60, %p61
      %p63 = scmp.ne.s32.totalorder %s52, %s53
      %p64 = scmp.eq.s32.totalorder %s14, 0
      %p65 = por %p63, %p64
      %p66 = scmp.ne.s32.totalorder %s52, %s53
      %p67 = scmp.eq.s32.totalorder %s15, 1
      %p68 = por %p66, %p67
      %p70 = scmp.ne.s32.totalorder %s53, %s69
      %p71 = scmp.eq.s32.totalorder %s15, 0
      %p72 = por %p70, %p71
      %s73 = sadd.s32 %s17, 1
      %s74 = sadd.s32 %s38, 1
      %s75 = ssub.s32 %s16, %s42
      %s76 = ssub.s32 %s19, %s30
      %s77 = sor.u32 %s75, %s76
      %s78 = ssub.s32 %s73, %s74
      %s79 = sor.u32 %s77, %s78
      %p80 = scmp.eq.s32.totalorder %s79, 0
      %s82 = sadd.s32 %s81, 1
      %s83 = scalar_select %p80, %s81, %s82
      %p86 = pneg %p80
      %p87 = scmp.eq.s32.totalorder %s9, 1
      %p88 = por %p86, %p87
      %p89 = scmp.ne.s32.totalorder %s81, %s84
      %p90 = scmp.eq.s32.totalorder %s9, 0
      %p91 = por %p89, %p90
      %p92 = scmp.ne.s32.totalorder %s81, %s84
      %p93 = scmp.eq.s32.totalorder %s14, 1
      %p94 = por %p92, %p93
      %p95 = scmp.ne.s32.totalorder %s84, %s85
      %p96 = scmp.eq.s32.totalorder %s14, 0
      %p97 = por %p95, %p96
      %p98 = scmp.ne.s32.totalorder %s84, %s85
      %p99 = scmp.eq.s32.totalorder %s15, 1
      %p100 = por %p98, %p99
      %p102 = scmp.ne.s32.totalorder %s85, %s101
      %p103 = scmp.eq.s32.totalorder %s15, 0
      %p104 = por %p102, %p103
      %s105 = sadd.s32 %s17, 2
      %s106 = sadd.s32 %s38, 2
      %s107 = ssub.s32 %s16, %s42
      %s108 = ssub.s32 %s19, %s30
      %s109 = sor.u32 %s107, %s108
      %s110 = ssub.s32 %s105, %s106
      %s111 = sor.u32 %s109, %s110
      %p112 = scmp.eq.s32.totalorder %s111, 0
      %s114 = sadd.s32 %s113, 1
      %s115 = scalar_select %p112, %s113, %s114
      %p118 = pneg %p112
      %p119 = scmp.eq.s32.totalorder %s9, 1
      %p120 = por %p118, %p119
      %p121 = scmp.ne.s32.totalorder %s113, %s116
      %p122 = scmp.eq.s32.totalorder %s9, 0
      %p123 = por %p121, %p122
      %p124 = scmp.ne.s32.totalorder %s113, %s116
      %p125 = scmp.eq.s32.totalorder %s14, 1
      %p126 = por %p124, %p125
      %p127 = scmp.ne.s32.totalorder %s116, %s117
      %p128 = scmp.eq.s32.totalorder %s14, 0
      %p129 = por %p127, %p128
      %p130 = scmp.ne.s32.totalorder %s116, %s117
      %p131 = scmp.eq.s32.totalorder %s15, 1
      %p132 = por %p130, %p131
      %p134 = scmp.ne.s32.totalorder %s117, %s133
      %p135 = scmp.eq.s32.totalorder %s15, 0
      %p136 = por %p134, %p135
      %s137 = ssub.s32 %s16, %s42
      %s138 = ssub.s32 %s18, %s34
      %s139 = sor.u32 %s137, %s138
      %s140 = ssub.s32 %s17, %s38
      %s141 = sor.u32 %s139, %s140
      %p142 = scmp.eq.s32.totalorder %s141, 0
      %s144 = sadd.s32 %s143, 1
      %s145 = scalar_select %p142, %s143, %s144
      %p148 = pneg %p142
      %p149 = scmp.eq.s32.totalorder %s9, 1
      %p150 = por %p148, %p149
      %p151 = scmp.ne.s32.totalorder %s143, %s146
      %p152 = scmp.eq.s32.totalorder %s9, 0
      %p153 = por %p151, %p152
      %p154 = scmp.ne.s32.totalorder %s143, %s146
      %p155 = scmp.eq.s32.totalorder %s14, 1
      %p156 = por %p154, %p155
      %p157 = scmp.ne.s32.totalorder %s146, %s147
      %p158 = scmp.eq.s32.totalorder %s14, 0
      %p159 = por %p157, %p158
      %p160 = scmp.ne.s32.totalorder %s146, %s147
      %p161 = scmp.eq.s32.totalorder %s15, 1
      %p162 = por %p160, %p161
      %p164 = scmp.ne.s32.totalorder %s147, %s163
      %p165 = scmp.eq.s32.totalorder %s15, 0
      %p166 = por %p164, %p165
      %p167 = scmp.le.s32.totalorder 1, %s9
      %p168 = scmp.lt.s32.totalorder %s9, 3
      %p169 = pnand %p167, %p168
      %p170 = pneg %p169
      // Predicated region
      $region9: #{cellpose_sam_apply.16} parent=5 // pred_check
        _
      $region10: #{cellpose_sam_apply.16} parent=5 // pred_check_branch
        %172 = sbr.rel (%p169) target = $region12
      $region11: #{cellpose_sam_apply.16} parent=5 // pred_region
        %s173 = ssub.s32 %s9, 1
      $region12: #{cellpose_sam_apply.16} parent=5 // pred_fallthru
        _
      %p174 = scmp.lt.s32.totalorder %s9, 2
      // Predicated region
      $region13: #{cellpose_sam_apply.16} parent=5 // pred_check
        %p175 = pneg %p174
      $region14: #{cellpose_sam_apply.16} parent=5 // pred_check_branch
        %177 = sbr.rel (%p175) target = $region16
      $region15: #{cellpose_sam_apply.16} parent=5 // pred_region
        // Predicated region
        $region17: #{cellpose_sam_apply.16} parent=15 // pred_check
          %p178 = pneg %p59
        $region18: #{cellpose_sam_apply.16} parent=15 // pred_check_branch
          %180 = sbr.rel (%p178) target = $region20
        $region19: #{cellpose_sam_apply.16} parent=15 // pred_region
          %s181 = sand.u32 %s49, 1
          %s182 = sand.u32 %s49, 1
          %s183 = smul.addr %s182, 32
          %s184 = scalar_lea.vmem [#allocation5], %s183
          %s185 = smul.u32 8, %s18
          %s186 = smul.addr %s185, 3
          %s187 = sadd.s32 %s17, %s186
          %s188 = smul.addr %s16, 24
          %s189 = sadd.s32 %s187, %s188
          %s190 = smul.addr %s189, 4
          %s191 = scalar_lea.vmem %s0, %s190
          // Predicated region
          $region21: #{cellpose_sam_apply.16} parent=19 // pred_check
            _
          $region22: #{cellpose_sam_apply.16} parent=19 // pred_check_branch
            %193 = sbr.rel (0) target = $region24
          $region23: #{cellpose_sam_apply.16} parent=19 // pred_region
            // Predicated region
            $region25: #{cellpose_sam_apply.16} parent=23 // pred_check
              _
            $region26: #{cellpose_sam_apply.16} parent=23 // pred_check_branch
              %195 = sbr.rel target = $region28
            $region27: #{cellpose_sam_apply.16} parent=23 // pred_region
              // Predicated region
              $region40: #{cellpose_sam_apply.16} parent=27 // pred_check
                _
              $region41: #{cellpose_sam_apply.16} parent=27 // pred_check_branch
                %224 = sbr.rel (0) target = $region43
              $region42: #{cellpose_sam_apply.16} parent=27 // pred_region
                loop: start=0, step=1, limit=1
                $region44: #{cellpose_sam_apply.16} parent=42 // loop_pre_header
                  _
                $region45: #{cellpose_sam_apply.16} parent=42 // loop_header
                  %s226 = sphi 0, %s230
                  %p227 = scmp.ge.s32.totalorder %s226, 1
                  %s231 = sphi %s191, %s191
                  %s232 = sphi %s184, %s184
                $region46: #{cellpose_sam_apply.16} parent=42 // loop_header_branch
                  %229 = sbr.rel (%p227) target = $region50
                $region47: #{cellpose_sam_apply.16} parent=42 // loop_body
                  _
                $region48: #{cellpose_sam_apply.16} parent=42 // loop_footer
                  %s230 = sadd.s32 1, %s226
                $region49: #{cellpose_sam_apply.16} parent=42 // loop_footer_branch
                  %225 = sbr.rel target = $region45
                $region50: #{cellpose_sam_apply.16} parent=42 // loop_exit
                  _
                loop: start=0, step=1, limit=1
                $region51: #{cellpose_sam_apply.16} parent=42 // loop_pre_header
                  _
                $region52: #{cellpose_sam_apply.16} parent=42 // loop_header
                  %s235 = sphi 0, %s239
                  %p236 = scmp.ge.s32.totalorder %s235, 1
                  %s240 = sphi %s191, %s191
                  %s241 = sphi %s184, %s184
                $region53: #{cellpose_sam_apply.16} parent=42 // loop_header_branch
                  %238 = sbr.rel (%p236) target = $region57
                $region54: #{cellpose_sam_apply.16} parent=42 // loop_body
                  %v242 = vld [vmem:[%s240] sm:$0xf]
                  %243 = vst [vmem:[%s241] sm:$0xf] %v242
                  %v244 = vld [vmem:[%s240 + $0xc] sm:$0xf]
                  %245 = vst [vmem:[%s241 + $0x4] sm:$0xf] %v244
                  %v246 = vld [vmem:[%s240 + $0x18] sm:$0xf]
                  %247 = vst [vmem:[%s241 + $0x8] sm:$0xf] %v246
                  %v248 = vld [vmem:[%s240 + $0x24] sm:$0xf]
                  %249 = vst [vmem:[%s241 + $0xc] sm:$0xf] %v248
                  %v250 = vld [vmem:[%s240 + $0x30] sm:$0xf]
                  %251 = vst [vmem:[%s241 + $0x10] sm:$0xf] %v250
                  %v252 = vld [vmem:[%s240 + $0x3c] sm:$0xf]
                  %253 = vst [vmem:[%s241 + $0x14] sm:$0xf] %v252
                  %v254 = vld [vmem:[%s240 + $0x48] sm:$0xf]
                  %255 = vst [vmem:[%s241 + $0x18] sm:$0xf] %v254
                  %v256 = vld [vmem:[%s240 + $0x54] sm:$0xf]
                  %257 = vst [vmem:[%s241 + $0x1c] sm:$0xf] %v256
                $region55: #{cellpose_sam_apply.16} parent=42 // loop_footer
                  %s239 = sadd.s32 1, %s235
                $region56: #{cellpose_sam_apply.16} parent=42 // loop_footer_branch
                  %234 = sbr.rel target = $region52
                $region57: #{cellpose_sam_apply.16} parent=42 // loop_exit
                  _
              $region43: #{cellpose_sam_apply.16} parent=27 // pred_fallthru
                _
            $region28: #{cellpose_sam_apply.16} parent=23 // pred_fallthru
              _
            // Predicated region
            $region29: #{cellpose_sam_apply.16} parent=23 // pred_check
              _
            $region30: #{cellpose_sam_apply.16} parent=23 // pred_check_branch
              %197 = sbr.rel (0) target = $region32
            $region31: #{cellpose_sam_apply.16} parent=23 // pred_region
              loop: start=0, step=1, limit=1
              $region33: #{cellpose_sam_apply.16} parent=31 // loop_pre_header
                _
              $region34: #{cellpose_sam_apply.16} parent=31 // loop_header
                %s200 = sphi 0, %s204
                %p201 = scmp.ge.s32.totalorder %s200, 1
                %s205 = sphi %s191, %s191
                %s206 = sphi %s184, %s184
              $region35: #{cellpose_sam_apply.16} parent=31 // loop_header_branch
                %203 = sbr.rel (%p201) target = $region39
              $region36: #{cellpose_sam_apply.16} parent=31 // loop_body
                %v207 = vld [vmem:[%s205] sm:$0xf]
                %208 = vst [vmem:[%s206] sm:$0xf] %v207
                %v209 = vld [vmem:[%s205 + $0xc] sm:$0xf]
                %210 = vst [vmem:[%s206 + $0x4] sm:$0xf] %v209
                %v211 = vld [vmem:[%s205 + $0x18] sm:$0xf]
                %212 = vst [vmem:[%s206 + $0x8] sm:$0xf] %v211
                %v213 = vld [vmem:[%s205 + $0x24] sm:$0xf]
                %214 = vst [vmem:[%s206 + $0xc] sm:$0xf] %v213
                %v215 = vld [vmem:[%s205 + $0x30] sm:$0xf]
                %216 = vst [vmem:[%s206 + $0x10] sm:$0xf] %v215
                %v217 = vld [vmem:[%s205 + $0x3c] sm:$0xf]
                %218 = vst [vmem:[%s206 + $0x14] sm:$0xf] %v217
                %v219 = vld [vmem:[%s205 + $0x48] sm:$0xf]
                %220 = vst [vmem:[%s206 + $0x18] sm:$0xf] %v219
                %v221 = vld [vmem:[%s205 + $0x54] sm:$0xf]
                %222 = vst [vmem:[%s206 + $0x1c] sm:$0xf] %v221
              $region37: #{cellpose_sam_apply.16} parent=31 // loop_footer
                %s204 = sadd.s32 1, %s200
              $region38: #{cellpose_sam_apply.16} parent=31 // loop_footer_branch
                %199 = sbr.rel target = $region34
              $region39: #{cellpose_sam_apply.16} parent=31 // loop_exit
                _
            $region32: #{cellpose_sam_apply.16} parent=23 // pred_fallthru
              _
          $region24: #{cellpose_sam_apply.16} parent=19 // pred_fallthru
            _
          %258 = vnop
        $region20: #{cellpose_sam_apply.16} parent=15 // pred_fallthru
          _
        // Predicated region
        $region58: #{cellpose_sam_apply.16} parent=15 // pred_check
          %p259 = pneg %p91
        $region59: #{cellpose_sam_apply.16} parent=15 // pred_check_branch
          %261 = sbr.rel (%p259) target = $region61
        $region60: #{cellpose_sam_apply.16} parent=15 // pred_region
          %s262 = sand.u32 %s81, 1
          %s263 = sand.u32 %s81, 1
          %s264 = smul.addr %s263, 32
          %s265 = scalar_lea.vmem [#allocation6], %s264
          %s266 = sadd.s32 %s17, 1
          %s267 = smul.u32 8, %s19
          %s268 = smul.addr %s267, 3
          %s269 = sadd.s32 %s266, %s268
          %s270 = smul.addr %s16, 24
          %s271 = sadd.s32 %s269, %s270
          %s272 = smul.addr %s271, 4
          %s273 = scalar_lea.vmem %s1, %s272
          // Predicated region
          $region62: #{cellpose_sam_apply.16} parent=60 // pred_check
            _
          $region63: #{cellpose_sam_apply.16} parent=60 // pred_check_branch
            %275 = sbr.rel (0) target = $region65
          $region64: #{cellpose_sam_apply.16} parent=60 // pred_region
            // Predicated region
            $region66: #{cellpose_sam_apply.16} parent=64 // pred_check
              _
            $region67: #{cellpose_sam_apply.16} parent=64 // pred_check_branch
              %277 = sbr.rel target = $region69
            $region68: #{cellpose_sam_apply.16} parent=64 // pred_region
              // Predicated region
              $region81: #{cellpose_sam_apply.16} parent=68 // pred_check
                _
              $region82: #{cellpose_sam_apply.16} parent=68 // pred_check_branch
                %306 = sbr.rel (0) target = $region84
              $region83: #{cellpose_sam_apply.16} parent=68 // pred_region
                loop: start=0, step=1, limit=1
                $region85: #{cellpose_sam_apply.16} parent=83 // loop_pre_header
                  _
                $region86: #{cellpose_sam_apply.16} parent=83 // loop_header
                  %s308 = sphi 0, %s312
                  %p309 = scmp.ge.s32.totalorder %s308, 1
                  %s313 = sphi %s273, %s273
                  %s314 = sphi %s265, %s265
                $region87: #{cellpose_sam_apply.16} parent=83 // loop_header_branch
                  %311 = sbr.rel (%p309) target = $region91
                $region88: #{cellpose_sam_apply.16} parent=83 // loop_body
                  _
                $region89: #{cellpose_sam_apply.16} parent=83 // loop_footer
                  %s312 = sadd.s32 1, %s308
                $region90: #{cellpose_sam_apply.16} parent=83 // loop_footer_branch
                  %307 = sbr.rel target = $region86
                $region91: #{cellpose_sam_apply.16} parent=83 // loop_exit
                  _
                loop: start=0, step=1, limit=1
                $region92: #{cellpose_sam_apply.16} parent=83 // loop_pre_header
                  _
                $region93: #{cellpose_sam_apply.16} parent=83 // loop_header
                  %s317 = sphi 0, %s321
                  %p318 = scmp.ge.s32.totalorder %s317, 1
                  %s322 = sphi %s273, %s273
                  %s323 = sphi %s265, %s265
                $region94: #{cellpose_sam_apply.16} parent=83 // loop_header_branch
                  %320 = sbr.rel (%p318) target = $region98
                $region95: #{cellpose_sam_apply.16} parent=83 // loop_body
                  %v324 = vld [vmem:[%s322] sm:$0xf]
                  %325 = vst [vmem:[%s323] sm:$0xf] %v324
                  %v326 = vld [vmem:[%s322 + $0xc] sm:$0xf]
                  %327 = vst [vmem:[%s323 + $0x4] sm:$0xf] %v326
                  %v328 = vld [vmem:[%s322 + $0x18] sm:$0xf]
                  %329 = vst [vmem:[%s323 + $0x8] sm:$0xf] %v328
                  %v330 = vld [vmem:[%s322 + $0x24] sm:$0xf]
                  %331 = vst [vmem:[%s323 + $0xc] sm:$0xf] %v330
                  %v332 = vld [vmem:[%s322 + $0x30] sm:$0xf]
                  %333 = vst [vmem:[%s323 + $0x10] sm:$0xf] %v332
                  %v334 = vld [vmem:[%s322 + $0x3c] sm:$0xf]
                  %335 = vst [vmem:[%s323 + $0x14] sm:$0xf] %v334
                  %v336 = vld [vmem:[%s322 + $0x48] sm:$0xf]
                  %337 = vst [vmem:[%s323 + $0x18] sm:$0xf] %v336
                  %v338 = vld [vmem:[%s322 + $0x54] sm:$0xf]
                  %339 = vst [vmem:[%s323 + $0x1c] sm:$0xf] %v338
                $region96: #{cellpose_sam_apply.16} parent=83 // loop_footer
                  %s321 = sadd.s32 1, %s317
                $region97: #{cellpose_sam_apply.16} parent=83 // loop_footer_branch
                  %316 = sbr.rel target = $region93
                $region98: #{cellpose_sam_apply.16} parent=83 // loop_exit
                  _
              $region84: #{cellpose_sam_apply.16} parent=68 // pred_fallthru
                _
            $region69: #{cellpose_sam_apply.16} parent=64 // pred_fallthru
              _
            // Predicated region
            $region70: #{cellpose_sam_apply.16} parent=64 // pred_check
              _
            $region71: #{cellpose_sam_apply.16} parent=64 // pred_check_branch
              %279 = sbr.rel (0) target = $region73
            $region72: #{cellpose_sam_apply.16} parent=64 // pred_region
              loop: start=0, step=1, limit=1
              $region74: #{cellpose_sam_apply.16} parent=72 // loop_pre_header
                _
              $region75: #{cellpose_sam_apply.16} parent=72 // loop_header
                %s282 = sphi 0, %s286
                %p283 = scmp.ge.s32.totalorder %s282, 1
                %s287 = sphi %s273, %s273
                %s288 = sphi %s265, %s265
              $region76: #{cellpose_sam_apply.16} parent=72 // loop_header_branch
                %285 = sbr.rel (%p283) target = $region80
              $region77: #{cellpose_sam_apply.16} parent=72 // loop_body
                %v289 = vld [vmem:[%s287] sm:$0xf]
                %290 = vst [vmem:[%s288] sm:$0xf] %v289
                %v291 = vld [vmem:[%s287 + $0xc] sm:$0xf]
                %292 = vst [vmem:[%s288 + $0x4] sm:$0xf] %v291
                %v293 = vld [vmem:[%s287 + $0x18] sm:$0xf]
                %294 = vst [vmem:[%s288 + $0x8] sm:$0xf] %v293
                %v295 = vld [vmem:[%s287 + $0x24] sm:$0xf]
                %296 = vst [vmem:[%s288 + $0xc] sm:$0xf] %v295
                %v297 = vld [vmem:[%s287 + $0x30] sm:$0xf]
                %298 = vst [vmem:[%s288 + $0x10] sm:$0xf] %v297
                %v299 = vld [vmem:[%s287 + $0x3c] sm:$0xf]
                %300 = vst [vmem:[%s288 + $0x14] sm:$0xf] %v299
                %v301 = vld [vmem:[%s287 + $0x48] sm:$0xf]
                %302 = vst [vmem:[%s288 + $0x18] sm:$0xf] %v301
                %v303 = vld [vmem:[%s287 + $0x54] sm:$0xf]
                %304 = vst [vmem:[%s288 + $0x1c] sm:$0xf] %v303
              $region78: #{cellpose_sam_apply.16} parent=72 // loop_footer
                %s286 = sadd.s32 1, %s282
              $region79: #{cellpose_sam_apply.16} parent=72 // loop_footer_branch
                %281 = sbr.rel target = $region75
              $region80: #{cellpose_sam_apply.16} parent=72 // loop_exit
                _
            $region73: #{cellpose_sam_apply.16} parent=64 // pred_fallthru
              _
          $region65: #{cellpose_sam_apply.16} parent=60 // pred_fallthru
            _
          %340 = vnop
        $region61: #{cellpose_sam_apply.16} parent=15 // pred_fallthru
          _
        // Predicated region
        $region99: #{cellpose_sam_apply.16} parent=15 // pred_check
          %p341 = pneg %p123
        $region100: #{cellpose_sam_apply.16} parent=15 // pred_check_branch
          %343 = sbr.rel (%p341) target = $region102
        $region101: #{cellpose_sam_apply.16} parent=15 // pred_region
          %s344 = sand.u32 %s113, 1
          %s345 = sand.u32 %s113, 1
          %s346 = smul.addr %s345, 32
          %s347 = scalar_lea.vmem [#allocation7], %s346
          %s348 = sadd.s32 %s17, 2
          %s349 = smul.u32 8, %s19
          %s350 = smul.addr %s349, 3
          %s351 = sadd.s32 %s348, %s350
          %s352 = smul.addr %s16, 24
          %s353 = sadd.s32 %s351, %s352
          %s354 = smul.addr %s353, 4
          %s355 = scalar_lea.vmem %s2, %s354
          // Predicated region
          $region103: #{cellpose_sam_apply.16} parent=101 // pred_check
            _
          $region104: #{cellpose_sam_apply.16} parent=101 // pred_check_branch
            %357 = sbr.rel (0) target = $region106
          $region105: #{cellpose_sam_apply.16} parent=101 // pred_region
            // Predicated region
            $region107: #{cellpose_sam_apply.16} parent=105 // pred_check
              _
            $region108: #{cellpose_sam_apply.16} parent=105 // pred_check_branch
              %359 = sbr.rel target = $region110
            $region109: #{cellpose_sam_apply.16} parent=105 // pred_region
              // Predicated region
              $region122: #{cellpose_sam_apply.16} parent=109 // pred_check
                _
              $region123: #{cellpose_sam_apply.16} parent=109 // pred_check_branch
                %388 = sbr.rel (0) target = $region125
              $region124: #{cellpose_sam_apply.16} parent=109 // pred_region
                loop: start=0, step=1, limit=1
                $region126: #{cellpose_sam_apply.16} parent=124 // loop_pre_header
                  _
                $region127: #{cellpose_sam_apply.16} parent=124 // loop_header
                  %s390 = sphi 0, %s394
                  %p391 = scmp.ge.s32.totalorder %s390, 1
                  %s395 = sphi %s355, %s355
                  %s396 = sphi %s347, %s347
                $region128: #{cellpose_sam_apply.16} parent=124 // loop_header_branch
                  %393 = sbr.rel (%p391) target = $region132
                $region129: #{cellpose_sam_apply.16} parent=124 // loop_body
                  _
                $region130: #{cellpose_sam_apply.16} parent=124 // loop_footer
                  %s394 = sadd.s32 1, %s390
                $region131: #{cellpose_sam_apply.16} parent=124 // loop_footer_branch
                  %389 = sbr.rel target = $region127
                $region132: #{cellpose_sam_apply.16} parent=124 // loop_exit
                  _
                loop: start=0, step=1, limit=1
                $region133: #{cellpose_sam_apply.16} parent=124 // loop_pre_header
                  _
                $region134: #{cellpose_sam_apply.16} parent=124 // loop_header
                  %s399 = sphi 0, %s403
                  %p400 = scmp.ge.s32.totalorder %s399, 1
                  %s404 = sphi %s355, %s355
                  %s405 = sphi %s347, %s347
                $region135: #{cellpose_sam_apply.16} parent=124 // loop_header_branch
                  %402 = sbr.rel (%p400) target = $region139
                $region136: #{cellpose_sam_apply.16} parent=124 // loop_body
                  %v406 = vld [vmem:[%s404] sm:$0xf]
                  %407 = vst [vmem:[%s405] sm:$0xf] %v406
                  %v408 = vld [vmem:[%s404 + $0xc] sm:$0xf]
                  %409 = vst [vmem:[%s405 + $0x4] sm:$0xf] %v408
                  %v410 = vld [vmem:[%s404 + $0x18] sm:$0xf]
                  %411 = vst [vmem:[%s405 + $0x8] sm:$0xf] %v410
                  %v412 = vld [vmem:[%s404 + $0x24] sm:$0xf]
                  %413 = vst [vmem:[%s405 + $0xc] sm:$0xf] %v412
                  %v414 = vld [vmem:[%s404 + $0x30] sm:$0xf]
                  %415 = vst [vmem:[%s405 + $0x10] sm:$0xf] %v414
                  %v416 = vld [vmem:[%s404 + $0x3c] sm:$0xf]
                  %417 = vst [vmem:[%s405 + $0x14] sm:$0xf] %v416
                  %v418 = vld [vmem:[%s404 + $0x48] sm:$0xf]
                  %419 = vst [vmem:[%s405 + $0x18] sm:$0xf] %v418
                  %v420 = vld [vmem:[%s404 + $0x54] sm:$0xf]
                  %421 = vst [vmem:[%s405 + $0x1c] sm:$0xf] %v420
                $region137: #{cellpose_sam_apply.16} parent=124 // loop_footer
                  %s403 = sadd.s32 1, %s399
                $region138: #{cellpose_sam_apply.16} parent=124 // loop_footer_branch
                  %398 = sbr.rel target = $region134
                $region139: #{cellpose_sam_apply.16} parent=124 // loop_exit
                  _
              $region125: #{cellpose_sam_apply.16} parent=109 // pred_fallthru
                _
            $region110: #{cellpose_sam_apply.16} parent=105 // pred_fallthru
              _
            // Predicated region
            $region111: #{cellpose_sam_apply.16} parent=105 // pred_check
              _
            $region112: #{cellpose_sam_apply.16} parent=105 // pred_check_branch
              %361 = sbr.rel (0) target = $region114
            $region113: #{cellpose_sam_apply.16} parent=105 // pred_region
              loop: start=0, step=1, limit=1
              $region115: #{cellpose_sam_apply.16} parent=113 // loop_pre_header
                _
              $region116: #{cellpose_sam_apply.16} parent=113 // loop_header
                %s364 = sphi 0, %s368
                %p365 = scmp.ge.s32.totalorder %s364, 1
                %s369 = sphi %s355, %s355
                %s370 = sphi %s347, %s347
              $region117: #{cellpose_sam_apply.16} parent=113 // loop_header_branch
                %367 = sbr.rel (%p365) target = $region121
              $region118: #{cellpose_sam_apply.16} parent=113 // loop_body
                %v371 = vld [vmem:[%s369] sm:$0xf]
                %372 = vst [vmem:[%s370] sm:$0xf] %v371
                %v373 = vld [vmem:[%s369 + $0xc] sm:$0xf]
                %374 = vst [vmem:[%s370 + $0x4] sm:$0xf] %v373
                %v375 = vld [vmem:[%s369 + $0x18] sm:$0xf]
                %376 = vst [vmem:[%s370 + $0x8] sm:$0xf] %v375
                %v377 = vld [vmem:[%s369 + $0x24] sm:$0xf]
                %378 = vst [vmem:[%s370 + $0xc] sm:$0xf] %v377
                %v379 = vld [vmem:[%s369 + $0x30] sm:$0xf]
                %380 = vst [vmem:[%s370 + $0x10] sm:$0xf] %v379
                %v381 = vld [vmem:[%s369 + $0x3c] sm:$0xf]
                %382 = vst [vmem:[%s370 + $0x14] sm:$0xf] %v381
                %v383 = vld [vmem:[%s369 + $0x48] sm:$0xf]
                %384 = vst [vmem:[%s370 + $0x18] sm:$0xf] %v383
                %v385 = vld [vmem:[%s369 + $0x54] sm:$0xf]
                %386 = vst [vmem:[%s370 + $0x1c] sm:$0xf] %v385
              $region119: #{cellpose_sam_apply.16} parent=113 // loop_footer
                %s368 = sadd.s32 1, %s364
              $region120: #{cellpose_sam_apply.16} parent=113 // loop_footer_branch
                %363 = sbr.rel target = $region116
              $region121: #{cellpose_sam_apply.16} parent=113 // loop_exit
                _
            $region114: #{cellpose_sam_apply.16} parent=105 // pred_fallthru
              _
          $region106: #{cellpose_sam_apply.16} parent=101 // pred_fallthru
            _
          %422 = vnop
        $region102: #{cellpose_sam_apply.16} parent=15 // pred_fallthru
          _
      $region16: #{cellpose_sam_apply.16} parent=5 // pred_fallthru
        _
      %p423 = scmp.le.s32.totalorder 1, %s9
      %p424 = scmp.lt.s32.totalorder %s9, 3
      %p425 = pnand %p423, %p424
      %p426 = pneg %p425
      // Predicated region
      $region140: #{cellpose_sam_apply.16} parent=5 // pred_check
        _
      $region141: #{cellpose_sam_apply.16} parent=5 // pred_check_branch
        %428 = sbr.rel (%p425) target = $region143
      $region142: #{cellpose_sam_apply.16} parent=5 // pred_region
        %s429 = ssub.s32 %s9, 1
        %s430 = sand.u32 %s52, 1
        %s431 = sand.u32 %s52, 1
        %s432 = smul.addr %s431, 32
        %s433 = scalar_lea.vmem [#allocation5], %s432
        // Predicated region
        $region144: #{cellpose_sam_apply.16} parent=142 // pred_check
          %p434 = pneg %p65
        $region145: #{cellpose_sam_apply.16} parent=142 // pred_check_branch
          %436 = sbr.rel (%p434) target = $region147
        $region146: #{cellpose_sam_apply.16} parent=142 // pred_region
          _
        $region147: #{cellpose_sam_apply.16} parent=142 // pred_fallthru
          _
        %s437 = sand.u32 %s84, 1
        %s438 = sand.u32 %s84, 1
        %s439 = smul.addr %s438, 32
        %s440 = scalar_lea.vmem [#allocation6], %s439
        // Predicated region
        $region148: #{cellpose_sam_apply.16} parent=142 // pred_check
          %p441 = pneg %p97
        $region149: #{cellpose_sam_apply.16} parent=142 // pred_check_branch
          %443 = sbr.rel (%p441) target = $region151
        $region150: #{cellpose_sam_apply.16} parent=142 // pred_region
          _
        $region151: #{cellpose_sam_apply.16} parent=142 // pred_fallthru
          _
        %s444 = sand.u32 %s116, 1
        %s445 = sand.u32 %s116, 1
        %s446 = smul.addr %s445, 32
        %s447 = scalar_lea.vmem [#allocation7], %s446
        // Predicated region
        $region152: #{cellpose_sam_apply.16} parent=142 // pred_check
          %p448 = pneg %p129
        $region153: #{cellpose_sam_apply.16} parent=142 // pred_check_branch
          %450 = sbr.rel (%p448) target = $region155
        $region154: #{cellpose_sam_apply.16} parent=142 // pred_region
          _
        $region155: #{cellpose_sam_apply.16} parent=142 // pred_fallthru
          _
        %s451 = sand.u32 %s52, 1
        %s452 = sand.u32 %s52, 1
        %s453 = smul.addr %s452, 32
        %s454 = scalar_lea.vmem [#allocation5], %s453
        %p455 = pneg %p65
        %p456 = pneg %p62
        %s457 = sand.u32 %s84, 1
        %s458 = sand.u32 %s84, 1
        %s459 = smul.addr %s458, 32
        %s460 = scalar_lea.vmem [#allocation6], %s459
        %p461 = pneg %p97
        %p462 = pneg %p94
        %s463 = sand.u32 %s116, 1
        %s464 = sand.u32 %s116, 1
        %s465 = smul.addr %s464, 32
        %s466 = scalar_lea.vmem [#allocation7], %s465
        %p467 = pneg %p129
        %p468 = pneg %p126
        %p469 = pneg %p159
        %p470 = pneg %p156
        %s471 = smul.u32 8, %s22
        %p472 = scmp.lt.s32.totalorder %s20, 1
        %s473 = scalar_select %p472, %s20, 1
        %p474 = scmp.lt.s32.totalorder %s471, 7
        %s475 = scalar_select %p474, %s471, 7
        %p476 = scmp.lt.s32.totalorder %s21, 0
        %s477 = scalar_select %p476, %s21, 0
        %s478 = sadd.s32 %s477, %s475
        %s479 = smul.addr %s473, 8
        %s480 = sadd.s32 %s478, %s479
        %s481 = smul.addr %s480, 4
        %s482 = scalar_lea.vmem %s3, %s481
        %s483 = smul.u32 8, %s22
        %s484 = sadd.s32 %s21, 1
        %s485 = smul.u32 8, %s23
        %s486 = sadd.s32 %s21, 2
        %s487 = smul.u32 8, %s23
        %s488 = smul.u32 8, %s22
        %p489 = scmp.lt.s32.totalorder %s20, 1
        %s490 = scalar_select %p489, %s20, 1
        %p491 = scmp.lt.s32.totalorder %s488, 7
        %s492 = scalar_select %p491, %s488, 7
        %p493 = scmp.lt.s32.totalorder %s21, 0
        %s494 = scalar_select %p493, %s21, 0
        %s495 = sadd.s32 %s494, %s492
        %s496 = smul.addr %s490, 8
        %s497 = sadd.s32 %s495, %s496
        %s498 = smul.addr %s497, 4
        %s499 = scalar_lea.vmem %s3, %s498
        %s500 = smul.u32 8, %s22
        %p502 = scmp.eq.s32.totalorder %s23, 0
        // Predicated region
        $region156: #{cellpose_sam_apply.16} parent=142 // pred_check
          %p503 = pneg %p502
        $region157: #{cellpose_sam_apply.16} parent=142 // pred_check_branch
          %505 = sbr.rel (%p503) target = $region159
        $region158: #{cellpose_sam_apply.16} parent=142 // pred_region
          %vm506 = vcmask 15360
          %507 = vst.msk [vmem:[#allocation2] sm:$0xff] %vm506, -inf
          %508 = vst.msk [vmem:[#allocation2 + $0x8] sm:$0xff] %vm506, -inf
          %509 = vst.msk [vmem:[#allocation2 + $0x10] sm:$0xff] %vm506, -inf
          %510 = vst.msk [vmem:[#allocation2 + $0x18] sm:$0xff] %vm506, -inf
          %511 = vst.msk [vmem:[#allocation2 + $0x20] sm:$0xff] %vm506, -inf
          %512 = vst.msk [vmem:[#allocation2 + $0x28] sm:$0xff] %vm506, -inf
          %513 = vst.msk [vmem:[#allocation2 + $0x30] sm:$0xff] %vm506, -inf
          %514 = vst.msk [vmem:[#allocation2 + $0x38] sm:$0xff] %vm506, -inf
          %515 = vst.msk [vmem:[#allocation3] sm:$0xff] %vm506, 0.0
          %516 = vst.msk [vmem:[#allocation3 + $0x8] sm:$0xff] %vm506, 0.0
          %517 = vst.msk [vmem:[#allocation3 + $0x10] sm:$0xff] %vm506, 0.0
          %518 = vst.msk [vmem:[#allocation3 + $0x18] sm:$0xff] %vm506, 0.0
          %519 = vst.msk [vmem:[#allocation3 + $0x20] sm:$0xff] %vm506, 0.0
          %520 = vst.msk [vmem:[#allocation3 + $0x28] sm:$0xff] %vm506, 0.0
          %521 = vst.msk [vmem:[#allocation3 + $0x30] sm:$0xff] %vm506, 0.0
          %522 = vst.msk [vmem:[#allocation3 + $0x38] sm:$0xff] %vm506, 0.0
          %523 = vst [vmem:[#allocation4] sm:$0xff] 0.0
          %524 = vst [vmem:[#allocation4 + $0x8] sm:$0xff] 0.0
          %525 = vst [vmem:[#allocation4 + $0x10] sm:$0xff] 0.0
          %526 = vst [vmem:[#allocation4 + $0x18] sm:$0xff] 0.0
          %527 = vst [vmem:[#allocation4 + $0x20] sm:$0xff] 0.0
          %528 = vst [vmem:[#allocation4 + $0x28] sm:$0xff] 0.0
          %529 = vst [vmem:[#allocation4 + $0x30] sm:$0xff] 0.0
          %530 = vst [vmem:[#allocation4 + $0x38] sm:$0xff] 0.0
        $region159: #{cellpose_sam_apply.16} parent=142 // pred_fallthru
          _
        %v531 = vld [vmem:[%s433] sm:$0xf]
        %v532 = vld [vmem:[%s433 + $0x4] sm:$0xf]
        %v533 = vld [vmem:[%s433 + $0x8] sm:$0xf]
        %v534 = vld [vmem:[%s433 + $0xc] sm:$0xf]
        %v535 = vld [vmem:[%s433 + $0x10] sm:$0xf]
        %v536 = vld [vmem:[%s433 + $0x14] sm:$0xf]
        %v537 = vld [vmem:[%s433 + $0x18] sm:$0xf]
        %v538 = vld [vmem:[%s433 + $0x1c] sm:$0xf]
        %v539 = vld [vmem:[%s440] sm:$0xf]
        %v540 = vld [vmem:[%s440 + $0x4] sm:$0xf]
        %v541 = vld [vmem:[%s440 + $0x8] sm:$0xf]
        %v542 = vld [vmem:[%s440 + $0xc] sm:$0xf]
        %v543 = vld [vmem:[%s440 + $0x10] sm:$0xf]
        %v544 = vld [vmem:[%s440 + $0x14] sm:$0xf]
        %v545 = vld [vmem:[%s440 + $0x18] sm:$0xf]
        %v546 = vld [vmem:[%s440 + $0x1c] sm:$0xf]
        %v547 = vld [vmem:[%s447] sm:$0xf]
        %v548 = vld [vmem:[%s447 + $0x4] sm:$0xf]
        %v549 = vld [vmem:[%s447 + $0x8] sm:$0xf]
        %v550 = vld [vmem:[%s447 + $0xc] sm:$0xf]
        %v551 = vld [vmem:[%s447 + $0x10] sm:$0xf]
        %v552 = vld [vmem:[%s447 + $0x14] sm:$0xf]
        %v553 = vld [vmem:[%s447 + $0x18] sm:$0xf]
        %v554 = vld [vmem:[%s447 + $0x1c] sm:$0xf]
        %v563 = vunpack.c.l.b16 %v531
        %v564 = vunpack.c.l.b16 %v532
        %v565 = vunpack.c.l.b16 %v533
        %v566 = vunpack.c.l.b16 %v534
        %v567 = vunpack.c.l.b16 %v535
        %v568 = vunpack.c.l.b16 %v536
        %v569 = vunpack.c.l.b16 %v537
        %v570 = vunpack.c.l.b16 %v538
        %v571 = vpack.c.b16 %v564, %v563
        %v572 = vpack.c.b16 %v566, %v565
        %v573 = vpack.c.b16 %v568, %v567
        %v574 = vpack.c.b16 %v570, %v569
        %v583 = vunpack.c.l.b16 %v539
        %v584 = vunpack.c.l.b16 %v540
        %v585 = vunpack.c.l.b16 %v541
        %v586 = vunpack.c.l.b16 %v542
        %v587 = vunpack.c.l.b16 %v543
        %v588 = vunpack.c.l.b16 %v544
        %v589 = vunpack.c.l.b16 %v545
        %v590 = vunpack.c.l.b16 %v546
        %v591 = vpack.c.b16 %v584, %v583
        %v592 = vpack.c.b16 %v586, %v585
        %v593 = vpack.c.b16 %v588, %v587
        %v594 = vpack.c.b16 %v590, %v589
        %vm595 = vcmask 523264
        %v597 = vsel %vm595, %v571, 0
        %v600 = vsel %vm595, %v572, 0
        %v603 = vsel %vm595, %v573, 0
        %v606 = vsel %vm595, %v574, 0
        %v609 = vsel %vm595, %v591, 0
        %v612 = vsel %vm595, %v592, 0
        %v615 = vsel %vm595, %v593, 0
        %v618 = vsel %vm595, %v594, 0
        %620 = vmatprep.subr.bf16.mxu0 0
        %621 = vmatpush1.bf16.xpose.msra.mxu0 %v609
        %622 = vmatprep.subr.bf16.mxu0 0
        %623 = vmatpush1.bf16.xpose.msra.mxu0 %v612
        %624 = vmatprep.subr.bf16.mxu0 0
        %625 = vmatpush1.bf16.xpose.msra.mxu0 %v615
        %626 = vmatprep.subr.bf16.mxu0 0
        %627 = vmatpush1.bf16.xpose.msra.mxu0 %v618
        %628 = vmatprep.subr.bf16.mxu0 0
        %629 = vmatpush1.bf16.xpose.msra.mxu0 0
        %630 = vmatprep.subr.bf16.mxu0 0
        %631 = vmatpush1.bf16.xpose.msra.mxu0 0
        %632 = vmatprep.subr.bf16.mxu0 0
        %633 = vmatpush1.bf16.xpose.msra.mxu0 0
        %634 = vmatprep.subr.bf16.mxu0 0
        %635 = vmatpush1.bf16.xpose.msra.mxu0 0
        %636 = vmatprep.subr.bf16.mxu0 0
        %637 = vmatpush1.bf16.xpose.msra.mxu0 0
        %638 = vmatprep.subr.bf16.mxu0 0
        %639 = vmatpush1.bf16.xpose.msra.mxu0 0
        %640 = vmatprep.subr.bf16.mxu0 0
        %641 = vmatpush1.bf16.xpose.msra.mxu0 0
        %642 = vmatprep.subr.bf16.mxu0 0
        %643 = vmatpush1.bf16.xpose.msra.mxu0 0
        %644 = vmatprep.subr.bf16.mxu0 0
        %645 = vmatpush1.bf16.xpose.msra.mxu0 0
        %646 = vmatprep.subr.bf16.mxu0 0
        %647 = vmatpush1.bf16.xpose.msra.mxu0 0
        %648 = vmatprep.subr.bf16.mxu0 0
        %649 = vmatpush1.bf16.xpose.msra.mxu0 0
        %650 = vmatprep.subr.bf16.mxu0 0
        %651 = vmatpush1.bf16.xpose.msra.mxu0 0
        %652 = vmatprep.mubr.bf16.mxu0 0
        %653 = vmatmul.mubr.bf16.gmra.mrb[0].mxu0 %v597
        %v654 = vpop.f32.mrb[0].mxu0
        %v655 = vadd.f32 0.0, %v654
        %v656 = vpop.f32.mrb[0].mxu0
        %v657 = vpop.f32.mrb[0].mxu0
        %v658 = vadd.f32 0.0, %v657
        %v659 = vpop.f32.mrb[0].mxu0
        %660 = vmatprep.mubr.bf16.mxu0 0
        %661 = vmatmul.mubr.bf16.gmra.mrb[0].mxu0 %v600
        %v662 = vpop.f32.mrb[0].mxu0
        %v663 = vadd.f32 0.0, %v662
        %v664 = vpop.f32.mrb[0].mxu0
        %v665 = vpop.f32.mrb[0].mxu0
        %v666 = vadd.f32 0.0, %v665
        %v667 = vpop.f32.mrb[0].mxu0
        %668 = vmatprep.mubr.bf16.mxu0 0
        %669 = vmatmul.mubr.bf16.gmra.mrb[0].mxu0 %v603
        %v670 = vpop.f32.mrb[0].mxu0
        %v671 = vadd.f32 0.0, %v670
        %v672 = vpop.f32.mrb[0].mxu0
        %v673 = vpop.f32.mrb[0].mxu0
        %v674 = vadd.f32 0.0, %v673
        %v675 = vpop.f32.mrb[0].mxu0
        %676 = vmatprep.mubr.bf16.mxu0 0
        %677 = vmatmul.mubr.bf16.gmra.mrb[0].mxu0 %v606
        %v678 = vpop.f32.mrb[0].mxu0
        %v679 = vadd.f32 0.0, %v678
        %v680 = vpop.f32.mrb[0].mxu0
        %v681 = vpop.f32.mrb[0].mxu0
        %v682 = vadd.f32 0.0, %v681
        %v683 = vpop.f32.mrb[0].mxu0
        %684 = vdwg.mxu0
        %v685 = vld [vmem:[#allocation2] sm:$0xff]
        %v686 = vld [vmem:[#allocation2 + $0x8] sm:$0xff]
        %v687 = vld [vmem:[#allocation2 + $0x10] sm:$0xff]
        %v688 = vld [vmem:[#allocation2 + $0x18] sm:$0xff]
        %v689 = vld [vmem:[#allocation2 + $0x20] sm:$0xff]
        %v690 = vld [vmem:[#allocation2 + $0x28] sm:$0xff]
        %v691 = vld [vmem:[#allocation2 + $0x30] sm:$0xff]
        %v692 = vld [vmem:[#allocation2 + $0x38] sm:$0xff]
        %v693 = vsel %vm595, %v655, -inf
        %694 = vmax.xlane.f32.xlu0 %v693
        %v695 = vpop.xlane.xlu0 %694
        %v696 = vsel %vm595, %v658, -inf
        %697 = vmax.xlane.f32.xlu0 %v696
        %v698 = vpop.xlane.xlu0 %697
        %v699 = vsel %vm595, %v663, -inf
        %700 = vmax.xlane.f32.xlu0 %v699
        %v701 = vpop.xlane.xlu0 %700
        %v702 = vsel %vm595, %v666, -inf
        %703 = vmax.xlane.f32.xlu0 %v702
        %v704 = vpop.xlane.xlu0 %703
        %v705 = vsel %vm595, %v671, -inf
        %706 = vmax.xlane.f32.xlu0 %v705
        %v707 = vpop.xlane.xlu0 %706
        %v708 = vsel %vm595, %v674, -inf
        %709 = vmax.xlane.f32.xlu0 %v708
        %v710 = vpop.xlane.xlu0 %709
        %v711 = vsel %vm595, %v679, -inf
        %712 = vmax.xlane.f32.xlu0 %v711
        %v713 = vpop.xlane.xlu0 %712
        %v714 = vsel %vm595, %v682, -inf
        %715 = vmax.xlane.f32.xlu0 %v714
        %v716 = vpop.xlane.xlu0 %715
        %v717 = vmax.f32 %v685, %v695
        %v718 = vmax.f32 %v686, %v698
        %v719 = vmax.f32 %v687, %v701
        %v720 = vmax.f32 %v688, %v704
        %v721 = vmax.f32 %v689, %v707
        %v722 = vmax.f32 %v690, %v710
        %v723 = vmax.f32 %v691, %v713
        %v724 = vmax.f32 %v692, %v716
        %v725 = vsub.f32 %v685, %v717
        %v726 = vsub.f32 %v686, %v718
        %v727 = vsub.f32 %v687, %v719
        %v728 = vsub.f32 %v688, %v720
        %v729 = vsub.f32 %v689, %v721
        %v730 = vsub.f32 %v690, %v722
        %v731 = vsub.f32 %v691, %v723
        %v732 = vsub.f32 %v692, %v724
        %v733 = vmul.f32 %v725, 1.442695
        %v734 = vpow.pop %v733
        %v735 = vmul.f32 %v726, 1.442695
        %v736 = vpow.pop %v735
        %v737 = vmul.f32 %v727, 1.442695
        %v738 = vpow.pop %v737
        %v739 = vmul.f32 %v728, 1.442695
        %v740 = vpow.pop %v739
        %v741 = vmul.f32 %v729, 1.442695
        %v742 = vpow.pop %v741
        %v743 = vmul.f32 %v730, 1.442695
        %v744 = vpow.pop %v743
        %v745 = vmul.f32 %v731, 1.442695
        %v746 = vpow.pop %v745
        %v747 = vmul.f32 %v732, 1.442695
        %v748 = vpow.pop %v747
        %750 = vset.pattern.permute.xlu0 0
        %751 = vperm.xlu0 %750, %v717
        %v752 = vpop.permute.xlu0 %751
        %755 = vset.pattern.permute.xlu0 0
        %756 = vperm.xlu0 %755, %v718
        %v757 = vpop.permute.xlu0 %756
        %760 = vset.pattern.permute.xlu0 0
        %761 = vperm.xlu0 %760, %v719
        %v762 = vpop.permute.xlu0 %761
        %765 = vset.pattern.permute.xlu0 0
        %766 = vperm.xlu0 %765, %v720
        %v767 = vpop.permute.xlu0 %766
        %770 = vset.pattern.permute.xlu0 0
        %771 = vperm.xlu0 %770, %v721
        %v772 = vpop.permute.xlu0 %771
        %775 = vset.pattern.permute.xlu0 0
        %776 = vperm.xlu0 %775, %v722
        %v777 = vpop.permute.xlu0 %776
        %780 = vset.pattern.permute.xlu0 0
        %781 = vperm.xlu0 %780, %v723
        %v782 = vpop.permute.xlu0 %781
        %785 = vset.pattern.permute.xlu0 0
        %786 = vperm.xlu0 %785, %v724
        %v787 = vpop.permute.xlu0 %786
        %v789 = vsub.f32 %v655, %v752
        %v790 = vsub.f32 %v658, %v757
        %v791 = vsub.f32 %v663, %v762
        %v792 = vsub.f32 %v666, %v767
        %v793 = vsub.f32 %v671, %v772
        %v794 = vsub.f32 %v674, %v777
        %v795 = vsub.f32 %v679, %v782
        %v796 = vsub.f32 %v682, %v787
        %v797 = vmul.f32 %v789, 1.442695
        %v798 = vpow.pop %v797
        %v799 = vmul.f32 %v790, 1.442695
        %v800 = vpow.pop %v799
        %v801 = vmul.f32 %v791, 1.442695
        %v802 = vpow.pop %v801
        %v803 = vmul.f32 %v792, 1.442695
        %v804 = vpow.pop %v803
        %v805 = vmul.f32 %v793, 1.442695
        %v806 = vpow.pop %v805
        %v807 = vmul.f32 %v794, 1.442695
        %v808 = vpow.pop %v807
        %v809 = vmul.f32 %v795, 1.442695
        %v810 = vpow.pop %v809
        %v811 = vmul.f32 %v796, 1.442695
        %v812 = vpow.pop %v811
        %v813 = vld [vmem:[#allocation3] sm:$0xff]
        %v814 = vld [vmem:[#allocation3 + $0x8] sm:$0xff]
        %v815 = vld [vmem:[#allocation3 + $0x10] sm:$0xff]
        %v816 = vld [vmem:[#allocation3 + $0x18] sm:$0xff]
        %v817 = vld [vmem:[#allocation3 + $0x20] sm:$0xff]
        %v818 = vld [vmem:[#allocation3 + $0x28] sm:$0xff]
        %v819 = vld [vmem:[#allocation3 + $0x30] sm:$0xff]
        %v820 = vld [vmem:[#allocation3 + $0x38] sm:$0xff]
        %v821 = vmul.f32 %v734, %v813
        %v822 = vmul.f32 %v736, %v814
        %v823 = vmul.f32 %v738, %v815
        %v824 = vmul.f32 %v740, %v816
        %v825 = vmul.f32 %v742, %v817
        %v826 = vmul.f32 %v744, %v818
        %v827 = vmul.f32 %v746, %v819
        %v828 = vmul.f32 %v748, %v820
        %v829 = vsel %vm595, %v798, 0.0
        %830 = vadd.xlane.f32.xlu0 %v829
        %v831 = vpop.xlane.xlu0 %830
        %v832 = vsel %vm595, %v800, 0.0
        %833 = vadd.xlane.f32.xlu0 %v832
        %v834 = vpop.xlane.xlu0 %833
        %v835 = vsel %vm595, %v802, 0.0
        %836 = vadd.xlane.f32.xlu0 %v835
        %v837 = vpop.xlane.xlu0 %836
        %v838 = vsel %vm595, %v804, 0.0
        %839 = vadd.xlane.f32.xlu0 %v838
        %v840 = vpop.xlane.xlu0 %839
        %v841 = vsel %vm595, %v806, 0.0
        %842 = vadd.xlane.f32.xlu0 %v841
        %v843 = vpop.xlane.xlu0 %842
        %v844 = vsel %vm595, %v808, 0.0
        %845 = vadd.xlane.f32.xlu0 %v844
        %v846 = vpop.xlane.xlu0 %845
        %v847 = vsel %vm595, %v810, 0.0
        %848 = vadd.xlane.f32.xlu0 %v847
        %v849 = vpop.xlane.xlu0 %848
        %v850 = vsel %vm595, %v812, 0.0
        %851 = vadd.xlane.f32.xlu0 %v850
        %v852 = vpop.xlane.xlu0 %851
        %v853 = vadd.f32 %v821, %v831
        %v854 = vadd.f32 %v822, %v834
        %v855 = vadd.f32 %v823, %v837
        %v856 = vadd.f32 %v824, %v840
        %v857 = vadd.f32 %v825, %v843
        %v858 = vadd.f32 %v826, %v846
        %v859 = vadd.f32 %v827, %v849
        %v860 = vadd.f32 %v828, %v852
        %vm861 = vcmask 7168
        %862 = vst.msk [vmem:[#allocation3] sm:$0xff] %vm861, %v853
        %863 = vst.msk [vmem:[#allocation3 + $0x8] sm:$0xff] %vm861, %v854
        %864 = vst.msk [vmem:[#allocation3 + $0x10] sm:$0xff] %vm861, %v855
        %865 = vst.msk [vmem:[#allocation3 + $0x18] sm:$0xff] %vm861, %v856
        %866 = vst.msk [vmem:[#allocation3 + $0x20] sm:$0xff] %vm861, %v857
        %867 = vst.msk [vmem:[#allocation3 + $0x28] sm:$0xff] %vm861, %v858
        %868 = vst.msk [vmem:[#allocation3 + $0x30] sm:$0xff] %vm861, %v859
        %869 = vst.msk [vmem:[#allocation3 + $0x38] sm:$0xff] %vm861, %v860
        %v870 = vld [vmem:[#allocation4] sm:$0xff]
        %v871 = vld [vmem:[#allocation4 + $0x8] sm:$0xff]
        %v872 = vld [vmem:[#allocation4 + $0x10] sm:$0xff]
        %v873 = vld [vmem:[#allocation4 + $0x18] sm:$0xff]
        %v874 = vld [vmem:[#allocation4 + $0x20] sm:$0xff]
        %v875 = vld [vmem:[#allocation4 + $0x28] sm:$0xff]
        %v876 = vld [vmem:[#allocation4 + $0x30] sm:$0xff]
        %v877 = vld [vmem:[#allocation4 + $0x38] sm:$0xff]
        %879 = vset.pattern.permute.xlu0 0
        %880 = vperm.xlu0 %879, %v734
        %v881 = vpop.permute.xlu0 %880
        %884 = vset.pattern.permute.xlu0 0
        %885 = vperm.xlu0 %884, %v736
        %v886 = vpop.permute.xlu0 %885
        %889 = vset.pattern.permute.xlu0 0
        %890 = vperm.xlu0 %889, %v738
        %v891 = vpop.permute.xlu0 %890
        %894 = vset.pattern.permute.xlu0 0
        %895 = vperm.xlu0 %894, %v740
        %v896 = vpop.permute.xlu0 %895
        %899 = vset.pattern.permute.xlu0 0
        %900 = vperm.xlu0 %899, %v742
        %v901 = vpop.permute.xlu0 %900
        %904 = vset.pattern.permute.xlu0 0
        %905 = vperm.xlu0 %904, %v744
        %v906 = vpop.permute.xlu0 %905
        %909 = vset.pattern.permute.xlu0 0
        %910 = vperm.xlu0 %909, %v746
        %v911 = vpop.permute.xlu0 %910
        %914 = vset.pattern.permute.xlu0 0
        %915 = vperm.xlu0 %914, %v748
        %v916 = vpop.permute.xlu0 %915
        %v918 = vmul.f32 %v881, %v870
        %v919 = vmul.f32 %v886, %v871
        %v920 = vmul.f32 %v891, %v872
        %v921 = vmul.f32 %v896, %v873
        %v922 = vmul.f32 %v901, %v874
        %v923 = vmul.f32 %v906, %v875
        %v924 = vmul.f32 %v911, %v876
        %v925 = vmul.f32 %v916, %v877
        %v926 = vpack.c.bf16 %v800, %v798
        %v927 = vpack.c.bf16 %v804, %v802
        %v928 = vpack.c.bf16 %v808, %v806
        %v929 = vpack.c.bf16 %v812, %v810
        %v938 = vunpack.c.l.b16 %v547
        %v939 = vunpack.c.l.b16 %v548
        %v940 = vunpack.c.l.b16 %v549
        %v941 = vunpack.c.l.b16 %v550
        %v942 = vunpack.c.l.b16 %v551
        %v943 = vunpack.c.l.b16 %v552
        %v944 = vunpack.c.l.b16 %v553
        %v945 = vunpack.c.l.b16 %v554
        %v946 = vpack.c.b16 %v939, %v938
        %v947 = vpack.c.b16 %v941, %v940
        %v948 = vpack.c.b16 %v943, %v942
        %v949 = vpack.c.b16 %v945, %v944
        %v955 = vsel %vm595, %v926, 0
        %v958 = vsel %vm595, %v927, 0
        %v961 = vsel %vm595, %v928, 0
        %v964 = vsel %vm595, %v929, 0
        %966 = vmatprep.subr.bf16.mxu0 0
        %967 = vmatpush1.bf16.msra.mxu0 %v946
        %968 = vmatprep.subr.bf16.mxu0 0
        %969 = vmatpush1.bf16.msra.mxu0 %v947
        %970 = vmatprep.subr.bf16.mxu0 0
        %971 = vmatpush1.bf16.msra.mxu0 %v948
        %972 = vmatprep.subr.bf16.mxu0 0
        %973 = vmatpush1.bf16.msra.mxu0 %v949
        %974 = vmatprep.subr.bf16.mxu0 0
        %975 = vmatpush1.bf16.msra.mxu0 0
        %976 = vmatprep.subr.bf16.mxu0 0
        %977 = vmatpush1.bf16.msra.mxu0 0
        %978 = vmatprep.subr.bf16.mxu0 0
        %979 = vmatpush1.bf16.msra.mxu0 0
        %980 = vmatprep.subr.bf16.mxu0 0
        %981 = vmatpush1.bf16.msra.mxu0 0
        %982 = vmatprep.subr.bf16.mxu0 0
        %983 = vmatpush1.bf16.msra.mxu0 0
        %984 = vmatprep.subr.bf16.mxu0 0
        %985 = vmatpush1.bf16.msra.mxu0 0
        %986 = vmatprep.subr.bf16.mxu0 0
        %987 = vmatpush1.bf16.msra.mxu0 0
        %988 = vmatprep.subr.bf16.mxu0 0
        %989 = vmatpush1.bf16.msra.mxu0 0
        %990 = vmatprep.subr.bf16.mxu0 0
        %991 = vmatpush1.bf16.msra.mxu0 0
        %992 = vmatprep.subr.bf16.mxu0 0
        %993 = vmatpush1.bf16.msra.mxu0 0
        %994 = vmatprep.subr.bf16.mxu0 0
        %995 = vmatpush1.bf16.msra.mxu0 0
        %996 = vmatprep.subr.bf16.mxu0 0
        %997 = vmatpush1.bf16.msra.mxu0 0
        %998 = vmatprep.mubr.bf16.mxu0 0
        %999 = vmatmul.mubr.bf16.gmra.mrb[0].mxu0 %v955
        %v1000 = vpop.f32.mrb[0].mxu0
        %v1001 = vadd.f32 0.0, %v1000
        %v1002 = vpop.f32.mrb[0].mxu0
        %v1003 = vpop.f32.mrb[0].mxu0
        %v1004 = vadd.f32 0.0, %v1003
        %v1005 = vpop.f32.mrb[0].mxu0
        %1006 = vmatprep.mubr.bf16.mxu0 0
        %1007 = vmatmul.mubr.bf16.gmra.mrb[0].mxu0 %v958
        %v1008 = vpop.f32.mrb[0].mxu0
        %v1009 = vadd.f32 0.0, %v1008
        %v1010 = vpop.f32.mrb[0].mxu0
        %v1011 = vpop.f32.mrb[0].mxu0
        %v1012 = vadd.f32 0.0, %v1011
        %v1013 = vpop.f32.mrb[0].mxu0
        %1014 = vmatprep.mubr.bf16.mxu0 0
        %1015 = vmatmul.mubr.bf16.gmra.mrb[0].mxu0 %v961
        %v1016 = vpop.f32.mrb[0].mxu0
        %v1017 = vadd.f32 0.0, %v1016
        %v1018 = vpop.f32.mrb[0].mxu0
        %v1019 = vpop.f32.mrb[0].mxu0
        %v1020 = vadd.f32 0.0, %v1019
        %v1021 = vpop.f32.mrb[0].mxu0
        %1022 = vmatprep.mubr.bf16.mxu0 0
        %1023 = vmatmul.mubr.bf16.gmra.mrb[0].mxu0 %v964
        %v1024 = vpop.f32.mrb[0].mxu0
        %v1025 = vadd.f32 0.0, %v1024
        %v1026 = vpop.f32.mrb[0].mxu0
        %v1027 = vpop.f32.mrb[0].mxu0
        %v1028 = vadd.f32 0.0, %v1027
        %v1029 = vpop.f32.mrb[0].mxu0
        %1030 = vdwg.mxu0
        %v1031 = vadd.f32 %v918, %v1001
        %v1032 = vadd.f32 %v919, %v1004
        %v1033 = vadd.f32 %v920, %v1009
        %v1034 = vadd.f32 %v921, %v1012
        %v1035 = vadd.f32 %v922, %v1017
        %v1036 = vadd.f32 %v923, %v1020
        %v1037 = vadd.f32 %v924, %v1025
        %v1038 = vadd.f32 %v925, %v1028
        %1039 = vst.msk [vmem:[#allocation4] sm:$0xff] %vm595, %v1031
        %1040 = vst.msk [vmem:[#allocation4 + $0x8] sm:$0xff] %vm595, %v1032
        %1041 = vst.msk [vmem:[#allocation4 + $0x10] sm:$0xff] %vm595, %v1033
        %1042 = vst.msk [vmem:[#allocation4 + $0x18] sm:$0xff] %vm595, %v1034
        %1043 = vst.msk [vmem:[#allocation4 + $0x20] sm:$0xff] %vm595, %v1035
        %1044 = vst.msk [vmem:[#allocation4 + $0x28] sm:$0xff] %vm595, %v1036
        %1045 = vst.msk [vmem:[#allocation4 + $0x30] sm:$0xff] %vm595, %v1037
        %1046 = vst.msk [vmem:[#allocation4 + $0x38] sm:$0xff] %vm595, %v1038
        %1047 = vst.msk [vmem:[#allocation2] sm:$0xff] %vm861, %v717
        %1048 = vst.msk [vmem:[#allocation2 + $0x8] sm:$0xff] %vm861, %v718
        %1049 = vst.msk [vmem:[#allocation2 + $0x10] sm:$0xff] %vm861, %v719
        %1050 = vst.msk [vmem:[#allocation2 + $0x18] sm:$0xff] %vm861, %v720
        %1051 = vst.msk [vmem:[#allocation2 + $0x20] sm:$0xff] %vm861, %v721
        %1052 = vst.msk [vmem:[#allocation2 + $0x28] sm:$0xff] %vm861, %v722
        %1053 = vst.msk [vmem:[#allocation2 + $0x30] sm:$0xff] %vm861, %v723
        %1054 = vst.msk [vmem:[#allocation2 + $0x38] sm:$0xff] %vm861, %v724
        %1055 = vrot.lane.b32.xlu0 %v571, 64
        %v1056 = vpop.permute.xlu0 %1055
        %1057 = vrot.lane.b32.xlu0 %v572, 64
        %v1058 = vpop.permute.xlu0 %1057
        %1059 = vrot.lane.b32.xlu0 %v573, 64
        %v1060 = vpop.permute.xlu0 %1059
        %1061 = vrot.lane.b32.xlu0 %v574, 64
        %v1062 = vpop.permute.xlu0 %1061
        %1063 = vrot.lane.b32.xlu0 %v591, 64
        %v1064 = vpop.permute.xlu0 %1063
        %1065 = vrot.lane.b32.xlu0 %v592, 64
        %v1066 = vpop.permute.xlu0 %1065
        %1067 = vrot.lane.b32.xlu0 %v593, 64
        %v1068 = vpop.permute.xlu0 %1067
        %1069 = vrot.lane.b32.xlu0 %v594, 64
        %v1070 = vpop.permute.xlu0 %1069
        %v1072 = vsel %vm595, %v1056, 0
        %v1075 = vsel %vm595, %v1058, 0
        %v1078 = vsel %vm595, %v1060, 0
        %v1081 = vsel %vm595, %v1062, 0
        %v1084 = vsel %vm595, %v1064, 0
        %v1087 = vsel %vm595, %v1066, 0
        %v1090 = vsel %vm595, %v1068, 0
        %v1093 = vsel %vm595, %v1070, 0
        %1095 = vmatprep.subr.bf16.mxu0 0
        %1096 = vmatpush1.bf16.xpose.msra.mxu0 %v1084
        %1097 = vmatprep.subr.bf16.mxu0 0
        %1098 = vmatpush1.bf16.xpose.msra.mxu0 %v1087
        %1099 = vmatprep.subr.bf16.mxu0 0
        %1100 = vmatpush1.bf16.xpose.msra.mxu0 %v1090
        %1101 = vmatprep.subr.bf16.mxu0 0
        %1102 = vmatpush1.bf16.xpose.msra.mxu0 %v1093
        %1103 = vmatprep.subr.bf16.mxu0 0
        %1104 = vmatpush1.bf16.xpose.msra.mxu0 0
        %1105 = vmatprep.subr.bf16.mxu0 0
        %1106 = vmatpush1.bf16.xpose.msra.mxu0 0
        %1107 = vmatprep.subr.bf16.mxu0 0
        %1108 = vmatpush1.bf16.xpose.msra.mxu0 0
        %1109 = vmatprep.subr.bf16.mxu0 0
        %1110 = vmatpush1.bf16.xpose.msra.mxu0 0
        %1111 = vmatprep.subr.bf16.mxu0 0
        %1112 = vmatpush1.bf16.xpose.msra.mxu0 0
        %1113 = vmatprep.subr.bf16.mxu0 0
        %1114 = vmatpush1.bf16.xpose.msra.mxu0 0
        %1115 = vmatprep.subr.bf16.mxu0 0
        %1116 = vmatpush1.bf16.xpose.msra.mxu0 0
        %1117 = vmatprep.subr.bf16.mxu0 0
        %1118 = vmatpush1.bf16.xpose.msra.mxu0 0
        %1119 = vmatprep.subr.bf16.mxu0 0
        %1120 = vmatpush1.bf16.xpose.msra.mxu0 0
        %1121 = vmatprep.subr.bf16.mxu0 0
        %1122 = vmatpush1.bf16.xpose.msra.mxu0 0
        %1123 = vmatprep.subr.bf16.mxu0 0
        %1124 = vmatpush1.bf16.xpose.msra.mxu0 0
        %1125 = vmatprep.subr.bf16.mxu0 0
        %1126 = vmatpush1.bf16.xpose.msra.mxu0 0
        %1127 = vmatprep.mubr.bf16.mxu0 0
        %1128 = vmatmul.mubr.bf16.gmra.mrb[0].mxu0 %v1072
        %v1129 = vpop.f32.mrb[0].mxu0
        %v1130 = vadd.f32 0.0, %v1129
        %v1131 = vpop.f32.mrb[0].mxu0
        %v1132 = vpop.f32.mrb[0].mxu0
        %v1133 = vadd.f32 0.0, %v1132
        %v1134 = vpop.f32.mrb[0].mxu0
        %1135 = vmatprep.mubr.bf16.mxu0 0
        %1136 = vmatmul.mubr.bf16.gmra.mrb[0].mxu0 %v1075
        %v1137 = vpop.f32.mrb[0].mxu0
        %v1138 = vadd.f32 0.0, %v1137
        %v1139 = vpop.f32.mrb[0].mxu0
        %v1140 = vpop.f32.mrb[0].mxu0
        %v1141 = vadd.f32 0.0, %v1140
        %v1142 = vpop.f32.mrb[0].mxu0
        %1143 = vmatprep.mubr.bf16.mxu0 0
        %1144 = vmatmul.mubr.bf16.gmra.mrb[0].mxu0 %v1078
        %v1145 = vpop.f32.mrb[0].mxu0
        %v1146 = vadd.f32 0.0, %v1145
        %v1147 = vpop.f32.mrb[0].mxu0
        %v1148 = vpop.f32.mrb[0].mxu0
        %v1149 = vadd.f32 0.0, %v1148
        %v1150 = vpop.f32.mrb[0].mxu0
        %1151 = vmatprep.mubr.bf16.mxu0 0
        %1152 = vmatmul.mubr.bf16.gmra.mrb[0].mxu0 %v1081
        %v1153 = vpop.f32.mrb[0].mxu0
        %v1154 = vadd.f32 0.0, %v1153
        %v1155 = vpop.f32.mrb[0].mxu0
        %v1156 = vpop.f32.mrb[0].mxu0
        %v1157 = vadd.f32 0.0, %v1156
        %v1158 = vpop.f32.mrb[0].mxu0
        %1159 = vdwg.mxu0
        %v1160 = vld [vmem:[#allocation2] sm:$0xff]
        %v1161 = vld [vmem:[#allocation2 + $0x8] sm:$0xff]
        %v1162 = vld [vmem:[#allocation2 + $0x10] sm:$0xff]
        %v1163 = vld [vmem:[#allocation2 + $0x18] sm:$0xff]
        %v1164 = vld [vmem:[#allocation2 + $0x20] sm:$0xff]
        %v1165 = vld [vmem:[#allocation2 + $0x28] sm:$0xff]
        %v1166 = vld [vmem:[#allocation2 + $0x30] sm:$0xff]
        %v1167 = vld [vmem:[#allocation2 + $0x38] sm:$0xff]
        %v1168 = vsel %vm595, %v1130, -inf
        %1169 = vmax.xlane.f32.xlu0 %v1168
        %v1170 = vpop.xlane.xlu0 %1169
        %v1171 = vsel %vm595, %v1133, -inf
        %1172 = vmax.xlane.f32.xlu0 %v1171
        %v1173 = vpop.xlane.xlu0 %1172
        %v1174 = vsel %vm595, %v1138, -inf
        %1175 = vmax.xlane.f32.xlu0 %v1174
        %v1176 = vpop.xlane.xlu0 %1175
        %v1177 = vsel %vm595, %v1141, -inf
        %1178 = vmax.xlane.f32.xlu0 %v1177
        %v1179 = vpop.xlane.xlu0 %1178
        %v1180 = vsel %vm595, %v1146, -inf
        %1181 = vmax.xlane.f32.xlu0 %v1180
        %v1182 = vpop.xlane.xlu0 %1181
        %v1183 = vsel %vm595, %v1149, -inf
        %1184 = vmax.xlane.f32.xlu0 %v1183
        %v1185 = vpop.xlane.xlu0 %1184
        %v1186 = vsel %vm595, %v1154, -inf
        %1187 = vmax.xlane.f32.xlu0 %v1186
        %v1188 = vpop.xlane.xlu0 %1187
        %v1189 = vsel %vm595, %v1157, -inf
        %1190 = vmax.xlane.f32.xlu0 %v1189
        %v1191 = vpop.xlane.xlu0 %1190
        %v1192 = vmax.f32 %v1160, %v1170
        %v1193 = vmax.f32 %v1161, %v1173
        %v1194 = vmax.f32 %v1162, %v1176
        %v1195 = vmax.f32 %v1163, %v1179
        %v1196 = vmax.f32 %v1164, %v1182
        %v1197 = vmax.f32 %v1165, %v1185
        %v1198 = vmax.f32 %v1166, %v1188
        %v1199 = vmax.f32 %v1167, %v1191
        %v1200 = vsub.f32 %v1160, %v1192
        %v1201 = vsub.f32 %v1161, %v1193
        %v1202 = vsub.f32 %v1162, %v1194
        %v1203 = vsub.f32 %v1163, %v1195
        %v1204 = vsub.f32 %v1164, %v1196
        %v1205 = vsub.f32 %v1165, %v1197
        %v1206 = vsub.f32 %v1166, %v1198
        %v1207 = vsub.f32 %v1167, %v1199
        %v1208 = vmul.f32 %v1200, 1.442695
        %v1209 = vpow.pop %v1208
        %v1210 = vmul.f32 %v1201, 1.442695
        %v1211 = vpow.pop %v1210
        %v1212 = vmul.f32 %v1202, 1.442695
        %v1213 = vpow.pop %v1212
        %v1214 = vmul.f32 %v1203, 1.442695
        %v1215 = vpow.pop %v1214
        %v1216 = vmul.f32 %v1204, 1.442695
        %v1217 = vpow.pop %v1216
        %v1218 = vmul.f32 %v1205, 1.442695
        %v1219 = vpow.pop %v1218
        %v1220 = vmul.f32 %v1206, 1.442695
        %v1221 = vpow.pop %v1220
        %v1222 = vmul.f32 %v1207, 1.442695
        %v1223 = vpow.pop %v1222
        %1225 = vset.pattern.permute.xlu0 1
        %1226 = vperm.xlu0 %1225, %v1192
        %v1227 = vpop.permute.xlu0 %1226
        %1230 = vset.pattern.permute.xlu0 1
        %1231 = vperm.xlu0 %1230, %v1193
        %v1232 = vpop.permute.xlu0 %1231
        %1235 = vset.pattern.permute.xlu0 1
        %1236 = vperm.xlu0 %1235, %v1194
        %v1237 = vpop.permute.xlu0 %1236
        %1240 = vset.pattern.permute.xlu0 1
        %1241 = vperm.xlu0 %1240, %v1195
        %v1242 = vpop.permute.xlu0 %1241
        %1245 = vset.pattern.permute.xlu0 1
        %1246 = vperm.xlu0 %1245, %v1196
        %v1247 = vpop.permute.xlu0 %1246
        %1250 = vset.pattern.permute.xlu0 1
        %1251 = vperm.xlu0 %1250, %v1197
        %v1252 = vpop.permute.xlu0 %1251
        %1255 = vset.pattern.permute.xlu0 1
        %1256 = vperm.xlu0 %1255, %v1198
        %v1257 = vpop.permute.xlu0 %1256
        %1260 = vset.pattern.permute.xlu0 1
        %1261 = vperm.xlu0 %1260, %v1199
        %v1262 = vpop.permute.xlu0 %1261
        %v1264 = vsub.f32 %v1130, %v1227
        %v1265 = vsub.f32 %v1133, %v1232
        %v1266 = vsub.f32 %v1138, %v1237
        %v1267 = vsub.f32 %v1141, %v1242
        %v1268 = vsub.f32 %v1146, %v1247
        %v1269 = vsub.f32 %v1149, %v1252
        %v1270 = vsub.f32 %v1154, %v1257
        %v1271 = vsub.f32 %v1157, %v1262
        %v1272 = vmul.f32 %v1264, 1.442695
        %v1273 = vpow.pop %v1272
        %v1274 = vmul.f32 %v1265, 1.442695
        %v1275 = vpow.pop %v1274
        %v1276 = vmul.f32 %v1266, 1.442695
        %v1277 = vpow.pop %v1276
        %v1278 = vmul.f32 %v1267, 1.442695
        %v1279 = vpow.pop %v1278
        %v1280 = vmul.f32 %v1268, 1.442695
        %v1281 = vpow.pop %v1280
        %v1282 = vmul.f32 %v1269, 1.442695
        %v1283 = vpow.pop %v1282
        %v1284 = vmul.f32 %v1270, 1.442695
        %v1285 = vpow.pop %v1284
        %v1286 = vmul.f32 %v1271, 1.442695
        %v1287 = vpow.pop %v1286
        %v1288 = vld [vmem:[#allocation3] sm:$0xff]
        %v1289 = vld [vmem:[#allocation3 + $0x8] sm:$0xff]
        %v1290 = vld [vmem:[#allocation3 + $0x10] sm:$0xff]
        %v1291 = vld [vmem:[#allocation3 + $0x18] sm:$0xff]
        %v1292 = vld [vmem:[#allocation3 + $0x20] sm:$0xff]
        %v1293 = vld [vmem:[#allocation3 + $0x28] sm:$0xff]
        %v1294 = vld [vmem:[#allocation3 + $0x30] sm:$0xff]
        %v1295 = vld [vmem:[#allocation3 + $0x38] sm:$0xff]
        %v1296 = vmul.f32 %v1209, %v1288
        %v1297 = vmul.f32 %v1211, %v1289
        %v1298 = vmul.f32 %v1213, %v1290
        %v1299 = vmul.f32 %v1215, %v1291
        %v1300 = vmul.f32 %v1217, %v1292
        %v1301 = vmul.f32 %v1219, %v1293
        %v1302 = vmul.f32 %v1221, %v1294
        %v1303 = vmul.f32 %v1223, %v1295
        %v1304 = vsel %vm595, %v1273, 0.0
        %1305 = vadd.xlane.f32.xlu0 %v1304
        %v1306 = vpop.xlane.xlu0 %1305
        %v1307 = vsel %vm595, %v1275, 0.0
        %1308 = vadd.xlane.f32.xlu0 %v1307
        %v1309 = vpop.xlane.xlu0 %1308
        %v1310 = vsel %vm595, %v1277, 0.0
        %1311 = vadd.xlane.f32.xlu0 %v1310
        %v1312 = vpop.xlane.xlu0 %1311
        %v1313 = vsel %vm595, %v1279, 0.0
        %1314 = vadd.xlane.f32.xlu0 %v1313
        %v1315 = vpop.xlane.xlu0 %1314
        %v1316 = vsel %vm595, %v1281, 0.0
        %1317 = vadd.xlane.f32.xlu0 %v1316
        %v1318 = vpop.xlane.xlu0 %1317
        %v1319 = vsel %vm595, %v1283, 0.0
        %1320 = vadd.xlane.f32.xlu0 %v1319
        %v1321 = vpop.xlane.xlu0 %1320
        %v1322 = vsel %vm595, %v1285, 0.0
        %1323 = vadd.xlane.f32.xlu0 %v1322
        %v1324 = vpop.xlane.xlu0 %1323
        %v1325 = vsel %vm595, %v1287, 0.0
        %1326 = vadd.xlane.f32.xlu0 %v1325
        %v1327 = vpop.xlane.xlu0 %1326
        %v1328 = vadd.f32 %v1296, %v1306
        %v1329 = vadd.f32 %v1297, %v1309
        %v1330 = vadd.f32 %v1298, %v1312
        %v1331 = vadd.f32 %v1299, %v1315
        %v1332 = vadd.f32 %v1300, %v1318
        %v1333 = vadd.f32 %v1301, %v1321
        %v1334 = vadd.f32 %v1302, %v1324
        %v1335 = vadd.f32 %v1303, %v1327
        %vm1336 = vcmask 15368
        %1337 = vst.msk [vmem:[#allocation3] sm:$0xff] %vm1336, %v1328
        %1338 = vst.msk [vmem:[#allocation3 + $0x8] sm:$0xff] %vm1336, %v1329
        %1339 = vst.msk [vmem:[#allocation3 + $0x10] sm:$0xff] %vm1336, %v1330
        %1340 = vst.msk [vmem:[#allocation3 + $0x18] sm:$0xff] %vm1336, %v1331
        %1341 = vst.msk [vmem:[#allocation3 + $0x20] sm:$0xff] %vm1336, %v1332
        %1342 = vst.msk [vmem:[#allocation3 + $0x28] sm:$0xff] %vm1336, %v1333
        %1343 = vst.msk [vmem:[#allocation3 + $0x30] sm:$0xff] %vm1336, %v1334
        %1344 = vst.msk [vmem:[#allocation3 + $0x38] sm:$0xff] %vm1336, %v1335
        %v1345 = vld [vmem:[#allocation4] sm:$0xff]
        %v1346 = vld [vmem:[#allocation4 + $0x8] sm:$0xff]
        %v1347 = vld [vmem:[#allocation4 + $0x10] sm:$0xff]
        %v1348 = vld [vmem:[#allocation4 + $0x18] sm:$0xff]
        %v1349 = vld [vmem:[#allocation4 + $0x20] sm:$0xff]
        %v1350 = vld [vmem:[#allocation4 + $0x28] sm:$0xff]
        %v1351 = vld [vmem:[#allocation4 + $0x30] sm:$0xff]
        %v1352 = vld [vmem:[#allocation4 + $0x38] sm:$0xff]
        %1354 = vset.pattern.permute.xlu0 1
        %1355 = vperm.xlu0 %1354, %v1209
        %v1356 = vpop.permute.xlu0 %1355
        %1359 = vset.pattern.permute.xlu0 1
        %1360 = vperm.xlu0 %1359, %v1211
        %v1361 = vpop.permute.xlu0 %1360
        %1364 = vset.pattern.permute.xlu0 1
        %1365 = vperm.xlu0 %1364, %v1213
        %v1366 = vpop.permute.xlu0 %1365
        %1369 = vset.pattern.permute.xlu0 1
        %1370 = vperm.xlu0 %1369, %v1215
        %v1371 = vpop.permute.xlu0 %1370
        %1374 = vset.pattern.permute.xlu0 1
        %1375 = vperm.xlu0 %1374, %v1217
        %v1376 = vpop.permute.xlu0 %1375
        %1379 = vset.pattern.permute.xlu0 1
        %1380 = vperm.xlu0 %1379, %v1219
        %v1381 = vpop.permute.xlu0 %1380
        %1384 = vset.pattern.permute.xlu0 1
        %1385 = vperm.xlu0 %1384, %v1221
        %v1386 = vpop.permute.xlu0 %1385
        %1389 = vset.pattern.permute.xlu0 1
        %1390 = vperm.xlu0 %1389, %v1223
        %v1391 = vpop.permute.xlu0 %1390
        %v1393 = vmul.f32 %v1356, %v1345
        %v1394 = vmul.f32 %v1361, %v1346
        %v1395 = vmul.f32 %v1366, %v1347
        %v1396 = vmul.f32 %v1371, %v1348
        %v1397 = vmul.f32 %v1376, %v1349
        %v1398 = vmul.f32 %v1381, %v1350
        %v1399 = vmul.f32 %v1386, %v1351
        %v1400 = vmul.f32 %v1391, %v1352
        %v1401 = vpack.c.bf16 %v1275, %v1273
        %v1402 = vpack.c.bf16 %v1279, %v1277
        %v1403 = vpack.c.bf16 %v1283, %v1281
        %v1404 = vpack.c.bf16 %v1287, %v1285
        %1405 = vrot.lane.b32.xlu0 %v946, 64
        %v1406 = vpop.permute.xlu0 %1405
        %1407 = vrot.lane.b32.xlu0 %v947, 64
        %v1408 = vpop.permute.xlu0 %1407
        %1409 = vrot.lane.b32.xlu0 %v948, 64
        %v1410 = vpop.permute.xlu0 %1409
        %1411 = vrot.lane.b32.xlu0 %v949, 64
        %v1412 = vpop.permute.xlu0 %1411
        %v1418 = vsel %vm595, %v1401, 0
        %v1421 = vsel %vm595, %v1402, 0
        %v1424 = vsel %vm595, %v1403, 0
        %v1427 = vsel %vm595, %v1404, 0
        %1429 = vmatprep.subr.bf16.mxu0 0
        %1430 = vmatpush1.bf16.msra.mxu0 %v1406
        %1431 = vmatprep.subr.bf16.mxu0 0
        %1432 = vmatpush1.bf16.msra.mxu0 %v1408
        %1433 = vmatprep.subr.bf16.mxu0 0
        %1434 = vmatpush1.bf16.msra.mxu0 %v1410
        %1435 = vmatprep.subr.bf16.mxu0 0
        %1436 = vmatpush1.bf16.msra.mxu0 %v1412
        %1437 = vmatprep.subr.bf16.mxu0 0
        %1438 = vmatpush1.bf16.msra.mxu0 0
        %1439 = vmatprep.subr.bf16.mxu0 0
        %1440 = vmatpush1.bf16.msra.mxu0 0
        %1441 = vmatprep.subr.bf16.mxu0 0
        %1442 = vmatpush1.bf16.msra.mxu0 0
        %1443 = vmatprep.subr.bf16.mxu0 0
        %1444 = vmatpush1.bf16.msra.mxu0 0
        %1445 = vmatprep.subr.bf16.mxu0 0
        %1446 = vmatpush1.bf16.msra.mxu0 0
        %1447 = vmatprep.subr.bf16.mxu0 0
        %1448 = vmatpush1.bf16.msra.mxu0 0
        %1449 = vmatprep.subr.bf16.mxu0 0
        %1450 = vmatpush1.bf16.msra.mxu0 0
        %1451 = vmatprep.subr.bf16.mxu0 0
        %1452 = vmatpush1.bf16.msra.mxu0 0
        %1453 = vmatprep.subr.bf16.mxu0 0
        %1454 = vmatpush1.bf16.msra.mxu0 0
        %1455 = vmatprep.subr.bf16.mxu0 0
        %1456 = vmatpush1.bf16.msra.mxu0 0
        %1457 = vmatprep.subr.bf16.mxu0 0
        %1458 = vmatpush1.bf16.msra.mxu0 0
        %1459 = vmatprep.subr.bf16.mxu0 0
        %1460 = vmatpush1.bf16.msra.mxu0 0
        %1461 = vmatprep.mubr.bf16.mxu0 0
        %1462 = vmatmul.mubr.bf16.gmra.mrb[0].mxu0 %v1418
        %v1463 = vpop.f32.mrb[0].mxu0
        %v1464 = vadd.f32 0.0, %v1463
        %v1465 = vpop.f32.mrb[0].mxu0
        %v1466 = vpop.f32.mrb[0].mxu0
        %v1467 = vadd.f32 0.0, %v1466
        %v1468 = vpop.f32.mrb[0].mxu0
        %1469 = vmatprep.mubr.bf16.mxu0 0
        %1470 = vmatmul.mubr.bf16.gmra.mrb[0].mxu0 %v1421
        %v1471 = vpop.f32.mrb[0].mxu0
        %v1472 = vadd.f32 0.0, %v1471
        %v1473 = vpop.f32.mrb[0].mxu0
        %v1474 = vpop.f32.mrb[0].mxu0
        %v1475 = vadd.f32 0.0, %v1474
        %v1476 = vpop.f32.mrb[0].mxu0
        %1477 = vmatprep.mubr.bf16.mxu0 0
        %1478 = vmatmul.mubr.bf16.gmra.mrb[0].mxu0 %v1424
        %v1479 = vpop.f32.mrb[0].mxu0
        %v1480 = vadd.f32 0.0, %v1479
        %v1481 = vpop.f32.mrb[0].mxu0
        %v1482 = vpop.f32.mrb[0].mxu0
        %v1483 = vadd.f32 0.0, %v1482
        %v1484 = vpop.f32.mrb[0].mxu0
        %1485 = vmatprep.mubr.bf16.mxu0 0
        %1486 = vmatmul.mubr.bf16.gmra.mrb[0].mxu0 %v1427
        %v1487 = vpop.f32.mrb[0].mxu0
        %v1488 = vadd.f32 0.0, %v1487
        %v1489 = vpop.f32.mrb[0].mxu0
        %v1490 = vpop.f32.mrb[0].mxu0
        %v1491 = vadd.f32 0.0, %v1490
        %v1492 = vpop.f32.mrb[0].mxu0
        %1493 = vdwg.mxu0
        %1502 = vrot.lane.b32.xlu0 %v1464, 64
        %v1503 = vpop.permute.xlu0 %1502
        %1504 = vrot.lane.b32.xlu0 %v1467, 64
        %v1505 = vpop.permute.xlu0 %1504
        %1506 = vrot.lane.b32.xlu0 %v1472, 64
        %v1507 = vpop.permute.xlu0 %1506
        %1508 = vrot.lane.b32.xlu0 %v1475, 64
        %v1509 = vpop.permute.xlu0 %1508
        %1510 = vrot.lane.b32.xlu0 %v1480, 64
        %v1511 = vpop.permute.xlu0 %1510
        %1512 = vrot.lane.b32.xlu0 %v1483, 64
        %v1513 = vpop.permute.xlu0 %1512
        %1514 = vrot.lane.b32.xlu0 %v1488, 64
        %v1515 = vpop.permute.xlu0 %1514
        %1516 = vrot.lane.b32.xlu0 %v1491, 64
        %v1517 = vpop.permute.xlu0 %1516
        %v1526 = vadd.f32 %v1393, %v1503
        %v1527 = vadd.f32 %v1394, %v1505
        %v1528 = vadd.f32 %v1395, %v1507
        %v1529 = vadd.f32 %v1396, %v1509
        %v1530 = vadd.f32 %v1397, %v1511
        %v1531 = vadd.f32 %v1398, %v1513
        %v1532 = vadd.f32 %v1399, %v1515
        %v1533 = vadd.f32 %v1400, %v1517
        %vm1534 = vcmask 1048064
        %1535 = vst.msk [vmem:[#allocation4] sm:$0xff] %vm1534, %v1526
        %1536 = vst.msk [vmem:[#allocation4 + $0x8] sm:$0xff] %vm1534, %v1527
        %1537 = vst.msk [vmem:[#allocation4 + $0x10] sm:$0xff] %vm1534, %v1528
        %1538 = vst.msk [vmem:[#allocation4 + $0x18] sm:$0xff] %vm1534, %v1529
        %1539 = vst.msk [vmem:[#allocation4 + $0x20] sm:$0xff] %vm1534, %v1530
        %1540 = vst.msk [vmem:[#allocation4 + $0x28] sm:$0xff] %vm1534, %v1531
        %1541 = vst.msk [vmem:[#allocation4 + $0x30] sm:$0xff] %vm1534, %v1532
        %1542 = vst.msk [vmem:[#allocation4 + $0x38] sm:$0xff] %vm1534, %v1533
        %1543 = vst.msk [vmem:[#allocation2] sm:$0xff] %vm1336, %v1192
        %1544 = vst.msk [vmem:[#allocation2 + $0x8] sm:$0xff] %vm1336, %v1193
        %1545 = vst.msk [vmem:[#allocation2 + $0x10] sm:$0xff] %vm1336, %v1194
        %1546 = vst.msk [vmem:[#allocation2 + $0x18] sm:$0xff] %vm1336, %v1195
        %1547 = vst.msk [vmem:[#allocation2 + $0x20] sm:$0xff] %vm1336, %v1196
        %1548 = vst.msk [vmem:[#allocation2 + $0x28] sm:$0xff] %vm1336, %v1197
        %1549 = vst.msk [vmem:[#allocation2 + $0x30] sm:$0xff] %vm1336, %v1198
        %1550 = vst.msk [vmem:[#allocation2 + $0x38] sm:$0xff] %vm1336, %v1199
        // Predicated region
        $region160: #{cellpose_sam_apply.16} parent=142 // pred_check
          %p1551 = pneg %p502
        $region161: #{cellpose_sam_apply.16} parent=142 // pred_check_branch
          %1553 = sbr.rel (%p1551) target = $region163
        $region162: #{cellpose_sam_apply.16} parent=142 // pred_region
          %v1554 = vld [vmem:[#allocation3] sm:$0xff]
          %v1555 = vld [vmem:[#allocation3 + $0x8] sm:$0xff]
          %v1556 = vld [vmem:[#allocation3 + $0x10] sm:$0xff]
          %v1557 = vld [vmem:[#allocation3 + $0x18] sm:$0xff]
          %v1558 = vld [vmem:[#allocation3 + $0x20] sm:$0xff]
          %v1559 = vld [vmem:[#allocation3 + $0x28] sm:$0xff]
          %v1560 = vld [vmem:[#allocation3 + $0x30] sm:$0xff]
          %v1561 = vld [vmem:[#allocation3 + $0x38] sm:$0xff]
          %v1562 = vrcp.pop %v1554
          %v1563 = vrcp.pop %v1555
          %v1564 = vrcp.pop %v1556
          %v1565 = vrcp.pop %v1557
          %v1566 = vrcp.pop %v1558
          %v1567 = vrcp.pop %v1559
          %v1568 = vrcp.pop %v1560
          %v1569 = vrcp.pop %v1561
          %v1570 = vld [vmem:[#allocation4] sm:$0xff]
          %v1571 = vld [vmem:[#allocation4 + $0x8] sm:$0xff]
          %v1572 = vld [vmem:[#allocation4 + $0x10] sm:$0xff]
          %v1573 = vld [vmem:[#allocation4 + $0x18] sm:$0xff]
          %v1574 = vld [vmem:[#allocation4 + $0x20] sm:$0xff]
          %v1575 = vld [vmem:[#allocation4 + $0x28] sm:$0xff]
          %v1576 = vld [vmem:[#allocation4 + $0x30] sm:$0xff]
          %v1577 = vld [vmem:[#allocation4 + $0x38] sm:$0xff]
          %1579 = vset.pattern.permute.xlu0 0
          %1580 = vperm.xlu0 %1579, %v1562
          %v1581 = vpop.permute.xlu0 %1580
          %1584 = vset.pattern.permute.xlu0 0
          %1585 = vperm.xlu0 %1584, %v1563
          %v1586 = vpop.permute.xlu0 %1585
          %1589 = vset.pattern.permute.xlu0 0
          %1590 = vperm.xlu0 %1589, %v1564
          %v1591 = vpop.permute.xlu0 %1590
          %1594 = vset.pattern.permute.xlu0 0
          %1595 = vperm.xlu0 %1594, %v1565
          %v1596 = vpop.permute.xlu0 %1595
          %1599 = vset.pattern.permute.xlu0 0
          %1600 = vperm.xlu0 %1599, %v1566
          %v1601 = vpop.permute.xlu0 %1600
          %1604 = vset.pattern.permute.xlu0 0
          %1605 = vperm.xlu0 %1604, %v1567
          %v1606 = vpop.permute.xlu0 %1605
          %1609 = vset.pattern.permute.xlu0 0
          %1610 = vperm.xlu0 %1609, %v1568
          %v1611 = vpop.permute.xlu0 %1610
          %1614 = vset.pattern.permute.xlu0 0
          %1615 = vperm.xlu0 %1614, %v1569
          %v1616 = vpop.permute.xlu0 %1615
          %v1618 = vmul.f32 %v1570, %v1581
          %v1619 = vmul.f32 %v1571, %v1586
          %v1620 = vmul.f32 %v1572, %v1591
          %v1621 = vmul.f32 %v1573, %v1596
          %v1622 = vmul.f32 %v1574, %v1601
          %v1623 = vmul.f32 %v1575, %v1606
          %v1624 = vmul.f32 %v1576, %v1611
          %v1625 = vmul.f32 %v1577, %v1616
          %v1626 = vpack.c.bf16 %v1619, %v1618
          %v1627 = vpack.c.bf16 %v1621, %v1620
          %v1628 = vpack.c.bf16 %v1623, %v1622
          %v1629 = vpack.c.bf16 %v1625, %v1624
          %v1634 = vunpack.c.l.b16 %v1626
          %v1635 = vunpack.c.h.b16 %v1626
          %v1636 = vunpack.c.l.b16 %v1627
          %v1637 = vunpack.c.h.b16 %v1627
          %v1638 = vunpack.c.l.b16 %v1628
          %v1639 = vunpack.c.h.b16 %v1628
          %v1640 = vunpack.c.l.b16 %v1629
          %v1641 = vunpack.c.h.b16 %v1629
          %v1642 = vpack.c.b16 %v1634, %v1634
          %v1643 = vpack.c.b16 %v1635, %v1635
          %v1644 = vpack.c.b16 %v1636, %v1636
          %v1645 = vpack.c.b16 %v1637, %v1637
          %v1646 = vpack.c.b16 %v1638, %v1638
          %v1647 = vpack.c.b16 %v1639, %v1639
          %v1648 = vpack.c.b16 %v1640, %v1640
          %v1649 = vpack.c.b16 %v1641, %v1641
          %vm1658 = vcmask 519168
          %1659 = vst.msk [vmem:[%s499] sm:$0xf] %vm1658, %v1642
          %1660 = vst.msk [vmem:[%s499 + $0x4] sm:$0xf] %vm1658, %v1643
          %1661 = vst.msk [vmem:[%s499 + $0x8] sm:$0xf] %vm1658, %v1644
          %1662 = vst.msk [vmem:[%s499 + $0xc] sm:$0xf] %vm1658, %v1645
          %1663 = vst.msk [vmem:[%s499 + $0x10] sm:$0xf] %vm1658, %v1646
          %1664 = vst.msk [vmem:[%s499 + $0x14] sm:$0xf] %vm1658, %v1647
          %1665 = vst.msk [vmem:[%s499 + $0x18] sm:$0xf] %vm1658, %v1648
          %1666 = vst.msk [vmem:[%s499 + $0x1c] sm:$0xf] %vm1658, %v1649
          %v1667 = vld [vmem:[#allocation3] sm:$0xff]
          %v1668 = vld [vmem:[#allocation3 + $0x8] sm:$0xff]
          %v1669 = vld [vmem:[#allocation3 + $0x10] sm:$0xff]
          %v1670 = vld [vmem:[#allocation3 + $0x18] sm:$0xff]
          %v1671 = vld [vmem:[#allocation3 + $0x20] sm:$0xff]
          %v1672 = vld [vmem:[#allocation3 + $0x28] sm:$0xff]
          %v1673 = vld [vmem:[#allocation3 + $0x30] sm:$0xff]
          %v1674 = vld [vmem:[#allocation3 + $0x38] sm:$0xff]
          %v1675 = vrcp.pop %v1667
          %v1676 = vrcp.pop %v1668
          %v1677 = vrcp.pop %v1669
          %v1678 = vrcp.pop %v1670
          %v1679 = vrcp.pop %v1671
          %v1680 = vrcp.pop %v1672
          %v1681 = vrcp.pop %v1673
          %v1682 = vrcp.pop %v1674
          %v1683 = vld [vmem:[#allocation4] sm:$0xff]
          %v1684 = vld [vmem:[#allocation4 + $0x8] sm:$0xff]
          %v1685 = vld [vmem:[#allocation4 + $0x10] sm:$0xff]
          %v1686 = vld [vmem:[#allocation4 + $0x18] sm:$0xff]
          %v1687 = vld [vmem:[#allocation4 + $0x20] sm:$0xff]
          %v1688 = vld [vmem:[#allocation4 + $0x28] sm:$0xff]
          %v1689 = vld [vmem:[#allocation4 + $0x30] sm:$0xff]
          %v1690 = vld [vmem:[#allocation4 + $0x38] sm:$0xff]
          %1692 = vset.pattern.permute.xlu0 1
          %1693 = vperm.xlu0 %1692, %v1675
          %v1694 = vpop.permute.xlu0 %1693
          %1697 = vset.pattern.permute.xlu0 1
          %1698 = vperm.xlu0 %1697, %v1676
          %v1699 = vpop.permute.xlu0 %1698
          %1702 = vset.pattern.permute.xlu0 1
          %1703 = vperm.xlu0 %1702, %v1677
          %v1704 = vpop.permute.xlu0 %1703
          %1707 = vset.pattern.permute.xlu0 1
          %1708 = vperm.xlu0 %1707, %v1678
          %v1709 = vpop.permute.xlu0 %1708
          %1712 = vset.pattern.permute.xlu0 1
          %1713 = vperm.xlu0 %1712, %v1679
          %v1714 = vpop.permute.xlu0 %1713
          %1717 = vset.pattern.permute.xlu0 1
          %1718 = vperm.xlu0 %1717, %v1680
          %v1719 = vpop.permute.xlu0 %1718
          %1722 = vset.pattern.permute.xlu0 1
          %1723 = vperm.xlu0 %1722, %v1681
          %v1724 = vpop.permute.xlu0 %1723
          %1727 = vset.pattern.permute.xlu0 1
          %1728 = vperm.xlu0 %1727, %v1682
          %v1729 = vpop.permute.xlu0 %1728
          %v1731 = vmul.f32 %v1683, %v1694
          %v1732 = vmul.f32 %v1684, %v1699
          %v1733 = vmul.f32 %v1685, %v1704
          %v1734 = vmul.f32 %v1686, %v1709
          %v1735 = vmul.f32 %v1687, %v1714
          %v1736 = vmul.f32 %v1688, %v1719
          %v1737 = vmul.f32 %v1689, %v1724
          %v1738 = vmul.f32 %v1690, %v1729
          %v1739 = vpack.c.bf16 %v1732, %v1731
          %v1740 = vpack.c.bf16 %v1734, %v1733
          %v1741 = vpack.c.bf16 %v1736, %v1735
          %v1742 = vpack.c.bf16 %v1738, %v1737
          %v1747 = vunpack.c.l.b16 %v1739
          %v1748 = vunpack.c.h.b16 %v1739
          %v1749 = vunpack.c.l.b16 %v1740
          %v1750 = vunpack.c.h.b16 %v1740
          %v1751 = vunpack.c.l.b16 %v1741
          %v1752 = vunpack.c.h.b16 %v1741
          %v1753 = vunpack.c.l.b16 %v1742
          %v1754 = vunpack.c.h.b16 %v1742
          %v1755 = vpack.c.b16 %v1747, %v1747
          %v1756 = vpack.c.b16 %v1748, %v1748
          %v1757 = vpack.c.b16 %v1749, %v1749
          %v1758 = vpack.c.b16 %v1750, %v1750
          %v1759 = vpack.c.b16 %v1751, %v1751
          %v1760 = vpack.c.b16 %v1752, %v1752
          %v1761 = vpack.c.b16 %v1753, %v1753
          %v1762 = vpack.c.b16 %v1754, %v1754
          %vm1771 = vcmask 1043968
          %1772 = vst.msk [vmem:[%s499] sm:$0xf] %vm1771, %v1755
          %1773 = vst.msk [vmem:[%s499 + $0x4] sm:$0xf] %vm1771, %v1756
          %1774 = vst.msk [vmem:[%s499 + $0x8] sm:$0xf] %vm1771, %v1757
          %1775 = vst.msk [vmem:[%s499 + $0xc] sm:$0xf] %vm1771, %v1758
          %1776 = vst.msk [vmem:[%s499 + $0x10] sm:$0xf] %vm1771, %v1759
          %1777 = vst.msk [vmem:[%s499 + $0x14] sm:$0xf] %vm1771, %v1760
          %1778 = vst.msk [vmem:[%s499 + $0x18] sm:$0xf] %vm1771, %v1761
          %1779 = vst.msk [vmem:[%s499 + $0x1c] sm:$0xf] %vm1771, %v1762
        $region163: #{cellpose_sam_apply.16} parent=142 // pred_fallthru
          _
        %s1780 = smul.u32 8, %s22
        %p1781 = scmp.lt.s32.totalorder %s20, 1
        %s1782 = scalar_select %p1781, %s20, 1
        %p1783 = scmp.lt.s32.totalorder %s1780, 7
        %s1784 = scalar_select %p1783, %s1780, 7
        %p1785 = scmp.lt.s32.totalorder %s21, 0
        %s1786 = scalar_select %p1785, %s21, 0
        %s1787 = sadd.s32 %s1786, %s1784
        %s1788 = smul.addr %s1782, 8
        %s1789 = sadd.s32 %s1787, %s1788
        %s1790 = smul.addr %s1789, 4
        %s1791 = scalar_lea.vmem %s3, %s1790
        // Predicated region
        $region164: #{cellpose_sam_apply.16} parent=142 // pred_check
          %p1792 = pneg %p156
        $region165: #{cellpose_sam_apply.16} parent=142 // pred_check_branch
          %1794 = sbr.rel (%p1792) target = $region167
        $region166: #{cellpose_sam_apply.16} parent=142 // pred_region
          %s1795 = smul.u32 8, %s22
        $region167: #{cellpose_sam_apply.16} parent=142 // pred_fallthru
          _
      $region143: #{cellpose_sam_apply.16} parent=5 // pred_fallthru
        _
      %p1796 = scmp.le.s32.totalorder 2, %s9
      // Predicated region
      $region168: #{cellpose_sam_apply.16} parent=5 // pred_check
        %p1797 = pneg %p1796
      $region169: #{cellpose_sam_apply.16} parent=5 // pred_check_branch
        %1799 = sbr.rel (%p1797) target = $region171
      $region170: #{cellpose_sam_apply.16} parent=5 // pred_region
        %s1800 = ssub.s32 %s9, 2
        // Predicated region
        $region172: #{cellpose_sam_apply.16} parent=170 // pred_check
          %p1801 = pneg %p162
        $region173: #{cellpose_sam_apply.16} parent=170 // pred_check_branch
          %1803 = sbr.rel (%p1801) target = $region175
        $region174: #{cellpose_sam_apply.16} parent=170 // pred_region
          %s1804 = smul.u32 8, %s26
          %p1805 = scmp.lt.s32.totalorder %s24, 1
          %s1806 = scalar_select %p1805, %s24, 1
          %p1807 = scmp.lt.s32.totalorder %s1804, 7
          %s1808 = scalar_select %p1807, %s1804, 7
          %p1809 = scmp.lt.s32.totalorder %s25, 0
          %s1810 = scalar_select %p1809, %s25, 0
          %s1811 = sadd.s32 %s1810, %s1808
          %s1812 = smul.addr %s1806, 8
          %s1813 = sadd.s32 %s1811, %s1812
          %s1814 = smul.addr %s1813, 4
          %s1815 = scalar_lea.vmem %s3, %s1814
        $region175: #{cellpose_sam_apply.16} parent=170 // pred_fallthru
          _
      $region171: #{cellpose_sam_apply.16} parent=5 // pred_fallthru
        _
    $region6: #{cellpose_sam_apply.16} parent=1 // loop_footer
      %s13 = sadd.s32 1, %s9
    $region7: #{cellpose_sam_apply.16} parent=1 // loop_footer_branch
      %8 = sbr.rel target = $region3
    $region8: #{cellpose_sam_apply.16} parent=1 // loop_exit
      _

// kernel: cellpose_sam_apply.17
$region0: #{cellpose_sam_apply.17}
  #allocation0 [shape = 'u32[]', space=smem, size = 0x4, offset = 0x4, fixed_abs, tag = 'smem constant byte address 0x4 - core index']
  #allocation1 [shape = 'u32[144,128]{1,0:T(1,128)}', space=vmem, size = 0x12000, scoped, tag = 'internal scratch']
  %s0 = inlined_call_operand.vmem [shape: bf16[128,128], index: 0, kind: input, shape index: {}]
  %s1 = inlined_call_operand.vmem [shape: bf16[128,128], index: 1, kind: input, shape index: {}]
  %s2 = inlined_call_operand.vmem [shape: f32[1,128], index: 2, kind: input, shape index: {}]
  %s3 = inlined_call_operand.vmem [shape: bf16[128,128], index: 3, kind: input, shape index: {}]
  %s4 = inlined_call_operand.vmem [shape: bf16[128,128], index: 4, kind: output, shape index: {}]
  %s5 = sld [smem:[#allocation0]]
  $region26: #{cellpose_sam_apply.17} parent=0
    _
  %s7 = ssub.s32 1, %s5
  %s8 = scalar_select 0, %s7, %s5
  // Predicated region
  $region2: #{cellpose_sam_apply.17} parent=0 // pred_check
    _
  $region3: #{cellpose_sam_apply.17} parent=0 // pred_check_branch
    %10 = sbr.rel (0) target = $region5
  $region4: #{cellpose_sam_apply.17} parent=0 // pred_region
    _
  $region5: #{cellpose_sam_apply.17} parent=0 // pred_fallthru
    _
  // Predicated region
  $region6: #{cellpose_sam_apply.17} parent=0 // pred_check
    _
  $region7: #{cellpose_sam_apply.17} parent=0 // pred_check_branch
    %12 = sbr.rel (0) target = $region9
  $region8: #{cellpose_sam_apply.17} parent=0 // pred_region
    _
  $region9: #{cellpose_sam_apply.17} parent=0 // pred_fallthru
    _
  // Predicated region
  $region10: #{cellpose_sam_apply.17} parent=0 // pred_check
    _
  $region11: #{cellpose_sam_apply.17} parent=0 // pred_check_branch
    %14 = sbr.rel (0) target = $region13
  $region12: #{cellpose_sam_apply.17} parent=0 // pred_region
    _
  $region13: #{cellpose_sam_apply.17} parent=0 // pred_fallthru
    _
  // Predicated region
  $region14: #{cellpose_sam_apply.17} parent=0 // pred_check
    _
  $region15: #{cellpose_sam_apply.17} parent=0 // pred_check_branch
    %16 = sbr.rel (0) target = $region17
  $region16: #{cellpose_sam_apply.17} parent=0 // pred_region
    _
  $region17: #{cellpose_sam_apply.17} parent=0 // pred_fallthru
    _
  %v18 = vld [vmem:[%s0] sm:$0xf]
  %v19 = vld [vmem:[%s0 + $0x4] sm:$0xf]
  %v20 = vld [vmem:[%s0 + $0x8] sm:$0xf]
  %v21 = vld [vmem:[%s0 + $0xc] sm:$0xf]
  %v22 = vld [vmem:[%s0 + $0x10] sm:$0xf]
  %v23 = vld [vmem:[%s0 + $0x14] sm:$0xf]
  %v24 = vld [vmem:[%s0 + $0x18] sm:$0xf]
  %v25 = vld [vmem:[%s0 + $0x1c] sm:$0xf]
  %v26 = vld [vmem:[%s0 + $0x20] sm:$0xf]
  %v27 = vld [vmem:[%s0 + $0x24] sm:$0xf]
  %v28 = vld [vmem:[%s0 + $0x28] sm:$0xf]
  %v29 = vld [vmem:[%s0 + $0x2c] sm:$0xf]
  %v30 = vld [vmem:[%s0 + $0x30] sm:$0xf]
  %v31 = vld [vmem:[%s0 + $0x34] sm:$0xf]
  %v32 = vld [vmem:[%s0 + $0x38] sm:$0xf]
  %v33 = vld [vmem:[%s0 + $0x3c] sm:$0xf]
  %v34 = vld [vmem:[%s1] sm:$0xf]
  %v35 = vld [vmem:[%s1 + $0x4] sm:$0xf]
  %v36 = vld [vmem:[%s1 + $0x8] sm:$0xf]
  %v37 = vld [vmem:[%s1 + $0xc] sm:$0xf]
  %v38 = vld [vmem:[%s1 + $0x10] sm:$0xf]
  %v39 = vld [vmem:[%s1 + $0x14] sm:$0xf]
  %v40 = vld [vmem:[%s1 + $0x18] sm:$0xf]
  %v41 = vld [vmem:[%s1 + $0x1c] sm:$0xf]
  %v42 = vld [vmem:[%s1 + $0x20] sm:$0xf]
  %v43 = vld [vmem:[%s1 + $0x24] sm:$0xf]
  %v44 = vld [vmem:[%s1 + $0x28] sm:$0xf]
  %v45 = vld [vmem:[%s1 + $0x2c] sm:$0xf]
  %v46 = vld [vmem:[%s1 + $0x30] sm:$0xf]
  %v47 = vld [vmem:[%s1 + $0x34] sm:$0xf]
  %v48 = vld [vmem:[%s1 + $0x38] sm:$0xf]
  %v49 = vld [vmem:[%s1 + $0x3c] sm:$0xf]
  %v50 = vld [vmem:[%s2] sm:$0x1]
  %v52 = vlaneseq
  %v53 = vshrl.u32 %v52, 7
  %v54 = vsub.s32 0, %v53
  %v55 = vrot.slane %v50, %v54
  %v73 = vunpack.c.l.b16 %v18
  %v74 = vunpack.c.l.b16 %v19
  %v75 = vunpack.c.l.b16 %v20
  %v76 = vunpack.c.l.b16 %v21
  %v77 = vunpack.c.l.b16 %v22
  %v78 = vunpack.c.l.b16 %v23
  %v79 = vunpack.c.l.b16 %v24
  %v80 = vunpack.c.l.b16 %v25
  %v81 = vunpack.c.l.b16 %v26
  %v82 = vunpack.c.l.b16 %v27
  %v83 = vunpack.c.l.b16 %v28
  %v84 = vunpack.c.l.b16 %v29
  %v85 = vunpack.c.l.b16 %v30
  %v86 = vunpack.c.l.b16 %v31
  %v87 = vunpack.c.l.b16 %v32
  %v88 = vunpack.c.l.b16 %v33
  %v89 = vpack.c.b16 %v74, %v73
  %v90 = vpack.c.b16 %v76, %v75
  %v91 = vpack.c.b16 %v78, %v77
  %v92 = vpack.c.b16 %v80, %v79
  %v93 = vpack.c.b16 %v82, %v81
  %v94 = vpack.c.b16 %v84, %v83
  %v95 = vpack.c.b16 %v86, %v85
  %v96 = vpack.c.b16 %v88, %v87
  %v121 = vunpack.c.l.b16 %v34
  %v122 = vunpack.c.l.b16 %v35
  %v123 = vunpack.c.l.b16 %v36
  %v124 = vunpack.c.l.b16 %v37
  %v125 = vunpack.c.l.b16 %v38
  %v126 = vunpack.c.l.b16 %v39
  %v127 = vunpack.c.l.b16 %v40
  %v128 = vunpack.c.l.b16 %v41
  %v129 = vunpack.c.l.b16 %v42
  %v130 = vunpack.c.l.b16 %v43
  %v131 = vunpack.c.l.b16 %v44
  %v132 = vunpack.c.l.b16 %v45
  %v133 = vunpack.c.l.b16 %v46
  %v134 = vunpack.c.l.b16 %v47
  %v135 = vunpack.c.l.b16 %v48
  %v136 = vunpack.c.l.b16 %v49
  %v137 = vpack.c.b16 %v122, %v121
  %v138 = vpack.c.b16 %v124, %v123
  %v139 = vpack.c.b16 %v126, %v125
  %v140 = vpack.c.b16 %v128, %v127
  %v141 = vpack.c.b16 %v130, %v129
  %v142 = vpack.c.b16 %v132, %v131
  %v143 = vpack.c.b16 %v134, %v133
  %v144 = vpack.c.b16 %v136, %v135
  %153 = vmatprep.subr.bf16.mxu0 0
  %154 = vmatpush1.bf16.msra.mxu0 %v137
  %155 = vmatprep.subr.bf16.mxu0 0
  %156 = vmatpush1.bf16.msra.mxu0 %v138
  %157 = vmatprep.subr.bf16.mxu0 0
  %158 = vmatpush1.bf16.msra.mxu0 %v139
  %159 = vmatprep.subr.bf16.mxu0 0
  %160 = vmatpush1.bf16.msra.mxu0 %v140
  %161 = vmatprep.subr.bf16.mxu0 0
  %162 = vmatpush1.bf16.msra.mxu0 %v141
  %163 = vmatprep.subr.bf16.mxu0 0
  %164 = vmatpush1.bf16.msra.mxu0 %v142
  %165 = vmatprep.subr.bf16.mxu0 0
  %166 = vmatpush1.bf16.msra.mxu0 %v143
  %167 = vmatprep.subr.bf16.mxu0 0
  %168 = vmatpush1.bf16.msra.mxu0 %v144
  %169 = vmatprep.subr.bf16.mxu0 0
  %170 = vmatpush1.bf16.msra.mxu0 0
  %171 = vmatprep.subr.bf16.mxu0 0
  %172 = vmatpush1.bf16.msra.mxu0 0
  %173 = vmatprep.subr.bf16.mxu0 0
  %174 = vmatpush1.bf16.msra.mxu0 0
  %175 = vmatprep.subr.bf16.mxu0 0
  %176 = vmatpush1.bf16.msra.mxu0 0
  %177 = vmatprep.subr.bf16.mxu0 0
  %178 = vmatpush1.bf16.msra.mxu0 0
  %179 = vmatprep.subr.bf16.mxu0 0
  %180 = vmatpush1.bf16.msra.mxu0 0
  %181 = vmatprep.subr.bf16.mxu0 0
  %182 = vmatpush1.bf16.msra.mxu0 0
  %183 = vmatprep.subr.bf16.mxu0 0
  %184 = vmatpush1.bf16.msra.mxu0 0
  %185 = vmatprep.mubr.bf16.mxu0 0
  %186 = vmatmul.mubr.bf16.gmra.mrb[0].mxu0 %v89
  %v187 = vpop.f32.mrb[0].mxu0
  %v188 = vadd.f32 %v55, %v187
  %v189 = vpop.f32.mrb[0].mxu0
  %v190 = vpop.f32.mrb[0].mxu0
  %v191 = vadd.f32 %v55, %v190
  %v192 = vpop.f32.mrb[0].mxu0
  %193 = vmatprep.mubr.bf16.mxu0 0
  %194 = vmatmul.mubr.bf16.gmra.mrb[0].mxu0 %v90
  %v195 = vpop.f32.mrb[0].mxu0
  %v196 = vadd.f32 %v55, %v195
  %v197 = vpop.f32.mrb[0].mxu0
  %v198 = vpop.f32.mrb[0].mxu0
  %v199 = vadd.f32 %v55, %v198
  %v200 = vpop.f32.mrb[0].mxu0
  %201 = vmatprep.mubr.bf16.mxu0 0
  %202 = vmatmul.mubr.bf16.gmra.mrb[0].mxu0 %v91
  %v203 = vpop.f32.mrb[0].mxu0
  %v204 = vadd.f32 %v55, %v203
  %v205 = vpop.f32.mrb[0].mxu0
  %v206 = vpop.f32.mrb[0].mxu0
  %v207 = vadd.f32 %v55, %v206
  %v208 = vpop.f32.mrb[0].mxu0
  %209 = vmatprep.mubr.bf16.mxu0 0
  %210 = vmatmul.mubr.bf16.gmra.mrb[0].mxu0 %v92
  %v211 = vpop.f32.mrb[0].mxu0
  %v212 = vadd.f32 %v55, %v211
  %v213 = vpop.f32.mrb[0].mxu0
  %v214 = vpop.f32.mrb[0].mxu0
  %v215 = vadd.f32 %v55, %v214
  %v216 = vpop.f32.mrb[0].mxu0
  %217 = vmatprep.mubr.bf16.mxu0 0
  %218 = vmatmul.mubr.bf16.gmra.mrb[0].mxu0 %v93
  %v219 = vpop.f32.mrb[0].mxu0
  %v220 = vadd.f32 %v55, %v219
  %v221 = vpop.f32.mrb[0].mxu0
  %v222 = vpop.f32.mrb[0].mxu0
  %v223 = vadd.f32 %v55, %v222
  %v224 = vpop.f32.mrb[0].mxu0
  %225 = vmatprep.mubr.bf16.mxu0 0
  %226 = vmatmul.mubr.bf16.gmra.mrb[0].mxu0 %v94
  %v227 = vpop.f32.mrb[0].mxu0
  %v228 = vadd.f32 %v55, %v227
  %v229 = vpop.f32.mrb[0].mxu0
  %v230 = vpop.f32.mrb[0].mxu0
  %v231 = vadd.f32 %v55, %v230
  %v232 = vpop.f32.mrb[0].mxu0
  %233 = vmatprep.mubr.bf16.mxu0 0
  %234 = vmatmul.mubr.bf16.gmra.mrb[0].mxu0 %v95
  %v235 = vpop.f32.mrb[0].mxu0
  %v236 = vadd.f32 %v55, %v235
  %v237 = vpop.f32.mrb[0].mxu0
  %v238 = vpop.f32.mrb[0].mxu0
  %v239 = vadd.f32 %v55, %v238
  %v240 = vpop.f32.mrb[0].mxu0
  %241 = vmatprep.mubr.bf16.mxu0 0
  %242 = vmatmul.mubr.bf16.gmra.mrb[0].mxu0 %v96
  %v243 = vpop.f32.mrb[0].mxu0
  %v244 = vadd.f32 %v55, %v243
  %v245 = vpop.f32.mrb[0].mxu0
  %v246 = vpop.f32.mrb[0].mxu0
  %v247 = vadd.f32 %v55, %v246
  %v248 = vpop.f32.mrb[0].mxu0
  %249 = vdwg.mxu0
  %v250 = vld [vmem:[%s3] sm:$0xf]
  %v251 = vld [vmem:[%s3 + $0x4] sm:$0xf]
  %v252 = vld [vmem:[%s3 + $0x8] sm:$0xf]
  %v253 = vld [vmem:[%s3 + $0xc] sm:$0xf]
  %v254 = vld [vmem:[%s3 + $0x10] sm:$0xf]
  %v255 = vld [vmem:[%s3 + $0x14] sm:$0xf]
  %v256 = vld [vmem:[%s3 + $0x18] sm:$0xf]
  %v257 = vld [vmem:[%s3 + $0x1c] sm:$0xf]
  %v258 = vld [vmem:[%s3 + $0x20] sm:$0xf]
  %v259 = vld [vmem:[%s3 + $0x24] sm:$0xf]
  %v260 = vld [vmem:[%s3 + $0x28] sm:$0xf]
  %v261 = vld [vmem:[%s3 + $0x2c] sm:$0xf]
  %v262 = vld [vmem:[%s3 + $0x30] sm:$0xf]
  %v263 = vld [vmem:[%s3 + $0x34] sm:$0xf]
  %v264 = vld [vmem:[%s3 + $0x38] sm:$0xf]
  %v265 = vld [vmem:[%s3 + $0x3c] sm:$0xf]
  %v266 = vunpack.c.l.bf16 %v250
  %v267 = vunpack.c.l.bf16 %v251
  %v268 = vunpack.c.l.bf16 %v252
  %v269 = vunpack.c.l.bf16 %v253
  %v270 = vunpack.c.l.bf16 %v254
  %v271 = vunpack.c.l.bf16 %v255
  %v272 = vunpack.c.l.bf16 %v256
  %v273 = vunpack.c.l.bf16 %v257
  %v274 = vunpack.c.l.bf16 %v258
  %v275 = vunpack.c.l.bf16 %v259
  %v276 = vunpack.c.l.bf16 %v260
  %v277 = vunpack.c.l.bf16 %v261
  %v278 = vunpack.c.l.bf16 %v262
  %v279 = vunpack.c.l.bf16 %v263
  %v280 = vunpack.c.l.bf16 %v264
  %v281 = vunpack.c.l.bf16 %v265
  %v282 = vadd.f32 %v188, %v266
  %v283 = vadd.f32 %v191, %v267
  %v284 = vadd.f32 %v196, %v268
  %v285 = vadd.f32 %v199, %v269
  %v286 = vadd.f32 %v204, %v270
  %v287 = vadd.f32 %v207, %v271
  %v288 = vadd.f32 %v212, %v272
  %v289 = vadd.f32 %v215, %v273
  %v290 = vadd.f32 %v220, %v274
  %v291 = vadd.f32 %v223, %v275
  %v292 = vadd.f32 %v228, %v276
  %v293 = vadd.f32 %v231, %v277
  %v294 = vadd.f32 %v236, %v278
  %v295 = vadd.f32 %v239, %v279
  %v296 = vadd.f32 %v244, %v280
  %v297 = vadd.f32 %v247, %v281
  %v298 = vpack.c.bf16 %v283, %v282
  %v299 = vpack.c.bf16 %v285, %v284
  %v300 = vpack.c.bf16 %v287, %v286
  %v301 = vpack.c.bf16 %v289, %v288
  %v302 = vpack.c.bf16 %v291, %v290
  %v303 = vpack.c.bf16 %v293, %v292
  %v304 = vpack.c.bf16 %v295, %v294
  %v305 = vpack.c.bf16 %v297, %v296
  %v314 = vunpack.c.l.b16 %v298
  %v315 = vunpack.c.h.b16 %v298
  %v316 = vunpack.c.l.b16 %v299
  %v317 = vunpack.c.h.b16 %v299
  %v318 = vunpack.c.l.b16 %v300
  %v319 = vunpack.c.h.b16 %v300
  %v320 = vunpack.c.l.b16 %v301
  %v321 = vunpack.c.h.b16 %v301
  %v322 = vunpack.c.l.b16 %v302
  %v323 = vunpack.c.h.b16 %v302
  %v324 = vunpack.c.l.b16 %v303
  %v325 = vunpack.c.h.b16 %v303
  %v326 = vunpack.c.l.b16 %v304
  %v327 = vunpack.c.h.b16 %v304
  %v328 = vunpack.c.l.b16 %v305
  %v329 = vunpack.c.h.b16 %v305
  %v330 = vpack.c.b16 %v314, %v314
  %v331 = vpack.c.b16 %v315, %v315
  %v332 = vpack.c.b16 %v316, %v316
  %v333 = vpack.c.b16 %v317, %v317
  %v334 = vpack.c.b16 %v318, %v318
  %v335 = vpack.c.b16 %v319, %v319
  %v336 = vpack.c.b16 %v320, %v320
  %v337 = vpack.c.b16 %v321, %v321
  %v338 = vpack.c.b16 %v322, %v322
  %v339 = vpack.c.b16 %v323, %v323
  %v340 = vpack.c.b16 %v324, %v324
  %v341 = vpack.c.b16 %v325, %v325
  %v342 = vpack.c.b16 %v326, %v326
  %v343 = vpack.c.b16 %v327, %v327
  %v344 = vpack.c.b16 %v328, %v328
  %v345 = vpack.c.b16 %v329, %v329
  %362 = vst [vmem:[%s4] sm:$0xf] %v330
  %363 = vst [vmem:[%s4 + $0x4] sm:$0xf] %v331
  %364 = vst [vmem:[%s4 + $0x8] sm:$0xf] %v332
  %365 = vst [vmem:[%s4 + $0xc] sm:$0xf] %v333
  %366 = vst [vmem:[%s4 + $0x10] sm:$0xf] %v334
  %367 = vst [vmem:[%s4 + $0x14] sm:$0xf] %v335
  %368 = vst [vmem:[%s4 + $0x18] sm:$0xf] %v336
  %369 = vst [vmem:[%s4 + $0x1c] sm:$0xf] %v337
  %370 = vst [vmem:[%s4 + $0x20] sm:$0xf] %v338
  %371 = vst [vmem:[%s4 + $0x24] sm:$0xf] %v339
  %372 = vst [vmem:[%s4 + $0x28] sm:$0xf] %v340
  %373 = vst [vmem:[%s4 + $0x2c] sm:$0xf] %v341
  %374 = vst [vmem:[%s4 + $0x30] sm:$0xf] %v342
  %375 = vst [vmem:[%s4 + $0x34] sm:$0xf] %v343
  %376 = vst [vmem:[%s4 + $0x38] sm:$0xf] %v344
  %377 = vst [vmem:[%s4 + $0x3c] sm:$0xf] %v345
  // Predicated region
  $region18: #{cellpose_sam_apply.17} parent=0 // pred_check
    _
  $region19: #{cellpose_sam_apply.17} parent=0 // pred_check_branch
    %379 = sbr.rel (0) target = $region21
  $region20: #{cellpose_sam_apply.17} parent=0 // pred_region
    _
  $region21: #{cellpose_sam_apply.17} parent=0 // pred_fallthru
    _
  // Predicated region
  $region22: #{cellpose_sam_apply.17} parent=0 // pred_check
    _
  $region23: #{cellpose_sam_apply.17} parent=0 // pred_check_branch
    %381 = sbr.rel (0) target = $region25
  $region24: #{cellpose_sam_apply.17} parent=0 // pred_region
    _
  $region25: #{cellpose_sam_apply.17} parent=0 // pred_fallthru
    _

// kernel: cellpose_sam_apply.18
$region0: #{cellpose_sam_apply.18}
  #allocation0 [shape = 'u32[]', space=smem, size = 0x4, offset = 0x4, fixed_abs, tag = 'smem constant byte address 0x4 - core index']
  #allocation1 [shape = 'u32[144,128]{1,0:T(1,128)}', space=vmem, size = 0x12000, scoped, tag = 'internal scratch']
  %s0 = inlined_call_operand.vmem [shape: bf16[128,128], index: 0, kind: input, shape index: {}]
  %s1 = inlined_call_operand.vmem [shape: bf16[128,512], index: 1, kind: input, shape index: {}]
  %s2 = inlined_call_operand.vmem [shape: f32[1,512], index: 2, kind: input, shape index: {}]
  %s3 = inlined_call_operand.vmem [shape: f32[1,128], index: 3, kind: input, shape index: {}]
  %s4 = inlined_call_operand.vmem [shape: f32[1,128], index: 4, kind: input, shape index: {}]
  %s5 = inlined_call_operand.vmem [shape: bf16[128,512], index: 5, kind: output, shape index: {}]
  %s6 = sld [smem:[#allocation0]]
  $region30: #{cellpose_sam_apply.18} parent=0
    _
  %s8 = ssub.s32 1, %s6
  %s9 = scalar_select 0, %s8, %s6
  // Predicated region
  $region2: #{cellpose_sam_apply.18} parent=0 // pred_check
    _
  $region3: #{cellpose_sam_apply.18} parent=0 // pred_check_branch
    %11 = sbr.rel (0) target = $region5
  $region4: #{cellpose_sam_apply.18} parent=0 // pred_region
    _
  $region5: #{cellpose_sam_apply.18} parent=0 // pred_fallthru
    _
  // Predicated region
  $region6: #{cellpose_sam_apply.18} parent=0 // pred_check
    _
  $region7: #{cellpose_sam_apply.18} parent=0 // pred_check_branch
    %13 = sbr.rel (0) target = $region9
  $region8: #{cellpose_sam_apply.18} parent=0 // pred_region
    _
  $region9: #{cellpose_sam_apply.18} parent=0 // pred_fallthru
    _
  // Predicated region
  $region10: #{cellpose_sam_apply.18} parent=0 // pred_check
    _
  $region11: #{cellpose_sam_apply.18} parent=0 // pred_check_branch
    %15 = sbr.rel (0) target = $region13
  $region12: #{cellpose_sam_apply.18} parent=0 // pred_region
    _
  $region13: #{cellpose_sam_apply.18} parent=0 // pred_fallthru
    _
  // Predicated region
  $region14: #{cellpose_sam_apply.18} parent=0 // pred_check
    _
  $region15: #{cellpose_sam_apply.18} parent=0 // pred_check_branch
    %17 = sbr.rel (0) target = $region17
  $region16: #{cellpose_sam_apply.18} parent=0 // pred_region
    _
  $region17: #{cellpose_sam_apply.18} parent=0 // pred_fallthru
    _
  // Predicated region
  $region18: #{cellpose_sam_apply.18} parent=0 // pred_check
    _
  $region19: #{cellpose_sam_apply.18} parent=0 // pred_check_branch
    %19 = sbr.rel (0) target = $region21
  $region20: #{cellpose_sam_apply.18} parent=0 // pred_region
    _
  $region21: #{cellpose_sam_apply.18} parent=0 // pred_fallthru
    _
  %v21 = vld [vmem:[%s0] sm:$0xf]
  %v22 = vld [vmem:[%s0 + $0x4] sm:$0xf]
  %v23 = vld [vmem:[%s0 + $0x8] sm:$0xf]
  %v24 = vld [vmem:[%s0 + $0xc] sm:$0xf]
  %v25 = vld [vmem:[%s0 + $0x10] sm:$0xf]
  %v26 = vld [vmem:[%s0 + $0x14] sm:$0xf]
  %v27 = vld [vmem:[%s0 + $0x18] sm:$0xf]
  %v28 = vld [vmem:[%s0 + $0x1c] sm:$0xf]
  %v29 = vld [vmem:[%s0 + $0x20] sm:$0xf]
  %v30 = vld [vmem:[%s0 + $0x24] sm:$0xf]
  %v31 = vld [vmem:[%s0 + $0x28] sm:$0xf]
  %v32 = vld [vmem:[%s0 + $0x2c] sm:$0xf]
  %v33 = vld [vmem:[%s0 + $0x30] sm:$0xf]
  %v34 = vld [vmem:[%s0 + $0x34] sm:$0xf]
  %v35 = vld [vmem:[%s0 + $0x38] sm:$0xf]
  %v36 = vld [vmem:[%s0 + $0x3c] sm:$0xf]
  %v37 = vunpack.c.l.bf16 %v21
  %v38 = vunpack.c.l.bf16 %v22
  %v39 = vunpack.c.l.bf16 %v23
  %v40 = vunpack.c.l.bf16 %v24
  %v41 = vunpack.c.l.bf16 %v25
  %v42 = vunpack.c.l.bf16 %v26
  %v43 = vunpack.c.l.bf16 %v27
  %v44 = vunpack.c.l.bf16 %v28
  %v45 = vunpack.c.l.bf16 %v29
  %v46 = vunpack.c.l.bf16 %v30
  %v47 = vunpack.c.l.bf16 %v31
  %v48 = vunpack.c.l.bf16 %v32
  %v49 = vunpack.c.l.bf16 %v33
  %v50 = vunpack.c.l.bf16 %v34
  %v51 = vunpack.c.l.bf16 %v35
  %v52 = vunpack.c.l.bf16 %v36
  %v53 = vld [vmem:[%s3] sm:$0x1]
  %v54 = vld [vmem:[%s4] sm:$0x1]
  %55 = vadd.xlane.f32.xlu0 %v37
  %v56 = vpop.xlane.xlu0 %55
  %57 = vadd.xlane.f32.xlu0 %v38
  %v58 = vpop.xlane.xlu0 %57
  %59 = vadd.xlane.f32.xlu0 %v39
  %v60 = vpop.xlane.xlu0 %59
  %61 = vadd.xlane.f32.xlu0 %v40
  %v62 = vpop.xlane.xlu0 %61
  %63 = vadd.xlane.f32.xlu0 %v41
  %v64 = vpop.xlane.xlu0 %63
  %65 = vadd.xlane.f32.xlu0 %v42
  %v66 = vpop.xlane.xlu0 %65
  %67 = vadd.xlane.f32.xlu0 %v43
  %v68 = vpop.xlane.xlu0 %67
  %69 = vadd.xlane.f32.xlu0 %v44
  %v70 = vpop.xlane.xlu0 %69
  %71 = vadd.xlane.f32.xlu0 %v45
  %v72 = vpop.xlane.xlu0 %71
  %73 = vadd.xlane.f32.xlu0 %v46
  %v74 = vpop.xlane.xlu0 %73
  %75 = vadd.xlane.f32.xlu0 %v47
  %v76 = vpop.xlane.xlu0 %75
  %77 = vadd.xlane.f32.xlu0 %v48
  %v78 = vpop.xlane.xlu0 %77
  %79 = vadd.xlane.f32.xlu0 %v49
  %v80 = vpop.xlane.xlu0 %79
  %81 = vadd.xlane.f32.xlu0 %v50
  %v82 = vpop.xlane.xlu0 %81
  %83 = vadd.xlane.f32.xlu0 %v51
  %v84 = vpop.xlane.xlu0 %83
  %85 = vadd.xlane.f32.xlu0 %v52
  %v86 = vpop.xlane.xlu0 %85
  %v87 = vrcp.pop 128.0
  %v88 = vmul.f32 %v56, %v87
  %v89 = vmul.f32 %v58, %v87
  %v90 = vmul.f32 %v60, %v87
  %v91 = vmul.f32 %v62, %v87
  %v92 = vmul.f32 %v64, %v87
  %v93 = vmul.f32 %v66, %v87
  %v94 = vmul.f32 %v68, %v87
  %v95 = vmul.f32 %v70, %v87
  %v96 = vmul.f32 %v72, %v87
  %v97 = vmul.f32 %v74, %v87
  %v98 = vmul.f32 %v76, %v87
  %v99 = vmul.f32 %v78, %v87
  %v100 = vmul.f32 %v80, %v87
  %v101 = vmul.f32 %v82, %v87
  %v102 = vmul.f32 %v84, %v87
  %v103 = vmul.f32 %v86, %v87
  %v104 = vsub.f32 %v37, %v88
  %v105 = vsub.f32 %v38, %v89
  %v106 = vsub.f32 %v39, %v90
  %v107 = vsub.f32 %v40, %v91
  %v108 = vsub.f32 %v41, %v92
  %v109 = vsub.f32 %v42, %v93
  %v110 = vsub.f32 %v43, %v94
  %v111 = vsub.f32 %v44, %v95
  %v112 = vsub.f32 %v45, %v96
  %v113 = vsub.f32 %v46, %v97
  %v114 = vsub.f32 %v47, %v98
  %v115 = vsub.f32 %v48, %v99
  %v116 = vsub.f32 %v49, %v100
  %v117 = vsub.f32 %v50, %v101
  %v118 = vsub.f32 %v51, %v102
  %v119 = vsub.f32 %v52, %v103
  %v120 = vmul.f32 %v104, %v104
  %v121 = vmul.f32 %v105, %v105
  %v122 = vmul.f32 %v106, %v106
  %v123 = vmul.f32 %v107, %v107
  %v124 = vmul.f32 %v108, %v108
  %v125 = vmul.f32 %v109, %v109
  %v126 = vmul.f32 %v110, %v110
  %v127 = vmul.f32 %v111, %v111
  %v128 = vmul.f32 %v112, %v112
  %v129 = vmul.f32 %v113, %v113
  %v130 = vmul.f32 %v114, %v114
  %v131 = vmul.f32 %v115, %v115
  %v132 = vmul.f32 %v116, %v116
  %v133 = vmul.f32 %v117, %v117
  %v134 = vmul.f32 %v118, %v118
  %v135 = vmul.f32 %v119, %v119
  %136 = vadd.xlane.f32.xlu0 %v120
  %v137 = vpop.xlane.xlu0 %136
  %138 = vadd.xlane.f32.xlu0 %v121
  %v139 = vpop.xlane.xlu0 %138
  %140 = vadd.xlane.f32.xlu0 %v122
  %v141 = vpop.xlane.xlu0 %140
  %142 = vadd.xlane.f32.xlu0 %v123
  %v143 = vpop.xlane.xlu0 %142
  %144 = vadd.xlane.f32.xlu0 %v124
  %v145 = vpop.xlane.xlu0 %144
  %146 = vadd.xlane.f32.xlu0 %v125
  %v147 = vpop.xlane.xlu0 %146
  %148 = vadd.xlane.f32.xlu0 %v126
  %v149 = vpop.xlane.xlu0 %148
  %150 = vadd.xlane.f32.xlu0 %v127
  %v151 = vpop.xlane.xlu0 %150
  %152 = vadd.xlane.f32.xlu0 %v128
  %v153 = vpop.xlane.xlu0 %152
  %154 = vadd.xlane.f32.xlu0 %v129
  %v155 = vpop.xlane.xlu0 %154
  %156 = vadd.xlane.f32.xlu0 %v130
  %v157 = vpop.xlane.xlu0 %156
  %158 = vadd.xlane.f32.xlu0 %v131
  %v159 = vpop.xlane.xlu0 %158
  %160 = vadd.xlane.f32.xlu0 %v132
  %v161 = vpop.xlane.xlu0 %160
  %162 = vadd.xlane.f32.xlu0 %v133
  %v163 = vpop.xlane.xlu0 %162
  %164 = vadd.xlane.f32.xlu0 %v134
  %v165 = vpop.xlane.xlu0 %164
  %166 = vadd.xlane.f32.xlu0 %v135
  %v167 = vpop.xlane.xlu0 %166
  %v168 = vmul.f32 %v137, %v87
  %v169 = vmul.f32 %v139, %v87
  %v170 = vmul.f32 %v141, %v87
  %v171 = vmul.f32 %v143, %v87
  %v172 = vmul.f32 %v145, %v87
  %v173 = vmul.f32 %v147, %v87
  %v174 = vmul.f32 %v149, %v87
  %v175 = vmul.f32 %v151, %v87
  %v176 = vmul.f32 %v153, %v87
  %v177 = vmul.f32 %v155, %v87
  %v178 = vmul.f32 %v157, %v87
  %v179 = vmul.f32 %v159, %v87
  %v180 = vmul.f32 %v161, %v87
  %v181 = vmul.f32 %v163, %v87
  %v182 = vmul.f32 %v165, %v87
  %v183 = vmul.f32 %v167, %v87
  %v184 = vadd.f32 %v168, 1e-06
  %v185 = vadd.f32 %v169, 1e-06
  %v186 = vadd.f32 %v170, 1e-06
  %v187 = vadd.f32 %v171, 1e-06
  %v188 = vadd.f32 %v172, 1e-06
  %v189 = vadd.f32 %v173, 1e-06
  %v190 = vadd.f32 %v174, 1e-06
  %v191 = vadd.f32 %v175, 1e-06
  %v192 = vadd.f32 %v176, 1e-06
  %v193 = vadd.f32 %v177, 1e-06
  %v194 = vadd.f32 %v178, 1e-06
  %v195 = vadd.f32 %v179, 1e-06
  %v196 = vadd.f32 %v180, 1e-06
  %v197 = vadd.f32 %v181, 1e-06
  %v198 = vadd.f32 %v182, 1e-06
  %v199 = vadd.f32 %v183, 1e-06
  %v200 = vrsqrt.pop %v184
  %v201 = vrsqrt.pop %v185
  %v202 = vrsqrt.pop %v186
  %v203 = vrsqrt.pop %v187
  %v204 = vrsqrt.pop %v188
  %v205 = vrsqrt.pop %v189
  %v206 = vrsqrt.pop %v190
  %v207 = vrsqrt.pop %v191
  %v208 = vrsqrt.pop %v192
  %v209 = vrsqrt.pop %v193
  %v210 = vrsqrt.pop %v194
  %v211 = vrsqrt.pop %v195
  %v212 = vrsqrt.pop %v196
  %v213 = vrsqrt.pop %v197
  %v214 = vrsqrt.pop %v198
  %v215 = vrsqrt.pop %v199
  %v216 = vmul.f32 %v104, %v200
  %v217 = vmul.f32 %v105, %v201
  %v218 = vmul.f32 %v106, %v202
  %v219 = vmul.f32 %v107, %v203
  %v220 = vmul.f32 %v108, %v204
  %v221 = vmul.f32 %v109, %v205
  %v222 = vmul.f32 %v110, %v206
  %v223 = vmul.f32 %v111, %v207
  %v224 = vmul.f32 %v112, %v208
  %v225 = vmul.f32 %v113, %v209
  %v226 = vmul.f32 %v114, %v210
  %v227 = vmul.f32 %v115, %v211
  %v228 = vmul.f32 %v116, %v212
  %v229 = vmul.f32 %v117, %v213
  %v230 = vmul.f32 %v118, %v214
  %v231 = vmul.f32 %v119, %v215
  %v233 = vlaneseq
  %v234 = vshrl.u32 %v233, 7
  %v235 = vsub.s32 0, %v234
  %v236 = vrot.slane %v53, %v235
  %v238 = vmul.f32 %v216, %v236
  %v239 = vmul.f32 %v217, %v236
  %v240 = vmul.f32 %v218, %v236
  %v241 = vmul.f32 %v219, %v236
  %v242 = vmul.f32 %v220, %v236
  %v243 = vmul.f32 %v221, %v236
  %v244 = vmul.f32 %v222, %v236
  %v245 = vmul.f32 %v223, %v236
  %v246 = vmul.f32 %v224, %v236
  %v247 = vmul.f32 %v225, %v236
  %v248 = vmul.f32 %v226, %v236
  %v249 = vmul.f32 %v227, %v236
  %v250 = vmul.f32 %v228, %v236
  %v251 = vmul.f32 %v229, %v236
  %v252 = vmul.f32 %v230, %v236
  %v253 = vmul.f32 %v231, %v236
  %v255 = vlaneseq
  %v256 = vshrl.u32 %v255, 7
  %v257 = vsub.s32 0, %v256
  %v258 = vrot.slane %v54, %v257
  %v260 = vadd.f32 %v238, %v258
  %v261 = vadd.f32 %v239, %v258
  %v262 = vadd.f32 %v240, %v258
  %v263 = vadd.f32 %v241, %v258
  %v264 = vadd.f32 %v242, %v258
  %v265 = vadd.f32 %v243, %v258
  %v266 = vadd.f32 %v244, %v258
  %v267 = vadd.f32 %v245, %v258
  %v268 = vadd.f32 %v246, %v258
  %v269 = vadd.f32 %v247, %v258
  %v270 = vadd.f32 %v248, %v258
  %v271 = vadd.f32 %v249, %v258
  %v272 = vadd.f32 %v250, %v258
  %v273 = vadd.f32 %v251, %v258
  %v274 = vadd.f32 %v252, %v258
  %v275 = vadd.f32 %v253, %v258
  %v276 = vpack.c.bf16 %v261, %v260
  %v277 = vpack.c.bf16 %v263, %v262
  %v278 = vpack.c.bf16 %v265, %v264
  %v279 = vpack.c.bf16 %v267, %v266
  %v280 = vpack.c.bf16 %v269, %v268
  %v281 = vpack.c.bf16 %v271, %v270
  %v282 = vpack.c.bf16 %v273, %v272
  %v283 = vpack.c.bf16 %v275, %v274
  %v284 = vld [vmem:[%s1] sm:$0xff]
  %v285 = vld [vmem:[%s1 + $0x8] sm:$0xff]
  %v286 = vld [vmem:[%s1 + $0x10] sm:$0xff]
  %v287 = vld [vmem:[%s1 + $0x18] sm:$0xff]
  %v288 = vld [vmem:[%s1 + $0x20] sm:$0xff]
  %v289 = vld [vmem:[%s1 + $0x28] sm:$0xff]
  %v290 = vld [vmem:[%s1 + $0x30] sm:$0xff]
  %v291 = vld [vmem:[%s1 + $0x38] sm:$0xff]
  %v292 = vld [vmem:[%s1 + $0x40] sm:$0xff]
  %v293 = vld [vmem:[%s1 + $0x48] sm:$0xff]
  %v294 = vld [vmem:[%s1 + $0x50] sm:$0xff]
  %v295 = vld [vmem:[%s1 + $0x58] sm:$0xff]
  %v296 = vld [vmem:[%s1 + $0x60] sm:$0xff]
  %v297 = vld [vmem:[%s1 + $0x68] sm:$0xff]
  %v298 = vld [vmem:[%s1 + $0x70] sm:$0xff]
  %v299 = vld [vmem:[%s1 + $0x78] sm:$0xff]
  %v300 = vld [vmem:[%s1 + $0x80] sm:$0xff]
  %v301 = vld [vmem:[%s1 + $0x88] sm:$0xff]
  %v302 = vld [vmem:[%s1 + $0x90] sm:$0xff]
  %v303 = vld [vmem:[%s1 + $0x98] sm:$0xff]
  %v304 = vld [vmem:[%s1 + $0xa0] sm:$0xff]
  %v305 = vld [vmem:[%s1 + $0xa8] sm:$0xff]
  %v306 = vld [vmem:[%s1 + $0xb0] sm:$0xff]
  %v307 = vld [vmem:[%s1 + $0xb8] sm:$0xff]
  %v308 = vld [vmem:[%s1 + $0xc0] sm:$0xff]
  %v309 = vld [vmem:[%s1 + $0xc8] sm:$0xff]
  %v310 = vld [vmem:[%s1 + $0xd0] sm:$0xff]
  %v311 = vld [vmem:[%s1 + $0xd8] sm:$0xff]
  %v312 = vld [vmem:[%s1 + $0xe0] sm:$0xff]
  %v313 = vld [vmem:[%s1 + $0xe8] sm:$0xff]
  %v314 = vld [vmem:[%s1 + $0xf0] sm:$0xff]
  %v315 = vld [vmem:[%s1 + $0xf8] sm:$0xff]
  %v316 = vld [vmem:[%s2] sm:$0xf]
  %v318 = vlaneseq
  %v319 = vshrl.u32 %v318, 7
  %v320 = vsub.s32 0, %v319
  %v321 = vrot.slane %v316, %v320
  %v322 = vlaneseq
  %v323 = vshrl.u32 %v322, 7
  %v324 = vsub.s32 1, %v323
  %v325 = vrot.slane %v316, %v324
  %v326 = vlaneseq
  %v327 = vshrl.u32 %v326, 7
  %v328 = vsub.s32 2, %v327
  %v329 = vrot.slane %v316, %v328
  %v330 = vlaneseq
  %v331 = vshrl.u32 %v330, 7
  %v332 = vsub.s32 3, %v331
  %v333 = vrot.slane %v316, %v332
  %v370 = vunpack.c.l.b16 %v284
  %v371 = vunpack.c.h.b16 %v284
  %v372 = vunpack.c.l.b16 %v285
  %v373 = vunpack.c.h.b16 %v285
  %v374 = vunpack.c.l.b16 %v286
  %v375 = vunpack.c.h.b16 %v286
  %v376 = vunpack.c.l.b16 %v287
  %v377 = vunpack.c.h.b16 %v287
  %v378 = vunpack.c.l.b16 %v288
  %v379 = vunpack.c.h.b16 %v288
  %v380 = vunpack.c.l.b16 %v289
  %v381 = vunpack.c.h.b16 %v289
  %v382 = vunpack.c.l.b16 %v290
  %v383 = vunpack.c.h.b16 %v290
  %v384 = vunpack.c.l.b16 %v291
  %v385 = vunpack.c.h.b16 %v291
  %v386 = vunpack.c.l.b16 %v292
  %v387 = vunpack.c.h.b16 %v292
  %v388 = vunpack.c.l.b16 %v293
  %v389 = vunpack.c.h.b16 %v293
  %v390 = vunpack.c.l.b16 %v294
  %v391 = vunpack.c.h.b16 %v294
  %v392 = vunpack.c.l.b16 %v295
  %v393 = vunpack.c.h.b16 %v295
  %v394 = vunpack.c.l.b16 %v296
  %v395 = vunpack.c.h.b16 %v296
  %v396 = vunpack.c.l.b16 %v297
  %v397 = vunpack.c.h.b16 %v297
  %v398 = vunpack.c.l.b16 %v298
  %v399 = vunpack.c.h.b16 %v298
  %v400 = vunpack.c.l.b16 %v299
  %v401 = vunpack.c.h.b16 %v299
  %v402 = vunpack.c.l.b16 %v300
  %v403 = vunpack.c.h.b16 %v300
  %v404 = vunpack.c.l.b16 %v301
  %v405 = vunpack.c.h.b16 %v301
  %v406 = vunpack.c.l.b16 %v302
  %v407 = vunpack.c.h.b16 %v302
  %v408 = vunpack.c.l.b16 %v303
  %v409 = vunpack.c.h.b16 %v303
  %v410 = vunpack.c.l.b16 %v304
  %v411 = vunpack.c.h.b16 %v304
  %v412 = vunpack.c.l.b16 %v305
  %v413 = vunpack.c.h.b16 %v305
  %v414 = vunpack.c.l.b16 %v306
  %v415 = vunpack.c.h.b16 %v306
  %v416 = vunpack.c.l.b16 %v307
  %v417 = vunpack.c.h.b16 %v307
  %v418 = vunpack.c.l.b16 %v308
  %v419 = vunpack.c.h.b16 %v308
  %v420 = vunpack.c.l.b16 %v309
  %v421 = vunpack.c.h.b16 %v309
  %v422 = vunpack.c.l.b16 %v310
  %v423 = vunpack.c.h.b16 %v310
  %v424 = vunpack.c.l.b16 %v311
  %v425 = vunpack.c.h.b16 %v311
  %v426 = vunpack.c.l.b16 %v312
  %v427 = vunpack.c.h.b16 %v312
  %v428 = vunpack.c.l.b16 %v313
  %v429 = vunpack.c.h.b16 %v313
  %v430 = vunpack.c.l.b16 %v314
  %v431 = vunpack.c.h.b16 %v314
  %v432 = vunpack.c.l.b16 %v315
  %v433 = vunpack.c.h.b16 %v315
  %v434 = vpack.c.b16 %v374, %v370
  %v435 = vpack.c.b16 %v375, %v371
  %v436 = vpack.c.b16 %v376, %v372
  %v437 = vpack.c.b16 %v377, %v373
  %v438 = vpack.c.b16 %v382, %v378
  %v439 = vpack.c.b16 %v383, %v379
  %v440 = vpack.c.b16 %v384, %v380
  %v441 = vpack.c.b16 %v385, %v381
  %v442 = vpack.c.b16 %v390, %v386
  %v443 = vpack.c.b16 %v391, %v387
  %v444 = vpack.c.b16 %v392, %v388
  %v445 = vpack.c.b16 %v393, %v389
  %v446 = vpack.c.b16 %v398, %v394
  %v447 = vpack.c.b16 %v399, %v395
  %v448 = vpack.c.b16 %v400, %v396
  %v449 = vpack.c.b16 %v401, %v397
  %v450 = vpack.c.b16 %v406, %v402
  %v451 = vpack.c.b16 %v407, %v403
  %v452 = vpack.c.b16 %v408, %v404
  %v453 = vpack.c.b16 %v409, %v405
  %v454 = vpack.c.b16 %v414, %v410
  %v455 = vpack.c.b16 %v415, %v411
  %v456 = vpack.c.b16 %v416, %v412
  %v457 = vpack.c.b16 %v417, %v413
  %v458 = vpack.c.b16 %v422, %v418
  %v459 = vpack.c.b16 %v423, %v419
  %v460 = vpack.c.b16 %v424, %v420
  %v461 = vpack.c.b16 %v425, %v421
  %v462 = vpack.c.b16 %v430, %v426
  %v463 = vpack.c.b16 %v431, %v427
  %v464 = vpack.c.b16 %v432, %v428
  %v465 = vpack.c.b16 %v433, %v429
  %498 = vmatprep.subr.bf16.mxu0 %v435
  %499 = vmatpush1.bf16.msra.mxu0 %v434
  %500 = vmatprep.subr.bf16.mxu0 %v439
  %501 = vmatpush1.bf16.msra.mxu0 %v438
  %502 = vmatprep.subr.bf16.mxu0 %v443
  %503 = vmatpush1.bf16.msra.mxu0 %v442
  %504 = vmatprep.subr.bf16.mxu0 %v447
  %505 = vmatpush1.bf16.msra.mxu0 %v446
  %506 = vmatprep.subr.bf16.mxu0 %v451
  %507 = vmatpush1.bf16.msra.mxu0 %v450
  %508 = vmatprep.subr.bf16.mxu0 %v455
  %509 = vmatpush1.bf16.msra.mxu0 %v454
  %510 = vmatprep.subr.bf16.mxu0 %v459
  %511 = vmatpush1.bf16.msra.mxu0 %v458
  %512 = vmatprep.subr.bf16.mxu0 %v463
  %513 = vmatpush1.bf16.msra.mxu0 %v462
  %514 = vmatprep.subr.bf16.mxu0 0
  %515 = vmatpush1.bf16.msra.mxu0 0
  %516 = vmatprep.subr.bf16.mxu0 0
  %517 = vmatpush1.bf16.msra.mxu0 0
  %518 = vmatprep.subr.bf16.mxu0 0
  %519 = vmatpush1.bf16.msra.mxu0 0
  %520 = vmatprep.subr.bf16.mxu0 0
  %521 = vmatpush1.bf16.msra.mxu0 0
  %522 = vmatprep.subr.bf16.mxu0 0
  %523 = vmatpush1.bf16.msra.mxu0 0
  %524 = vmatprep.subr.bf16.mxu0 0
  %525 = vmatpush1.bf16.msra.mxu0 0
  %526 = vmatprep.subr.bf16.mxu0 0
  %527 = vmatpush1.bf16.msra.mxu0 0
  %528 = vmatprep.subr.bf16.mxu0 0
  %529 = vmatpush1.bf16.msra.mxu0 0
  %530 = vmatprep.mubr.bf16.mxu0 0
  %531 = vmatmul.mubr.bf16.gmra.mrb[0].mxu0 %v276
  %v532 = vpop.f32.mrb[0].mxu0
  %v533 = vadd.f32 %v321, %v532
  %v534 = vpop.f32.mrb[0].mxu0
  %v535 = vadd.f32 %v325, %v534
  %v536 = vpop.f32.mrb[0].mxu0
  %v537 = vadd.f32 %v321, %v536
  %v538 = vpop.f32.mrb[0].mxu0
  %v539 = vadd.f32 %v325, %v538
  %540 = vmatprep.mubr.bf16.mxu0 0
  %541 = vmatmul.mubr.bf16.gmra.mrb[0].mxu0 %v277
  %v542 = vpop.f32.mrb[0].mxu0
  %v543 = vadd.f32 %v321, %v542
  %v544 = vpop.f32.mrb[0].mxu0
  %v545 = vadd.f32 %v325, %v544
  %v546 = vpop.f32.mrb[0].mxu0
  %v547 = vadd.f32 %v321, %v546
  %v548 = vpop.f32.mrb[0].mxu0
  %v549 = vadd.f32 %v325, %v548
  %550 = vmatprep.mubr.bf16.mxu0 0
  %551 = vmatmul.mubr.bf16.gmra.mrb[0].mxu0 %v278
  %v552 = vpop.f32.mrb[0].mxu0
  %v553 = vadd.f32 %v321, %v552
  %v554 = vpop.f32.mrb[0].mxu0
  %v555 = vadd.f32 %v325, %v554
  %v556 = vpop.f32.mrb[0].mxu0
  %v557 = vadd.f32 %v321, %v556
  %v558 = vpop.f32.mrb[0].mxu0
  %v559 = vadd.f32 %v325, %v558
  %560 = vmatprep.mubr.bf16.mxu0 0
  %561 = vmatmul.mubr.bf16.gmra.mrb[0].mxu0 %v279
  %v562 = vpop.f32.mrb[0].mxu0
  %v563 = vadd.f32 %v321, %v562
  %v564 = vpop.f32.mrb[0].mxu0
  %v565 = vadd.f32 %v325, %v564
  %v566 = vpop.f32.mrb[0].mxu0
  %v567 = vadd.f32 %v321, %v566
  %v568 = vpop.f32.mrb[0].mxu0
  %v569 = vadd.f32 %v325, %v568
  %570 = vmatprep.mubr.bf16.mxu0 0
  %571 = vmatmul.mubr.bf16.gmra.mrb[0].mxu0 %v280
  %v572 = vpop.f32.mrb[0].mxu0
  %v573 = vadd.f32 %v321, %v572
  %v574 = vpop.f32.mrb[0].mxu0
  %v575 = vadd.f32 %v325, %v574
  %v576 = vpop.f32.mrb[0].mxu0
  %v577 = vadd.f32 %v321, %v576
  %v578 = vpop.f32.mrb[0].mxu0
  %v579 = vadd.f32 %v325, %v578
  %580 = vmatprep.mubr.bf16.mxu0 0
  %581 = vmatmul.mubr.bf16.gmra.mrb[0].mxu0 %v281
  %v582 = vpop.f32.mrb[0].mxu0
  %v583 = vadd.f32 %v321, %v582
  %v584 = vpop.f32.mrb[0].mxu0
  %v585 = vadd.f32 %v325, %v584
  %v586 = vpop.f32.mrb[0].mxu0
  %v587 = vadd.f32 %v321, %v586
  %v588 = vpop.f32.mrb[0].mxu0
  %v589 = vadd.f32 %v325, %v588
  %590 = vmatprep.mubr.bf16.mxu0 0
  %591 = vmatmul.mubr.bf16.gmra.mrb[0].mxu0 %v282
  %v592 = vpop.f32.mrb[0].mxu0
  %v593 = vadd.f32 %v321, %v592
  %v594 = vpop.f32.mrb[0].mxu0
  %v595 = vadd.f32 %v325, %v594
  %v596 = vpop.f32.mrb[0].mxu0
  %v597 = vadd.f32 %v321, %v596
  %v598 = vpop.f32.mrb[0].mxu0
  %v599 = vadd.f32 %v325, %v598
  %600 = vmatprep.mubr.bf16.mxu0 0
  %601 = vmatmul.mubr.bf16.gmra.mrb[0].mxu0 %v283
  %v602 = vpop.f32.mrb[0].mxu0
  %v603 = vadd.f32 %v321, %v602
  %v604 = vpop.f32.mrb[0].mxu0
  %v605 = vadd.f32 %v325, %v604
  %v606 = vpop.f32.mrb[0].mxu0
  %v607 = vadd.f32 %v321, %v606
  %v608 = vpop.f32.mrb[0].mxu0
  %v609 = vadd.f32 %v325, %v608
  %610 = vdwg.mxu0
  %611 = vmatprep.subr.bf16.mxu0 %v437
  %612 = vmatpush1.bf16.msra.mxu0 %v436
  %613 = vmatprep.subr.bf16.mxu0 %v441
  %614 = vmatpush1.bf16.msra.mxu0 %v440
  %615 = vmatprep.subr.bf16.mxu0 %v445
  %616 = vmatpush1.bf16.msra.mxu0 %v444
  %617 = vmatprep.subr.bf16.mxu0 %v449
  %618 = vmatpush1.bf16.msra.mxu0 %v448
  %619 = vmatprep.subr.bf16.mxu0 %v453
  %620 = vmatpush1.bf16.msra.mxu0 %v452
  %621 = vmatprep.subr.bf16.mxu0 %v457
  %622 = vmatpush1.bf16.msra.mxu0 %v456
  %623 = vmatprep.subr.bf16.mxu0 %v461
  %624 = vmatpush1.bf16.msra.mxu0 %v460
  %625 = vmatprep.subr.bf16.mxu0 %v465
  %626 = vmatpush1.bf16.msra.mxu0 %v464
  %627 = vmatprep.subr.bf16.mxu0 0
  %628 = vmatpush1.bf16.msra.mxu0 0
  %629 = vmatprep.subr.bf16.mxu0 0
  %630 = vmatpush1.bf16.msra.mxu0 0
  %631 = vmatprep.subr.bf16.mxu0 0
  %632 = vmatpush1.bf16.msra.mxu0 0
  %633 = vmatprep.subr.bf16.mxu0 0
  %634 = vmatpush1.bf16.msra.mxu0 0
  %635 = vmatprep.subr.bf16.mxu0 0
  %636 = vmatpush1.bf16.msra.mxu0 0
  %637 = vmatprep.subr.bf16.mxu0 0
  %638 = vmatpush1.bf16.msra.mxu0 0
  %639 = vmatprep.subr.bf16.mxu0 0
  %640 = vmatpush1.bf16.msra.mxu0 0
  %641 = vmatprep.subr.bf16.mxu0 0
  %642 = vmatpush1.bf16.msra.mxu0 0
  %643 = vmatprep.mubr.bf16.mxu0 0
  %644 = vmatmul.mubr.bf16.gmra.mrb[0].mxu0 %v276
  %v645 = vpop.f32.mrb[0].mxu0
  %v646 = vadd.f32 %v329, %v645
  %v647 = vpop.f32.mrb[0].mxu0
  %v648 = vadd.f32 %v333, %v647
  %v649 = vpop.f32.mrb[0].mxu0
  %v650 = vadd.f32 %v329, %v649
  %v651 = vpop.f32.mrb[0].mxu0
  %v652 = vadd.f32 %v333, %v651
  %653 = vmatprep.mubr.bf16.mxu0 0
  %654 = vmatmul.mubr.bf16.gmra.mrb[0].mxu0 %v277
  %v655 = vpop.f32.mrb[0].mxu0
  %v656 = vadd.f32 %v329, %v655
  %v657 = vpop.f32.mrb[0].mxu0
  %v658 = vadd.f32 %v333, %v657
  %v659 = vpop.f32.mrb[0].mxu0
  %v660 = vadd.f32 %v329, %v659
  %v661 = vpop.f32.mrb[0].mxu0
  %v662 = vadd.f32 %v333, %v661
  %663 = vmatprep.mubr.bf16.mxu0 0
  %664 = vmatmul.mubr.bf16.gmra.mrb[0].mxu0 %v278
  %v665 = vpop.f32.mrb[0].mxu0
  %v666 = vadd.f32 %v329, %v665
  %v667 = vpop.f32.mrb[0].mxu0
  %v668 = vadd.f32 %v333, %v667
  %v669 = vpop.f32.mrb[0].mxu0
  %v670 = vadd.f32 %v329, %v669
  %v671 = vpop.f32.mrb[0].mxu0
  %v672 = vadd.f32 %v333, %v671
  %673 = vmatprep.mubr.bf16.mxu0 0
  %674 = vmatmul.mubr.bf16.gmra.mrb[0].mxu0 %v279
  %v675 = vpop.f32.mrb[0].mxu0
  %v676 = vadd.f32 %v329, %v675
  %v677 = vpop.f32.mrb[0].mxu0
  %v678 = vadd.f32 %v333, %v677
  %v679 = vpop.f32.mrb[0].mxu0
  %v680 = vadd.f32 %v329, %v679
  %v681 = vpop.f32.mrb[0].mxu0
  %v682 = vadd.f32 %v333, %v681
  %683 = vmatprep.mubr.bf16.mxu0 0
  %684 = vmatmul.mubr.bf16.gmra.mrb[0].mxu0 %v280
  %v685 = vpop.f32.mrb[0].mxu0
  %v686 = vadd.f32 %v329, %v685
  %v687 = vpop.f32.mrb[0].mxu0
  %v688 = vadd.f32 %v333, %v687
  %v689 = vpop.f32.mrb[0].mxu0
  %v690 = vadd.f32 %v329, %v689
  %v691 = vpop.f32.mrb[0].mxu0
  %v692 = vadd.f32 %v333, %v691
  %693 = vmatprep.mubr.bf16.mxu0 0
  %694 = vmatmul.mubr.bf16.gmra.mrb[0].mxu0 %v281
  %v695 = vpop.f32.mrb[0].mxu0
  %v696 = vadd.f32 %v329, %v695
  %v697 = vpop.f32.mrb[0].mxu0
  %v698 = vadd.f32 %v333, %v697
  %v699 = vpop.f32.mrb[0].mxu0
  %v700 = vadd.f32 %v329, %v699
  %v701 = vpop.f32.mrb[0].mxu0
  %v702 = vadd.f32 %v333, %v701
  %703 = vmatprep.mubr.bf16.mxu0 0
  %704 = vmatmul.mubr.bf16.gmra.mrb[0].mxu0 %v282
  %v705 = vpop.f32.mrb[0].mxu0
  %v706 = vadd.f32 %v329, %v705
  %v707 = vpop.f32.mrb[0].mxu0
  %v708 = vadd.f32 %v333, %v707
  %v709 = vpop.f32.mrb[0].mxu0
  %v710 = vadd.f32 %v329, %v709
  %v711 = vpop.f32.mrb[0].mxu0
  %v712 = vadd.f32 %v333, %v711
  %713 = vmatprep.mubr.bf16.mxu0 0
  %714 = vmatmul.mubr.bf16.gmra.mrb[0].mxu0 %v283
  %v715 = vpop.f32.mrb[0].mxu0
  %v716 = vadd.f32 %v329, %v715
  %v717 = vpop.f32.mrb[0].mxu0
  %v718 = vadd.f32 %v333, %v717
  %v719 = vpop.f32.mrb[0].mxu0
  %v720 = vadd.f32 %v329, %v719
  %v721 = vpop.f32.mrb[0].mxu0
  %v722 = vadd.f32 %v333, %v721
  %723 = vdwg.mxu0
  %v724 = vmul.f32 %v533, 0.5
  %v725 = vmul.f32 %v535, 0.5
  %v726 = vmul.f32 %v646, 0.5
  %v727 = vmul.f32 %v648, 0.5
  %v728 = vmul.f32 %v537, 0.5
  %v729 = vmul.f32 %v539, 0.5
  %v730 = vmul.f32 %v650, 0.5
  %v731 = vmul.f32 %v652, 0.5
  %v732 = vmul.f32 %v543, 0.5
  %v733 = vmul.f32 %v545, 0.5
  %v734 = vmul.f32 %v656, 0.5
  %v735 = vmul.f32 %v658, 0.5
  %v736 = vmul.f32 %v547, 0.5
  %v737 = vmul.f32 %v549, 0.5
  %v738 = vmul.f32 %v660, 0.5
  %v739 = vmul.f32 %v662, 0.5
  %v740 = vmul.f32 %v553, 0.5
  %v741 = vmul.f32 %v555, 0.5
  %v742 = vmul.f32 %v666, 0.5
  %v743 = vmul.f32 %v668, 0.5
  %v744 = vmul.f32 %v557, 0.5
  %v745 = vmul.f32 %v559, 0.5
  %v746 = vmul.f32 %v670, 0.5
  %v747 = vmul.f32 %v672, 0.5
  %v748 = vmul.f32 %v563, 0.5
  %v749 = vmul.f32 %v565, 0.5
  %v750 = vmul.f32 %v676, 0.5
  %v751 = vmul.f32 %v678, 0.5
  %v752 = vmul.f32 %v567, 0.5
  %v753 = vmul.f32 %v569, 0.5
  %v754 = vmul.f32 %v680, 0.5
  %v755 = vmul.f32 %v682, 0.5
  %v756 = vmul.f32 %v573, 0.5
  %v757 = vmul.f32 %v575, 0.5
  %v758 = vmul.f32 %v686, 0.5
  %v759 = vmul.f32 %v688, 0.5
  %v760 = vmul.f32 %v577, 0.5
  %v761 = vmul.f32 %v579, 0.5
  %v762 = vmul.f32 %v690, 0.5
  %v763 = vmul.f32 %v692, 0.5
  %v764 = vmul.f32 %v583, 0.5
  %v765 = vmul.f32 %v585, 0.5
  %v766 = vmul.f32 %v696, 0.5
  %v767 = vmul.f32 %v698, 0.5
  %v768 = vmul.f32 %v587, 0.5
  %v769 = vmul.f32 %v589, 0.5
  %v770 = vmul.f32 %v700, 0.5
  %v771 = vmul.f32 %v702, 0.5
  %v772 = vmul.f32 %v593, 0.5
  %v773 = vmul.f32 %v595, 0.5
  %v774 = vmul.f32 %v706, 0.5
  %v775 = vmul.f32 %v708, 0.5
  %v776 = vmul.f32 %v597, 0.5
  %v777 = vmul.f32 %v599, 0.5
  %v778 = vmul.f32 %v710, 0.5
  %v779 = vmul.f32 %v712, 0.5
  %v780 = vmul.f32 %v603, 0.5
  %v781 = vmul.f32 %v605, 0.5
  %v782 = vmul.f32 %v716, 0.5
  %v783 = vmul.f32 %v718, 0.5
  %v784 = vmul.f32 %v607, 0.5
  %v785 = vmul.f32 %v609, 0.5
  %v786 = vmul.f32 %v720, 0.5
  %v787 = vmul.f32 %v722, 0.5
  %v788 = vmul.f32 %v533, 0.044715
  %v789 = vmul.f32 %v535, 0.044715
  %v790 = vmul.f32 %v646, 0.044715
  %v791 = vmul.f32 %v648, 0.044715
  %v792 = vmul.f32 %v537, 0.044715
  %v793 = vmul.f32 %v539, 0.044715
  %v794 = vmul.f32 %v650, 0.044715
  %v795 = vmul.f32 %v652, 0.044715
  %v796 = vmul.f32 %v543, 0.044715
  %v797 = vmul.f32 %v545, 0.044715
  %v798 = vmul.f32 %v656, 0.044715
  %v799 = vmul.f32 %v658, 0.044715
  %v800 = vmul.f32 %v547, 0.044715
  %v801 = vmul.f32 %v549, 0.044715
  %v802 = vmul.f32 %v660, 0.044715
  %v803 = vmul.f32 %v662, 0.044715
  %v804 = vmul.f32 %v553, 0.044715
  %v805 = vmul.f32 %v555, 0.044715
  %v806 = vmul.f32 %v666, 0.044715
  %v807 = vmul.f32 %v668, 0.044715
  %v808 = vmul.f32 %v557, 0.044715
  %v809 = vmul.f32 %v559, 0.044715
  %v810 = vmul.f32 %v670, 0.044715
  %v811 = vmul.f32 %v672, 0.044715
  %v812 = vmul.f32 %v563, 0.044715
  %v813 = vmul.f32 %v565, 0.044715
  %v814 = vmul.f32 %v676, 0.044715
  %v815 = vmul.f32 %v678, 0.044715
  %v816 = vmul.f32 %v567, 0.044715
  %v817 = vmul.f32 %v569, 0.044715
  %v818 = vmul.f32 %v680, 0.044715
  %v819 = vmul.f32 %v682, 0.044715
  %v820 = vmul.f32 %v573, 0.044715
  %v821 = vmul.f32 %v575, 0.044715
  %v822 = vmul.f32 %v686, 0.044715
  %v823 = vmul.f32 %v688, 0.044715
  %v824 = vmul.f32 %v577, 0.044715
  %v825 = vmul.f32 %v579, 0.044715
  %v826 = vmul.f32 %v690, 0.044715
  %v827 = vmul.f32 %v692, 0.044715
  %v828 = vmul.f32 %v583, 0.044715
  %v829 = vmul.f32 %v585, 0.044715
  %v830 = vmul.f32 %v696, 0.044715
  %v831 = vmul.f32 %v698, 0.044715
  %v832 = vmul.f32 %v587, 0.044715
  %v833 = vmul.f32 %v589, 0.044715
  %v834 = vmul.f32 %v700, 0.044715
  %v835 = vmul.f32 %v702, 0.044715
  %v836 = vmul.f32 %v593, 0.044715
  %v837 = vmul.f32 %v595, 0.044715
  %v838 = vmul.f32 %v706, 0.044715
  %v839 = vmul.f32 %v708, 0.044715
  %v840 = vmul.f32 %v597, 0.044715
  %v841 = vmul.f32 %v599, 0.044715
  %v842 = vmul.f32 %v710, 0.044715
  %v843 = vmul.f32 %v712, 0.044715
  %v844 = vmul.f32 %v603, 0.044715
  %v845 = vmul.f32 %v605, 0.044715
  %v846 = vmul.f32 %v716, 0.044715
  %v847 = vmul.f32 %v718, 0.044715
  %v848 = vmul.f32 %v607, 0.044715
  %v849 = vmul.f32 %v609, 0.044715
  %v850 = vmul.f32 %v720, 0.044715
  %v851 = vmul.f32 %v722, 0.044715
  %v852 = vmul.f32 %v788, %v533
  %v853 = vmul.f32 %v789, %v535
  %v854 = vmul.f32 %v790, %v646
  %v855 = vmul.f32 %v791, %v648
  %v856 = vmul.f32 %v792, %v537
  %v857 = vmul.f32 %v793, %v539
  %v858 = vmul.f32 %v794, %v650
  %v859 = vmul.f32 %v795, %v652
  %v860 = vmul.f32 %v796, %v543
  %v861 = vmul.f32 %v797, %v545
  %v862 = vmul.f32 %v798, %v656
  %v863 = vmul.f32 %v799, %v658
  %v864 = vmul.f32 %v800, %v547
  %v865 = vmul.f32 %v801, %v549
  %v866 = vmul.f32 %v802, %v660
  %v867 = vmul.f32 %v803, %v662
  %v868 = vmul.f32 %v804, %v553
  %v869 = vmul.f32 %v805, %v555
  %v870 = vmul.f32 %v806, %v666
  %v871 = vmul.f32 %v807, %v668
  %v872 = vmul.f32 %v808, %v557
  %v873 = vmul.f32 %v809, %v559
  %v874 = vmul.f32 %v810, %v670
  %v875 = vmul.f32 %v811, %v672
  %v876 = vmul.f32 %v812, %v563
  %v877 = vmul.f32 %v813, %v565
  %v878 = vmul.f32 %v814, %v676
  %v879 = vmul.f32 %v815, %v678
  %v880 = vmul.f32 %v816, %v567
  %v881 = vmul.f32 %v817, %v569
  %v882 = vmul.f32 %v818, %v680
  %v883 = vmul.f32 %v819, %v682
  %v884 = vmul.f32 %v820, %v573
  %v885 = vmul.f32 %v821, %v575
  %v886 = vmul.f32 %v822, %v686
  %v887 = vmul.f32 %v823, %v688
  %v888 = vmul.f32 %v824, %v577
  %v889 = vmul.f32 %v825, %v579
  %v890 = vmul.f32 %v826, %v690
  %v891 = vmul.f32 %v827, %v692
  %v892 = vmul.f32 %v828, %v583
  %v893 = vmul.f32 %v829, %v585
  %v894 = vmul.f32 %v830, %v696
  %v895 = vmul.f32 %v831, %v698
  %v896 = vmul.f32 %v832, %v587
  %v897 = vmul.f32 %v833, %v589
  %v898 = vmul.f32 %v834, %v700
  %v899 = vmul.f32 %v835, %v702
  %v900 = vmul.f32 %v836, %v593
  %v901 = vmul.f32 %v837, %v595
  %v902 = vmul.f32 %v838, %v706
  %v903 = vmul.f32 %v839, %v708
  %v904 = vmul.f32 %v840, %v597
  %v905 = vmul.f32 %v841, %v599
  %v906 = vmul.f32 %v842, %v710
  %v907 = vmul.f32 %v843, %v712
  %v908 = vmul.f32 %v844, %v603
  %v909 = vmul.f32 %v845, %v605
  %v910 = vmul.f32 %v846, %v716
  %v911 = vmul.f32 %v847, %v718
  %v912 = vmul.f32 %v848, %v607
  %v913 = vmul.f32 %v849, %v609
  %v914 = vmul.f32 %v850, %v720
  %v915 = vmul.f32 %v851, %v722
  %v916 = vmul.f32 %v852, %v533
  %v917 = vmul.f32 %v853, %v535
  %v918 = vmul.f32 %v854, %v646
  %v919 = vmul.f32 %v855, %v648
  %v920 = vmul.f32 %v856, %v537
  %v921 = vmul.f32 %v857, %v539
  %v922 = vmul.f32 %v858, %v650
  %v923 = vmul.f32 %v859, %v652
  %v924 = vmul.f32 %v860, %v543
  %v925 = vmul.f32 %v861, %v545
  %v926 = vmul.f32 %v862, %v656
  %v927 = vmul.f32 %v863, %v658
  %v928 = vmul.f32 %v864, %v547
  %v929 = vmul.f32 %v865, %v549
  %v930 = vmul.f32 %v866, %v660
  %v931 = vmul.f32 %v867, %v662
  %v932 = vmul.f32 %v868, %v553
  %v933 = vmul.f32 %v869, %v555
  %v934 = vmul.f32 %v870, %v666
  %v935 = vmul.f32 %v871, %v668
  %v936 = vmul.f32 %v872, %v557
  %v937 = vmul.f32 %v873, %v559
  %v938 = vmul.f32 %v874, %v670
  %v939 = vmul.f32 %v875, %v672
  %v940 = vmul.f32 %v876, %v563
  %v941 = vmul.f32 %v877, %v565
  %v942 = vmul.f32 %v878, %v676
  %v943 = vmul.f32 %v879, %v678
  %v944 = vmul.f32 %v880, %v567
  %v945 = vmul.f32 %v881, %v569
  %v946 = vmul.f32 %v882, %v680
  %v947 = vmul.f32 %v883, %v682
  %v948 = vmul.f32 %v884, %v573
  %v949 = vmul.f32 %v885, %v575
  %v950 = vmul.f32 %v886, %v686
  %v951 = vmul.f32 %v887, %v688
  %v952 = vmul.f32 %v888, %v577
  %v953 = vmul.f32 %v889, %v579
  %v954 = vmul.f32 %v890, %v690
  %v955 = vmul.f32 %v891, %v692
  %v956 = vmul.f32 %v892, %v583
  %v957 = vmul.f32 %v893, %v585
  %v958 = vmul.f32 %v894, %v696
  %v959 = vmul.f32 %v895, %v698
  %v960 = vmul.f32 %v896, %v587
  %v961 = vmul.f32 %v897, %v589
  %v962 = vmul.f32 %v898, %v700
  %v963 = vmul.f32 %v899, %v702
  %v964 = vmul.f32 %v900, %v593
  %v965 = vmul.f32 %v901, %v595
  %v966 = vmul.f32 %v902, %v706
  %v967 = vmul.f32 %v903, %v708
  %v968 = vmul.f32 %v904, %v597
  %v969 = vmul.f32 %v905, %v599
  %v970 = vmul.f32 %v906, %v710
  %v971 = vmul.f32 %v907, %v712
  %v972 = vmul.f32 %v908, %v603
  %v973 = vmul.f32 %v909, %v605
  %v974 = vmul.f32 %v910, %v716
  %v975 = vmul.f32 %v911, %v718
  %v976 = vmul.f32 %v912, %v607
  %v977 = vmul.f32 %v913, %v609
  %v978 = vmul.f32 %v914, %v720
  %v979 = vmul.f32 %v915, %v722
  %v980 = vadd.f32 %v533, %v916
  %v981 = vadd.f32 %v535, %v917
  %v982 = vadd.f32 %v646, %v918
  %v983 = vadd.f32 %v648, %v919
  %v984 = vadd.f32 %v537, %v920
  %v985 = vadd.f32 %v539, %v921
  %v986 = vadd.f32 %v650, %v922
  %v987 = vadd.f32 %v652, %v923
  %v988 = vadd.f32 %v543, %v924
  %v989 = vadd.f32 %v545, %v925
  %v990 = vadd.f32 %v656, %v926
  %v991 = vadd.f32 %v658, %v927
  %v992 = vadd.f32 %v547, %v928
  %v993 = vadd.f32 %v549, %v929
  %v994 = vadd.f32 %v660, %v930
  %v995 = vadd.f32 %v662, %v931
  %v996 = vadd.f32 %v553, %v932
  %v997 = vadd.f32 %v555, %v933
  %v998 = vadd.f32 %v666, %v934
  %v999 = vadd.f32 %v668, %v935
  %v1000 = vadd.f32 %v557, %v936
  %v1001 = vadd.f32 %v559, %v937
  %v1002 = vadd.f32 %v670, %v938
  %v1003 = vadd.f32 %v672, %v939
  %v1004 = vadd.f32 %v563, %v940
  %v1005 = vadd.f32 %v565, %v941
  %v1006 = vadd.f32 %v676, %v942
  %v1007 = vadd.f32 %v678, %v943
  %v1008 = vadd.f32 %v567, %v944
  %v1009 = vadd.f32 %v569, %v945
  %v1010 = vadd.f32 %v680, %v946
  %v1011 = vadd.f32 %v682, %v947
  %v1012 = vadd.f32 %v573, %v948
  %v1013 = vadd.f32 %v575, %v949
  %v1014 = vadd.f32 %v686, %v950
  %v1015 = vadd.f32 %v688, %v951
  %v1016 = vadd.f32 %v577, %v952
  %v1017 = vadd.f32 %v579, %v953
  %v1018 = vadd.f32 %v690, %v954
  %v1019 = vadd.f32 %v692, %v955
  %v1020 = vadd.f32 %v583, %v956
  %v1021 = vadd.f32 %v585, %v957
  %v1022 = vadd.f32 %v696, %v958
  %v1023 = vadd.f32 %v698, %v959
  %v1024 = vadd.f32 %v587, %v960
  %v1025 = vadd.f32 %v589, %v961
  %v1026 = vadd.f32 %v700, %v962
  %v1027 = vadd.f32 %v702, %v963
  %v1028 = vadd.f32 %v593, %v964
  %v1029 = vadd.f32 %v595, %v965
  %v1030 = vadd.f32 %v706, %v966
  %v1031 = vadd.f32 %v708, %v967
  %v1032 = vadd.f32 %v597, %v968
  %v1033 = vadd.f32 %v599, %v969
  %v1034 = vadd.f32 %v710, %v970
  %v1035 = vadd.f32 %v712, %v971
  %v1036 = vadd.f32 %v603, %v972
  %v1037 = vadd.f32 %v605, %v973
  %v1038 = vadd.f32 %v716, %v974
  %v1039 = vadd.f32 %v718, %v975
  %v1040 = vadd.f32 %v607, %v976
  %v1041 = vadd.f32 %v609, %v977
  %v1042 = vadd.f32 %v720, %v978
  %v1043 = vadd.f32 %v722, %v979
  %v1044 = vmul.f32 %v980, 0.7978846
  %v1045 = vmul.f32 %v981, 0.7978846
  %v1046 = vmul.f32 %v982, 0.7978846
  %v1047 = vmul.f32 %v983, 0.7978846
  %v1048 = vmul.f32 %v984, 0.7978846
  %v1049 = vmul.f32 %v985, 0.7978846
  %v1050 = vmul.f32 %v986, 0.7978846
  %v1051 = vmul.f32 %v987, 0.7978846
  %v1052 = vmul.f32 %v988, 0.7978846
  %v1053 = vmul.f32 %v989, 0.7978846
  %v1054 = vmul.f32 %v990, 0.7978846
  %v1055 = vmul.f32 %v991, 0.7978846
  %v1056 = vmul.f32 %v992, 0.7978846
  %v1057 = vmul.f32 %v993, 0.7978846
  %v1058 = vmul.f32 %v994, 0.7978846
  %v1059 = vmul.f32 %v995, 0.7978846
  %v1060 = vmul.f32 %v996, 0.7978846
  %v1061 = vmul.f32 %v997, 0.7978846
  %v1062 = vmul.f32 %v998, 0.7978846
  %v1063 = vmul.f32 %v999, 0.7978846
  %v1064 = vmul.f32 %v1000, 0.7978846
  %v1065 = vmul.f32 %v1001, 0.7978846
  %v1066 = vmul.f32 %v1002, 0.7978846
  %v1067 = vmul.f32 %v1003, 0.7978846
  %v1068 = vmul.f32 %v1004, 0.7978846
  %v1069 = vmul.f32 %v1005, 0.7978846
  %v1070 = vmul.f32 %v1006, 0.7978846
  %v1071 = vmul.f32 %v1007, 0.7978846
  %v1072 = vmul.f32 %v1008, 0.7978846
  %v1073 = vmul.f32 %v1009, 0.7978846
  %v1074 = vmul.f32 %v1010, 0.7978846
  %v1075 = vmul.f32 %v1011, 0.7978846
  %v1076 = vmul.f32 %v1012, 0.7978846
  %v1077 = vmul.f32 %v1013, 0.7978846
  %v1078 = vmul.f32 %v1014, 0.7978846
  %v1079 = vmul.f32 %v1015, 0.7978846
  %v1080 = vmul.f32 %v1016, 0.7978846
  %v1081 = vmul.f32 %v1017, 0.7978846
  %v1082 = vmul.f32 %v1018, 0.7978846
  %v1083 = vmul.f32 %v1019, 0.7978846
  %v1084 = vmul.f32 %v1020, 0.7978846
  %v1085 = vmul.f32 %v1021, 0.7978846
  %v1086 = vmul.f32 %v1022, 0.7978846
  %v1087 = vmul.f32 %v1023, 0.7978846
  %v1088 = vmul.f32 %v1024, 0.7978846
  %v1089 = vmul.f32 %v1025, 0.7978846
  %v1090 = vmul.f32 %v1026, 0.7978846
  %v1091 = vmul.f32 %v1027, 0.7978846
  %v1092 = vmul.f32 %v1028, 0.7978846
  %v1093 = vmul.f32 %v1029, 0.7978846
  %v1094 = vmul.f32 %v1030, 0.7978846
  %v1095 = vmul.f32 %v1031, 0.7978846
  %v1096 = vmul.f32 %v1032, 0.7978846
  %v1097 = vmul.f32 %v1033, 0.7978846
  %v1098 = vmul.f32 %v1034, 0.7978846
  %v1099 = vmul.f32 %v1035, 0.7978846
  %v1100 = vmul.f32 %v1036, 0.7978846
  %v1101 = vmul.f32 %v1037, 0.7978846
  %v1102 = vmul.f32 %v1038, 0.7978846
  %v1103 = vmul.f32 %v1039, 0.7978846
  %v1104 = vmul.f32 %v1040, 0.7978846
  %v1105 = vmul.f32 %v1041, 0.7978846
  %v1106 = vmul.f32 %v1042, 0.7978846
  %v1107 = vmul.f32 %v1043, 0.7978846
  %v1108 = vtanh.pop %v1044
  %v1109 = vtanh.pop %v1045
  %v1110 = vtanh.pop %v1046
  %v1111 = vtanh.pop %v1047
  %v1112 = vtanh.pop %v1048
  %v1113 = vtanh.pop %v1049
  %v1114 = vtanh.pop %v1050
  %v1115 = vtanh.pop %v1051
  %v1116 = vtanh.pop %v1052
  %v1117 = vtanh.pop %v1053
  %v1118 = vtanh.pop %v1054
  %v1119 = vtanh.pop %v1055
  %v1120 = vtanh.pop %v1056
  %v1121 = vtanh.pop %v1057
  %v1122 = vtanh.pop %v1058
  %v1123 = vtanh.pop %v1059
  %v1124 = vtanh.pop %v1060
  %v1125 = vtanh.pop %v1061
  %v1126 = vtanh.pop %v1062
  %v1127 = vtanh.pop %v1063
  %v1128 = vtanh.pop %v1064
  %v1129 = vtanh.pop %v1065
  %v1130 = vtanh.pop %v1066
  %v1131 = vtanh.pop %v1067
  %v1132 = vtanh.pop %v1068
  %v1133 = vtanh.pop %v1069
  %v1134 = vtanh.pop %v1070
  %v1135 = vtanh.pop %v1071
  %v1136 = vtanh.pop %v1072
  %v1137 = vtanh.pop %v1073
  %v1138 = vtanh.pop %v1074
  %v1139 = vtanh.pop %v1075
  %v1140 = vtanh.pop %v1076
  %v1141 = vtanh.pop %v1077
  %v1142 = vtanh.pop %v1078
  %v1143 = vtanh.pop %v1079
  %v1144 = vtanh.pop %v1080
  %v1145 = vtanh.pop %v1081
  %v1146 = vtanh.pop %v1082
  %v1147 = vtanh.pop %v1083
  %v1148 = vtanh.pop %v1084
  %v1149 = vtanh.pop %v1085
  %v1150 = vtanh.pop %v1086
  %v1151 = vtanh.pop %v1087
  %v1152 = vtanh.pop %v1088
  %v1153 = vtanh.pop %v1089
  %v1154 = vtanh.pop %v1090
  %v1155 = vtanh.pop %v1091
  %v1156 = vtanh.pop %v1092
  %v1157 = vtanh.pop %v1093
  %v1158 = vtanh.pop %v1094
  %v1159 = vtanh.pop %v1095
  %v1160 = vtanh.pop %v1096
  %v1161 = vtanh.pop %v1097
  %v1162 = vtanh.pop %v1098
  %v1163 = vtanh.pop %v1099
  %v1164 = vtanh.pop %v1100
  %v1165 = vtanh.pop %v1101
  %v1166 = vtanh.pop %v1102
  %v1167 = vtanh.pop %v1103
  %v1168 = vtanh.pop %v1104
  %v1169 = vtanh.pop %v1105
  %v1170 = vtanh.pop %v1106
  %v1171 = vtanh.pop %v1107
  %v1172 = vadd.f32 %v1108, 1.0
  %v1173 = vadd.f32 %v1109, 1.0
  %v1174 = vadd.f32 %v1110, 1.0
  %v1175 = vadd.f32 %v1111, 1.0
  %v1176 = vadd.f32 %v1112, 1.0
  %v1177 = vadd.f32 %v1113, 1.0
  %v1178 = vadd.f32 %v1114, 1.0
  %v1179 = vadd.f32 %v1115, 1.0
  %v1180 = vadd.f32 %v1116, 1.0
  %v1181 = vadd.f32 %v1117, 1.0
  %v1182 = vadd.f32 %v1118, 1.0
  %v1183 = vadd.f32 %v1119, 1.0
  %v1184 = vadd.f32 %v1120, 1.0
  %v1185 = vadd.f32 %v1121, 1.0
  %v1186 = vadd.f32 %v1122, 1.0
  %v1187 = vadd.f32 %v1123, 1.0
  %v1188 = vadd.f32 %v1124, 1.0
  %v1189 = vadd.f32 %v1125, 1.0
  %v1190 = vadd.f32 %v1126, 1.0
  %v1191 = vadd.f32 %v1127, 1.0
  %v1192 = vadd.f32 %v1128, 1.0
  %v1193 = vadd.f32 %v1129, 1.0
  %v1194 = vadd.f32 %v1130, 1.0
  %v1195 = vadd.f32 %v1131, 1.0
  %v1196 = vadd.f32 %v1132, 1.0
  %v1197 = vadd.f32 %v1133, 1.0
  %v1198 = vadd.f32 %v1134, 1.0
  %v1199 = vadd.f32 %v1135, 1.0
  %v1200 = vadd.f32 %v1136, 1.0
  %v1201 = vadd.f32 %v1137, 1.0
  %v1202 = vadd.f32 %v1138, 1.0
  %v1203 = vadd.f32 %v1139, 1.0
  %v1204 = vadd.f32 %v1140, 1.0
  %v1205 = vadd.f32 %v1141, 1.0
  %v1206 = vadd.f32 %v1142, 1.0
  %v1207 = vadd.f32 %v1143, 1.0
  %v1208 = vadd.f32 %v1144, 1.0
  %v1209 = vadd.f32 %v1145, 1.0
  %v1210 = vadd.f32 %v1146, 1.0
  %v1211 = vadd.f32 %v1147, 1.0
  %v1212 = vadd.f32 %v1148, 1.0
  %v1213 = vadd.f32 %v1149, 1.0
  %v1214 = vadd.f32 %v1150, 1.0
  %v1215 = vadd.f32 %v1151, 1.0
  %v1216 = vadd.f32 %v1152, 1.0
  %v1217 = vadd.f32 %v1153, 1.0
  %v1218 = vadd.f32 %v1154, 1.0
  %v1219 = vadd.f32 %v1155, 1.0
  %v1220 = vadd.f32 %v1156, 1.0
  %v1221 = vadd.f32 %v1157, 1.0
  %v1222 = vadd.f32 %v1158, 1.0
  %v1223 = vadd.f32 %v1159, 1.0
  %v1224 = vadd.f32 %v1160, 1.0
  %v1225 = vadd.f32 %v1161, 1.0
  %v1226 = vadd.f32 %v1162, 1.0
  %v1227 = vadd.f32 %v1163, 1.0
  %v1228 = vadd.f32 %v1164, 1.0
  %v1229 = vadd.f32 %v1165, 1.0
  %v1230 = vadd.f32 %v1166, 1.0
  %v1231 = vadd.f32 %v1167, 1.0
  %v1232 = vadd.f32 %v1168, 1.0
  %v1233 = vadd.f32 %v1169, 1.0
  %v1234 = vadd.f32 %v1170, 1.0
  %v1235 = vadd.f32 %v1171, 1.0
  %v1236 = vmul.f32 %v724, %v1172
  %v1237 = vmul.f32 %v725, %v1173
  %v1238 = vmul.f32 %v726, %v1174
  %v1239 = vmul.f32 %v727, %v1175
  %v1240 = vmul.f32 %v728, %v1176
  %v1241 = vmul.f32 %v729, %v1177
  %v1242 = vmul.f32 %v730, %v1178
  %v1243 = vmul.f32 %v731, %v1179
  %v1244 = vmul.f32 %v732, %v1180
  %v1245 = vmul.f32 %v733, %v1181
  %v1246 = vmul.f32 %v734, %v1182
  %v1247 = vmul.f32 %v735, %v1183
  %v1248 = vmul.f32 %v736, %v1184
  %v1249 = vmul.f32 %v737, %v1185
  %v1250 = vmul.f32 %v738, %v1186
  %v1251 = vmul.f32 %v739, %v1187
  %v1252 = vmul.f32 %v740, %v1188
  %v1253 = vmul.f32 %v741, %v1189
  %v1254 = vmul.f32 %v742, %v1190
  %v1255 = vmul.f32 %v743, %v1191
  %v1256 = vmul.f32 %v744, %v1192
  %v1257 = vmul.f32 %v745, %v1193
  %v1258 = vmul.f32 %v746, %v1194
  %v1259 = vmul.f32 %v747, %v1195
  %v1260 = vmul.f32 %v748, %v1196
  %v1261 = vmul.f32 %v749, %v1197
  %v1262 = vmul.f32 %v750, %v1198
  %v1263 = vmul.f32 %v751, %v1199
  %v1264 = vmul.f32 %v752, %v1200
  %v1265 = vmul.f32 %v753, %v1201
  %v1266 = vmul.f32 %v754, %v1202
  %v1267 = vmul.f32 %v755, %v1203
  %v1268 = vmul.f32 %v756, %v1204
  %v1269 = vmul.f32 %v757, %v1205
  %v1270 = vmul.f32 %v758, %v1206
  %v1271 = vmul.f32 %v759, %v1207
  %v1272 = vmul.f32 %v760, %v1208
  %v1273 = vmul.f32 %v761, %v1209
  %v1274 = vmul.f32 %v762, %v1210
  %v1275 = vmul.f32 %v763, %v1211
  %v1276 = vmul.f32 %v764, %v1212
  %v1277 = vmul.f32 %v765, %v1213
  %v1278 = vmul.f32 %v766, %v1214
  %v1279 = vmul.f32 %v767, %v1215
  %v1280 = vmul.f32 %v768, %v1216
  %v1281 = vmul.f32 %v769, %v1217
  %v1282 = vmul.f32 %v770, %v1218
  %v1283 = vmul.f32 %v771, %v1219
  %v1284 = vmul.f32 %v772, %v1220
  %v1285 = vmul.f32 %v773, %v1221
  %v1286 = vmul.f32 %v774, %v1222
  %v1287 = vmul.f32 %v775, %v1223
  %v1288 = vmul.f32 %v776, %v1224
  %v1289 = vmul.f32 %v777, %v1225
  %v1290 = vmul.f32 %v778, %v1226
  %v1291 = vmul.f32 %v779, %v1227
  %v1292 = vmul.f32 %v780, %v1228
  %v1293 = vmul.f32 %v781, %v1229
  %v1294 = vmul.f32 %v782, %v1230
  %v1295 = vmul.f32 %v783, %v1231
  %v1296 = vmul.f32 %v784, %v1232
  %v1297 = vmul.f32 %v785, %v1233
  %v1298 = vmul.f32 %v786, %v1234
  %v1299 = vmul.f32 %v787, %v1235
  %v1300 = vpack.c.bf16 %v1240, %v1236
  %v1301 = vpack.c.bf16 %v1241, %v1237
  %v1302 = vpack.c.bf16 %v1242, %v1238
  %v1303 = vpack.c.bf16 %v1243, %v1239
  %v1304 = vpack.c.bf16 %v1248, %v1244
  %v1305 = vpack.c.bf16 %v1249, %v1245
  %v1306 = vpack.c.bf16 %v1250, %v1246
  %v1307 = vpack.c.bf16 %v1251, %v1247
  %v1308 = vpack.c.bf16 %v1256, %v1252
  %v1309 = vpack.c.bf16 %v1257, %v1253
  %v1310 = vpack.c.bf16 %v1258, %v1254
  %v1311 = vpack.c.bf16 %v1259, %v1255
  %v1312 = vpack.c.bf16 %v1264, %v1260
  %v1313 = vpack.c.bf16 %v1265, %v1261
  %v1314 = vpack.c.bf16 %v1266, %v1262
  %v1315 = vpack.c.bf16 %v1267, %v1263
  %v1316 = vpack.c.bf16 %v1272, %v1268
  %v1317 = vpack.c.bf16 %v1273, %v1269
  %v1318 = vpack.c.bf16 %v1274, %v1270
  %v1319 = vpack.c.bf16 %v1275, %v1271
  %v1320 = vpack.c.bf16 %v1280, %v1276
  %v1321 = vpack.c.bf16 %v1281, %v1277
  %v1322 = vpack.c.bf16 %v1282, %v1278
  %v1323 = vpack.c.bf16 %v1283, %v1279
  %v1324 = vpack.c.bf16 %v1288, %v1284
  %v1325 = vpack.c.bf16 %v1289, %v1285
  %v1326 = vpack.c.bf16 %v1290, %v1286
  %v1327 = vpack.c.bf16 %v1291, %v1287
  %v1328 = vpack.c.bf16 %v1296, %v1292
  %v1329 = vpack.c.bf16 %v1297, %v1293
  %v1330 = vpack.c.bf16 %v1298, %v1294
  %v1331 = vpack.c.bf16 %v1299, %v1295
  %v1364 = vunpack.c.l.b16 %v1300
  %v1365 = vunpack.c.l.b16 %v1301
  %v1366 = vunpack.c.l.b16 %v1302
  %v1367 = vunpack.c.l.b16 %v1303
  %v1368 = vunpack.c.h.b16 %v1300
  %v1369 = vunpack.c.h.b16 %v1301
  %v1370 = vunpack.c.h.b16 %v1302
  %v1371 = vunpack.c.h.b16 %v1303
  %v1372 = vunpack.c.l.b16 %v1304
  %v1373 = vunpack.c.l.b16 %v1305
  %v1374 = vunpack.c.l.b16 %v1306
  %v1375 = vunpack.c.l.b16 %v1307
  %v1376 = vunpack.c.h.b16 %v1304
  %v1377 = vunpack.c.h.b16 %v1305
  %v1378 = vunpack.c.h.b16 %v1306
  %v1379 = vunpack.c.h.b16 %v1307
  %v1380 = vunpack.c.l.b16 %v1308
  %v1381 = vunpack.c.l.b16 %v1309
  %v1382 = vunpack.c.l.b16 %v1310
  %v1383 = vunpack.c.l.b16 %v1311
  %v1384 = vunpack.c.h.b16 %v1308
  %v1385 = vunpack.c.h.b16 %v1309
  %v1386 = vunpack.c.h.b16 %v1310
  %v1387 = vunpack.c.h.b16 %v1311
  %v1388 = vunpack.c.l.b16 %v1312
  %v1389 = vunpack.c.l.b16 %v1313
  %v1390 = vunpack.c.l.b16 %v1314
  %v1391 = vunpack.c.l.b16 %v1315
  %v1392 = vunpack.c.h.b16 %v1312
  %v1393 = vunpack.c.h.b16 %v1313
  %v1394 = vunpack.c.h.b16 %v1314
  %v1395 = vunpack.c.h.b16 %v1315
  %v1396 = vunpack.c.l.b16 %v1316
  %v1397 = vunpack.c.l.b16 %v1317
  %v1398 = vunpack.c.l.b16 %v1318
  %v1399 = vunpack.c.l.b16 %v1319
  %v1400 = vunpack.c.h.b16 %v1316
  %v1401 = vunpack.c.h.b16 %v1317
  %v1402 = vunpack.c.h.b16 %v1318
  %v1403 = vunpack.c.h.b16 %v1319
  %v1404 = vunpack.c.l.b16 %v1320
  %v1405 = vunpack.c.l.b16 %v1321
  %v1406 = vunpack.c.l.b16 %v1322
  %v1407 = vunpack.c.l.b16 %v1323
  %v1408 = vunpack.c.h.b16 %v1320
  %v1409 = vunpack.c.h.b16 %v1321
  %v1410 = vunpack.c.h.b16 %v1322
  %v1411 = vunpack.c.h.b16 %v1323
  %v1412 = vunpack.c.l.b16 %v1324
  %v1413 = vunpack.c.l.b16 %v1325
  %v1414 = vunpack.c.l.b16 %v1326
  %v1415 = vunpack.c.l.b16 %v1327
  %v1416 = vunpack.c.h.b16 %v1324
  %v1417 = vunpack.c.h.b16 %v1325
  %v1418 = vunpack.c.h.b16 %v1326
  %v1419 = vunpack.c.h.b16 %v1327
  %v1420 = vunpack.c.l.b16 %v1328
  %v1421 = vunpack.c.l.b16 %v1329
  %v1422 = vunpack.c.l.b16 %v1330
  %v1423 = vunpack.c.l.b16 %v1331
  %v1424 = vunpack.c.h.b16 %v1328
  %v1425 = vunpack.c.h.b16 %v1329
  %v1426 = vunpack.c.h.b16 %v1330
  %v1427 = vunpack.c.h.b16 %v1331
  %v1428 = vpack.c.b16 %v1365, %v1364
  %v1429 = vpack.c.b16 %v1367, %v1366
  %v1430 = vpack.c.b16 %v1369, %v1368
  %v1431 = vpack.c.b16 %v1371, %v1370
  %v1432 = vpack.c.b16 %v1373, %v1372
  %v1433 = vpack.c.b16 %v1375, %v1374
  %v1434 = vpack.c.b16 %v1377, %v1376
  %v1435 = vpack.c.b16 %v1379, %v1378
  %v1436 = vpack.c.b16 %v1381, %v1380
  %v1437 = vpack.c.b16 %v1383, %v1382
  %v1438 = vpack.c.b16 %v1385, %v1384
  %v1439 = vpack.c.b16 %v1387, %v1386
  %v1440 = vpack.c.b16 %v1389, %v1388
  %v1441 = vpack.c.b16 %v1391, %v1390
  %v1442 = vpack.c.b16 %v1393, %v1392
  %v1443 = vpack.c.b16 %v1395, %v1394
  %v1444 = vpack.c.b16 %v1397, %v1396
  %v1445 = vpack.c.b16 %v1399, %v1398
  %v1446 = vpack.c.b16 %v1401, %v1400
  %v1447 = vpack.c.b16 %v1403, %v1402
  %v1448 = vpack.c.b16 %v1405, %v1404
  %v1449 = vpack.c.b16 %v1407, %v1406
  %v1450 = vpack.c.b16 %v1409, %v1408
  %v1451 = vpack.c.b16 %v1411, %v1410
  %v1452 = vpack.c.b16 %v1413, %v1412
  %v1453 = vpack.c.b16 %v1415, %v1414
  %v1454 = vpack.c.b16 %v1417, %v1416
  %v1455 = vpack.c.b16 %v1419, %v1418
  %v1456 = vpack.c.b16 %v1421, %v1420
  %v1457 = vpack.c.b16 %v1423, %v1422
  %v1458 = vpack.c.b16 %v1425, %v1424
  %v1459 = vpack.c.b16 %v1427, %v1426
  %1492 = vst [vmem:[%s5] sm:$0xff] %v1428
  %1493 = vst [vmem:[%s5 + $0x8] sm:$0xff] %v1429
  %1494 = vst [vmem:[%s5 + $0x10] sm:$0xff] %v1430
  %1495 = vst [vmem:[%s5 + $0x18] sm:$0xff] %v1431
  %1496 = vst [vmem:[%s5 + $0x20] sm:$0xff] %v1432
  %1497 = vst [vmem:[%s5 + $0x28] sm:$0xff] %v1433
  %1498 = vst [vmem:[%s5 + $0x30] sm:$0xff] %v1434
  %1499 = vst [vmem:[%s5 + $0x38] sm:$0xff] %v1435
  %1500 = vst [vmem:[%s5 + $0x40] sm:$0xff] %v1436
  %1501 = vst [vmem:[%s5 + $0x48] sm:$0xff] %v1437
  %1502 = vst [vmem:[%s5 + $0x50] sm:$0xff] %v1438
  %1503 = vst [vmem:[%s5 + $0x58] sm:$0xff] %v1439
  %1504 = vst [vmem:[%s5 + $0x60] sm:$0xff] %v1440
  %1505 = vst [vmem:[%s5 + $0x68] sm:$0xff] %v1441
  %1506 = vst [vmem:[%s5 + $0x70] sm:$0xff] %v1442
  %1507 = vst [vmem:[%s5 + $0x78] sm:$0xff] %v1443
  %1508 = vst [vmem:[%s5 + $0x80] sm:$0xff] %v1444
  %1509 = vst [vmem:[%s5 + $0x88] sm:$0xff] %v1445
  %1510 = vst [vmem:[%s5 + $0x90] sm:$0xff] %v1446
  %1511 = vst [vmem:[%s5 + $0x98] sm:$0xff] %v1447
  %1512 = vst [vmem:[%s5 + $0xa0] sm:$0xff] %v1448
  %1513 = vst [vmem:[%s5 + $0xa8] sm:$0xff] %v1449
  %1514 = vst [vmem:[%s5 + $0xb0] sm:$0xff] %v1450
  %1515 = vst [vmem:[%s5 + $0xb8] sm:$0xff] %v1451
  %1516 = vst [vmem:[%s5 + $0xc0] sm:$0xff] %v1452
  %1517 = vst [vmem:[%s5 + $0xc8] sm:$0xff] %v1453
  %1518 = vst [vmem:[%s5 + $0xd0] sm:$0xff] %v1454
  %1519 = vst [vmem:[%s5 + $0xd8] sm:$0xff] %v1455
  %1520 = vst [vmem:[%s5 + $0xe0] sm:$0xff] %v1456
  %1521 = vst [vmem:[%s5 + $0xe8] sm:$0xff] %v1457
  %1522 = vst [vmem:[%s5 + $0xf0] sm:$0xff] %v1458
  %1523 = vst [vmem:[%s5 + $0xf8] sm:$0xff] %v1459
  // Predicated region
  $region22: #{cellpose_sam_apply.18} parent=0 // pred_check
    _
  $region23: #{cellpose_sam_apply.18} parent=0 // pred_check_branch
    %1525 = sbr.rel (0) target = $region25
  $region24: #{cellpose_sam_apply.18} parent=0 // pred_region
    _
  $region25: #{cellpose_sam_apply.18} parent=0 // pred_fallthru
    _
  // Predicated region
  $region26: #{cellpose_sam_apply.18} parent=0 // pred_check
    _
  $region27: #{cellpose_sam_apply.18} parent=0 // pred_check_branch
    %1527 = sbr.rel (0) target = $region29
  $region28: #{cellpose_sam_apply.18} parent=0 // pred_region
    _
  $region29: #{cellpose_sam_apply.18} parent=0 // pred_fallthru
    _

// kernel: cellpose_sam_apply.25
$region0: #{cellpose_sam_apply.25}
  #allocation0 [shape = 'u32[]', space=smem, size = 0x4, offset = 0x4, fixed_abs, tag = 'smem constant byte address 0x4 - core index']
  #allocation1 [shape = 'u32[144,128]{1,0:T(1,128)}', space=vmem, size = 0x12000, scoped, tag = 'internal scratch']
  %s0 = inlined_call_operand.vmem [shape: bf16[128,128], index: 0, kind: input, shape index: {}]
  %s1 = inlined_call_operand.vmem [shape: bf16[128,128], index: 1, kind: input, shape index: {}]
  %s2 = inlined_call_operand.vmem [shape: f32[1,128], index: 2, kind: input, shape index: {}]
  %s3 = inlined_call_operand.vmem [shape: f32[1,128], index: 3, kind: input, shape index: {}]
  %s4 = inlined_call_operand.vmem [shape: f32[1,128], index: 4, kind: input, shape index: {}]
  %s5 = inlined_call_operand.vmem [shape: bf16[128,128], index: 5, kind: output, shape index: {}]
  %s6 = sld [smem:[#allocation0]]
  $region30: #{cellpose_sam_apply.25} parent=0
    _
  %s8 = ssub.s32 1, %s6
  %s9 = scalar_select 0, %s8, %s6
  // Predicated region
  $region2: #{cellpose_sam_apply.25} parent=0 // pred_check
    _
  $region3: #{cellpose_sam_apply.25} parent=0 // pred_check_branch
    %11 = sbr.rel (0) target = $region5
  $region4: #{cellpose_sam_apply.25} parent=0 // pred_region
    _
  $region5: #{cellpose_sam_apply.25} parent=0 // pred_fallthru
    _
  // Predicated region
  $region6: #{cellpose_sam_apply.25} parent=0 // pred_check
    _
  $region7: #{cellpose_sam_apply.25} parent=0 // pred_check_branch
    %13 = sbr.rel (0) target = $region9
  $region8: #{cellpose_sam_apply.25} parent=0 // pred_region
    _
  $region9: #{cellpose_sam_apply.25} parent=0 // pred_fallthru
    _
  // Predicated region
  $region10: #{cellpose_sam_apply.25} parent=0 // pred_check
    _
  $region11: #{cellpose_sam_apply.25} parent=0 // pred_check_branch
    %15 = sbr.rel (0) target = $region13
  $region12: #{cellpose_sam_apply.25} parent=0 // pred_region
    _
  $region13: #{cellpose_sam_apply.25} parent=0 // pred_fallthru
    _
  // Predicated region
  $region14: #{cellpose_sam_apply.25} parent=0 // pred_check
    _
  $region15: #{cellpose_sam_apply.25} parent=0 // pred_check_branch
    %17 = sbr.rel (0) target = $region17
  $region16: #{cellpose_sam_apply.25} parent=0 // pred_region
    _
  $region17: #{cellpose_sam_apply.25} parent=0 // pred_fallthru
    _
  // Predicated region
  $region18: #{cellpose_sam_apply.25} parent=0 // pred_check
    _
  $region19: #{cellpose_sam_apply.25} parent=0 // pred_check_branch
    %19 = sbr.rel (0) target = $region21
  $region20: #{cellpose_sam_apply.25} parent=0 // pred_region
    _
  $region21: #{cellpose_sam_apply.25} parent=0 // pred_fallthru
    _
  %v21 = vld [vmem:[%s0] sm:$0xf]
  %v22 = vld [vmem:[%s0 + $0x4] sm:$0xf]
  %v23 = vld [vmem:[%s0 + $0x8] sm:$0xf]
  %v24 = vld [vmem:[%s0 + $0xc] sm:$0xf]
  %v25 = vld [vmem:[%s0 + $0x10] sm:$0xf]
  %v26 = vld [vmem:[%s0 + $0x14] sm:$0xf]
  %v27 = vld [vmem:[%s0 + $0x18] sm:$0xf]
  %v28 = vld [vmem:[%s0 + $0x1c] sm:$0xf]
  %v29 = vld [vmem:[%s0 + $0x20] sm:$0xf]
  %v30 = vld [vmem:[%s0 + $0x24] sm:$0xf]
  %v31 = vld [vmem:[%s0 + $0x28] sm:$0xf]
  %v32 = vld [vmem:[%s0 + $0x2c] sm:$0xf]
  %v33 = vld [vmem:[%s0 + $0x30] sm:$0xf]
  %v34 = vld [vmem:[%s0 + $0x34] sm:$0xf]
  %v35 = vld [vmem:[%s0 + $0x38] sm:$0xf]
  %v36 = vld [vmem:[%s0 + $0x3c] sm:$0xf]
  %v37 = vld [vmem:[%s1] sm:$0xf]
  %v38 = vld [vmem:[%s1 + $0x4] sm:$0xf]
  %v39 = vld [vmem:[%s1 + $0x8] sm:$0xf]
  %v40 = vld [vmem:[%s1 + $0xc] sm:$0xf]
  %v41 = vld [vmem:[%s1 + $0x10] sm:$0xf]
  %v42 = vld [vmem:[%s1 + $0x14] sm:$0xf]
  %v43 = vld [vmem:[%s1 + $0x18] sm:$0xf]
  %v44 = vld [vmem:[%s1 + $0x1c] sm:$0xf]
  %v45 = vld [vmem:[%s1 + $0x20] sm:$0xf]
  %v46 = vld [vmem:[%s1 + $0x24] sm:$0xf]
  %v47 = vld [vmem:[%s1 + $0x28] sm:$0xf]
  %v48 = vld [vmem:[%s1 + $0x2c] sm:$0xf]
  %v49 = vld [vmem:[%s1 + $0x30] sm:$0xf]
  %v50 = vld [vmem:[%s1 + $0x34] sm:$0xf]
  %v51 = vld [vmem:[%s1 + $0x38] sm:$0xf]
  %v52 = vld [vmem:[%s1 + $0x3c] sm:$0xf]
  %v53 = vld [vmem:[%s2] sm:$0x1]
  %v55 = vlaneseq
  %v56 = vshrl.u32 %v55, 7
  %v57 = vsub.s32 0, %v56
  %v58 = vrot.slane %v53, %v57
  %v76 = vunpack.c.l.b16 %v21
  %v77 = vunpack.c.l.b16 %v22
  %v78 = vunpack.c.l.b16 %v23
  %v79 = vunpack.c.l.b16 %v24
  %v80 = vunpack.c.l.b16 %v25
  %v81 = vunpack.c.l.b16 %v26
  %v82 = vunpack.c.l.b16 %v27
  %v83 = vunpack.c.l.b16 %v28
  %v84 = vunpack.c.l.b16 %v29
  %v85 = vunpack.c.l.b16 %v30
  %v86 = vunpack.c.l.b16 %v31
  %v87 = vunpack.c.l.b16 %v32
  %v88 = vunpack.c.l.b16 %v33
  %v89 = vunpack.c.l.b16 %v34
  %v90 = vunpack.c.l.b16 %v35
  %v91 = vunpack.c.l.b16 %v36
  %v92 = vpack.c.b16 %v77, %v76
  %v93 = vpack.c.b16 %v79, %v78
  %v94 = vpack.c.b16 %v81, %v80
  %v95 = vpack.c.b16 %v83, %v82
  %v96 = vpack.c.b16 %v85, %v84
  %v97 = vpack.c.b16 %v87, %v86
  %v98 = vpack.c.b16 %v89, %v88
  %v99 = vpack.c.b16 %v91, %v90
  %v124 = vunpack.c.l.b16 %v37
  %v125 = vunpack.c.l.b16 %v38
  %v126 = vunpack.c.l.b16 %v39
  %v127 = vunpack.c.l.b16 %v40
  %v128 = vunpack.c.l.b16 %v41
  %v129 = vunpack.c.l.b16 %v42
  %v130 = vunpack.c.l.b16 %v43
  %v131 = vunpack.c.l.b16 %v44
  %v132 = vunpack.c.l.b16 %v45
  %v133 = vunpack.c.l.b16 %v46
  %v134 = vunpack.c.l.b16 %v47
  %v135 = vunpack.c.l.b16 %v48
  %v136 = vunpack.c.l.b16 %v49
  %v137 = vunpack.c.l.b16 %v50
  %v138 = vunpack.c.l.b16 %v51
  %v139 = vunpack.c.l.b16 %v52
  %v140 = vpack.c.b16 %v125, %v124
  %v141 = vpack.c.b16 %v127, %v126
  %v142 = vpack.c.b16 %v129, %v128
  %v143 = vpack.c.b16 %v131, %v130
  %v144 = vpack.c.b16 %v133, %v132
  %v145 = vpack.c.b16 %v135, %v134
  %v146 = vpack.c.b16 %v137, %v136
  %v147 = vpack.c.b16 %v139, %v138
  %156 = vmatprep.subr.bf16.mxu0 0
  %157 = vmatpush1.bf16.msra.mxu0 %v140
  %158 = vmatprep.subr.bf16.mxu0 0
  %159 = vmatpush1.bf16.msra.mxu0 %v141
  %160 = vmatprep.subr.bf16.mxu0 0
  %161 = vmatpush1.bf16.msra.mxu0 %v142
  %162 = vmatprep.subr.bf16.mxu0 0
  %163 = vmatpush1.bf16.msra.mxu0 %v143
  %164 = vmatprep.subr.bf16.mxu0 0
  %165 = vmatpush1.bf16.msra.mxu0 %v144
  %166 = vmatprep.subr.bf16.mxu0 0
  %167 = vmatpush1.bf16.msra.mxu0 %v145
  %168 = vmatprep.subr.bf16.mxu0 0
  %169 = vmatpush1.bf16.msra.mxu0 %v146
  %170 = vmatprep.subr.bf16.mxu0 0
  %171 = vmatpush1.bf16.msra.mxu0 %v147
  %172 = vmatprep.subr.bf16.mxu0 0
  %173 = vmatpush1.bf16.msra.mxu0 0
  %174 = vmatprep.subr.bf16.mxu0 0
  %175 = vmatpush1.bf16.msra.mxu0 0
  %176 = vmatprep.subr.bf16.mxu0 0
  %177 = vmatpush1.bf16.msra.mxu0 0
  %178 = vmatprep.subr.bf16.mxu0 0
  %179 = vmatpush1.bf16.msra.mxu0 0
  %180 = vmatprep.subr.bf16.mxu0 0
  %181 = vmatpush1.bf16.msra.mxu0 0
  %182 = vmatprep.subr.bf16.mxu0 0
  %183 = vmatpush1.bf16.msra.mxu0 0
  %184 = vmatprep.subr.bf16.mxu0 0
  %185 = vmatpush1.bf16.msra.mxu0 0
  %186 = vmatprep.subr.bf16.mxu0 0
  %187 = vmatpush1.bf16.msra.mxu0 0
  %188 = vmatprep.mubr.bf16.mxu0 0
  %189 = vmatmul.mubr.bf16.gmra.mrb[0].mxu0 %v92
  %v190 = vpop.f32.mrb[0].mxu0
  %v191 = vadd.f32 %v58, %v190
  %v192 = vpop.f32.mrb[0].mxu0
  %v193 = vpop.f32.mrb[0].mxu0
  %v194 = vadd.f32 %v58, %v193
  %v195 = vpop.f32.mrb[0].mxu0
  %196 = vmatprep.mubr.bf16.mxu0 0
  %197 = vmatmul.mubr.bf16.gmra.mrb[0].mxu0 %v93
  %v198 = vpop.f32.mrb[0].mxu0
  %v199 = vadd.f32 %v58, %v198
  %v200 = vpop.f32.mrb[0].mxu0
  %v201 = vpop.f32.mrb[0].mxu0
  %v202 = vadd.f32 %v58, %v201
  %v203 = vpop.f32.mrb[0].mxu0
  %204 = vmatprep.mubr.bf16.mxu0 0
  %205 = vmatmul.mubr.bf16.gmra.mrb[0].mxu0 %v94
  %v206 = vpop.f32.mrb[0].mxu0
  %v207 = vadd.f32 %v58, %v206
  %v208 = vpop.f32.mrb[0].mxu0
  %v209 = vpop.f32.mrb[0].mxu0
  %v210 = vadd.f32 %v58, %v209
  %v211 = vpop.f32.mrb[0].mxu0
  %212 = vmatprep.mubr.bf16.mxu0 0
  %213 = vmatmul.mubr.bf16.gmra.mrb[0].mxu0 %v95
  %v214 = vpop.f32.mrb[0].mxu0
  %v215 = vadd.f32 %v58, %v214
  %v216 = vpop.f32.mrb[0].mxu0
  %v217 = vpop.f32.mrb[0].mxu0
  %v218 = vadd.f32 %v58, %v217
  %v219 = vpop.f32.mrb[0].mxu0
  %220 = vmatprep.mubr.bf16.mxu0 0
  %221 = vmatmul.mubr.bf16.gmra.mrb[0].mxu0 %v96
  %v222 = vpop.f32.mrb[0].mxu0
  %v223 = vadd.f32 %v58, %v222
  %v224 = vpop.f32.mrb[0].mxu0
  %v225 = vpop.f32.mrb[0].mxu0
  %v226 = vadd.f32 %v58, %v225
  %v227 = vpop.f32.mrb[0].mxu0
  %228 = vmatprep.mubr.bf16.mxu0 0
  %229 = vmatmul.mubr.bf16.gmra.mrb[0].mxu0 %v97
  %v230 = vpop.f32.mrb[0].mxu0
  %v231 = vadd.f32 %v58, %v230
  %v232 = vpop.f32.mrb[0].mxu0
  %v233 = vpop.f32.mrb[0].mxu0
  %v234 = vadd.f32 %v58, %v233
  %v235 = vpop.f32.mrb[0].mxu0
  %236 = vmatprep.mubr.bf16.mxu0 0
  %237 = vmatmul.mubr.bf16.gmra.mrb[0].mxu0 %v98
  %v238 = vpop.f32.mrb[0].mxu0
  %v239 = vadd.f32 %v58, %v238
  %v240 = vpop.f32.mrb[0].mxu0
  %v241 = vpop.f32.mrb[0].mxu0
  %v242 = vadd.f32 %v58, %v241
  %v243 = vpop.f32.mrb[0].mxu0
  %244 = vmatprep.mubr.bf16.mxu0 0
  %245 = vmatmul.mubr.bf16.gmra.mrb[0].mxu0 %v99
  %v246 = vpop.f32.mrb[0].mxu0
  %v247 = vadd.f32 %v58, %v246
  %v248 = vpop.f32.mrb[0].mxu0
  %v249 = vpop.f32.mrb[0].mxu0
  %v250 = vadd.f32 %v58, %v249
  %v251 = vpop.f32.mrb[0].mxu0
  %252 = vdwg.mxu0
  %v253 = vld [vmem:[%s3] sm:$0x1]
  %v254 = vld [vmem:[%s4] sm:$0x1]
  %255 = vadd.xlane.f32.xlu0 %v191
  %v256 = vpop.xlane.xlu0 %255
  %257 = vadd.xlane.f32.xlu0 %v194
  %v258 = vpop.xlane.xlu0 %257
  %259 = vadd.xlane.f32.xlu0 %v199
  %v260 = vpop.xlane.xlu0 %259
  %261 = vadd.xlane.f32.xlu0 %v202
  %v262 = vpop.xlane.xlu0 %261
  %263 = vadd.xlane.f32.xlu0 %v207
  %v264 = vpop.xlane.xlu0 %263
  %265 = vadd.xlane.f32.xlu0 %v210
  %v266 = vpop.xlane.xlu0 %265
  %267 = vadd.xlane.f32.xlu0 %v215
  %v268 = vpop.xlane.xlu0 %267
  %269 = vadd.xlane.f32.xlu0 %v218
  %v270 = vpop.xlane.xlu0 %269
  %271 = vadd.xlane.f32.xlu0 %v223
  %v272 = vpop.xlane.xlu0 %271
  %273 = vadd.xlane.f32.xlu0 %v226
  %v274 = vpop.xlane.xlu0 %273
  %275 = vadd.xlane.f32.xlu0 %v231
  %v276 = vpop.xlane.xlu0 %275
  %277 = vadd.xlane.f32.xlu0 %v234
  %v278 = vpop.xlane.xlu0 %277
  %279 = vadd.xlane.f32.xlu0 %v239
  %v280 = vpop.xlane.xlu0 %279
  %281 = vadd.xlane.f32.xlu0 %v242
  %v282 = vpop.xlane.xlu0 %281
  %283 = vadd.xlane.f32.xlu0 %v247
  %v284 = vpop.xlane.xlu0 %283
  %285 = vadd.xlane.f32.xlu0 %v250
  %v286 = vpop.xlane.xlu0 %285
  %v287 = vrcp.pop 128.0
  %v288 = vmul.f32 %v256, %v287
  %v289 = vmul.f32 %v258, %v287
  %v290 = vmul.f32 %v260, %v287
  %v291 = vmul.f32 %v262, %v287
  %v292 = vmul.f32 %v264, %v287
  %v293 = vmul.f32 %v266, %v287
  %v294 = vmul.f32 %v268, %v287
  %v295 = vmul.f32 %v270, %v287
  %v296 = vmul.f32 %v272, %v287
  %v297 = vmul.f32 %v274, %v287
  %v298 = vmul.f32 %v276, %v287
  %v299 = vmul.f32 %v278, %v287
  %v300 = vmul.f32 %v280, %v287
  %v301 = vmul.f32 %v282, %v287
  %v302 = vmul.f32 %v284, %v287
  %v303 = vmul.f32 %v286, %v287
  %v304 = vsub.f32 %v191, %v288
  %v305 = vsub.f32 %v194, %v289
  %v306 = vsub.f32 %v199, %v290
  %v307 = vsub.f32 %v202, %v291
  %v308 = vsub.f32 %v207, %v292
  %v309 = vsub.f32 %v210, %v293
  %v310 = vsub.f32 %v215, %v294
  %v311 = vsub.f32 %v218, %v295
  %v312 = vsub.f32 %v223, %v296
  %v313 = vsub.f32 %v226, %v297
  %v314 = vsub.f32 %v231, %v298
  %v315 = vsub.f32 %v234, %v299
  %v316 = vsub.f32 %v239, %v300
  %v317 = vsub.f32 %v242, %v301
  %v318 = vsub.f32 %v247, %v302
  %v319 = vsub.f32 %v250, %v303
  %v320 = vmul.f32 %v304, %v304
  %v321 = vmul.f32 %v305, %v305
  %v322 = vmul.f32 %v306, %v306
  %v323 = vmul.f32 %v307, %v307
  %v324 = vmul.f32 %v308, %v308
  %v325 = vmul.f32 %v309, %v309
  %v326 = vmul.f32 %v310, %v310
  %v327 = vmul.f32 %v311, %v311
  %v328 = vmul.f32 %v312, %v312
  %v329 = vmul.f32 %v313, %v313
  %v330 = vmul.f32 %v314, %v314
  %v331 = vmul.f32 %v315, %v315
  %v332 = vmul.f32 %v316, %v316
  %v333 = vmul.f32 %v317, %v317
  %v334 = vmul.f32 %v318, %v318
  %v335 = vmul.f32 %v319, %v319
  %336 = vadd.xlane.f32.xlu0 %v320
  %v337 = vpop.xlane.xlu0 %336
  %338 = vadd.xlane.f32.xlu0 %v321
  %v339 = vpop.xlane.xlu0 %338
  %340 = vadd.xlane.f32.xlu0 %v322
  %v341 = vpop.xlane.xlu0 %340
  %342 = vadd.xlane.f32.xlu0 %v323
  %v343 = vpop.xlane.xlu0 %342
  %344 = vadd.xlane.f32.xlu0 %v324
  %v345 = vpop.xlane.xlu0 %344
  %346 = vadd.xlane.f32.xlu0 %v325
  %v347 = vpop.xlane.xlu0 %346
  %348 = vadd.xlane.f32.xlu0 %v326
  %v349 = vpop.xlane.xlu0 %348
  %350 = vadd.xlane.f32.xlu0 %v327
  %v351 = vpop.xlane.xlu0 %350
  %352 = vadd.xlane.f32.xlu0 %v328
  %v353 = vpop.xlane.xlu0 %352
  %354 = vadd.xlane.f32.xlu0 %v329
  %v355 = vpop.xlane.xlu0 %354
  %356 = vadd.xlane.f32.xlu0 %v330
  %v357 = vpop.xlane.xlu0 %356
  %358 = vadd.xlane.f32.xlu0 %v331
  %v359 = vpop.xlane.xlu0 %358
  %360 = vadd.xlane.f32.xlu0 %v332
  %v361 = vpop.xlane.xlu0 %360
  %362 = vadd.xlane.f32.xlu0 %v333
  %v363 = vpop.xlane.xlu0 %362
  %364 = vadd.xlane.f32.xlu0 %v334
  %v365 = vpop.xlane.xlu0 %364
  %366 = vadd.xlane.f32.xlu0 %v335
  %v367 = vpop.xlane.xlu0 %366
  %v368 = vmul.f32 %v337, %v287
  %v369 = vmul.f32 %v339, %v287
  %v370 = vmul.f32 %v341, %v287
  %v371 = vmul.f32 %v343, %v287
  %v372 = vmul.f32 %v345, %v287
  %v373 = vmul.f32 %v347, %v287
  %v374 = vmul.f32 %v349, %v287
  %v375 = vmul.f32 %v351, %v287
  %v376 = vmul.f32 %v353, %v287
  %v377 = vmul.f32 %v355, %v287
  %v378 = vmul.f32 %v357, %v287
  %v379 = vmul.f32 %v359, %v287
  %v380 = vmul.f32 %v361, %v287
  %v381 = vmul.f32 %v363, %v287
  %v382 = vmul.f32 %v365, %v287
  %v383 = vmul.f32 %v367, %v287
  %v384 = vadd.f32 %v368, 1e-06
  %v385 = vadd.f32 %v369, 1e-06
  %v386 = vadd.f32 %v370, 1e-06
  %v387 = vadd.f32 %v371, 1e-06
  %v388 = vadd.f32 %v372, 1e-06
  %v389 = vadd.f32 %v373, 1e-06
  %v390 = vadd.f32 %v374, 1e-06
  %v391 = vadd.f32 %v375, 1e-06
  %v392 = vadd.f32 %v376, 1e-06
  %v393 = vadd.f32 %v377, 1e-06
  %v394 = vadd.f32 %v378, 1e-06
  %v395 = vadd.f32 %v379, 1e-06
  %v396 = vadd.f32 %v380, 1e-06
  %v397 = vadd.f32 %v381, 1e-06
  %v398 = vadd.f32 %v382, 1e-06
  %v399 = vadd.f32 %v383, 1e-06
  %v400 = vrsqrt.pop %v384
  %v401 = vrsqrt.pop %v385
  %v402 = vrsqrt.pop %v386
  %v403 = vrsqrt.pop %v387
  %v404 = vrsqrt.pop %v388
  %v405 = vrsqrt.pop %v389
  %v406 = vrsqrt.pop %v390
  %v407 = vrsqrt.pop %v391
  %v408 = vrsqrt.pop %v392
  %v409 = vrsqrt.pop %v393
  %v410 = vrsqrt.pop %v394
  %v411 = vrsqrt.pop %v395
  %v412 = vrsqrt.pop %v396
  %v413 = vrsqrt.pop %v397
  %v414 = vrsqrt.pop %v398
  %v415 = vrsqrt.pop %v399
  %v416 = vmul.f32 %v304, %v400
  %v417 = vmul.f32 %v305, %v401
  %v418 = vmul.f32 %v306, %v402
  %v419 = vmul.f32 %v307, %v403
  %v420 = vmul.f32 %v308, %v404
  %v421 = vmul.f32 %v309, %v405
  %v422 = vmul.f32 %v310, %v406
  %v423 = vmul.f32 %v311, %v407
  %v424 = vmul.f32 %v312, %v408
  %v425 = vmul.f32 %v313, %v409
  %v426 = vmul.f32 %v314, %v410
  %v427 = vmul.f32 %v315, %v411
  %v428 = vmul.f32 %v316, %v412
  %v429 = vmul.f32 %v317, %v413
  %v430 = vmul.f32 %v318, %v414
  %v431 = vmul.f32 %v319, %v415
  %v433 = vlaneseq
  %v434 = vshrl.u32 %v433, 7
  %v435 = vsub.s32 0, %v434
  %v436 = vrot.slane %v253, %v435
  %v438 = vmul.f32 %v416, %v436
  %v439 = vmul.f32 %v417, %v436
  %v440 = vmul.f32 %v418, %v436
  %v441 = vmul.f32 %v419, %v436
  %v442 = vmul.f32 %v420, %v436
  %v443 = vmul.f32 %v421, %v436
  %v444 = vmul.f32 %v422, %v436
  %v445 = vmul.f32 %v423, %v436
  %v446 = vmul.f32 %v424, %v436
  %v447 = vmul.f32 %v425, %v436
  %v448 = vmul.f32 %v426, %v436
  %v449 = vmul.f32 %v427, %v436
  %v450 = vmul.f32 %v428, %v436
  %v451 = vmul.f32 %v429, %v436
  %v452 = vmul.f32 %v430, %v436
  %v453 = vmul.f32 %v431, %v436
  %v455 = vlaneseq
  %v456 = vshrl.u32 %v455, 7
  %v457 = vsub.s32 0, %v456
  %v458 = vrot.slane %v254, %v457
  %v460 = vadd.f32 %v438, %v458
  %v461 = vadd.f32 %v439, %v458
  %v462 = vadd.f32 %v440, %v458
  %v463 = vadd.f32 %v441, %v458
  %v464 = vadd.f32 %v442, %v458
  %v465 = vadd.f32 %v443, %v458
  %v466 = vadd.f32 %v444, %v458
  %v467 = vadd.f32 %v445, %v458
  %v468 = vadd.f32 %v446, %v458
  %v469 = vadd.f32 %v447, %v458
  %v470 = vadd.f32 %v448, %v458
  %v471 = vadd.f32 %v449, %v458
  %v472 = vadd.f32 %v450, %v458
  %v473 = vadd.f32 %v451, %v458
  %v474 = vadd.f32 %v452, %v458
  %v475 = vadd.f32 %v453, %v458
  %v476 = vpack.c.bf16 %v461, %v460
  %v477 = vpack.c.bf16 %v463, %v462
  %v478 = vpack.c.bf16 %v465, %v464
  %v479 = vpack.c.bf16 %v467, %v466
  %v480 = vpack.c.bf16 %v469, %v468
  %v481 = vpack.c.bf16 %v471, %v470
  %v482 = vpack.c.bf16 %v473, %v472
  %v483 = vpack.c.bf16 %v475, %v474
  %v492 = vunpack.c.l.b16 %v476
  %v493 = vunpack.c.h.b16 %v476
  %v494 = vunpack.c.l.b16 %v477
  %v495 = vunpack.c.h.b16 %v477
  %v496 = vunpack.c.l.b16 %v478
  %v497 = vunpack.c.h.b16 %v478
  %v498 = vunpack.c.l.b16 %v479
  %v499 = vunpack.c.h.b16 %v479
  %v500 = vunpack.c.l.b16 %v480
  %v501 = vunpack.c.h.b16 %v480
  %v502 = vunpack.c.l.b16 %v481
  %v503 = vunpack.c.h.b16 %v481
  %v504 = vunpack.c.l.b16 %v482
  %v505 = vunpack.c.h.b16 %v482
  %v506 = vunpack.c.l.b16 %v483
  %v507 = vunpack.c.h.b16 %v483
  %v508 = vpack.c.b16 %v492, %v492
  %v509 = vpack.c.b16 %v493, %v493
  %v510 = vpack.c.b16 %v494, %v494
  %v511 = vpack.c.b16 %v495, %v495
  %v512 = vpack.c.b16 %v496, %v496
  %v513 = vpack.c.b16 %v497, %v497
  %v514 = vpack.c.b16 %v498, %v498
  %v515 = vpack.c.b16 %v499, %v499
  %v516 = vpack.c.b16 %v500, %v500
  %v517 = vpack.c.b16 %v501, %v501
  %v518 = vpack.c.b16 %v502, %v502
  %v519 = vpack.c.b16 %v503, %v503
  %v520 = vpack.c.b16 %v504, %v504
  %v521 = vpack.c.b16 %v505, %v505
  %v522 = vpack.c.b16 %v506, %v506
  %v523 = vpack.c.b16 %v507, %v507
  %540 = vst [vmem:[%s5] sm:$0xf] %v508
  %541 = vst [vmem:[%s5 + $0x4] sm:$0xf] %v509
  %542 = vst [vmem:[%s5 + $0x8] sm:$0xf] %v510
  %543 = vst [vmem:[%s5 + $0xc] sm:$0xf] %v511
  %544 = vst [vmem:[%s5 + $0x10] sm:$0xf] %v512
  %545 = vst [vmem:[%s5 + $0x14] sm:$0xf] %v513
  %546 = vst [vmem:[%s5 + $0x18] sm:$0xf] %v514
  %547 = vst [vmem:[%s5 + $0x1c] sm:$0xf] %v515
  %548 = vst [vmem:[%s5 + $0x20] sm:$0xf] %v516
  %549 = vst [vmem:[%s5 + $0x24] sm:$0xf] %v517
  %550 = vst [vmem:[%s5 + $0x28] sm:$0xf] %v518
  %551 = vst [vmem:[%s5 + $0x2c] sm:$0xf] %v519
  %552 = vst [vmem:[%s5 + $0x30] sm:$0xf] %v520
  %553 = vst [vmem:[%s5 + $0x34] sm:$0xf] %v521
  %554 = vst [vmem:[%s5 + $0x38] sm:$0xf] %v522
  %555 = vst [vmem:[%s5 + $0x3c] sm:$0xf] %v523
  // Predicated region
  $region22: #{cellpose_sam_apply.25} parent=0 // pred_check
    _
  $region23: #{cellpose_sam_apply.25} parent=0 // pred_check_branch
    %557 = sbr.rel (0) target = $region25
  $region24: #{cellpose_sam_apply.25} parent=0 // pred_region
    _
  $region25: #{cellpose_sam_apply.25} parent=0 // pred_fallthru
    _
  // Predicated region
  $region26: #{cellpose_sam_apply.25} parent=0 // pred_check
    _
  $region27: #{cellpose_sam_apply.25} parent=0 // pred_check_branch
    %559 = sbr.rel (0) target = $region29
  $region28: #{cellpose_sam_apply.25} parent=0 // pred_region
    _
  $region29: #{cellpose_sam_apply.25} parent=0 // pred_fallthru
    _

// kernel: cellpose_sam_apply.19
$region0: #{cellpose_sam_apply.19}
  #allocation0 [shape = 'u32[]', space=smem, size = 0x4, offset = 0x4, fixed_abs, tag = 'smem constant byte address 0x4 - core index']
  #allocation1 [shape = 'u32[144,128]{1,0:T(1,128)}', space=vmem, size = 0x12000, scoped, tag = 'internal scratch']
  %s0 = inlined_call_operand.vmem [shape: bf16[128,512], index: 0, kind: input, shape index: {}]
  %s1 = inlined_call_operand.vmem [shape: bf16[512,128], index: 1, kind: input, shape index: {}]
  %s2 = inlined_call_operand.vmem [shape: f32[1,128], index: 2, kind: input, shape index: {}]
  %s3 = inlined_call_operand.vmem [shape: bf16[128,128], index: 3, kind: input, shape index: {}]
  %s4 = inlined_call_operand.vmem [shape: bf16[128,128], index: 4, kind: output, shape index: {}]
  %s5 = sld [smem:[#allocation0]]
  $region26: #{cellpose_sam_apply.19} parent=0
    _
  %s7 = ssub.s32 1, %s5
  %s8 = scalar_select 0, %s7, %s5
  // Predicated region
  $region2: #{cellpose_sam_apply.19} parent=0 // pred_check
    _
  $region3: #{cellpose_sam_apply.19} parent=0 // pred_check_branch
    %10 = sbr.rel (0) target = $region5
  $region4: #{cellpose_sam_apply.19} parent=0 // pred_region
    _
  $region5: #{cellpose_sam_apply.19} parent=0 // pred_fallthru
    _
  // Predicated region
  $region6: #{cellpose_sam_apply.19} parent=0 // pred_check
    _
  $region7: #{cellpose_sam_apply.19} parent=0 // pred_check_branch
    %12 = sbr.rel (0) target = $region9
  $region8: #{cellpose_sam_apply.19} parent=0 // pred_region
    _
  $region9: #{cellpose_sam_apply.19} parent=0 // pred_fallthru
    _
  // Predicated region
  $region10: #{cellpose_sam_apply.19} parent=0 // pred_check
    _
  $region11: #{cellpose_sam_apply.19} parent=0 // pred_check_branch
    %14 = sbr.rel (0) target = $region13
  $region12: #{cellpose_sam_apply.19} parent=0 // pred_region
    _
  $region13: #{cellpose_sam_apply.19} parent=0 // pred_fallthru
    _
  // Predicated region
  $region14: #{cellpose_sam_apply.19} parent=0 // pred_check
    _
  $region15: #{cellpose_sam_apply.19} parent=0 // pred_check_branch
    %16 = sbr.rel (0) target = $region17
  $region16: #{cellpose_sam_apply.19} parent=0 // pred_region
    _
  $region17: #{cellpose_sam_apply.19} parent=0 // pred_fallthru
    _
  %v18 = vld [vmem:[%s0] sm:$0xff]
  %v19 = vld [vmem:[%s0 + $0x8] sm:$0xff]
  %v20 = vld [vmem:[%s0 + $0x10] sm:$0xff]
  %v21 = vld [vmem:[%s0 + $0x18] sm:$0xff]
  %v22 = vld [vmem:[%s0 + $0x20] sm:$0xff]
  %v23 = vld [vmem:[%s0 + $0x28] sm:$0xff]
  %v24 = vld [vmem:[%s0 + $0x30] sm:$0xff]
  %v25 = vld [vmem:[%s0 + $0x38] sm:$0xff]
  %v26 = vld [vmem:[%s0 + $0x40] sm:$0xff]
  %v27 = vld [vmem:[%s0 + $0x48] sm:$0xff]
  %v28 = vld [vmem:[%s0 + $0x50] sm:$0xff]
  %v29 = vld [vmem:[%s0 + $0x58] sm:$0xff]
  %v30 = vld [vmem:[%s0 + $0x60] sm:$0xff]
  %v31 = vld [vmem:[%s0 + $0x68] sm:$0xff]
  %v32 = vld [vmem:[%s0 + $0x70] sm:$0xff]
  %v33 = vld [vmem:[%s0 + $0x78] sm:$0xff]
  %v34 = vld [vmem:[%s0 + $0x80] sm:$0xff]
  %v35 = vld [vmem:[%s0 + $0x88] sm:$0xff]
  %v36 = vld [vmem:[%s0 + $0x90] sm:$0xff]
  %v37 = vld [vmem:[%s0 + $0x98] sm:$0xff]
  %v38 = vld [vmem:[%s0 + $0xa0] sm:$0xff]
  %v39 = vld [vmem:[%s0 + $0xa8] sm:$0xff]
  %v40 = vld [vmem:[%s0 + $0xb0] sm:$0xff]
  %v41 = vld [vmem:[%s0 + $0xb8] sm:$0xff]
  %v42 = vld [vmem:[%s0 + $0xc0] sm:$0xff]
  %v43 = vld [vmem:[%s0 + $0xc8] sm:$0xff]
  %v44 = vld [vmem:[%s0 + $0xd0] sm:$0xff]
  %v45 = vld [vmem:[%s0 + $0xd8] sm:$0xff]
  %v46 = vld [vmem:[%s0 + $0xe0] sm:$0xff]
  %v47 = vld [vmem:[%s0 + $0xe8] sm:$0xff]
  %v48 = vld [vmem:[%s0 + $0xf0] sm:$0xff]
  %v49 = vld [vmem:[%s0 + $0xf8] sm:$0xff]
  %v50 = vld [vmem:[%s1] sm:$0xf]
  %v51 = vld [vmem:[%s1 + $0x4] sm:$0xf]
  %v52 = vld [vmem:[%s1 + $0x8] sm:$0xf]
  %v53 = vld [vmem:[%s1 + $0xc] sm:$0xf]
  %v54 = vld [vmem:[%s1 + $0x10] sm:$0xf]
  %v55 = vld [vmem:[%s1 + $0x14] sm:$0xf]
  %v56 = vld [vmem:[%s1 + $0x18] sm:$0xf]
  %v57 = vld [vmem:[%s1 + $0x1c] sm:$0xf]
  %v58 = vld [vmem:[%s1 + $0x20] sm:$0xf]
  %v59 = vld [vmem:[%s1 + $0x24] sm:$0xf]
  %v60 = vld [vmem:[%s1 + $0x28] sm:$0xf]
  %v61 = vld [vmem:[%s1 + $0x2c] sm:$0xf]
  %v62 = vld [vmem:[%s1 + $0x30] sm:$0xf]
  %v63 = vld [vmem:[%s1 + $0x34] sm:$0xf]
  %v64 = vld [vmem:[%s1 + $0x38] sm:$0xf]
  %v65 = vld [vmem:[%s1 + $0x3c] sm:$0xf]
  %v66 = vld [vmem:[%s1 + $0x40] sm:$0xf]
  %v67 = vld [vmem:[%s1 + $0x44] sm:$0xf]
  %v68 = vld [vmem:[%s1 + $0x48] sm:$0xf]
  %v69 = vld [vmem:[%s1 + $0x4c] sm:$0xf]
  %v70 = vld [vmem:[%s1 + $0x50] sm:$0xf]
  %v71 = vld [vmem:[%s1 + $0x54] sm:$0xf]
  %v72 = vld [vmem:[%s1 + $0x58] sm:$0xf]
  %v73 = vld [vmem:[%s1 + $0x5c] sm:$0xf]
  %v74 = vld [vmem:[%s1 + $0x60] sm:$0xf]
  %v75 = vld [vmem:[%s1 + $0x64] sm:$0xf]
  %v76 = vld [vmem:[%s1 + $0x68] sm:$0xf]
  %v77 = vld [vmem:[%s1 + $0x6c] sm:$0xf]
  %v78 = vld [vmem:[%s1 + $0x70] sm:$0xf]
  %v79 = vld [vmem:[%s1 + $0x74] sm:$0xf]
  %v80 = vld [vmem:[%s1 + $0x78] sm:$0xf]
  %v81 = vld [vmem:[%s1 + $0x7c] sm:$0xf]
  %v82 = vld [vmem:[%s1 + $0x80] sm:$0xf]
  %v83 = vld [vmem:[%s1 + $0x84] sm:$0xf]
  %v84 = vld [vmem:[%s1 + $0x88] sm:$0xf]
  %v85 = vld [vmem:[%s1 + $0x8c] sm:$0xf]
  %v86 = vld [vmem:[%s1 + $0x90] sm:$0xf]
  %v87 = vld [vmem:[%s1 + $0x94] sm:$0xf]
  %v88 = vld [vmem:[%s1 + $0x98] sm:$0xf]
  %v89 = vld [vmem:[%s1 + $0x9c] sm:$0xf]
  %v90 = vld [vmem:[%s1 + $0xa0] sm:$0xf]
  %v91 = vld [vmem:[%s1 + $0xa4] sm:$0xf]
  %v92 = vld [vmem:[%s1 + $0xa8] sm:$0xf]
  %v93 = vld [vmem:[%s1 + $0xac] sm:$0xf]
  %v94 = vld [vmem:[%s1 + $0xb0] sm:$0xf]
  %v95 = vld [vmem:[%s1 + $0xb4] sm:$0xf]
  %v96 = vld [vmem:[%s1 + $0xb8] sm:$0xf]
  %v97 = vld [vmem:[%s1 + $0xbc] sm:$0xf]
  %v98 = vld [vmem:[%s1 + $0xc0] sm:$0xf]
  %v99 = vld [vmem:[%s1 + $0xc4] sm:$0xf]
  %v100 = vld [vmem:[%s1 + $0xc8] sm:$0xf]
  %v101 = vld [vmem:[%s1 + $0xcc] sm:$0xf]
  %v102 = vld [vmem:[%s1 + $0xd0] sm:$0xf]
  %v103 = vld [vmem:[%s1 + $0xd4] sm:$0xf]
  %v104 = vld [vmem:[%s1 + $0xd8] sm:$0xf]
  %v105 = vld [vmem:[%s1 + $0xdc] sm:$0xf]
  %v106 = vld [vmem:[%s1 + $0xe0] sm:$0xf]
  %v107 = vld [vmem:[%s1 + $0xe4] sm:$0xf]
  %v108 = vld [vmem:[%s1 + $0xe8] sm:$0xf]
  %v109 = vld [vmem:[%s1 + $0xec] sm:$0xf]
  %v110 = vld [vmem:[%s1 + $0xf0] sm:$0xf]
  %v111 = vld [vmem:[%s1 + $0xf4] sm:$0xf]
  %v112 = vld [vmem:[%s1 + $0xf8] sm:$0xf]
  %v113 = vld [vmem:[%s1 + $0xfc] sm:$0xf]
  %v114 = vld [vmem:[%s2] sm:$0x1]
  %v116 = vlaneseq
  %v117 = vshrl.u32 %v116, 7
  %v118 = vsub.s32 0, %v117
  %v119 = vrot.slane %v114, %v118
  %v153 = vunpack.c.l.b16 %v18
  %v154 = vunpack.c.h.b16 %v18
  %v155 = vunpack.c.l.b16 %v19
  %v156 = vunpack.c.h.b16 %v19
  %v157 = vunpack.c.l.b16 %v20
  %v158 = vunpack.c.h.b16 %v20
  %v159 = vunpack.c.l.b16 %v21
  %v160 = vunpack.c.h.b16 %v21
  %v161 = vunpack.c.l.b16 %v22
  %v162 = vunpack.c.h.b16 %v22
  %v163 = vunpack.c.l.b16 %v23
  %v164 = vunpack.c.h.b16 %v23
  %v165 = vunpack.c.l.b16 %v24
  %v166 = vunpack.c.h.b16 %v24
  %v167 = vunpack.c.l.b16 %v25
  %v168 = vunpack.c.h.b16 %v25
  %v169 = vunpack.c.l.b16 %v26
  %v170 = vunpack.c.h.b16 %v26
  %v171 = vunpack.c.l.b16 %v27
  %v172 = vunpack.c.h.b16 %v27
  %v173 = vunpack.c.l.b16 %v28
  %v174 = vunpack.c.h.b16 %v28
  %v175 = vunpack.c.l.b16 %v29
  %v176 = vunpack.c.h.b16 %v29
  %v177 = vunpack.c.l.b16 %v30
  %v178 = vunpack.c.h.b16 %v30
  %v179 = vunpack.c.l.b16 %v31
  %v180 = vunpack.c.h.b16 %v31
  %v181 = vunpack.c.l.b16 %v32
  %v182 = vunpack.c.h.b16 %v32
  %v183 = vunpack.c.l.b16 %v33
  %v184 = vunpack.c.h.b16 %v33
  %v185 = vunpack.c.l.b16 %v34
  %v186 = vunpack.c.h.b16 %v34
  %v187 = vunpack.c.l.b16 %v35
  %v188 = vunpack.c.h.b16 %v35
  %v189 = vunpack.c.l.b16 %v36
  %v190 = vunpack.c.h.b16 %v36
  %v191 = vunpack.c.l.b16 %v37
  %v192 = vunpack.c.h.b16 %v37
  %v193 = vunpack.c.l.b16 %v38
  %v194 = vunpack.c.h.b16 %v38
  %v195 = vunpack.c.l.b16 %v39
  %v196 = vunpack.c.h.b16 %v39
  %v197 = vunpack.c.l.b16 %v40
  %v198 = vunpack.c.h.b16 %v40
  %v199 = vunpack.c.l.b16 %v41
  %v200 = vunpack.c.h.b16 %v41
  %v201 = vunpack.c.l.b16 %v42
  %v202 = vunpack.c.h.b16 %v42
  %v203 = vunpack.c.l.b16 %v43
  %v204 = vunpack.c.h.b16 %v43
  %v205 = vunpack.c.l.b16 %v44
  %v206 = vunpack.c.h.b16 %v44
  %v207 = vunpack.c.l.b16 %v45
  %v208 = vunpack.c.h.b16 %v45
  %v209 = vunpack.c.l.b16 %v46
  %v210 = vunpack.c.h.b16 %v46
  %v211 = vunpack.c.l.b16 %v47
  %v212 = vunpack.c.h.b16 %v47
  %v213 = vunpack.c.l.b16 %v48
  %v214 = vunpack.c.h.b16 %v48
  %v215 = vunpack.c.l.b16 %v49
  %v216 = vunpack.c.h.b16 %v49
  %v217 = vpack.c.b16 %v157, %v153
  %v218 = vpack.c.b16 %v158, %v154
  %v219 = vpack.c.b16 %v159, %v155
  %v220 = vpack.c.b16 %v160, %v156
  %v221 = vpack.c.b16 %v165, %v161
  %v222 = vpack.c.b16 %v166, %v162
  %v223 = vpack.c.b16 %v167, %v163
  %v224 = vpack.c.b16 %v168, %v164
  %v225 = vpack.c.b16 %v173, %v169
  %v226 = vpack.c.b16 %v174, %v170
  %v227 = vpack.c.b16 %v175, %v171
  %v228 = vpack.c.b16 %v176, %v172
  %v229 = vpack.c.b16 %v181, %v177
  %v230 = vpack.c.b16 %v182, %v178
  %v231 = vpack.c.b16 %v183, %v179
  %v232 = vpack.c.b16 %v184, %v180
  %v233 = vpack.c.b16 %v189, %v185
  %v234 = vpack.c.b16 %v190, %v186
  %v235 = vpack.c.b16 %v191, %v187
  %v236 = vpack.c.b16 %v192, %v188
  %v237 = vpack.c.b16 %v197, %v193
  %v238 = vpack.c.b16 %v198, %v194
  %v239 = vpack.c.b16 %v199, %v195
  %v240 = vpack.c.b16 %v200, %v196
  %v241 = vpack.c.b16 %v205, %v201
  %v242 = vpack.c.b16 %v206, %v202
  %v243 = vpack.c.b16 %v207, %v203
  %v244 = vpack.c.b16 %v208, %v204
  %v245 = vpack.c.b16 %v213, %v209
  %v246 = vpack.c.b16 %v214, %v210
  %v247 = vpack.c.b16 %v215, %v211
  %v248 = vpack.c.b16 %v216, %v212
  %v345 = vunpack.c.l.b16 %v50
  %v346 = vunpack.c.l.b16 %v51
  %v347 = vunpack.c.l.b16 %v52
  %v348 = vunpack.c.l.b16 %v53
  %v349 = vunpack.c.l.b16 %v54
  %v350 = vunpack.c.l.b16 %v55
  %v351 = vunpack.c.l.b16 %v56
  %v352 = vunpack.c.l.b16 %v57
  %v353 = vunpack.c.l.b16 %v58
  %v354 = vunpack.c.l.b16 %v59
  %v355 = vunpack.c.l.b16 %v60
  %v356 = vunpack.c.l.b16 %v61
  %v357 = vunpack.c.l.b16 %v62
  %v358 = vunpack.c.l.b16 %v63
  %v359 = vunpack.c.l.b16 %v64
  %v360 = vunpack.c.l.b16 %v65
  %v361 = vunpack.c.l.b16 %v66
  %v362 = vunpack.c.l.b16 %v67
  %v363 = vunpack.c.l.b16 %v68
  %v364 = vunpack.c.l.b16 %v69
  %v365 = vunpack.c.l.b16 %v70
  %v366 = vunpack.c.l.b16 %v71
  %v367 = vunpack.c.l.b16 %v72
  %v368 = vunpack.c.l.b16 %v73
  %v369 = vunpack.c.l.b16 %v74
  %v370 = vunpack.c.l.b16 %v75
  %v371 = vunpack.c.l.b16 %v76
  %v372 = vunpack.c.l.b16 %v77
  %v373 = vunpack.c.l.b16 %v78
  %v374 = vunpack.c.l.b16 %v79
  %v375 = vunpack.c.l.b16 %v80
  %v376 = vunpack.c.l.b16 %v81
  %v377 = vunpack.c.l.b16 %v82
  %v378 = vunpack.c.l.b16 %v83
  %v379 = vunpack.c.l.b16 %v84
  %v380 = vunpack.c.l.b16 %v85
  %v381 = vunpack.c.l.b16 %v86
  %v382 = vunpack.c.l.b16 %v87
  %v383 = vunpack.c.l.b16 %v88
  %v384 = vunpack.c.l.b16 %v89
  %v385 = vunpack.c.l.b16 %v90
  %v386 = vunpack.c.l.b16 %v91
  %v387 = vunpack.c.l.b16 %v92
  %v388 = vunpack.c.l.b16 %v93
  %v389 = vunpack.c.l.b16 %v94
  %v390 = vunpack.c.l.b16 %v95
  %v391 = vunpack.c.l.b16 %v96
  %v392 = vunpack.c.l.b16 %v97
  %v393 = vunpack.c.l.b16 %v98
  %v394 = vunpack.c.l.b16 %v99
  %v395 = vunpack.c.l.b16 %v100
  %v396 = vunpack.c.l.b16 %v101
  %v397 = vunpack.c.l.b16 %v102
  %v398 = vunpack.c.l.b16 %v103
  %v399 = vunpack.c.l.b16 %v104
  %v400 = vunpack.c.l.b16 %v105
  %v401 = vunpack.c.l.b16 %v106
  %v402 = vunpack.c.l.b16 %v107
  %v403 = vunpack.c.l.b16 %v108
  %v404 = vunpack.c.l.b16 %v109
  %v405 = vunpack.c.l.b16 %v110
  %v406 = vunpack.c.l.b16 %v111
  %v407 = vunpack.c.l.b16 %v112
  %v408 = vunpack.c.l.b16 %v113
  %v409 = vpack.c.b16 %v346, %v345
  %v410 = vpack.c.b16 %v348, %v347
  %v411 = vpack.c.b16 %v350, %v349
  %v412 = vpack.c.b16 %v352, %v351
  %v413 = vpack.c.b16 %v354, %v353
  %v414 = vpack.c.b16 %v356, %v355
  %v415 = vpack.c.b16 %v358, %v357
  %v416 = vpack.c.b16 %v360, %v359
  %v417 = vpack.c.b16 %v362, %v361
  %v418 = vpack.c.b16 %v364, %v363
  %v419 = vpack.c.b16 %v366, %v365
  %v420 = vpack.c.b16 %v368, %v367
  %v421 = vpack.c.b16 %v370, %v369
  %v422 = vpack.c.b16 %v372, %v371
  %v423 = vpack.c.b16 %v374, %v373
  %v424 = vpack.c.b16 %v376, %v375
  %v425 = vpack.c.b16 %v378, %v377
  %v426 = vpack.c.b16 %v380, %v379
  %v427 = vpack.c.b16 %v382, %v381
  %v428 = vpack.c.b16 %v384, %v383
  %v429 = vpack.c.b16 %v386, %v385
  %v430 = vpack.c.b16 %v388, %v387
  %v431 = vpack.c.b16 %v390, %v389
  %v432 = vpack.c.b16 %v392, %v391
  %v433 = vpack.c.b16 %v394, %v393
  %v434 = vpack.c.b16 %v396, %v395
  %v435 = vpack.c.b16 %v398, %v397
  %v436 = vpack.c.b16 %v400, %v399
  %v437 = vpack.c.b16 %v402, %v401
  %v438 = vpack.c.b16 %v404, %v403
  %v439 = vpack.c.b16 %v406, %v405
  %v440 = vpack.c.b16 %v408, %v407
  %473 = vmatprep.subr.bf16.mxu0 0
  %474 = vmatpush1.bf16.msra.mxu0 %v409
  %475 = vmatprep.subr.bf16.mxu0 0
  %476 = vmatpush1.bf16.msra.mxu0 %v410
  %477 = vmatprep.subr.bf16.mxu0 0
  %478 = vmatpush1.bf16.msra.mxu0 %v411
  %479 = vmatprep.subr.bf16.mxu0 0
  %480 = vmatpush1.bf16.msra.mxu0 %v412
  %481 = vmatprep.subr.bf16.mxu0 0
  %482 = vmatpush1.bf16.msra.mxu0 %v413
  %483 = vmatprep.subr.bf16.mxu0 0
  %484 = vmatpush1.bf16.msra.mxu0 %v414
  %485 = vmatprep.subr.bf16.mxu0 0
  %486 = vmatpush1.bf16.msra.mxu0 %v415
  %487 = vmatprep.subr.bf16.mxu0 0
  %488 = vmatpush1.bf16.msra.mxu0 %v416
  %489 = vmatprep.subr.bf16.mxu0 0
  %490 = vmatpush1.bf16.msra.mxu0 %v417
  %491 = vmatprep.subr.bf16.mxu0 0
  %492 = vmatpush1.bf16.msra.mxu0 %v418
  %493 = vmatprep.subr.bf16.mxu0 0
  %494 = vmatpush1.bf16.msra.mxu0 %v419
  %495 = vmatprep.subr.bf16.mxu0 0
  %496 = vmatpush1.bf16.msra.mxu0 %v420
  %497 = vmatprep.subr.bf16.mxu0 0
  %498 = vmatpush1.bf16.msra.mxu0 %v421
  %499 = vmatprep.subr.bf16.mxu0 0
  %500 = vmatpush1.bf16.msra.mxu0 %v422
  %501 = vmatprep.subr.bf16.mxu0 0
  %502 = vmatpush1.bf16.msra.mxu0 %v423
  %503 = vmatprep.subr.bf16.mxu0 0
  %504 = vmatpush1.bf16.msra.mxu0 %v424
  %505 = vmatprep.mubr.bf16.mxu0 %v218
  %506 = vmatmul.mubr.bf16.gmra.mrb[0].mxu0 %v217
  %v507 = vpop.f32.mrb[0].mxu0
  %v508 = vadd.f32 %v119, %v507
  %v509 = vpop.f32.mrb[0].mxu0
  %v510 = vpop.f32.mrb[0].mxu0
  %v511 = vadd.f32 %v119, %v510
  %v512 = vpop.f32.mrb[0].mxu0
  %513 = vmatprep.mubr.bf16.mxu0 %v222
  %514 = vmatmul.mubr.bf16.gmra.mrb[0].mxu0 %v221
  %v515 = vpop.f32.mrb[0].mxu0
  %v516 = vadd.f32 %v119, %v515
  %v517 = vpop.f32.mrb[0].mxu0
  %v518 = vpop.f32.mrb[0].mxu0
  %v519 = vadd.f32 %v119, %v518
  %v520 = vpop.f32.mrb[0].mxu0
  %521 = vmatprep.mubr.bf16.mxu0 %v226
  %522 = vmatmul.mubr.bf16.gmra.mrb[0].mxu0 %v225
  %v523 = vpop.f32.mrb[0].mxu0
  %v524 = vadd.f32 %v119, %v523
  %v525 = vpop.f32.mrb[0].mxu0
  %v526 = vpop.f32.mrb[0].mxu0
  %v527 = vadd.f32 %v119, %v526
  %v528 = vpop.f32.mrb[0].mxu0
  %529 = vmatprep.mubr.bf16.mxu0 %v230
  %530 = vmatmul.mubr.bf16.gmra.mrb[0].mxu0 %v229
  %v531 = vpop.f32.mrb[0].mxu0
  %v532 = vadd.f32 %v119, %v531
  %v533 = vpop.f32.mrb[0].mxu0
  %v534 = vpop.f32.mrb[0].mxu0
  %v535 = vadd.f32 %v119, %v534
  %v536 = vpop.f32.mrb[0].mxu0
  %537 = vmatprep.mubr.bf16.mxu0 %v234
  %538 = vmatmul.mubr.bf16.gmra.mrb[0].mxu0 %v233
  %v539 = vpop.f32.mrb[0].mxu0
  %v540 = vadd.f32 %v119, %v539
  %v541 = vpop.f32.mrb[0].mxu0
  %v542 = vpop.f32.mrb[0].mxu0
  %v543 = vadd.f32 %v119, %v542
  %v544 = vpop.f32.mrb[0].mxu0
  %545 = vmatprep.mubr.bf16.mxu0 %v238
  %546 = vmatmul.mubr.bf16.gmra.mrb[0].mxu0 %v237
  %v547 = vpop.f32.mrb[0].mxu0
  %v548 = vadd.f32 %v119, %v547
  %v549 = vpop.f32.mrb[0].mxu0
  %v550 = vpop.f32.mrb[0].mxu0
  %v551 = vadd.f32 %v119, %v550
  %v552 = vpop.f32.mrb[0].mxu0
  %553 = vmatprep.mubr.bf16.mxu0 %v242
  %554 = vmatmul.mubr.bf16.gmra.mrb[0].mxu0 %v241
  %v555 = vpop.f32.mrb[0].mxu0
  %v556 = vadd.f32 %v119, %v555
  %v557 = vpop.f32.mrb[0].mxu0
  %v558 = vpop.f32.mrb[0].mxu0
  %v559 = vadd.f32 %v119, %v558
  %v560 = vpop.f32.mrb[0].mxu0
  %561 = vmatprep.mubr.bf16.mxu0 %v246
  %562 = vmatmul.mubr.bf16.gmra.mrb[0].mxu0 %v245
  %v563 = vpop.f32.mrb[0].mxu0
  %v564 = vadd.f32 %v119, %v563
  %v565 = vpop.f32.mrb[0].mxu0
  %v566 = vpop.f32.mrb[0].mxu0
  %v567 = vadd.f32 %v119, %v566
  %v568 = vpop.f32.mrb[0].mxu0
  %569 = vdwg.mxu0
  %570 = vmatprep.subr.bf16.mxu0 0
  %571 = vmatpush1.bf16.msra.mxu0 %v425
  %572 = vmatprep.subr.bf16.mxu0 0
  %573 = vmatpush1.bf16.msra.mxu0 %v426
  %574 = vmatprep.subr.bf16.mxu0 0
  %575 = vmatpush1.bf16.msra.mxu0 %v427
  %576 = vmatprep.subr.bf16.mxu0 0
  %577 = vmatpush1.bf16.msra.mxu0 %v428
  %578 = vmatprep.subr.bf16.mxu0 0
  %579 = vmatpush1.bf16.msra.mxu0 %v429
  %580 = vmatprep.subr.bf16.mxu0 0
  %581 = vmatpush1.bf16.msra.mxu0 %v430
  %582 = vmatprep.subr.bf16.mxu0 0
  %583 = vmatpush1.bf16.msra.mxu0 %v431
  %584 = vmatprep.subr.bf16.mxu0 0
  %585 = vmatpush1.bf16.msra.mxu0 %v432
  %586 = vmatprep.subr.bf16.mxu0 0
  %587 = vmatpush1.bf16.msra.mxu0 %v433
  %588 = vmatprep.subr.bf16.mxu0 0
  %589 = vmatpush1.bf16.msra.mxu0 %v434
  %590 = vmatprep.subr.bf16.mxu0 0
  %591 = vmatpush1.bf16.msra.mxu0 %v435
  %592 = vmatprep.subr.bf16.mxu0 0
  %593 = vmatpush1.bf16.msra.mxu0 %v436
  %594 = vmatprep.subr.bf16.mxu0 0
  %595 = vmatpush1.bf16.msra.mxu0 %v437
  %596 = vmatprep.subr.bf16.mxu0 0
  %597 = vmatpush1.bf16.msra.mxu0 %v438
  %598 = vmatprep.subr.bf16.mxu0 0
  %599 = vmatpush1.bf16.msra.mxu0 %v439
  %600 = vmatprep.subr.bf16.mxu0 0
  %601 = vmatpush1.bf16.msra.mxu0 %v440
  %602 = vmatprep.mubr.bf16.mxu0 %v220
  %603 = vmatmul.mubr.bf16.gmra.mrb[0].mxu0 %v219
  %v604 = vpop.f32.mrb[0].mxu0
  %v605 = vadd.f32 %v508, %v604
  %v606 = vpop.f32.mrb[0].mxu0
  %v607 = vpop.f32.mrb[0].mxu0
  %v608 = vadd.f32 %v511, %v607
  %v609 = vpop.f32.mrb[0].mxu0
  %610 = vmatprep.mubr.bf16.mxu0 %v224
  %611 = vmatmul.mubr.bf16.gmra.mrb[0].mxu0 %v223
  %v612 = vpop.f32.mrb[0].mxu0
  %v613 = vadd.f32 %v516, %v612
  %v614 = vpop.f32.mrb[0].mxu0
  %v615 = vpop.f32.mrb[0].mxu0
  %v616 = vadd.f32 %v519, %v615
  %v617 = vpop.f32.mrb[0].mxu0
  %618 = vmatprep.mubr.bf16.mxu0 %v228
  %619 = vmatmul.mubr.bf16.gmra.mrb[0].mxu0 %v227
  %v620 = vpop.f32.mrb[0].mxu0
  %v621 = vadd.f32 %v524, %v620
  %v622 = vpop.f32.mrb[0].mxu0
  %v623 = vpop.f32.mrb[0].mxu0
  %v624 = vadd.f32 %v527, %v623
  %v625 = vpop.f32.mrb[0].mxu0
  %626 = vmatprep.mubr.bf16.mxu0 %v232
  %627 = vmatmul.mubr.bf16.gmra.mrb[0].mxu0 %v231
  %v628 = vpop.f32.mrb[0].mxu0
  %v629 = vadd.f32 %v532, %v628
  %v630 = vpop.f32.mrb[0].mxu0
  %v631 = vpop.f32.mrb[0].mxu0
  %v632 = vadd.f32 %v535, %v631
  %v633 = vpop.f32.mrb[0].mxu0
  %634 = vmatprep.mubr.bf16.mxu0 %v236
  %635 = vmatmul.mubr.bf16.gmra.mrb[0].mxu0 %v235
  %v636 = vpop.f32.mrb[0].mxu0
  %v637 = vadd.f32 %v540, %v636
  %v638 = vpop.f32.mrb[0].mxu0
  %v639 = vpop.f32.mrb[0].mxu0
  %v640 = vadd.f32 %v543, %v639
  %v641 = vpop.f32.mrb[0].mxu0
  %642 = vmatprep.mubr.bf16.mxu0 %v240
  %643 = vmatmul.mubr.bf16.gmra.mrb[0].mxu0 %v239
  %v644 = vpop.f32.mrb[0].mxu0
  %v645 = vadd.f32 %v548, %v644
  %v646 = vpop.f32.mrb[0].mxu0
  %v647 = vpop.f32.mrb[0].mxu0
  %v648 = vadd.f32 %v551, %v647
  %v649 = vpop.f32.mrb[0].mxu0
  %650 = vmatprep.mubr.bf16.mxu0 %v244
  %651 = vmatmul.mubr.bf16.gmra.mrb[0].mxu0 %v243
  %v652 = vpop.f32.mrb[0].mxu0
  %v653 = vadd.f32 %v556, %v652
  %v654 = vpop.f32.mrb[0].mxu0
  %v655 = vpop.f32.mrb[0].mxu0
  %v656 = vadd.f32 %v559, %v655
  %v657 = vpop.f32.mrb[0].mxu0
  %658 = vmatprep.mubr.bf16.mxu0 %v248
  %659 = vmatmul.mubr.bf16.gmra.mrb[0].mxu0 %v247
  %v660 = vpop.f32.mrb[0].mxu0
  %v661 = vadd.f32 %v564, %v660
  %v662 = vpop.f32.mrb[0].mxu0
  %v663 = vpop.f32.mrb[0].mxu0
  %v664 = vadd.f32 %v567, %v663
  %v665 = vpop.f32.mrb[0].mxu0
  %666 = vdwg.mxu0
  %v667 = vld [vmem:[%s3] sm:$0xf]
  %v668 = vld [vmem:[%s3 + $0x4] sm:$0xf]
  %v669 = vld [vmem:[%s3 + $0x8] sm:$0xf]
  %v670 = vld [vmem:[%s3 + $0xc] sm:$0xf]
  %v671 = vld [vmem:[%s3 + $0x10] sm:$0xf]
  %v672 = vld [vmem:[%s3 + $0x14] sm:$0xf]
  %v673 = vld [vmem:[%s3 + $0x18] sm:$0xf]
  %v674 = vld [vmem:[%s3 + $0x1c] sm:$0xf]
  %v675 = vld [vmem:[%s3 + $0x20] sm:$0xf]
  %v676 = vld [vmem:[%s3 + $0x24] sm:$0xf]
  %v677 = vld [vmem:[%s3 + $0x28] sm:$0xf]
  %v678 = vld [vmem:[%s3 + $0x2c] sm:$0xf]
  %v679 = vld [vmem:[%s3 + $0x30] sm:$0xf]
  %v680 = vld [vmem:[%s3 + $0x34] sm:$0xf]
  %v681 = vld [vmem:[%s3 + $0x38] sm:$0xf]
  %v682 = vld [vmem:[%s3 + $0x3c] sm:$0xf]
  %v683 = vunpack.c.l.bf16 %v667
  %v684 = vunpack.c.l.bf16 %v668
  %v685 = vunpack.c.l.bf16 %v669
  %v686 = vunpack.c.l.bf16 %v670
  %v687 = vunpack.c.l.bf16 %v671
  %v688 = vunpack.c.l.bf16 %v672
  %v689 = vunpack.c.l.bf16 %v673
  %v690 = vunpack.c.l.bf16 %v674
  %v691 = vunpack.c.l.bf16 %v675
  %v692 = vunpack.c.l.bf16 %v676
  %v693 = vunpack.c.l.bf16 %v677
  %v694 = vunpack.c.l.bf16 %v678
  %v695 = vunpack.c.l.bf16 %v679
  %v696 = vunpack.c.l.bf16 %v680
  %v697 = vunpack.c.l.bf16 %v681
  %v698 = vunpack.c.l.bf16 %v682
  %v699 = vadd.f32 %v605, %v683
  %v700 = vadd.f32 %v608, %v684
  %v701 = vadd.f32 %v613, %v685
  %v702 = vadd.f32 %v616, %v686
  %v703 = vadd.f32 %v621, %v687
  %v704 = vadd.f32 %v624, %v688
  %v705 = vadd.f32 %v629, %v689
  %v706 = vadd.f32 %v632, %v690
  %v707 = vadd.f32 %v637, %v691
  %v708 = vadd.f32 %v640, %v692
  %v709 = vadd.f32 %v645, %v693
  %v710 = vadd.f32 %v648, %v694
  %v711 = vadd.f32 %v653, %v695
  %v712 = vadd.f32 %v656, %v696
  %v713 = vadd.f32 %v661, %v697
  %v714 = vadd.f32 %v664, %v698
  %v715 = vpack.c.bf16 %v700, %v699
  %v716 = vpack.c.bf16 %v702, %v701
  %v717 = vpack.c.bf16 %v704, %v703
  %v718 = vpack.c.bf16 %v706, %v705
  %v719 = vpack.c.bf16 %v708, %v707
  %v720 = vpack.c.bf16 %v710, %v709
  %v721 = vpack.c.bf16 %v712, %v711
  %v722 = vpack.c.bf16 %v714, %v713
  %v731 = vunpack.c.l.b16 %v715
  %v732 = vunpack.c.h.b16 %v715
  %v733 = vunpack.c.l.b16 %v716
  %v734 = vunpack.c.h.b16 %v716
  %v735 = vunpack.c.l.b16 %v717
  %v736 = vunpack.c.h.b16 %v717
  %v737 = vunpack.c.l.b16 %v718
  %v738 = vunpack.c.h.b16 %v718
  %v739 = vunpack.c.l.b16 %v719
  %v740 = vunpack.c.h.b16 %v719
  %v741 = vunpack.c.l.b16 %v720
  %v742 = vunpack.c.h.b16 %v720
  %v743 = vunpack.c.l.b16 %v721
  %v744 = vunpack.c.h.b16 %v721
  %v745 = vunpack.c.l.b16 %v722
  %v746 = vunpack.c.h.b16 %v722
  %v747 = vpack.c.b16 %v731, %v731
  %v748 = vpack.c.b16 %v732, %v732
  %v749 = vpack.c.b16 %v733, %v733
  %v750 = vpack.c.b16 %v734, %v734
  %v751 = vpack.c.b16 %v735, %v735
  %v752 = vpack.c.b16 %v736, %v736
  %v753 = vpack.c.b16 %v737, %v737
  %v754 = vpack.c.b16 %v738, %v738
  %v755 = vpack.c.b16 %v739, %v739
  %v756 = vpack.c.b16 %v740, %v740
  %v757 = vpack.c.b16 %v741, %v741
  %v758 = vpack.c.b16 %v742, %v742
  %v759 = vpack.c.b16 %v743, %v743
  %v760 = vpack.c.b16 %v744, %v744
  %v761 = vpack.c.b16 %v745, %v745
  %v762 = vpack.c.b16 %v746, %v746
  %779 = vst [vmem:[%s4] sm:$0xf] %v747
  %780 = vst [vmem:[%s4 + $0x4] sm:$0xf] %v748
  %781 = vst [vmem:[%s4 + $0x8] sm:$0xf] %v749
  %782 = vst [vmem:[%s4 + $0xc] sm:$0xf] %v750
  %783 = vst [vmem:[%s4 + $0x10] sm:$0xf] %v751
  %784 = vst [vmem:[%s4 + $0x14] sm:$0xf] %v752
  %785 = vst [vmem:[%s4 + $0x18] sm:$0xf] %v753
  %786 = vst [vmem:[%s4 + $0x1c] sm:$0xf] %v754
  %787 = vst [vmem:[%s4 + $0x20] sm:$0xf] %v755
  %788 = vst [vmem:[%s4 + $0x24] sm:$0xf] %v756
  %789 = vst [vmem:[%s4 + $0x28] sm:$0xf] %v757
  %790 = vst [vmem:[%s4 + $0x2c] sm:$0xf] %v758
  %791 = vst [vmem:[%s4 + $0x30] sm:$0xf] %v759
  %792 = vst [vmem:[%s4 + $0x34] sm:$0xf] %v760
  %793 = vst [vmem:[%s4 + $0x38] sm:$0xf] %v761
  %794 = vst [vmem:[%s4 + $0x3c] sm:$0xf] %v762
  // Predicated region
  $region18: #{cellpose_sam_apply.19} parent=0 // pred_check
    _
  $region19: #{cellpose_sam_apply.19} parent=0 // pred_check_branch
    %796 = sbr.rel (0) target = $region21
  $region20: #{cellpose_sam_apply.19} parent=0 // pred_region
    _
  $region21: #{cellpose_sam_apply.19} parent=0 // pred_fallthru
    _
  // Predicated region
  $region22: #{cellpose_sam_apply.19} parent=0 // pred_check
    _
  $region23: #{cellpose_sam_apply.19} parent=0 // pred_check_branch
    %798 = sbr.rel (0) target = $region25
  $region24: #{cellpose_sam_apply.19} parent=0 // pred_region
    _
  $region25: #{cellpose_sam_apply.19} parent=0 // pred_fallthru
    _

// kernel: cellpose_sam_apply.27
$region0: #{cellpose_sam_apply.27}
  #allocation0 [shape = 'u32[]', space=smem, size = 0x4, offset = 0x4, fixed_abs, tag = 'smem constant byte address 0x4 - core index']
  #allocation1 [shape = 'u32[144,128]{1,0:T(1,128)}', space=vmem, size = 0x12000, scoped, tag = 'internal scratch']
  %s0 = inlined_call_operand.vmem [shape: bf16[128,128], index: 0, kind: input, shape index: {}]
  %s1 = inlined_call_operand.vmem [shape: bf16[128,384], index: 1, kind: input, shape index: {}]
  %s2 = inlined_call_operand.vmem [shape: f32[1,384], index: 2, kind: input, shape index: {}]
  %s3 = inlined_call_operand.vmem [shape: f32[128,384], index: 3, kind: output, shape index: {}]
  %s4 = sld [smem:[#allocation0]]
  $region22: #{cellpose_sam_apply.27} parent=0
    _
  %s6 = ssub.s32 1, %s4
  %s7 = scalar_select 0, %s6, %s4
  // Predicated region
  $region2: #{cellpose_sam_apply.27} parent=0 // pred_check
    _
  $region3: #{cellpose_sam_apply.27} parent=0 // pred_check_branch
    %9 = sbr.rel (0) target = $region5
  $region4: #{cellpose_sam_apply.27} parent=0 // pred_region
    _
  $region5: #{cellpose_sam_apply.27} parent=0 // pred_fallthru
    _
  // Predicated region
  $region6: #{cellpose_sam_apply.27} parent=0 // pred_check
    _
  $region7: #{cellpose_sam_apply.27} parent=0 // pred_check_branch
    %11 = sbr.rel (0) target = $region9
  $region8: #{cellpose_sam_apply.27} parent=0 // pred_region
    _
  $region9: #{cellpose_sam_apply.27} parent=0 // pred_fallthru
    _
  // Predicated region
  $region10: #{cellpose_sam_apply.27} parent=0 // pred_check
    _
  $region11: #{cellpose_sam_apply.27} parent=0 // pred_check_branch
    %13 = sbr.rel (0) target = $region13
  $region12: #{cellpose_sam_apply.27} parent=0 // pred_region
    _
  $region13: #{cellpose_sam_apply.27} parent=0 // pred_fallthru
    _
  %v15 = vld [vmem:[%s0] sm:$0xf]
  %v16 = vld [vmem:[%s0 + $0x4] sm:$0xf]
  %v17 = vld [vmem:[%s0 + $0x8] sm:$0xf]
  %v18 = vld [vmem:[%s0 + $0xc] sm:$0xf]
  %v19 = vld [vmem:[%s0 + $0x10] sm:$0xf]
  %v20 = vld [vmem:[%s0 + $0x14] sm:$0xf]
  %v21 = vld [vmem:[%s0 + $0x18] sm:$0xf]
  %v22 = vld [vmem:[%s0 + $0x1c] sm:$0xf]
  %v23 = vld [vmem:[%s0 + $0x20] sm:$0xf]
  %v24 = vld [vmem:[%s0 + $0x24] sm:$0xf]
  %v25 = vld [vmem:[%s0 + $0x28] sm:$0xf]
  %v26 = vld [vmem:[%s0 + $0x2c] sm:$0xf]
  %v27 = vld [vmem:[%s0 + $0x30] sm:$0xf]
  %v28 = vld [vmem:[%s0 + $0x34] sm:$0xf]
  %v29 = vld [vmem:[%s0 + $0x38] sm:$0xf]
  %v30 = vld [vmem:[%s0 + $0x3c] sm:$0xf]
  %v31 = vld [vmem:[%s1] sm:$0xff]
  %v32 = vld [vmem:[%s1 + $0x8] sm:$0xf]
  %v33 = vld [vmem:[%s1 + $0xc] sm:$0xff]
  %v34 = vld [vmem:[%s1 + $0x14] sm:$0xf]
  %v35 = vld [vmem:[%s1 + $0x18] sm:$0xff]
  %v36 = vld [vmem:[%s1 + $0x20] sm:$0xf]
  %v37 = vld [vmem:[%s1 + $0x24] sm:$0xff]
  %v38 = vld [vmem:[%s1 + $0x2c] sm:$0xf]
  %v39 = vld [vmem:[%s1 + $0x30] sm:$0xff]
  %v40 = vld [vmem:[%s1 + $0x38] sm:$0xf]
  %v41 = vld [vmem:[%s1 + $0x3c] sm:$0xff]
  %v42 = vld [vmem:[%s1 + $0x44] sm:$0xf]
  %v43 = vld [vmem:[%s1 + $0x48] sm:$0xff]
  %v44 = vld [vmem:[%s1 + $0x50] sm:$0xf]
  %v45 = vld [vmem:[%s1 + $0x54] sm:$0xff]
  %v46 = vld [vmem:[%s1 + $0x5c] sm:$0xf]
  %v47 = vld [vmem:[%s1 + $0x60] sm:$0xff]
  %v48 = vld [vmem:[%s1 + $0x68] sm:$0xf]
  %v49 = vld [vmem:[%s1 + $0x6c] sm:$0xff]
  %v50 = vld [vmem:[%s1 + $0x74] sm:$0xf]
  %v51 = vld [vmem:[%s1 + $0x78] sm:$0xff]
  %v52 = vld [vmem:[%s1 + $0x80] sm:$0xf]
  %v53 = vld [vmem:[%s1 + $0x84] sm:$0xff]
  %v54 = vld [vmem:[%s1 + $0x8c] sm:$0xf]
  %v55 = vld [vmem:[%s1 + $0x90] sm:$0xff]
  %v56 = vld [vmem:[%s1 + $0x98] sm:$0xf]
  %v57 = vld [vmem:[%s1 + $0x9c] sm:$0xff]
  %v58 = vld [vmem:[%s1 + $0xa4] sm:$0xf]
  %v59 = vld [vmem:[%s1 + $0xa8] sm:$0xff]
  %v60 = vld [vmem:[%s1 + $0xb0] sm:$0xf]
  %v61 = vld [vmem:[%s1 + $0xb4] sm:$0xff]
  %v62 = vld [vmem:[%s1 + $0xbc] sm:$0xf]
  %v63 = vld [vmem:[%s2] sm:$0x7]
  %v65 = vlaneseq
  %v66 = vshrl.u32 %v65, 7
  %v67 = vsub.s32 0, %v66
  %v68 = vrot.slane %v63, %v67
  %v69 = vlaneseq
  %v70 = vshrl.u32 %v69, 7
  %v71 = vsub.s32 1, %v70
  %v72 = vrot.slane %v63, %v71
  %v73 = vlaneseq
  %v74 = vshrl.u32 %v73, 7
  %v75 = vsub.s32 2, %v74
  %v76 = vrot.slane %v63, %v75
  %v96 = vunpack.c.l.b16 %v15
  %v97 = vunpack.c.l.b16 %v16
  %v98 = vunpack.c.l.b16 %v17
  %v99 = vunpack.c.l.b16 %v18
  %v100 = vunpack.c.l.b16 %v19
  %v101 = vunpack.c.l.b16 %v20
  %v102 = vunpack.c.l.b16 %v21
  %v103 = vunpack.c.l.b16 %v22
  %v104 = vunpack.c.l.b16 %v23
  %v105 = vunpack.c.l.b16 %v24
  %v106 = vunpack.c.l.b16 %v25
  %v107 = vunpack.c.l.b16 %v26
  %v108 = vunpack.c.l.b16 %v27
  %v109 = vunpack.c.l.b16 %v28
  %v110 = vunpack.c.l.b16 %v29
  %v111 = vunpack.c.l.b16 %v30
  %v112 = vpack.c.b16 %v97, %v96
  %v113 = vpack.c.b16 %v99, %v98
  %v114 = vpack.c.b16 %v101, %v100
  %v115 = vpack.c.b16 %v103, %v102
  %v116 = vpack.c.b16 %v105, %v104
  %v117 = vpack.c.b16 %v107, %v106
  %v118 = vpack.c.b16 %v109, %v108
  %v119 = vpack.c.b16 %v111, %v110
  %v160 = vunpack.c.l.b16 %v31
  %v161 = vunpack.c.h.b16 %v31
  %v162 = vunpack.c.l.b16 %v32
  %v163 = vunpack.c.l.b16 %v33
  %v164 = vunpack.c.h.b16 %v33
  %v165 = vunpack.c.l.b16 %v34
  %v166 = vunpack.c.l.b16 %v35
  %v167 = vunpack.c.h.b16 %v35
  %v168 = vunpack.c.l.b16 %v36
  %v169 = vunpack.c.l.b16 %v37
  %v170 = vunpack.c.h.b16 %v37
  %v171 = vunpack.c.l.b16 %v38
  %v172 = vunpack.c.l.b16 %v39
  %v173 = vunpack.c.h.b16 %v39
  %v174 = vunpack.c.l.b16 %v40
  %v175 = vunpack.c.l.b16 %v41
  %v176 = vunpack.c.h.b16 %v41
  %v177 = vunpack.c.l.b16 %v42
  %v178 = vunpack.c.l.b16 %v43
  %v179 = vunpack.c.h.b16 %v43
  %v180 = vunpack.c.l.b16 %v44
  %v181 = vunpack.c.l.b16 %v45
  %v182 = vunpack.c.h.b16 %v45
  %v183 = vunpack.c.l.b16 %v46
  %v184 = vunpack.c.l.b16 %v47
  %v185 = vunpack.c.h.b16 %v47
  %v186 = vunpack.c.l.b16 %v48
  %v187 = vunpack.c.l.b16 %v49
  %v188 = vunpack.c.h.b16 %v49
  %v189 = vunpack.c.l.b16 %v50
  %v190 = vunpack.c.l.b16 %v51
  %v191 = vunpack.c.h.b16 %v51
  %v192 = vunpack.c.l.b16 %v52
  %v193 = vunpack.c.l.b16 %v53
  %v194 = vunpack.c.h.b16 %v53
  %v195 = vunpack.c.l.b16 %v54
  %v196 = vunpack.c.l.b16 %v55
  %v197 = vunpack.c.h.b16 %v55
  %v198 = vunpack.c.l.b16 %v56
  %v199 = vunpack.c.l.b16 %v57
  %v200 = vunpack.c.h.b16 %v57
  %v201 = vunpack.c.l.b16 %v58
  %v202 = vunpack.c.l.b16 %v59
  %v203 = vunpack.c.h.b16 %v59
  %v204 = vunpack.c.l.b16 %v60
  %v205 = vunpack.c.l.b16 %v61
  %v206 = vunpack.c.h.b16 %v61
  %v207 = vunpack.c.l.b16 %v62
  %v208 = vpack.c.b16 %v163, %v160
  %v209 = vpack.c.b16 %v164, %v161
  %v210 = vpack.c.b16 %v165, %v162
  %v211 = vpack.c.b16 %v169, %v166
  %v212 = vpack.c.b16 %v170, %v167
  %v213 = vpack.c.b16 %v171, %v168
  %v214 = vpack.c.b16 %v175, %v172
  %v215 = vpack.c.b16 %v176, %v173
  %v216 = vpack.c.b16 %v177, %v174
  %v217 = vpack.c.b16 %v181, %v178
  %v218 = vpack.c.b16 %v182, %v179
  %v219 = vpack.c.b16 %v183, %v180
  %v220 = vpack.c.b16 %v187, %v184
  %v221 = vpack.c.b16 %v188, %v185
  %v222 = vpack.c.b16 %v189, %v186
  %v223 = vpack.c.b16 %v193, %v190
  %v224 = vpack.c.b16 %v194, %v191
  %v225 = vpack.c.b16 %v195, %v192
  %v226 = vpack.c.b16 %v199, %v196
  %v227 = vpack.c.b16 %v200, %v197
  %v228 = vpack.c.b16 %v201, %v198
  %v229 = vpack.c.b16 %v205, %v202
  %v230 = vpack.c.b16 %v206, %v203
  %v231 = vpack.c.b16 %v207, %v204
  %256 = vmatprep.subr.bf16.mxu0 %v209
  %257 = vmatpush1.bf16.msra.mxu0 %v208
  %258 = vmatprep.subr.bf16.mxu0 %v212
  %259 = vmatpush1.bf16.msra.mxu0 %v211
  %260 = vmatprep.subr.bf16.mxu0 %v215
  %261 = vmatpush1.bf16.msra.mxu0 %v214
  %262 = vmatprep.subr.bf16.mxu0 %v218
  %263 = vmatpush1.bf16.msra.mxu0 %v217
  %264 = vmatprep.subr.bf16.mxu0 %v221
  %265 = vmatpush1.bf16.msra.mxu0 %v220
  %266 = vmatprep.subr.bf16.mxu0 %v224
  %267 = vmatpush1.bf16.msra.mxu0 %v223
  %268 = vmatprep.subr.bf16.mxu0 %v227
  %269 = vmatpush1.bf16.msra.mxu0 %v226
  %270 = vmatprep.subr.bf16.mxu0 %v230
  %271 = vmatpush1.bf16.msra.mxu0 %v229
  %272 = vmatprep.subr.bf16.mxu0 0
  %273 = vmatpush1.bf16.msra.mxu0 0
  %274 = vmatprep.subr.bf16.mxu0 0
  %275 = vmatpush1.bf16.msra.mxu0 0
  %276 = vmatprep.subr.bf16.mxu0 0
  %277 = vmatpush1.bf16.msra.mxu0 0
  %278 = vmatprep.subr.bf16.mxu0 0
  %279 = vmatpush1.bf16.msra.mxu0 0
  %280 = vmatprep.subr.bf16.mxu0 0
  %281 = vmatpush1.bf16.msra.mxu0 0
  %282 = vmatprep.subr.bf16.mxu0 0
  %283 = vmatpush1.bf16.msra.mxu0 0
  %284 = vmatprep.subr.bf16.mxu0 0
  %285 = vmatpush1.bf16.msra.mxu0 0
  %286 = vmatprep.subr.bf16.mxu0 0
  %287 = vmatpush1.bf16.msra.mxu0 0
  %288 = vmatprep.mubr.bf16.mxu0 0
  %289 = vmatmul.mubr.bf16.gmra.mrb[0].mxu0 %v112
  %v290 = vpop.f32.mrb[0].mxu0
  %v291 = vadd.f32 %v68, %v290
  %v292 = vpop.f32.mrb[0].mxu0
  %v293 = vadd.f32 %v72, %v292
  %v294 = vpop.f32.mrb[0].mxu0
  %v295 = vadd.f32 %v68, %v294
  %v296 = vpop.f32.mrb[0].mxu0
  %v297 = vadd.f32 %v72, %v296
  %298 = vmatprep.mubr.bf16.mxu0 0
  %299 = vmatmul.mubr.bf16.gmra.mrb[0].mxu0 %v113
  %v300 = vpop.f32.mrb[0].mxu0
  %v301 = vadd.f32 %v68, %v300
  %v302 = vpop.f32.mrb[0].mxu0
  %v303 = vadd.f32 %v72, %v302
  %v304 = vpop.f32.mrb[0].mxu0
  %v305 = vadd.f32 %v68, %v304
  %v306 = vpop.f32.mrb[0].mxu0
  %v307 = vadd.f32 %v72, %v306
  %308 = vmatprep.mubr.bf16.mxu0 0
  %309 = vmatmul.mubr.bf16.gmra.mrb[0].mxu0 %v114
  %v310 = vpop.f32.mrb[0].mxu0
  %v311 = vadd.f32 %v68, %v310
  %v312 = vpop.f32.mrb[0].mxu0
  %v313 = vadd.f32 %v72, %v312
  %v314 = vpop.f32.mrb[0].mxu0
  %v315 = vadd.f32 %v68, %v314
  %v316 = vpop.f32.mrb[0].mxu0
  %v317 = vadd.f32 %v72, %v316
  %318 = vmatprep.mubr.bf16.mxu0 0
  %319 = vmatmul.mubr.bf16.gmra.mrb[0].mxu0 %v115
  %v320 = vpop.f32.mrb[0].mxu0
  %v321 = vadd.f32 %v68, %v320
  %v322 = vpop.f32.mrb[0].mxu0
  %v323 = vadd.f32 %v72, %v322
  %v324 = vpop.f32.mrb[0].mxu0
  %v325 = vadd.f32 %v68, %v324
  %v326 = vpop.f32.mrb[0].mxu0
  %v327 = vadd.f32 %v72, %v326
  %328 = vmatprep.mubr.bf16.mxu0 0
  %329 = vmatmul.mubr.bf16.gmra.mrb[0].mxu0 %v116
  %v330 = vpop.f32.mrb[0].mxu0
  %v331 = vadd.f32 %v68, %v330
  %v332 = vpop.f32.mrb[0].mxu0
  %v333 = vadd.f32 %v72, %v332
  %v334 = vpop.f32.mrb[0].mxu0
  %v335 = vadd.f32 %v68, %v334
  %v336 = vpop.f32.mrb[0].mxu0
  %v337 = vadd.f32 %v72, %v336
  %338 = vmatprep.mubr.bf16.mxu0 0
  %339 = vmatmul.mubr.bf16.gmra.mrb[0].mxu0 %v117
  %v340 = vpop.f32.mrb[0].mxu0
  %v341 = vadd.f32 %v68, %v340
  %v342 = vpop.f32.mrb[0].mxu0
  %v343 = vadd.f32 %v72, %v342
  %v344 = vpop.f32.mrb[0].mxu0
  %v345 = vadd.f32 %v68, %v344
  %v346 = vpop.f32.mrb[0].mxu0
  %v347 = vadd.f32 %v72, %v346
  %348 = vmatprep.mubr.bf16.mxu0 0
  %349 = vmatmul.mubr.bf16.gmra.mrb[0].mxu0 %v118
  %v350 = vpop.f32.mrb[0].mxu0
  %v351 = vadd.f32 %v68, %v350
  %v352 = vpop.f32.mrb[0].mxu0
  %v353 = vadd.f32 %v72, %v352
  %v354 = vpop.f32.mrb[0].mxu0
  %v355 = vadd.f32 %v68, %v354
  %v356 = vpop.f32.mrb[0].mxu0
  %v357 = vadd.f32 %v72, %v356
  %358 = vmatprep.mubr.bf16.mxu0 0
  %359 = vmatmul.mubr.bf16.gmra.mrb[0].mxu0 %v119
  %v360 = vpop.f32.mrb[0].mxu0
  %v361 = vadd.f32 %v68, %v360
  %v362 = vpop.f32.mrb[0].mxu0
  %v363 = vadd.f32 %v72, %v362
  %v364 = vpop.f32.mrb[0].mxu0
  %v365 = vadd.f32 %v68, %v364
  %v366 = vpop.f32.mrb[0].mxu0
  %v367 = vadd.f32 %v72, %v366
  %368 = vdwg.mxu0
  %369 = vmatprep.subr.bf16.mxu0 0
  %370 = vmatpush1.bf16.msra.mxu0 %v210
  %371 = vmatprep.subr.bf16.mxu0 0
  %372 = vmatpush1.bf16.msra.mxu0 %v213
  %373 = vmatprep.subr.bf16.mxu0 0
  %374 = vmatpush1.bf16.msra.mxu0 %v216
  %375 = vmatprep.subr.bf16.mxu0 0
  %376 = vmatpush1.bf16.msra.mxu0 %v219
  %377 = vmatprep.subr.bf16.mxu0 0
  %378 = vmatpush1.bf16.msra.mxu0 %v222
  %379 = vmatprep.subr.bf16.mxu0 0
  %380 = vmatpush1.bf16.msra.mxu0 %v225
  %381 = vmatprep.subr.bf16.mxu0 0
  %382 = vmatpush1.bf16.msra.mxu0 %v228
  %383 = vmatprep.subr.bf16.mxu0 0
  %384 = vmatpush1.bf16.msra.mxu0 %v231
  %385 = vmatprep.subr.bf16.mxu0 0
  %386 = vmatpush1.bf16.msra.mxu0 0
  %387 = vmatprep.subr.bf16.mxu0 0
  %388 = vmatpush1.bf16.msra.mxu0 0
  %389 = vmatprep.subr.bf16.mxu0 0
  %390 = vmatpush1.bf16.msra.mxu0 0
  %391 = vmatprep.subr.bf16.mxu0 0
  %392 = vmatpush1.bf16.msra.mxu0 0
  %393 = vmatprep.subr.bf16.mxu0 0
  %394 = vmatpush1.bf16.msra.mxu0 0
  %395 = vmatprep.subr.bf16.mxu0 0
  %396 = vmatpush1.bf16.msra.mxu0 0
  %397 = vmatprep.subr.bf16.mxu0 0
  %398 = vmatpush1.bf16.msra.mxu0 0
  %399 = vmatprep.subr.bf16.mxu0 0
  %400 = vmatpush1.bf16.msra.mxu0 0
  %401 = vmatprep.mubr.bf16.mxu0 0
  %402 = vmatmul.mubr.bf16.gmra.mrb[0].mxu0 %v112
  %v403 = vpop.f32.mrb[0].mxu0
  %v404 = vadd.f32 %v76, %v403
  %v405 = vpop.f32.mrb[0].mxu0
  %v406 = vpop.f32.mrb[0].mxu0
  %v407 = vadd.f32 %v76, %v406
  %v408 = vpop.f32.mrb[0].mxu0
  %409 = vmatprep.mubr.bf16.mxu0 0
  %410 = vmatmul.mubr.bf16.gmra.mrb[0].mxu0 %v113
  %v411 = vpop.f32.mrb[0].mxu0
  %v412 = vadd.f32 %v76, %v411
  %v413 = vpop.f32.mrb[0].mxu0
  %v414 = vpop.f32.mrb[0].mxu0
  %v415 = vadd.f32 %v76, %v414
  %v416 = vpop.f32.mrb[0].mxu0
  %417 = vmatprep.mubr.bf16.mxu0 0
  %418 = vmatmul.mubr.bf16.gmra.mrb[0].mxu0 %v114
  %v419 = vpop.f32.mrb[0].mxu0
  %v420 = vadd.f32 %v76, %v419
  %v421 = vpop.f32.mrb[0].mxu0
  %v422 = vpop.f32.mrb[0].mxu0
  %v423 = vadd.f32 %v76, %v422
  %v424 = vpop.f32.mrb[0].mxu0
  %425 = vmatprep.mubr.bf16.mxu0 0
  %426 = vmatmul.mubr.bf16.gmra.mrb[0].mxu0 %v115
  %v427 = vpop.f32.mrb[0].mxu0
  %v428 = vadd.f32 %v76, %v427
  %v429 = vpop.f32.mrb[0].mxu0
  %v430 = vpop.f32.mrb[0].mxu0
  %v431 = vadd.f32 %v76, %v430
  %v432 = vpop.f32.mrb[0].mxu0
  %433 = vmatprep.mubr.bf16.mxu0 0
  %434 = vmatmul.mubr.bf16.gmra.mrb[0].mxu0 %v116
  %v435 = vpop.f32.mrb[0].mxu0
  %v436 = vadd.f32 %v76, %v435
  %v437 = vpop.f32.mrb[0].mxu0
  %v438 = vpop.f32.mrb[0].mxu0
  %v439 = vadd.f32 %v76, %v438
  %v440 = vpop.f32.mrb[0].mxu0
  %441 = vmatprep.mubr.bf16.mxu0 0
  %442 = vmatmul.mubr.bf16.gmra.mrb[0].mxu0 %v117
  %v443 = vpop.f32.mrb[0].mxu0
  %v444 = vadd.f32 %v76, %v443
  %v445 = vpop.f32.mrb[0].mxu0
  %v446 = vpop.f32.mrb[0].mxu0
  %v447 = vadd.f32 %v76, %v446
  %v448 = vpop.f32.mrb[0].mxu0
  %449 = vmatprep.mubr.bf16.mxu0 0
  %450 = vmatmul.mubr.bf16.gmra.mrb[0].mxu0 %v118
  %v451 = vpop.f32.mrb[0].mxu0
  %v452 = vadd.f32 %v76, %v451
  %v453 = vpop.f32.mrb[0].mxu0
  %v454 = vpop.f32.mrb[0].mxu0
  %v455 = vadd.f32 %v76, %v454
  %v456 = vpop.f32.mrb[0].mxu0
  %457 = vmatprep.mubr.bf16.mxu0 0
  %458 = vmatmul.mubr.bf16.gmra.mrb[0].mxu0 %v119
  %v459 = vpop.f32.mrb[0].mxu0
  %v460 = vadd.f32 %v76, %v459
  %v461 = vpop.f32.mrb[0].mxu0
  %v462 = vpop.f32.mrb[0].mxu0
  %v463 = vadd.f32 %v76, %v462
  %v464 = vpop.f32.mrb[0].mxu0
  %465 = vdwg.mxu0
  %466 = vst [vmem:[%s3] sm:$0xff] %v291
  %467 = vst [vmem:[%s3 + $0x8] sm:$0xff] %v293
  %468 = vst [vmem:[%s3 + $0x10] sm:$0xff] %v404
  %469 = vst [vmem:[%s3 + $0x18] sm:$0xff] %v295
  %470 = vst [vmem:[%s3 + $0x20] sm:$0xff] %v297
  %471 = vst [vmem:[%s3 + $0x28] sm:$0xff] %v407
  %472 = vst [vmem:[%s3 + $0x30] sm:$0xff] %v301
  %473 = vst [vmem:[%s3 + $0x38] sm:$0xff] %v303
  %474 = vst [vmem:[%s3 + $0x40] sm:$0xff] %v412
  %475 = vst [vmem:[%s3 + $0x48] sm:$0xff] %v305
  %476 = vst [vmem:[%s3 + $0x50] sm:$0xff] %v307
  %477 = vst [vmem:[%s3 + $0x58] sm:$0xff] %v415
  %478 = vst [vmem:[%s3 + $0x60] sm:$0xff] %v311
  %479 = vst [vmem:[%s3 + $0x68] sm:$0xff] %v313
  %480 = vst [vmem:[%s3 + $0x70] sm:$0xff] %v420
  %481 = vst [vmem:[%s3 + $0x78] sm:$0xff] %v315
  %482 = vst [vmem:[%s3 + $0x80] sm:$0xff] %v317
  %483 = vst [vmem:[%s3 + $0x88] sm:$0xff] %v423
  %484 = vst [vmem:[%s3 + $0x90] sm:$0xff] %v321
  %485 = vst [vmem:[%s3 + $0x98] sm:$0xff] %v323
  %486 = vst [vmem:[%s3 + $0xa0] sm:$0xff] %v428
  %487 = vst [vmem:[%s3 + $0xa8] sm:$0xff] %v325
  %488 = vst [vmem:[%s3 + $0xb0] sm:$0xff] %v327
  %489 = vst [vmem:[%s3 + $0xb8] sm:$0xff] %v431
  %490 = vst [vmem:[%s3 + $0xc0] sm:$0xff] %v331
  %491 = vst [vmem:[%s3 + $0xc8] sm:$0xff] %v333
  %492 = vst [vmem:[%s3 + $0xd0] sm:$0xff] %v436
  %493 = vst [vmem:[%s3 + $0xd8] sm:$0xff] %v335
  %494 = vst [vmem:[%s3 + $0xe0] sm:$0xff] %v337
  %495 = vst [vmem:[%s3 + $0xe8] sm:$0xff] %v439
  %496 = vst [vmem:[%s3 + $0xf0] sm:$0xff] %v341
  %497 = vst [vmem:[%s3 + $0xf8] sm:$0xff] %v343
  %498 = vst [vmem:[%s3 + $0x100] sm:$0xff] %v444
  %499 = vst [vmem:[%s3 + $0x108] sm:$0xff] %v345
  %500 = vst [vmem:[%s3 + $0x110] sm:$0xff] %v347
  %501 = vst [vmem:[%s3 + $0x118] sm:$0xff] %v447
  %502 = vst [vmem:[%s3 + $0x120] sm:$0xff] %v351
  %503 = vst [vmem:[%s3 + $0x128] sm:$0xff] %v353
  %504 = vst [vmem:[%s3 + $0x130] sm:$0xff] %v452
  %505 = vst [vmem:[%s3 + $0x138] sm:$0xff] %v355
  %506 = vst [vmem:[%s3 + $0x140] sm:$0xff] %v357
  %507 = vst [vmem:[%s3 + $0x148] sm:$0xff] %v455
  %508 = vst [vmem:[%s3 + $0x150] sm:$0xff] %v361
  %509 = vst [vmem:[%s3 + $0x158] sm:$0xff] %v363
  %510 = vst [vmem:[%s3 + $0x160] sm:$0xff] %v460
  %511 = vst [vmem:[%s3 + $0x168] sm:$0xff] %v365
  %512 = vst [vmem:[%s3 + $0x170] sm:$0xff] %v367
  %513 = vst [vmem:[%s3 + $0x178] sm:$0xff] %v463
  // Predicated region
  $region14: #{cellpose_sam_apply.27} parent=0 // pred_check
    _
  $region15: #{cellpose_sam_apply.27} parent=0 // pred_check_branch
    %515 = sbr.rel (0) target = $region17
  $region16: #{cellpose_sam_apply.27} parent=0 // pred_region
    _
  $region17: #{cellpose_sam_apply.27} parent=0 // pred_fallthru
    _
  // Predicated region
  $region18: #{cellpose_sam_apply.27} parent=0 // pred_check
    _
  $region19: #{cellpose_sam_apply.27} parent=0 // pred_check_branch
    %517 = sbr.rel (0) target = $region21
  $region20: #{cellpose_sam_apply.27} parent=0 // pred_region
    _
  $region21: #{cellpose_sam_apply.27} parent=0 // pred_fallthru
    _

// kernel: cellpose_sam_apply.26
$region0: #{cellpose_sam_apply.26}
  #allocation0 [shape = 'u32[]', space=smem, size = 0x4, offset = 0x4, fixed_abs, tag = 'smem constant byte address 0x4 - core index']
  #allocation1 [shape = 'u32[144,128]{1,0:T(1,128)}', space=vmem, size = 0x12000, scoped, tag = 'internal scratch']
  #allocation2 [shape = 'f32[128,128]{1,0:T(8,128)}', space=vmem, size = 0x10000, scoped, tag = 'scratch operand']
  %s0 = inlined_call_operand.vmem [shape: bf16[128,1152], index: 0, kind: input, shape index: {}]
  %s1 = inlined_call_operand.vmem [shape: bf16[1152,128], index: 1, kind: input, shape index: {}]
  %s2 = inlined_call_operand.vmem [shape: f32[1,128], index: 2, kind: input, shape index: {}]
  %s3 = inlined_call_operand.vmem [shape: f32[1,128], index: 3, kind: input, shape index: {}]
  %s4 = inlined_call_operand.vmem [shape: f32[1,128], index: 4, kind: input, shape index: {}]
  %s5 = inlined_call_operand.vmem [shape: bf16[128,128], index: 5, kind: output, shape index: {}]
  %s6 = sld [smem:[#allocation0]]
  $region87: #{cellpose_sam_apply.26} parent=0
    _
  %s8 = ssub.s32 1, %s6
  %s9 = scalar_select 0, %s8, %s6
  $region1: #{cellpose_sam_apply.26} parent=0
    #allocation3 [shape = 'u8[196608]{0}', space=vmem, size = 0x30000, scoped, tag = 'input window, operand 0']
    loop: start=0, step=1, limit=5
    $region2: #{cellpose_sam_apply.26} parent=1 // loop_pre_header
      _
    $region3: #{cellpose_sam_apply.26} parent=1 // loop_header
      %s11 = sphi 0, %s15
      %p12 = scmp.ge.s32.totalorder %s11, 5
      %s18 = sphi 0, %s37
      %s19 = sphi 0, %s33
      %s20 = sphi 0, %s29
      %s21 = sphi 0, %s18
      %s22 = sphi 0, %s19
      %s23 = sphi 0, %s20
      %s24 = sphi 0, %s21
      %s25 = sphi 0, %s22
      %s26 = sphi 0, %s23
      %s42 = sphi 0, %s44
      %s45 = sphi 0, %s42
      %s46 = sphi 0, %s45
      %s62 = sphi 0, %s46
      %s70 = sphi 0, %s72
      %s73 = sphi 0, %s70
      %s74 = sphi 0, %s73
      %s90 = sphi 0, %s74
      %s96 = sphi 0, %s98
      %s99 = sphi 0, %s96
      %s100 = sphi 0, %s99
      %s116 = sphi 0, %s100
      %s122 = sphi 0, %s124
      %s125 = sphi 0, %s122
      %s126 = sphi 0, %s125
      %s142 = sphi 0, %s126
      %s148 = sphi 0, %s150
      %s151 = sphi 0, %s148
      %s152 = sphi 0, %s151
      %s168 = sphi 0, %s152
      %s176 = sphi 0, %s178
      %s179 = sphi 0, %s176
      %s180 = sphi 0, %s179
      %s196 = sphi 0, %s180
    $region4: #{cellpose_sam_apply.26} parent=1 // loop_header_branch
      %14 = sbr.rel (%p12) target = $region8
    $region5: #{cellpose_sam_apply.26} parent=1 // loop_body
      %s16 = ssub.s32 %s11, 1
      %s17 = ssub.s32 %s11, 2
      %s27 = sadd.s32 1, %s20
      %p28 = scmp.ge.s32.totalorder %s27, 3
      %s29 = scalar_select %p28, 0, %s27
      %s30 = sadd.s32 1, %s19
      %s31 = scalar_select %p28, %s30, %s19
      %p32 = scmp.ge.s32.totalorder %s31, 1
      %s33 = scalar_select %p32, 0, %s31
      %s34 = sadd.s32 1, %s18
      %s35 = scalar_select %p32, %s34, %s18
      %p36 = scmp.ge.s32.totalorder %s35, 1
      %s37 = scalar_select %p36, 0, %s35
      %s38 = ssub.s32 %s18, %s37
      %s39 = ssub.s32 %s20, %s29
      %s40 = sor.u32 %s38, %s39
      %p41 = scmp.eq.s32.totalorder %s40, 0
      %s43 = sadd.s32 %s42, 1
      %s44 = scalar_select %p41, %s42, %s43
      %p47 = pneg %p41
      %p48 = scmp.eq.s32.totalorder %s11, 2
      %p49 = por %p47, %p48
      %p50 = scmp.ne.s32.totalorder %s42, %s45
      %p51 = scmp.eq.s32.totalorder %s11, 0
      %p52 = por %p50, %p51
      %p53 = scmp.ne.s32.totalorder %s42, %s45
      %p54 = scmp.eq.s32.totalorder %s16, 2
      %p55 = por %p53, %p54
      %p56 = scmp.ne.s32.totalorder %s45, %s46
      %p57 = scmp.eq.s32.totalorder %s16, 0
      %p58 = por %p56, %p57
      %p59 = scmp.ne.s32.totalorder %s45, %s46
      %p60 = scmp.eq.s32.totalorder %s17, 2
      %p61 = por %p59, %p60
      %p63 = scmp.ne.s32.totalorder %s46, %s62
      %p64 = scmp.eq.s32.totalorder %s17, 0
      %p65 = por %p63, %p64
      %s66 = ssub.s32 %s20, %s29
      %s67 = ssub.s32 %s19, %s33
      %s68 = sor.u32 %s66, %s67
      %p69 = scmp.eq.s32.totalorder %s68, 0
      %s71 = sadd.s32 %s70, 1
      %s72 = scalar_select %p69, %s70, %s71
      %p75 = pneg %p69
      %p76 = scmp.eq.s32.totalorder %s11, 2
      %p77 = por %p75, %p76
      %p78 = scmp.ne.s32.totalorder %s70, %s73
      %p79 = scmp.eq.s32.totalorder %s11, 0
      %p80 = por %p78, %p79
      %p81 = scmp.ne.s32.totalorder %s70, %s73
      %p82 = scmp.eq.s32.totalorder %s16, 2
      %p83 = por %p81, %p82
      %p84 = scmp.ne.s32.totalorder %s73, %s74
      %p85 = scmp.eq.s32.totalorder %s16, 0
      %p86 = por %p84, %p85
      %p87 = scmp.ne.s32.totalorder %s73, %s74
      %p88 = scmp.eq.s32.totalorder %s17, 2
      %p89 = por %p87, %p88
      %p91 = scmp.ne.s32.totalorder %s74, %s90
      %p92 = scmp.eq.s32.totalorder %s17, 0
      %p93 = por %p91, %p92
      %s94 = ssub.s32 %s19, %s33
      %p95 = scmp.eq.s32.totalorder %s94, 0
      %s97 = sadd.s32 %s96, 1
      %s98 = scalar_select %p95, %s96, %s97
      %p101 = pneg %p95
      %p102 = scmp.eq.s32.totalorder %s11, 2
      %p103 = por %p101, %p102
      %p104 = scmp.ne.s32.totalorder %s96, %s99
      %p105 = scmp.eq.s32.totalorder %s11, 0
      %p106 = por %p104, %p105
      %p107 = scmp.ne.s32.totalorder %s96, %s99
      %p108 = scmp.eq.s32.totalorder %s16, 2
      %p109 = por %p107, %p108
      %p110 = scmp.ne.s32.totalorder %s99, %s100
      %p111 = scmp.eq.s32.totalorder %s16, 0
      %p112 = por %p110, %p111
      %p113 = scmp.ne.s32.totalorder %s99, %s100
      %p114 = scmp.eq.s32.totalorder %s17, 2
      %p115 = por %p113, %p114
      %p117 = scmp.ne.s32.totalorder %s100, %s116
      %p118 = scmp.eq.s32.totalorder %s17, 0
      %p119 = por %p117, %p118
      %s120 = ssub.s32 %s19, %s33
      %p121 = scmp.eq.s32.totalorder %s120, 0
      %s123 = sadd.s32 %s122, 1
      %s124 = scalar_select %p121, %s122, %s123
      %p127 = pneg %p121
      %p128 = scmp.eq.s32.totalorder %s11, 2
      %p129 = por %p127, %p128
      %p130 = scmp.ne.s32.totalorder %s122, %s125
      %p131 = scmp.eq.s32.totalorder %s11, 0
      %p132 = por %p130, %p131
      %p133 = scmp.ne.s32.totalorder %s122, %s125
      %p134 = scmp.eq.s32.totalorder %s16, 2
      %p135 = por %p133, %p134
      %p136 = scmp.ne.s32.totalorder %s125, %s126
      %p137 = scmp.eq.s32.totalorder %s16, 0
      %p138 = por %p136, %p137
      %p139 = scmp.ne.s32.totalorder %s125, %s126
      %p140 = scmp.eq.s32.totalorder %s17, 2
      %p141 = por %p139, %p140
      %p143 = scmp.ne.s32.totalorder %s126, %s142
      %p144 = scmp.eq.s32.totalorder %s17, 0
      %p145 = por %p143, %p144
      %s146 = ssub.s32 %s19, %s33
      %p147 = scmp.eq.s32.totalorder %s146, 0
      %s149 = sadd.s32 %s148, 1
      %s150 = scalar_select %p147, %s148, %s149
      %p153 = pneg %p147
      %p154 = scmp.eq.s32.totalorder %s11, 2
      %p155 = por %p153, %p154
      %p156 = scmp.ne.s32.totalorder %s148, %s151
      %p157 = scmp.eq.s32.totalorder %s11, 0
      %p158 = por %p156, %p157
      %p159 = scmp.ne.s32.totalorder %s148, %s151
      %p160 = scmp.eq.s32.totalorder %s16, 2
      %p161 = por %p159, %p160
      %p162 = scmp.ne.s32.totalorder %s151, %s152
      %p163 = scmp.eq.s32.totalorder %s16, 0
      %p164 = por %p162, %p163
      %p165 = scmp.ne.s32.totalorder %s151, %s152
      %p166 = scmp.eq.s32.totalorder %s17, 2
      %p167 = por %p165, %p166
      %p169 = scmp.ne.s32.totalorder %s152, %s168
      %p170 = scmp.eq.s32.totalorder %s17, 0
      %p171 = por %p169, %p170
      %s172 = ssub.s32 %s18, %s37
      %s173 = ssub.s32 %s19, %s33
      %s174 = sor.u32 %s172, %s173
      %p175 = scmp.eq.s32.totalorder %s174, 0
      %s177 = sadd.s32 %s176, 1
      %s178 = scalar_select %p175, %s176, %s177
      %p181 = pneg %p175
      %p182 = scmp.eq.s32.totalorder %s11, 2
      %p183 = por %p181, %p182
      %p184 = scmp.ne.s32.totalorder %s176, %s179
      %p185 = scmp.eq.s32.totalorder %s11, 0
      %p186 = por %p184, %p185
      %p187 = scmp.ne.s32.totalorder %s176, %s179
      %p188 = scmp.eq.s32.totalorder %s16, 2
      %p189 = por %p187, %p188
      %p190 = scmp.ne.s32.totalorder %s179, %s180
      %p191 = scmp.eq.s32.totalorder %s16, 0
      %p192 = por %p190, %p191
      %p193 = scmp.ne.s32.totalorder %s179, %s180
      %p194 = scmp.eq.s32.totalorder %s17, 2
      %p195 = por %p193, %p194
      %p197 = scmp.ne.s32.totalorder %s180, %s196
      %p198 = scmp.eq.s32.totalorder %s17, 0
      %p199 = por %p197, %p198
      %p200 = scmp.le.s32.totalorder 1, %s11
      %p201 = scmp.lt.s32.totalorder %s11, 4
      %p202 = pnand %p200, %p201
      %p203 = pneg %p202
      // Predicated region
      $region9: #{cellpose_sam_apply.26} parent=5 // pred_check
        _
      $region10: #{cellpose_sam_apply.26} parent=5 // pred_check_branch
        %205 = sbr.rel (%p202) target = $region12
      $region11: #{cellpose_sam_apply.26} parent=5 // pred_region
        %s206 = ssub.s32 %s11, 1
        // Predicated region
        $region13: #{cellpose_sam_apply.26} parent=11 // pred_check
          %p207 = pneg %p112
        $region14: #{cellpose_sam_apply.26} parent=11 // pred_check_branch
          %209 = sbr.rel (%p207) target = $region16
        $region15: #{cellpose_sam_apply.26} parent=11 // pred_region
          %p210 = scmp.lt.s32.totalorder %s22, 0
          %s211 = scalar_select %p210, %s22, 0
          %s212 = scalar_lea.vmem %s2, %s211
        $region16: #{cellpose_sam_apply.26} parent=11 // pred_fallthru
          _
        // Predicated region
        $region17: #{cellpose_sam_apply.26} parent=11 // pred_check
          %p213 = pneg %p138
        $region18: #{cellpose_sam_apply.26} parent=11 // pred_check_branch
          %215 = sbr.rel (%p213) target = $region20
        $region19: #{cellpose_sam_apply.26} parent=11 // pred_region
          %p216 = scmp.lt.s32.totalorder %s22, 0
          %s217 = scalar_select %p216, %s22, 0
          %s218 = scalar_lea.vmem %s3, %s217
        $region20: #{cellpose_sam_apply.26} parent=11 // pred_fallthru
          _
        // Predicated region
        $region21: #{cellpose_sam_apply.26} parent=11 // pred_check
          %p219 = pneg %p164
        $region22: #{cellpose_sam_apply.26} parent=11 // pred_check_branch
          %221 = sbr.rel (%p219) target = $region24
        $region23: #{cellpose_sam_apply.26} parent=11 // pred_region
          %p222 = scmp.lt.s32.totalorder %s22, 0
          %s223 = scalar_select %p222, %s22, 0
          %s224 = scalar_lea.vmem %s4, %s223
        $region24: #{cellpose_sam_apply.26} parent=11 // pred_fallthru
          _
      $region12: #{cellpose_sam_apply.26} parent=5 // pred_fallthru
        _
      %p225 = scmp.lt.s32.totalorder %s11, 3
      // Predicated region
      $region25: #{cellpose_sam_apply.26} parent=5 // pred_check
        %p226 = pneg %p225
      $region26: #{cellpose_sam_apply.26} parent=5 // pred_check_branch
        %228 = sbr.rel (%p226) target = $region28
      $region27: #{cellpose_sam_apply.26} parent=5 // pred_region
        // Predicated region
        $region29: #{cellpose_sam_apply.26} parent=27 // pred_check
          %p229 = pneg %p52
        $region30: #{cellpose_sam_apply.26} parent=27 // pred_check_branch
          %231 = sbr.rel (%p229) target = $region32
        $region31: #{cellpose_sam_apply.26} parent=27 // pred_region
          %s232 = sand.u32 %s42, 1
          %s233 = sand.u32 %s42, 1
          %s234 = smul.addr %s233, 192
          %s235 = scalar_lea.vmem [#allocation3], %s234
          %s236 = smul.u32 16, %s18
          %s237 = smul.u32 3, %s20
          %s238 = smul.addr %s236, 9
          %s239 = sadd.s32 %s237, %s238
          %s240 = smul.addr %s239, 4
          %s241 = scalar_lea.vmem %s0, %s240
          // Predicated region
          $region33: #{cellpose_sam_apply.26} parent=31 // pred_check
            _
          $region34: #{cellpose_sam_apply.26} parent=31 // pred_check_branch
            %243 = sbr.rel (0) target = $region36
          $region35: #{cellpose_sam_apply.26} parent=31 // pred_region
            // Predicated region
            $region37: #{cellpose_sam_apply.26} parent=35 // pred_check
              _
            $region38: #{cellpose_sam_apply.26} parent=35 // pred_check_branch
              %245 = sbr.rel (0) target = $region40
            $region39: #{cellpose_sam_apply.26} parent=35 // pred_region
              %s246 = scalar_lea.vmem %s241, 8
              %s247 = scalar_lea.vmem %s235, 8 [#allocation3]
              loop: start=0, step=1, limit=1
              $region41: #{cellpose_sam_apply.26} parent=39 // loop_pre_header
                _
              $region42: #{cellpose_sam_apply.26} parent=39 // loop_header
                %s249 = sphi 0, %s253
                %p250 = scmp.ge.s32.totalorder %s249, 1
                %s254 = sphi %s241, %s241
                %s255 = sphi %s235, %s235
              $region43: #{cellpose_sam_apply.26} parent=39 // loop_header_branch
                %252 = sbr.rel (%p250) target = $region47
              $region44: #{cellpose_sam_apply.26} parent=39 // loop_body
                %v256 = vld [vmem:[%s254] sm:$0xff]
                %257 = vst [vmem:[%s255] sm:$0xff] %v256
                %v258 = vld [vmem:[%s254 + $0x24] sm:$0xff]
                %259 = vst [vmem:[%s255 + $0xc] sm:$0xff] %v258
                %v260 = vld [vmem:[%s254 + $0x48] sm:$0xff]
                %261 = vst [vmem:[%s255 + $0x18] sm:$0xff] %v260
                %v262 = vld [vmem:[%s254 + $0x6c] sm:$0xff]
                %263 = vst [vmem:[%s255 + $0x24] sm:$0xff] %v262
                %v264 = vld [vmem:[%s254 + $0x90] sm:$0xff]
                %265 = vst [vmem:[%s255 + $0x30] sm:$0xff] %v264
                %v266 = vld [vmem:[%s254 + $0xb4] sm:$0xff]
                %267 = vst [vmem:[%s255 + $0x3c] sm:$0xff] %v266
                %v268 = vld [vmem:[%s254 + $0xd8] sm:$0xff]
                %269 = vst [vmem:[%s255 + $0x48] sm:$0xff] %v268
                %v270 = vld [vmem:[%s254 + $0xfc] sm:$0xff]
                %271 = vst [vmem:[%s255 + $0x54] sm:$0xff] %v270
                %v272 = vld [vmem:[%s254 + $0x120] sm:$0xff]
                %273 = vst [vmem:[%s255 + $0x60] sm:$0xff] %v272
                %v274 = vld [vmem:[%s254 + $0x144] sm:$0xff]
                %275 = vst [vmem:[%s255 + $0x6c] sm:$0xff] %v274
                %v276 = vld [vmem:[%s254 + $0x168] sm:$0xff]
                %277 = vst [vmem:[%s255 + $0x78] sm:$0xff] %v276
                %v278 = vld [vmem:[%s254 + $0x18c] sm:$0xff]
                %279 = vst [vmem:[%s255 + $0x84] sm:$0xff] %v278
                %v280 = vld [vmem:[%s254 + $0x1b0] sm:$0xff]
                %281 = vst [vmem:[%s255 + $0x90] sm:$0xff] %v280
                %v282 = vld [vmem:[%s254 + $0x1d4] sm:$0xff]
                %283 = vst [vmem:[%s255 + $0x9c] sm:$0xff] %v282
                %v284 = vld [vmem:[%s254 + $0x1f8] sm:$0xff]
                %285 = vst [vmem:[%s255 + $0xa8] sm:$0xff] %v284
                %v286 = vld [vmem:[%s254 + $0x21c] sm:$0xff]
                %287 = vst [vmem:[%s255 + $0xb4] sm:$0xff] %v286
              $region45: #{cellpose_sam_apply.26} parent=39 // loop_footer
                %s253 = sadd.s32 1, %s249
              $region46: #{cellpose_sam_apply.26} parent=39 // loop_footer_branch
                %248 = sbr.rel target = $region42
              $region47: #{cellpose_sam_apply.26} parent=39 // loop_exit
                _
              loop: start=0, step=1, limit=1
              $region48: #{cellpose_sam_apply.26} parent=39 // loop_pre_header
                _
              $region49: #{cellpose_sam_apply.26} parent=39 // loop_header
                %s290 = sphi 0, %s294
                %p291 = scmp.ge.s32.totalorder %s290, 1
                %s295 = sphi %s246, %s246
                %s296 = sphi %s247, %s247
              $region50: #{cellpose_sam_apply.26} parent=39 // loop_header_branch
                %293 = sbr.rel (%p291) target = $region54
              $region51: #{cellpose_sam_apply.26} parent=39 // loop_body
                %v297 = vld [vmem:[%s295] sm:$0xf]
                %298 = vst [vmem:[%s296] sm:$0xf] %v297
                %v299 = vld [vmem:[%s295 + $0x24] sm:$0xf]
                %300 = vst [vmem:[%s296 + $0xc] sm:$0xf] %v299
                %v301 = vld [vmem:[%s295 + $0x48] sm:$0xf]
                %302 = vst [vmem:[%s296 + $0x18] sm:$0xf] %v301
                %v303 = vld [vmem:[%s295 + $0x6c] sm:$0xf]
                %304 = vst [vmem:[%s296 + $0x24] sm:$0xf] %v303
                %v305 = vld [vmem:[%s295 + $0x90] sm:$0xf]
                %306 = vst [vmem:[%s296 + $0x30] sm:$0xf] %v305
                %v307 = vld [vmem:[%s295 + $0xb4] sm:$0xf]
                %308 = vst [vmem:[%s296 + $0x3c] sm:$0xf] %v307
                %v309 = vld [vmem:[%s295 + $0xd8] sm:$0xf]
                %310 = vst [vmem:[%s296 + $0x48] sm:$0xf] %v309
                %v311 = vld [vmem:[%s295 + $0xfc] sm:$0xf]
                %312 = vst [vmem:[%s296 + $0x54] sm:$0xf] %v311
                %v313 = vld [vmem:[%s295 + $0x120] sm:$0xf]
                %314 = vst [vmem:[%s296 + $0x60] sm:$0xf] %v313
                %v315 = vld [vmem:[%s295 + $0x144] sm:$0xf]
                %316 = vst [vmem:[%s296 + $0x6c] sm:$0xf] %v315
                %v317 = vld [vmem:[%s295 + $0x168] sm:$0xf]
                %318 = vst [vmem:[%s296 + $0x78] sm:$0xf] %v317
                %v319 = vld [vmem:[%s295 + $0x18c] sm:$0xf]
                %320 = vst [vmem:[%s296 + $0x84] sm:$0xf] %v319
                %v321 = vld [vmem:[%s295 + $0x1b0] sm:$0xf]
                %322 = vst [vmem:[%s296 + $0x90] sm:$0xf] %v321
                %v323 = vld [vmem:[%s295 + $0x1d4] sm:$0xf]
                %324 = vst [vmem:[%s296 + $0x9c] sm:$0xf] %v323
                %v325 = vld [vmem:[%s295 + $0x1f8] sm:$0xf]
                %326 = vst [vmem:[%s296 + $0xa8] sm:$0xf] %v325
                %v327 = vld [vmem:[%s295 + $0x21c] sm:$0xf]
                %328 = vst [vmem:[%s296 + $0xb4] sm:$0xf] %v327
              $region52: #{cellpose_sam_apply.26} parent=39 // loop_footer
                %s294 = sadd.s32 1, %s290
              $region53: #{cellpose_sam_apply.26} parent=39 // loop_footer_branch
                %289 = sbr.rel target = $region49
              $region54: #{cellpose_sam_apply.26} parent=39 // loop_exit
                _
            $region40: #{cellpose_sam_apply.26} parent=35 // pred_fallthru
              _
          $region36: #{cellpose_sam_apply.26} parent=31 // pred_fallthru
            _
          %329 = vnop
        $region32: #{cellpose_sam_apply.26} parent=27 // pred_fallthru
          _
        // Predicated region
        $region55: #{cellpose_sam_apply.26} parent=27 // pred_check
          %p330 = pneg %p80
        $region56: #{cellpose_sam_apply.26} parent=27 // pred_check_branch
          %332 = sbr.rel (%p330) target = $region58
        $region57: #{cellpose_sam_apply.26} parent=27 // pred_region
          %s333 = smul.u32 48, %s20
          %p334 = scmp.lt.s32.totalorder %s333, 143
          %s335 = scalar_select %p334, %s333, 143
          %p336 = scmp.lt.s32.totalorder %s19, 0
          %s337 = scalar_select %p336, %s19, 0
          %s338 = sadd.s32 %s337, %s335
          %s339 = smul.addr %s338, 4
          %s340 = scalar_lea.vmem %s1, %s339
          %s341 = smul.u32 48, %s20
        $region58: #{cellpose_sam_apply.26} parent=27 // pred_fallthru
          _
      $region28: #{cellpose_sam_apply.26} parent=5 // pred_fallthru
        _
      %p342 = scmp.le.s32.totalorder 1, %s11
      %p343 = scmp.lt.s32.totalorder %s11, 4
      %p344 = pnand %p342, %p343
      %p345 = pneg %p344
      // Predicated region
      $region59: #{cellpose_sam_apply.26} parent=5 // pred_check
        _
      $region60: #{cellpose_sam_apply.26} parent=5 // pred_check_branch
        %347 = sbr.rel (%p344) target = $region62
      $region61: #{cellpose_sam_apply.26} parent=5 // pred_region
        %s348 = ssub.s32 %s11, 1
        %s349 = sand.u32 %s45, 1
        %s350 = sand.u32 %s45, 1
        %s351 = smul.addr %s350, 192
        %s352 = scalar_lea.vmem [#allocation3], %s351
        // Predicated region
        $region63: #{cellpose_sam_apply.26} parent=61 // pred_check
          %p353 = pneg %p58
        $region64: #{cellpose_sam_apply.26} parent=61 // pred_check_branch
          %355 = sbr.rel (%p353) target = $region66
        $region65: #{cellpose_sam_apply.26} parent=61 // pred_region
          _
        $region66: #{cellpose_sam_apply.26} parent=61 // pred_fallthru
          _
        %s356 = sand.u32 %s45, 1
        %s357 = sand.u32 %s45, 1
        %s358 = smul.addr %s357, 192
        %s359 = scalar_lea.vmem [#allocation3], %s358
        %p360 = pneg %p58
        %p361 = pneg %p55
        %s362 = smul.u32 48, %s23
        %p363 = scmp.lt.s32.totalorder %s362, 143
        %s364 = scalar_select %p363, %s362, 143
        %p365 = scmp.lt.s32.totalorder %s22, 0
        %s366 = scalar_select %p365, %s22, 0
        %s367 = sadd.s32 %s366, %s364
        %s368 = smul.addr %s367, 4
        %s369 = scalar_lea.vmem %s1, %s368
        %p370 = pneg %p86
        %p371 = pneg %p83
        %p372 = scmp.lt.s32.totalorder %s22, 0
        %s373 = scalar_select %p372, %s22, 0
        %s374 = scalar_lea.vmem %s2, %s373
        %p375 = pneg %p112
        %p376 = pneg %p109
        %p377 = scmp.lt.s32.totalorder %s22, 0
        %s378 = scalar_select %p377, %s22, 0
        %s379 = scalar_lea.vmem %s3, %s378
        %p380 = pneg %p138
        %p381 = pneg %p135
        %p382 = scmp.lt.s32.totalorder %s22, 0
        %s383 = scalar_select %p382, %s22, 0
        %s384 = scalar_lea.vmem %s4, %s383
        %p385 = pneg %p164
        %p386 = pneg %p161
        %p387 = pneg %p192
        %p388 = pneg %p189
        %s389 = smul.u32 16, %s21
        %p390 = scmp.lt.s32.totalorder %s389, 15
        %s391 = scalar_select %p390, %s389, 15
        %p392 = scmp.lt.s32.totalorder %s22, 0
        %s393 = scalar_select %p392, %s22, 0
        %s394 = sadd.s32 %s393, %s391
        %s395 = smul.addr %s394, 4
        %s396 = scalar_lea.vmem %s5, %s395
        %s397 = smul.u32 16, %s21
        %s398 = smul.u32 3, %s23
        %s399 = smul.u32 48, %s23
        %p400 = scmp.lt.s32.totalorder %s399, 143
        %s401 = scalar_select %p400, %s399, 143
        %p402 = scmp.lt.s32.totalorder %s22, 0
        %s403 = scalar_select %p402, %s22, 0
        %s404 = sadd.s32 %s403, %s401
        %s405 = smul.addr %s404, 4
        %s406 = scalar_lea.vmem %s1, %s405
        %s407 = smul.u32 48, %s23
        %p408 = scmp.lt.s32.totalorder %s22, 0
        %s409 = scalar_select %p408, %s22, 0
        %s410 = scalar_lea.vmem %s2, %s409
        %p411 = scmp.lt.s32.totalorder %s22, 0
        %s412 = scalar_select %p411, %s22, 0
        %s413 = scalar_lea.vmem %s3, %s412
        %p414 = scmp.lt.s32.totalorder %s22, 0
        %s415 = scalar_select %p414, %s22, 0
        %s416 = scalar_lea.vmem %s4, %s415
        %s417 = smul.u32 16, %s21
        %p418 = scmp.lt.s32.totalorder %s417, 15
        %s419 = scalar_select %p418, %s417, 15
        %p420 = scmp.lt.s32.totalorder %s22, 0
        %s421 = scalar_select %p420, %s22, 0
        %s422 = sadd.s32 %s421, %s419
        %s423 = smul.addr %s422, 4
        %s424 = scalar_lea.vmem %s5, %s423
        %s425 = smul.u32 16, %s21
        %v427 = vld [vmem:[%s352] sm:$0xff]
        %v428 = vld [vmem:[%s352 + $0x8] sm:$0xf]
        %v429 = vld [vmem:[%s352 + $0xc] sm:$0xff]
        %v430 = vld [vmem:[%s352 + $0x14] sm:$0xf]
        %v431 = vld [vmem:[%s352 + $0x18] sm:$0xff]
        %v432 = vld [vmem:[%s352 + $0x20] sm:$0xf]
        %v433 = vld [vmem:[%s352 + $0x24] sm:$0xff]
        %v434 = vld [vmem:[%s352 + $0x2c] sm:$0xf]
        %v435 = vld [vmem:[%s352 + $0x30] sm:$0xff]
        %v436 = vld [vmem:[%s352 + $0x38] sm:$0xf]
        %v437 = vld [vmem:[%s352 + $0x3c] sm:$0xff]
        %v438 = vld [vmem:[%s352 + $0x44] sm:$0xf]
        %v439 = vld [vmem:[%s352 + $0x48] sm:$0xff]
        %v440 = vld [vmem:[%s352 + $0x50] sm:$0xf]
        %v441 = vld [vmem:[%s352 + $0x54] sm:$0xff]
        %v442 = vld [vmem:[%s352 + $0x5c] sm:$0xf]
        %v443 = vld [vmem:[%s352 + $0x60] sm:$0xff]
        %v444 = vld [vmem:[%s352 + $0x68] sm:$0xf]
        %v445 = vld [vmem:[%s352 + $0x6c] sm:$0xff]
        %v446 = vld [vmem:[%s352 + $0x74] sm:$0xf]
        %v447 = vld [vmem:[%s352 + $0x78] sm:$0xff]
        %v448 = vld [vmem:[%s352 + $0x80] sm:$0xf]
        %v449 = vld [vmem:[%s352 + $0x84] sm:$0xff]
        %v450 = vld [vmem:[%s352 + $0x8c] sm:$0xf]
        %v451 = vld [vmem:[%s352 + $0x90] sm:$0xff]
        %v452 = vld [vmem:[%s352 + $0x98] sm:$0xf]
        %v453 = vld [vmem:[%s352 + $0x9c] sm:$0xff]
        %v454 = vld [vmem:[%s352 + $0xa4] sm:$0xf]
        %v455 = vld [vmem:[%s352 + $0xa8] sm:$0xff]
        %v456 = vld [vmem:[%s352 + $0xb0] sm:$0xf]
        %v457 = vld [vmem:[%s352 + $0xb4] sm:$0xff]
        %v458 = vld [vmem:[%s352 + $0xbc] sm:$0xf]
        %v459 = vld [vmem:[%s406] sm:$0xf]
        %v460 = vld [vmem:[%s406 + $0x4] sm:$0xf]
        %v461 = vld [vmem:[%s406 + $0x8] sm:$0xf]
        %v462 = vld [vmem:[%s406 + $0xc] sm:$0xf]
        %v463 = vld [vmem:[%s406 + $0x10] sm:$0xf]
        %v464 = vld [vmem:[%s406 + $0x14] sm:$0xf]
        %v465 = vld [vmem:[%s406 + $0x18] sm:$0xf]
        %v466 = vld [vmem:[%s406 + $0x1c] sm:$0xf]
        %v467 = vld [vmem:[%s406 + $0x20] sm:$0xf]
        %v468 = vld [vmem:[%s406 + $0x24] sm:$0xf]
        %v469 = vld [vmem:[%s406 + $0x28] sm:$0xf]
        %v470 = vld [vmem:[%s406 + $0x2c] sm:$0xf]
        %v471 = vld [vmem:[%s406 + $0x30] sm:$0xf]
        %v472 = vld [vmem:[%s406 + $0x34] sm:$0xf]
        %v473 = vld [vmem:[%s406 + $0x38] sm:$0xf]
        %v474 = vld [vmem:[%s406 + $0x3c] sm:$0xf]
        %v475 = vld [vmem:[%s406 + $0x40] sm:$0xf]
        %v476 = vld [vmem:[%s406 + $0x44] sm:$0xf]
        %v477 = vld [vmem:[%s406 + $0x48] sm:$0xf]
        %v478 = vld [vmem:[%s406 + $0x4c] sm:$0xf]
        %v479 = vld [vmem:[%s406 + $0x50] sm:$0xf]
        %v480 = vld [vmem:[%s406 + $0x54] sm:$0xf]
        %v481 = vld [vmem:[%s406 + $0x58] sm:$0xf]
        %v482 = vld [vmem:[%s406 + $0x5c] sm:$0xf]
        %v483 = vld [vmem:[%s406 + $0x60] sm:$0xf]
        %v484 = vld [vmem:[%s406 + $0x64] sm:$0xf]
        %v485 = vld [vmem:[%s406 + $0x68] sm:$0xf]
        %v486 = vld [vmem:[%s406 + $0x6c] sm:$0xf]
        %v487 = vld [vmem:[%s406 + $0x70] sm:$0xf]
        %v488 = vld [vmem:[%s406 + $0x74] sm:$0xf]
        %v489 = vld [vmem:[%s406 + $0x78] sm:$0xf]
        %v490 = vld [vmem:[%s406 + $0x7c] sm:$0xf]
        %v491 = vld [vmem:[%s406 + $0x80] sm:$0xf]
        %v492 = vld [vmem:[%s406 + $0x84] sm:$0xf]
        %v493 = vld [vmem:[%s406 + $0x88] sm:$0xf]
        %v494 = vld [vmem:[%s406 + $0x8c] sm:$0xf]
        %v495 = vld [vmem:[%s406 + $0x90] sm:$0xf]
        %v496 = vld [vmem:[%s406 + $0x94] sm:$0xf]
        %v497 = vld [vmem:[%s406 + $0x98] sm:$0xf]
        %v498 = vld [vmem:[%s406 + $0x9c] sm:$0xf]
        %v499 = vld [vmem:[%s406 + $0xa0] sm:$0xf]
        %v500 = vld [vmem:[%s406 + $0xa4] sm:$0xf]
        %v501 = vld [vmem:[%s406 + $0xa8] sm:$0xf]
        %v502 = vld [vmem:[%s406 + $0xac] sm:$0xf]
        %v503 = vld [vmem:[%s406 + $0xb0] sm:$0xf]
        %v504 = vld [vmem:[%s406 + $0xb4] sm:$0xf]
        %v505 = vld [vmem:[%s406 + $0xb8] sm:$0xf]
        %v506 = vld [vmem:[%s406 + $0xbc] sm:$0xf]
        %v539 = vunpack.c.l.b16 %v427
        %v540 = vunpack.c.h.b16 %v427
        %v541 = vunpack.c.l.b16 %v428
        %v542 = vunpack.c.l.b16 %v429
        %v543 = vunpack.c.h.b16 %v429
        %v544 = vunpack.c.l.b16 %v430
        %v545 = vunpack.c.l.b16 %v431
        %v546 = vunpack.c.h.b16 %v431
        %v547 = vunpack.c.l.b16 %v432
        %v548 = vunpack.c.l.b16 %v433
        %v549 = vunpack.c.h.b16 %v433
        %v550 = vunpack.c.l.b16 %v434
        %v551 = vunpack.c.l.b16 %v435
        %v552 = vunpack.c.h.b16 %v435
        %v553 = vunpack.c.l.b16 %v436
        %v554 = vunpack.c.l.b16 %v437
        %v555 = vunpack.c.h.b16 %v437
        %v556 = vunpack.c.l.b16 %v438
        %v557 = vunpack.c.l.b16 %v439
        %v558 = vunpack.c.h.b16 %v439
        %v559 = vunpack.c.l.b16 %v440
        %v560 = vunpack.c.l.b16 %v441
        %v561 = vunpack.c.h.b16 %v441
        %v562 = vunpack.c.l.b16 %v442
        %v563 = vunpack.c.l.b16 %v443
        %v564 = vunpack.c.h.b16 %v443
        %v565 = vunpack.c.l.b16 %v444
        %v566 = vunpack.c.l.b16 %v445
        %v567 = vunpack.c.h.b16 %v445
        %v568 = vunpack.c.l.b16 %v446
        %v569 = vunpack.c.l.b16 %v447
        %v570 = vunpack.c.h.b16 %v447
        %v571 = vunpack.c.l.b16 %v448
        %v572 = vunpack.c.l.b16 %v449
        %v573 = vunpack.c.h.b16 %v449
        %v574 = vunpack.c.l.b16 %v450
        %v575 = vunpack.c.l.b16 %v451
        %v576 = vunpack.c.h.b16 %v451
        %v577 = vunpack.c.l.b16 %v452
        %v578 = vunpack.c.l.b16 %v453
        %v579 = vunpack.c.h.b16 %v453
        %v580 = vunpack.c.l.b16 %v454
        %v581 = vunpack.c.l.b16 %v455
        %v582 = vunpack.c.h.b16 %v455
        %v583 = vunpack.c.l.b16 %v456
        %v584 = vunpack.c.l.b16 %v457
        %v585 = vunpack.c.h.b16 %v457
        %v586 = vunpack.c.l.b16 %v458
        %v587 = vpack.c.b16 %v542, %v539
        %v588 = vpack.c.b16 %v543, %v540
        %v589 = vpack.c.b16 %v544, %v541
        %v590 = vpack.c.b16 %v548, %v545
        %v591 = vpack.c.b16 %v549, %v546
        %v592 = vpack.c.b16 %v550, %v547
        %v593 = vpack.c.b16 %v554, %v551
        %v594 = vpack.c.b16 %v555, %v552
        %v595 = vpack.c.b16 %v556, %v553
        %v596 = vpack.c.b16 %v560, %v557
        %v597 = vpack.c.b16 %v561, %v558
        %v598 = vpack.c.b16 %v562, %v559
        %v599 = vpack.c.b16 %v566, %v563
        %v600 = vpack.c.b16 %v567, %v564
        %v601 = vpack.c.b16 %v568, %v565
        %v602 = vpack.c.b16 %v572, %v569
        %v603 = vpack.c.b16 %v573, %v570
        %v604 = vpack.c.b16 %v574, %v571
        %v605 = vpack.c.b16 %v578, %v575
        %v606 = vpack.c.b16 %v579, %v576
        %v607 = vpack.c.b16 %v580, %v577
        %v608 = vpack.c.b16 %v584, %v581
        %v609 = vpack.c.b16 %v585, %v582
        %v610 = vpack.c.b16 %v586, %v583
        %v683 = vunpack.c.l.b16 %v459
        %v684 = vunpack.c.l.b16 %v460
        %v685 = vunpack.c.l.b16 %v461
        %v686 = vunpack.c.l.b16 %v462
        %v687 = vunpack.c.l.b16 %v463
        %v688 = vunpack.c.l.b16 %v464
        %v689 = vunpack.c.l.b16 %v465
        %v690 = vunpack.c.l.b16 %v466
        %v691 = vunpack.c.l.b16 %v467
        %v692 = vunpack.c.l.b16 %v468
        %v693 = vunpack.c.l.b16 %v469
        %v694 = vunpack.c.l.b16 %v470
        %v695 = vunpack.c.l.b16 %v471
        %v696 = vunpack.c.l.b16 %v472
        %v697 = vunpack.c.l.b16 %v473
        %v698 = vunpack.c.l.b16 %v474
        %v699 = vunpack.c.l.b16 %v475
        %v700 = vunpack.c.l.b16 %v476
        %v701 = vunpack.c.l.b16 %v477
        %v702 = vunpack.c.l.b16 %v478
        %v703 = vunpack.c.l.b16 %v479
        %v704 = vunpack.c.l.b16 %v480
        %v705 = vunpack.c.l.b16 %v481
        %v706 = vunpack.c.l.b16 %v482
        %v707 = vunpack.c.l.b16 %v483
        %v708 = vunpack.c.l.b16 %v484
        %v709 = vunpack.c.l.b16 %v485
        %v710 = vunpack.c.l.b16 %v486
        %v711 = vunpack.c.l.b16 %v487
        %v712 = vunpack.c.l.b16 %v488
        %v713 = vunpack.c.l.b16 %v489
        %v714 = vunpack.c.l.b16 %v490
        %v715 = vunpack.c.l.b16 %v491
        %v716 = vunpack.c.l.b16 %v492
        %v717 = vunpack.c.l.b16 %v493
        %v718 = vunpack.c.l.b16 %v494
        %v719 = vunpack.c.l.b16 %v495
        %v720 = vunpack.c.l.b16 %v496
        %v721 = vunpack.c.l.b16 %v497
        %v722 = vunpack.c.l.b16 %v498
        %v723 = vunpack.c.l.b16 %v499
        %v724 = vunpack.c.l.b16 %v500
        %v725 = vunpack.c.l.b16 %v501
        %v726 = vunpack.c.l.b16 %v502
        %v727 = vunpack.c.l.b16 %v503
        %v728 = vunpack.c.l.b16 %v504
        %v729 = vunpack.c.l.b16 %v505
        %v730 = vunpack.c.l.b16 %v506
        %v731 = vpack.c.b16 %v684, %v683
        %v732 = vpack.c.b16 %v686, %v685
        %v733 = vpack.c.b16 %v688, %v687
        %v734 = vpack.c.b16 %v690, %v689
        %v735 = vpack.c.b16 %v692, %v691
        %v736 = vpack.c.b16 %v694, %v693
        %v737 = vpack.c.b16 %v696, %v695
        %v738 = vpack.c.b16 %v698, %v697
        %v739 = vpack.c.b16 %v700, %v699
        %v740 = vpack.c.b16 %v702, %v701
        %v741 = vpack.c.b16 %v704, %v703
        %v742 = vpack.c.b16 %v706, %v705
        %v743 = vpack.c.b16 %v708, %v707
        %v744 = vpack.c.b16 %v710, %v709
        %v745 = vpack.c.b16 %v712, %v711
        %v746 = vpack.c.b16 %v714, %v713
        %v747 = vpack.c.b16 %v716, %v715
        %v748 = vpack.c.b16 %v718, %v717
        %v749 = vpack.c.b16 %v720, %v719
        %v750 = vpack.c.b16 %v722, %v721
        %v751 = vpack.c.b16 %v724, %v723
        %v752 = vpack.c.b16 %v726, %v725
        %v753 = vpack.c.b16 %v728, %v727
        %v754 = vpack.c.b16 %v730, %v729
        %779 = vmatprep.subr.bf16.mxu0 0
        %780 = vmatpush1.bf16.msra.mxu0 %v731
        %781 = vmatprep.subr.bf16.mxu0 0
        %782 = vmatpush1.bf16.msra.mxu0 %v732
        %783 = vmatprep.subr.bf16.mxu0 0
        %784 = vmatpush1.bf16.msra.mxu0 %v733
        %785 = vmatprep.subr.bf16.mxu0 0
        %786 = vmatpush1.bf16.msra.mxu0 %v734
        %787 = vmatprep.subr.bf16.mxu0 0
        %788 = vmatpush1.bf16.msra.mxu0 %v735
        %789 = vmatprep.subr.bf16.mxu0 0
        %790 = vmatpush1.bf16.msra.mxu0 %v736
        %791 = vmatprep.subr.bf16.mxu0 0
        %792 = vmatpush1.bf16.msra.mxu0 %v737
        %793 = vmatprep.subr.bf16.mxu0 0
        %794 = vmatpush1.bf16.msra.mxu0 %v738
        %795 = vmatprep.subr.bf16.mxu0 0
        %796 = vmatpush1.bf16.msra.mxu0 %v739
        %797 = vmatprep.subr.bf16.mxu0 0
        %798 = vmatpush1.bf16.msra.mxu0 %v740
        %799 = vmatprep.subr.bf16.mxu0 0
        %800 = vmatpush1.bf16.msra.mxu0 %v741
        %801 = vmatprep.subr.bf16.mxu0 0
        %802 = vmatpush1.bf16.msra.mxu0 %v742
        %803 = vmatprep.subr.bf16.mxu0 0
        %804 = vmatpush1.bf16.msra.mxu0 %v743
        %805 = vmatprep.subr.bf16.mxu0 0
        %806 = vmatpush1.bf16.msra.mxu0 %v744
        %807 = vmatprep.subr.bf16.mxu0 0
        %808 = vmatpush1.bf16.msra.mxu0 %v745
        %809 = vmatprep.subr.bf16.mxu0 0
        %810 = vmatpush1.bf16.msra.mxu0 %v746
        %811 = vmatprep.mubr.bf16.mxu0 %v588
        %812 = vmatmul.mubr.bf16.gmra.mrb[0].mxu0 %v587
        %v813 = vpop.f32.mrb[0].mxu0
        %v814 = vadd.f32 0.0, %v813
        %v815 = vpop.f32.mrb[0].mxu0
        %v816 = vpop.f32.mrb[0].mxu0
        %v817 = vadd.f32 0.0, %v816
        %v818 = vpop.f32.mrb[0].mxu0
        %819 = vmatprep.mubr.bf16.mxu0 %v591
        %820 = vmatmul.mubr.bf16.gmra.mrb[0].mxu0 %v590
        %v821 = vpop.f32.mrb[0].mxu0
        %v822 = vadd.f32 0.0, %v821
        %v823 = vpop.f32.mrb[0].mxu0
        %v824 = vpop.f32.mrb[0].mxu0
        %v825 = vadd.f32 0.0, %v824
        %v826 = vpop.f32.mrb[0].mxu0
        %827 = vmatprep.mubr.bf16.mxu0 %v594
        %828 = vmatmul.mubr.bf16.gmra.mrb[0].mxu0 %v593
        %v829 = vpop.f32.mrb[0].mxu0
        %v830 = vadd.f32 0.0, %v829
        %v831 = vpop.f32.mrb[0].mxu0
        %v832 = vpop.f32.mrb[0].mxu0
        %v833 = vadd.f32 0.0, %v832
        %v834 = vpop.f32.mrb[0].mxu0
        %835 = vmatprep.mubr.bf16.mxu0 %v597
        %836 = vmatmul.mubr.bf16.gmra.mrb[0].mxu0 %v596
        %v837 = vpop.f32.mrb[0].mxu0
        %v838 = vadd.f32 0.0, %v837
        %v839 = vpop.f32.mrb[0].mxu0
        %v840 = vpop.f32.mrb[0].mxu0
        %v841 = vadd.f32 0.0, %v840
        %v842 = vpop.f32.mrb[0].mxu0
        %843 = vmatprep.mubr.bf16.mxu0 %v600
        %844 = vmatmul.mubr.bf16.gmra.mrb[0].mxu0 %v599
        %v845 = vpop.f32.mrb[0].mxu0
        %v846 = vadd.f32 0.0, %v845
        %v847 = vpop.f32.mrb[0].mxu0
        %v848 = vpop.f32.mrb[0].mxu0
        %v849 = vadd.f32 0.0, %v848
        %v850 = vpop.f32.mrb[0].mxu0
        %851 = vmatprep.mubr.bf16.mxu0 %v603
        %852 = vmatmul.mubr.bf16.gmra.mrb[0].mxu0 %v602
        %v853 = vpop.f32.mrb[0].mxu0
        %v854 = vadd.f32 0.0, %v853
        %v855 = vpop.f32.mrb[0].mxu0
        %v856 = vpop.f32.mrb[0].mxu0
        %v857 = vadd.f32 0.0, %v856
        %v858 = vpop.f32.mrb[0].mxu0
        %859 = vmatprep.mubr.bf16.mxu0 %v606
        %860 = vmatmul.mubr.bf16.gmra.mrb[0].mxu0 %v605
        %v861 = vpop.f32.mrb[0].mxu0
        %v862 = vadd.f32 0.0, %v861
        %v863 = vpop.f32.mrb[0].mxu0
        %v864 = vpop.f32.mrb[0].mxu0
        %v865 = vadd.f32 0.0, %v864
        %v866 = vpop.f32.mrb[0].mxu0
        %867 = vmatprep.mubr.bf16.mxu0 %v609
        %868 = vmatmul.mubr.bf16.gmra.mrb[0].mxu0 %v608
        %v869 = vpop.f32.mrb[0].mxu0
        %v870 = vadd.f32 0.0, %v869
        %v871 = vpop.f32.mrb[0].mxu0
        %v872 = vpop.f32.mrb[0].mxu0
        %v873 = vadd.f32 0.0, %v872
        %v874 = vpop.f32.mrb[0].mxu0
        %875 = vdwg.mxu0
        %876 = vmatprep.subr.bf16.mxu0 0
        %877 = vmatpush1.bf16.msra.mxu0 %v747
        %878 = vmatprep.subr.bf16.mxu0 0
        %879 = vmatpush1.bf16.msra.mxu0 %v748
        %880 = vmatprep.subr.bf16.mxu0 0
        %881 = vmatpush1.bf16.msra.mxu0 %v749
        %882 = vmatprep.subr.bf16.mxu0 0
        %883 = vmatpush1.bf16.msra.mxu0 %v750
        %884 = vmatprep.subr.bf16.mxu0 0
        %885 = vmatpush1.bf16.msra.mxu0 %v751
        %886 = vmatprep.subr.bf16.mxu0 0
        %887 = vmatpush1.bf16.msra.mxu0 %v752
        %888 = vmatprep.subr.bf16.mxu0 0
        %889 = vmatpush1.bf16.msra.mxu0 %v753
        %890 = vmatprep.subr.bf16.mxu0 0
        %891 = vmatpush1.bf16.msra.mxu0 %v754
        %892 = vmatprep.subr.bf16.mxu0 0
        %893 = vmatpush1.bf16.msra.mxu0 0
        %894 = vmatprep.subr.bf16.mxu0 0
        %895 = vmatpush1.bf16.msra.mxu0 0
        %896 = vmatprep.subr.bf16.mxu0 0
        %897 = vmatpush1.bf16.msra.mxu0 0
        %898 = vmatprep.subr.bf16.mxu0 0
        %899 = vmatpush1.bf16.msra.mxu0 0
        %900 = vmatprep.subr.bf16.mxu0 0
        %901 = vmatpush1.bf16.msra.mxu0 0
        %902 = vmatprep.subr.bf16.mxu0 0
        %903 = vmatpush1.bf16.msra.mxu0 0
        %904 = vmatprep.subr.bf16.mxu0 0
        %905 = vmatpush1.bf16.msra.mxu0 0
        %906 = vmatprep.subr.bf16.mxu0 0
        %907 = vmatpush1.bf16.msra.mxu0 0
        %908 = vmatprep.mubr.bf16.mxu0 0
        %909 = vmatmul.mubr.bf16.gmra.mrb[0].mxu0 %v589
        %v910 = vpop.f32.mrb[0].mxu0
        %v911 = vadd.f32 %v814, %v910
        %v912 = vpop.f32.mrb[0].mxu0
        %v913 = vpop.f32.mrb[0].mxu0
        %v914 = vadd.f32 %v817, %v913
        %v915 = vpop.f32.mrb[0].mxu0
        %916 = vmatprep.mubr.bf16.mxu0 0
        %917 = vmatmul.mubr.bf16.gmra.mrb[0].mxu0 %v592
        %v918 = vpop.f32.mrb[0].mxu0
        %v919 = vadd.f32 %v822, %v918
        %v920 = vpop.f32.mrb[0].mxu0
        %v921 = vpop.f32.mrb[0].mxu0
        %v922 = vadd.f32 %v825, %v921
        %v923 = vpop.f32.mrb[0].mxu0
        %924 = vmatprep.mubr.bf16.mxu0 0
        %925 = vmatmul.mubr.bf16.gmra.mrb[0].mxu0 %v595
        %v926 = vpop.f32.mrb[0].mxu0
        %v927 = vadd.f32 %v830, %v926
        %v928 = vpop.f32.mrb[0].mxu0
        %v929 = vpop.f32.mrb[0].mxu0
        %v930 = vadd.f32 %v833, %v929
        %v931 = vpop.f32.mrb[0].mxu0
        %932 = vmatprep.mubr.bf16.mxu0 0
        %933 = vmatmul.mubr.bf16.gmra.mrb[0].mxu0 %v598
        %v934 = vpop.f32.mrb[0].mxu0
        %v935 = vadd.f32 %v838, %v934
        %v936 = vpop.f32.mrb[0].mxu0
        %v937 = vpop.f32.mrb[0].mxu0
        %v938 = vadd.f32 %v841, %v937
        %v939 = vpop.f32.mrb[0].mxu0
        %940 = vmatprep.mubr.bf16.mxu0 0
        %941 = vmatmul.mubr.bf16.gmra.mrb[0].mxu0 %v601
        %v942 = vpop.f32.mrb[0].mxu0
        %v943 = vadd.f32 %v846, %v942
        %v944 = vpop.f32.mrb[0].mxu0
        %v945 = vpop.f32.mrb[0].mxu0
        %v946 = vadd.f32 %v849, %v945
        %v947 = vpop.f32.mrb[0].mxu0
        %948 = vmatprep.mubr.bf16.mxu0 0
        %949 = vmatmul.mubr.bf16.gmra.mrb[0].mxu0 %v604
        %v950 = vpop.f32.mrb[0].mxu0
        %v951 = vadd.f32 %v854, %v950
        %v952 = vpop.f32.mrb[0].mxu0
        %v953 = vpop.f32.mrb[0].mxu0
        %v954 = vadd.f32 %v857, %v953
        %v955 = vpop.f32.mrb[0].mxu0
        %956 = vmatprep.mubr.bf16.mxu0 0
        %957 = vmatmul.mubr.bf16.gmra.mrb[0].mxu0 %v607
        %v958 = vpop.f32.mrb[0].mxu0
        %v959 = vadd.f32 %v862, %v958
        %v960 = vpop.f32.mrb[0].mxu0
        %v961 = vpop.f32.mrb[0].mxu0
        %v962 = vadd.f32 %v865, %v961
        %v963 = vpop.f32.mrb[0].mxu0
        %964 = vmatprep.mubr.bf16.mxu0 0
        %965 = vmatmul.mubr.bf16.gmra.mrb[0].mxu0 %v610
        %v966 = vpop.f32.mrb[0].mxu0
        %v967 = vadd.f32 %v870, %v966
        %v968 = vpop.f32.mrb[0].mxu0
        %v969 = vpop.f32.mrb[0].mxu0
        %v970 = vadd.f32 %v873, %v969
        %v971 = vpop.f32.mrb[0].mxu0
        %972 = vdwg.mxu0
        %p973 = scmp.eq.s32.totalorder %s23, 0
        // Predicated region
        $region67: #{cellpose_sam_apply.26} parent=61 // pred_check
          %p974 = pneg %p973
        $region68: #{cellpose_sam_apply.26} parent=61 // pred_check_branch
          %976 = sbr.rel (%p974) target = $region70
        $region69: #{cellpose_sam_apply.26} parent=61 // pred_region
          %977 = vst [vmem:[#allocation2] sm:$0xff] 0.0
          %978 = vst [vmem:[#allocation2 + $0x8] sm:$0xff] 0.0
          %979 = vst [vmem:[#allocation2 + $0x10] sm:$0xff] 0.0
          %980 = vst [vmem:[#allocation2 + $0x18] sm:$0xff] 0.0
          %981 = vst [vmem:[#allocation2 + $0x20] sm:$0xff] 0.0
          %982 = vst [vmem:[#allocation2 + $0x28] sm:$0xff] 0.0
          %983 = vst [vmem:[#allocation2 + $0x30] sm:$0xff] 0.0
          %984 = vst [vmem:[#allocation2 + $0x38] sm:$0xff] 0.0
          %985 = vst [vmem:[#allocation2 + $0x40] sm:$0xff] 0.0
          %986 = vst [vmem:[#allocation2 + $0x48] sm:$0xff] 0.0
          %987 = vst [vmem:[#allocation2 + $0x50] sm:$0xff] 0.0
          %988 = vst [vmem:[#allocation2 + $0x58] sm:$0xff] 0.0
          %989 = vst [vmem:[#allocation2 + $0x60] sm:$0xff] 0.0
          %990 = vst [vmem:[#allocation2 + $0x68] sm:$0xff] 0.0
          %991 = vst [vmem:[#allocation2 + $0x70] sm:$0xff] 0.0
          %992 = vst [vmem:[#allocation2 + $0x78] sm:$0xff] 0.0
        $region70: #{cellpose_sam_apply.26} parent=61 // pred_fallthru
          _
        %v993 = vld [vmem:[#allocation2] sm:$0xff]
        %v994 = vld [vmem:[#allocation2 + $0x8] sm:$0xff]
        %v995 = vld [vmem:[#allocation2 + $0x10] sm:$0xff]
        %v996 = vld [vmem:[#allocation2 + $0x18] sm:$0xff]
        %v997 = vld [vmem:[#allocation2 + $0x20] sm:$0xff]
        %v998 = vld [vmem:[#allocation2 + $0x28] sm:$0xff]
        %v999 = vld [vmem:[#allocation2 + $0x30] sm:$0xff]
        %v1000 = vld [vmem:[#allocation2 + $0x38] sm:$0xff]
        %v1001 = vld [vmem:[#allocation2 + $0x40] sm:$0xff]
        %v1002 = vld [vmem:[#allocation2 + $0x48] sm:$0xff]
        %v1003 = vld [vmem:[#allocation2 + $0x50] sm:$0xff]
        %v1004 = vld [vmem:[#allocation2 + $0x58] sm:$0xff]
        %v1005 = vld [vmem:[#allocation2 + $0x60] sm:$0xff]
        %v1006 = vld [vmem:[#allocation2 + $0x68] sm:$0xff]
        %v1007 = vld [vmem:[#allocation2 + $0x70] sm:$0xff]
        %v1008 = vld [vmem:[#allocation2 + $0x78] sm:$0xff]
        %v1009 = vadd.f32 %v993, %v911
        %v1010 = vadd.f32 %v994, %v914
        %v1011 = vadd.f32 %v995, %v919
        %v1012 = vadd.f32 %v996, %v922
        %v1013 = vadd.f32 %v997, %v927
        %v1014 = vadd.f32 %v998, %v930
        %v1015 = vadd.f32 %v999, %v935
        %v1016 = vadd.f32 %v1000, %v938
        %v1017 = vadd.f32 %v1001, %v943
        %v1018 = vadd.f32 %v1002, %v946
        %v1019 = vadd.f32 %v1003, %v951
        %v1020 = vadd.f32 %v1004, %v954
        %v1021 = vadd.f32 %v1005, %v959
        %v1022 = vadd.f32 %v1006, %v962
        %v1023 = vadd.f32 %v1007, %v967
        %v1024 = vadd.f32 %v1008, %v970
        %1025 = vst [vmem:[#allocation2] sm:$0xff] %v1009
        %1026 = vst [vmem:[#allocation2 + $0x8] sm:$0xff] %v1010
        %1027 = vst [vmem:[#allocation2 + $0x10] sm:$0xff] %v1011
        %1028 = vst [vmem:[#allocation2 + $0x18] sm:$0xff] %v1012
        %1029 = vst [vmem:[#allocation2 + $0x20] sm:$0xff] %v1013
        %1030 = vst [vmem:[#allocation2 + $0x28] sm:$0xff] %v1014
        %1031 = vst [vmem:[#allocation2 + $0x30] sm:$0xff] %v1015
        %1032 = vst [vmem:[#allocation2 + $0x38] sm:$0xff] %v1016
        %1033 = vst [vmem:[#allocation2 + $0x40] sm:$0xff] %v1017
        %1034 = vst [vmem:[#allocation2 + $0x48] sm:$0xff] %v1018
        %1035 = vst [vmem:[#allocation2 + $0x50] sm:$0xff] %v1019
        %1036 = vst [vmem:[#allocation2 + $0x58] sm:$0xff] %v1020
        %1037 = vst [vmem:[#allocation2 + $0x60] sm:$0xff] %v1021
        %1038 = vst [vmem:[#allocation2 + $0x68] sm:$0xff] %v1022
        %1039 = vst [vmem:[#allocation2 + $0x70] sm:$0xff] %v1023
        %1040 = vst [vmem:[#allocation2 + $0x78] sm:$0xff] %v1024
        %p1041 = scmp.eq.s32.totalorder %s23, 2
        // Predicated region
        $region71: #{cellpose_sam_apply.26} parent=61 // pred_check
          %p1042 = pneg %p1041
        $region72: #{cellpose_sam_apply.26} parent=61 // pred_check_branch
          %1044 = sbr.rel (%p1042) target = $region74
        $region73: #{cellpose_sam_apply.26} parent=61 // pred_region
          %v1045 = vld [vmem:[#allocation2] sm:$0xff]
          %v1046 = vld [vmem:[#allocation2 + $0x8] sm:$0xff]
          %v1047 = vld [vmem:[#allocation2 + $0x10] sm:$0xff]
          %v1048 = vld [vmem:[#allocation2 + $0x18] sm:$0xff]
          %v1049 = vld [vmem:[#allocation2 + $0x20] sm:$0xff]
          %v1050 = vld [vmem:[#allocation2 + $0x28] sm:$0xff]
          %v1051 = vld [vmem:[#allocation2 + $0x30] sm:$0xff]
          %v1052 = vld [vmem:[#allocation2 + $0x38] sm:$0xff]
          %v1053 = vld [vmem:[#allocation2 + $0x40] sm:$0xff]
          %v1054 = vld [vmem:[#allocation2 + $0x48] sm:$0xff]
          %v1055 = vld [vmem:[#allocation2 + $0x50] sm:$0xff]
          %v1056 = vld [vmem:[#allocation2 + $0x58] sm:$0xff]
          %v1057 = vld [vmem:[#allocation2 + $0x60] sm:$0xff]
          %v1058 = vld [vmem:[#allocation2 + $0x68] sm:$0xff]
          %v1059 = vld [vmem:[#allocation2 + $0x70] sm:$0xff]
          %v1060 = vld [vmem:[#allocation2 + $0x78] sm:$0xff]
          %v1061 = vld [vmem:[%s410] sm:$0x1]
          %v1063 = vlaneseq
          %v1064 = vshrl.u32 %v1063, 7
          %v1065 = vsub.s32 0, %v1064
          %v1066 = vrot.slane %v1061, %v1065
          %v1068 = vadd.f32 %v1045, %v1066
          %v1069 = vadd.f32 %v1046, %v1066
          %v1070 = vadd.f32 %v1047, %v1066
          %v1071 = vadd.f32 %v1048, %v1066
          %v1072 = vadd.f32 %v1049, %v1066
          %v1073 = vadd.f32 %v1050, %v1066
          %v1074 = vadd.f32 %v1051, %v1066
          %v1075 = vadd.f32 %v1052, %v1066
          %v1076 = vadd.f32 %v1053, %v1066
          %v1077 = vadd.f32 %v1054, %v1066
          %v1078 = vadd.f32 %v1055, %v1066
          %v1079 = vadd.f32 %v1056, %v1066
          %v1080 = vadd.f32 %v1057, %v1066
          %v1081 = vadd.f32 %v1058, %v1066
          %v1082 = vadd.f32 %v1059, %v1066
          %v1083 = vadd.f32 %v1060, %v1066
          %v1084 = vld [vmem:[%s413] sm:$0x1]
          %v1085 = vld [vmem:[%s416] sm:$0x1]
          %1086 = vadd.xlane.f32.xlu0 %v1068
          %v1087 = vpop.xlane.xlu0 %1086
          %1088 = vadd.xlane.f32.xlu0 %v1069
          %v1089 = vpop.xlane.xlu0 %1088
          %1090 = vadd.xlane.f32.xlu0 %v1070
          %v1091 = vpop.xlane.xlu0 %1090
          %1092 = vadd.xlane.f32.xlu0 %v1071
          %v1093 = vpop.xlane.xlu0 %1092
          %1094 = vadd.xlane.f32.xlu0 %v1072
          %v1095 = vpop.xlane.xlu0 %1094
          %1096 = vadd.xlane.f32.xlu0 %v1073
          %v1097 = vpop.xlane.xlu0 %1096
          %1098 = vadd.xlane.f32.xlu0 %v1074
          %v1099 = vpop.xlane.xlu0 %1098
          %1100 = vadd.xlane.f32.xlu0 %v1075
          %v1101 = vpop.xlane.xlu0 %1100
          %1102 = vadd.xlane.f32.xlu0 %v1076
          %v1103 = vpop.xlane.xlu0 %1102
          %1104 = vadd.xlane.f32.xlu0 %v1077
          %v1105 = vpop.xlane.xlu0 %1104
          %1106 = vadd.xlane.f32.xlu0 %v1078
          %v1107 = vpop.xlane.xlu0 %1106
          %1108 = vadd.xlane.f32.xlu0 %v1079
          %v1109 = vpop.xlane.xlu0 %1108
          %1110 = vadd.xlane.f32.xlu0 %v1080
          %v1111 = vpop.xlane.xlu0 %1110
          %1112 = vadd.xlane.f32.xlu0 %v1081
          %v1113 = vpop.xlane.xlu0 %1112
          %1114 = vadd.xlane.f32.xlu0 %v1082
          %v1115 = vpop.xlane.xlu0 %1114
          %1116 = vadd.xlane.f32.xlu0 %v1083
          %v1117 = vpop.xlane.xlu0 %1116
          %v1118 = vrcp.pop 128.0
          %v1119 = vmul.f32 %v1087, %v1118
          %v1120 = vmul.f32 %v1089, %v1118
          %v1121 = vmul.f32 %v1091, %v1118
          %v1122 = vmul.f32 %v1093, %v1118
          %v1123 = vmul.f32 %v1095, %v1118
          %v1124 = vmul.f32 %v1097, %v1118
          %v1125 = vmul.f32 %v1099, %v1118
          %v1126 = vmul.f32 %v1101, %v1118
          %v1127 = vmul.f32 %v1103, %v1118
          %v1128 = vmul.f32 %v1105, %v1118
          %v1129 = vmul.f32 %v1107, %v1118
          %v1130 = vmul.f32 %v1109, %v1118
          %v1131 = vmul.f32 %v1111, %v1118
          %v1132 = vmul.f32 %v1113, %v1118
          %v1133 = vmul.f32 %v1115, %v1118
          %v1134 = vmul.f32 %v1117, %v1118
          %v1135 = vsub.f32 %v1068, %v1119
          %v1136 = vsub.f32 %v1069, %v1120
          %v1137 = vsub.f32 %v1070, %v1121
          %v1138 = vsub.f32 %v1071, %v1122
          %v1139 = vsub.f32 %v1072, %v1123
          %v1140 = vsub.f32 %v1073, %v1124
          %v1141 = vsub.f32 %v1074, %v1125
          %v1142 = vsub.f32 %v1075, %v1126
          %v1143 = vsub.f32 %v1076, %v1127
          %v1144 = vsub.f32 %v1077, %v1128
          %v1145 = vsub.f32 %v1078, %v1129
          %v1146 = vsub.f32 %v1079, %v1130
          %v1147 = vsub.f32 %v1080, %v1131
          %v1148 = vsub.f32 %v1081, %v1132
          %v1149 = vsub.f32 %v1082, %v1133
          %v1150 = vsub.f32 %v1083, %v1134
          %v1151 = vmul.f32 %v1135, %v1135
          %v1152 = vmul.f32 %v1136, %v1136
          %v1153 = vmul.f32 %v1137, %v1137
          %v1154 = vmul.f32 %v1138, %v1138
          %v1155 = vmul.f32 %v1139, %v1139
          %v1156 = vmul.f32 %v1140, %v1140
          %v1157 = vmul.f32 %v1141, %v1141
          %v1158 = vmul.f32 %v1142, %v1142
          %v1159 = vmul.f32 %v1143, %v1143
          %v1160 = vmul.f32 %v1144, %v1144
          %v1161 = vmul.f32 %v1145, %v1145
          %v1162 = vmul.f32 %v1146, %v1146
          %v1163 = vmul.f32 %v1147, %v1147
          %v1164 = vmul.f32 %v1148, %v1148
          %v1165 = vmul.f32 %v1149, %v1149
          %v1166 = vmul.f32 %v1150, %v1150
          %1167 = vadd.xlane.f32.xlu0 %v1151
          %v1168 = vpop.xlane.xlu0 %1167
          %1169 = vadd.xlane.f32.xlu0 %v1152
          %v1170 = vpop.xlane.xlu0 %1169
          %1171 = vadd.xlane.f32.xlu0 %v1153
          %v1172 = vpop.xlane.xlu0 %1171
          %1173 = vadd.xlane.f32.xlu0 %v1154
          %v1174 = vpop.xlane.xlu0 %1173
          %1175 = vadd.xlane.f32.xlu0 %v1155
          %v1176 = vpop.xlane.xlu0 %1175
          %1177 = vadd.xlane.f32.xlu0 %v1156
          %v1178 = vpop.xlane.xlu0 %1177
          %1179 = vadd.xlane.f32.xlu0 %v1157
          %v1180 = vpop.xlane.xlu0 %1179
          %1181 = vadd.xlane.f32.xlu0 %v1158
          %v1182 = vpop.xlane.xlu0 %1181
          %1183 = vadd.xlane.f32.xlu0 %v1159
          %v1184 = vpop.xlane.xlu0 %1183
          %1185 = vadd.xlane.f32.xlu0 %v1160
          %v1186 = vpop.xlane.xlu0 %1185
          %1187 = vadd.xlane.f32.xlu0 %v1161
          %v1188 = vpop.xlane.xlu0 %1187
          %1189 = vadd.xlane.f32.xlu0 %v1162
          %v1190 = vpop.xlane.xlu0 %1189
          %1191 = vadd.xlane.f32.xlu0 %v1163
          %v1192 = vpop.xlane.xlu0 %1191
          %1193 = vadd.xlane.f32.xlu0 %v1164
          %v1194 = vpop.xlane.xlu0 %1193
          %1195 = vadd.xlane.f32.xlu0 %v1165
          %v1196 = vpop.xlane.xlu0 %1195
          %1197 = vadd.xlane.f32.xlu0 %v1166
          %v1198 = vpop.xlane.xlu0 %1197
          %v1199 = vmul.f32 %v1168, %v1118
          %v1200 = vmul.f32 %v1170, %v1118
          %v1201 = vmul.f32 %v1172, %v1118
          %v1202 = vmul.f32 %v1174, %v1118
          %v1203 = vmul.f32 %v1176, %v1118
          %v1204 = vmul.f32 %v1178, %v1118
          %v1205 = vmul.f32 %v1180, %v1118
          %v1206 = vmul.f32 %v1182, %v1118
          %v1207 = vmul.f32 %v1184, %v1118
          %v1208 = vmul.f32 %v1186, %v1118
          %v1209 = vmul.f32 %v1188, %v1118
          %v1210 = vmul.f32 %v1190, %v1118
          %v1211 = vmul.f32 %v1192, %v1118
          %v1212 = vmul.f32 %v1194, %v1118
          %v1213 = vmul.f32 %v1196, %v1118
          %v1214 = vmul.f32 %v1198, %v1118
          %v1215 = vadd.f32 %v1199, 1e-06
          %v1216 = vadd.f32 %v1200, 1e-06
          %v1217 = vadd.f32 %v1201, 1e-06
          %v1218 = vadd.f32 %v1202, 1e-06
          %v1219 = vadd.f32 %v1203, 1e-06
          %v1220 = vadd.f32 %v1204, 1e-06
          %v1221 = vadd.f32 %v1205, 1e-06
          %v1222 = vadd.f32 %v1206, 1e-06
          %v1223 = vadd.f32 %v1207, 1e-06
          %v1224 = vadd.f32 %v1208, 1e-06
          %v1225 = vadd.f32 %v1209, 1e-06
          %v1226 = vadd.f32 %v1210, 1e-06
          %v1227 = vadd.f32 %v1211, 1e-06
          %v1228 = vadd.f32 %v1212, 1e-06
          %v1229 = vadd.f32 %v1213, 1e-06
          %v1230 = vadd.f32 %v1214, 1e-06
          %v1231 = vrsqrt.pop %v1215
          %v1232 = vrsqrt.pop %v1216
          %v1233 = vrsqrt.pop %v1217
          %v1234 = vrsqrt.pop %v1218
          %v1235 = vrsqrt.pop %v1219
          %v1236 = vrsqrt.pop %v1220
          %v1237 = vrsqrt.pop %v1221
          %v1238 = vrsqrt.pop %v1222
          %v1239 = vrsqrt.pop %v1223
          %v1240 = vrsqrt.pop %v1224
          %v1241 = vrsqrt.pop %v1225
          %v1242 = vrsqrt.pop %v1226
          %v1243 = vrsqrt.pop %v1227
          %v1244 = vrsqrt.pop %v1228
          %v1245 = vrsqrt.pop %v1229
          %v1246 = vrsqrt.pop %v1230
          %v1247 = vmul.f32 %v1135, %v1231
          %v1248 = vmul.f32 %v1136, %v1232
          %v1249 = vmul.f32 %v1137, %v1233
          %v1250 = vmul.f32 %v1138, %v1234
          %v1251 = vmul.f32 %v1139, %v1235
          %v1252 = vmul.f32 %v1140, %v1236
          %v1253 = vmul.f32 %v1141, %v1237
          %v1254 = vmul.f32 %v1142, %v1238
          %v1255 = vmul.f32 %v1143, %v1239
          %v1256 = vmul.f32 %v1144, %v1240
          %v1257 = vmul.f32 %v1145, %v1241
          %v1258 = vmul.f32 %v1146, %v1242
          %v1259 = vmul.f32 %v1147, %v1243
          %v1260 = vmul.f32 %v1148, %v1244
          %v1261 = vmul.f32 %v1149, %v1245
          %v1262 = vmul.f32 %v1150, %v1246
          %v1264 = vlaneseq
          %v1265 = vshrl.u32 %v1264, 7
          %v1266 = vsub.s32 0, %v1265
          %v1267 = vrot.slane %v1084, %v1266
          %v1269 = vmul.f32 %v1247, %v1267
          %v1270 = vmul.f32 %v1248, %v1267
          %v1271 = vmul.f32 %v1249, %v1267
          %v1272 = vmul.f32 %v1250, %v1267
          %v1273 = vmul.f32 %v1251, %v1267
          %v1274 = vmul.f32 %v1252, %v1267
          %v1275 = vmul.f32 %v1253, %v1267
          %v1276 = vmul.f32 %v1254, %v1267
          %v1277 = vmul.f32 %v1255, %v1267
          %v1278 = vmul.f32 %v1256, %v1267
          %v1279 = vmul.f32 %v1257, %v1267
          %v1280 = vmul.f32 %v1258, %v1267
          %v1281 = vmul.f32 %v1259, %v1267
          %v1282 = vmul.f32 %v1260, %v1267
          %v1283 = vmul.f32 %v1261, %v1267
          %v1284 = vmul.f32 %v1262, %v1267
          %v1286 = vlaneseq
          %v1287 = vshrl.u32 %v1286, 7
          %v1288 = vsub.s32 0, %v1287
          %v1289 = vrot.slane %v1085, %v1288
          %v1291 = vadd.f32 %v1269, %v1289
          %v1292 = vadd.f32 %v1270, %v1289
          %v1293 = vadd.f32 %v1271, %v1289
          %v1294 = vadd.f32 %v1272, %v1289
          %v1295 = vadd.f32 %v1273, %v1289
          %v1296 = vadd.f32 %v1274, %v1289
          %v1297 = vadd.f32 %v1275, %v1289
          %v1298 = vadd.f32 %v1276, %v1289
          %v1299 = vadd.f32 %v1277, %v1289
          %v1300 = vadd.f32 %v1278, %v1289
          %v1301 = vadd.f32 %v1279, %v1289
          %v1302 = vadd.f32 %v1280, %v1289
          %v1303 = vadd.f32 %v1281, %v1289
          %v1304 = vadd.f32 %v1282, %v1289
          %v1305 = vadd.f32 %v1283, %v1289
          %v1306 = vadd.f32 %v1284, %v1289
          %v1307 = vpack.c.bf16 %v1292, %v1291
          %v1308 = vpack.c.bf16 %v1294, %v1293
          %v1309 = vpack.c.bf16 %v1296, %v1295
          %v1310 = vpack.c.bf16 %v1298, %v1297
          %v1311 = vpack.c.bf16 %v1300, %v1299
          %v1312 = vpack.c.bf16 %v1302, %v1301
          %v1313 = vpack.c.bf16 %v1304, %v1303
          %v1314 = vpack.c.bf16 %v1306, %v1305
          %v1323 = vunpack.c.l.b16 %v1307
          %v1324 = vunpack.c.h.b16 %v1307
          %v1325 = vunpack.c.l.b16 %v1308
          %v1326 = vunpack.c.h.b16 %v1308
          %v1327 = vunpack.c.l.b16 %v1309
          %v1328 = vunpack.c.h.b16 %v1309
          %v1329 = vunpack.c.l.b16 %v1310
          %v1330 = vunpack.c.h.b16 %v1310
          %v1331 = vunpack.c.l.b16 %v1311
          %v1332 = vunpack.c.h.b16 %v1311
          %v1333 = vunpack.c.l.b16 %v1312
          %v1334 = vunpack.c.h.b16 %v1312
          %v1335 = vunpack.c.l.b16 %v1313
          %v1336 = vunpack.c.h.b16 %v1313
          %v1337 = vunpack.c.l.b16 %v1314
          %v1338 = vunpack.c.h.b16 %v1314
          %v1339 = vpack.c.b16 %v1323, %v1323
          %v1340 = vpack.c.b16 %v1324, %v1324
          %v1341 = vpack.c.b16 %v1325, %v1325
          %v1342 = vpack.c.b16 %v1326, %v1326
          %v1343 = vpack.c.b16 %v1327, %v1327
          %v1344 = vpack.c.b16 %v1328, %v1328
          %v1345 = vpack.c.b16 %v1329, %v1329
          %v1346 = vpack.c.b16 %v1330, %v1330
          %v1347 = vpack.c.b16 %v1331, %v1331
          %v1348 = vpack.c.b16 %v1332, %v1332
          %v1349 = vpack.c.b16 %v1333, %v1333
          %v1350 = vpack.c.b16 %v1334, %v1334
          %v1351 = vpack.c.b16 %v1335, %v1335
          %v1352 = vpack.c.b16 %v1336, %v1336
          %v1353 = vpack.c.b16 %v1337, %v1337
          %v1354 = vpack.c.b16 %v1338, %v1338
          %1371 = vst [vmem:[%s424] sm:$0xf] %v1339
          %1372 = vst [vmem:[%s424 + $0x4] sm:$0xf] %v1340
          %1373 = vst [vmem:[%s424 + $0x8] sm:$0xf] %v1341
          %1374 = vst [vmem:[%s424 + $0xc] sm:$0xf] %v1342
          %1375 = vst [vmem:[%s424 + $0x10] sm:$0xf] %v1343
          %1376 = vst [vmem:[%s424 + $0x14] sm:$0xf] %v1344
          %1377 = vst [vmem:[%s424 + $0x18] sm:$0xf] %v1345
          %1378 = vst [vmem:[%s424 + $0x1c] sm:$0xf] %v1346
          %1379 = vst [vmem:[%s424 + $0x20] sm:$0xf] %v1347
          %1380 = vst [vmem:[%s424 + $0x24] sm:$0xf] %v1348
          %1381 = vst [vmem:[%s424 + $0x28] sm:$0xf] %v1349
          %1382 = vst [vmem:[%s424 + $0x2c] sm:$0xf] %v1350
          %1383 = vst [vmem:[%s424 + $0x30] sm:$0xf] %v1351
          %1384 = vst [vmem:[%s424 + $0x34] sm:$0xf] %v1352
          %1385 = vst [vmem:[%s424 + $0x38] sm:$0xf] %v1353
          %1386 = vst [vmem:[%s424 + $0x3c] sm:$0xf] %v1354
        $region74: #{cellpose_sam_apply.26} parent=61 // pred_fallthru
          _
        %s1387 = smul.u32 16, %s21
        %p1388 = scmp.lt.s32.totalorder %s1387, 15
        %s1389 = scalar_select %p1388, %s1387, 15
        %p1390 = scmp.lt.s32.totalorder %s22, 0
        %s1391 = scalar_select %p1390, %s22, 0
        %s1392 = sadd.s32 %s1391, %s1389
        %s1393 = smul.addr %s1392, 4
        %s1394 = scalar_lea.vmem %s5, %s1393
        // Predicated region
        $region75: #{cellpose_sam_apply.26} parent=61 // pred_check
          %p1395 = pneg %p189
        $region76: #{cellpose_sam_apply.26} parent=61 // pred_check_branch
          %1397 = sbr.rel (%p1395) target = $region78
        $region77: #{cellpose_sam_apply.26} parent=61 // pred_region
          %s1398 = smul.u32 16, %s21
        $region78: #{cellpose_sam_apply.26} parent=61 // pred_fallthru
          _
        // Predicated region
        $region79: #{cellpose_sam_apply.26} parent=61 // pred_check
          %p1399 = pneg %p189
        $region80: #{cellpose_sam_apply.26} parent=61 // pred_check_branch
          %1401 = sbr.rel (%p1399) target = $region82
        $region81: #{cellpose_sam_apply.26} parent=61 // pred_region
          %s1402 = smul.u32 16, %s21
          %p1403 = scmp.lt.s32.totalorder %s1402, 15
          %s1404 = scalar_select %p1403, %s1402, 15
          %p1405 = scmp.lt.s32.totalorder %s22, 0
          %s1406 = scalar_select %p1405, %s22, 0
          %s1407 = sadd.s32 %s1406, %s1404
          %s1408 = smul.addr %s1407, 4
          %s1409 = scalar_lea.vmem %s5, %s1408
        $region82: #{cellpose_sam_apply.26} parent=61 // pred_fallthru
          _
      $region62: #{cellpose_sam_apply.26} parent=5 // pred_fallthru
        _
      %p1410 = scmp.le.s32.totalorder 2, %s11
      // Predicated region
      $region83: #{cellpose_sam_apply.26} parent=5 // pred_check
        %p1411 = pneg %p1410
      $region84: #{cellpose_sam_apply.26} parent=5 // pred_check_branch
        %1413 = sbr.rel (%p1411) target = $region86
      $region85: #{cellpose_sam_apply.26} parent=5 // pred_region
        %s1414 = ssub.s32 %s11, 2
      $region86: #{cellpose_sam_apply.26} parent=5 // pred_fallthru
        _
    $region6: #{cellpose_sam_apply.26} parent=1 // loop_footer
      %s15 = sadd.s32 1, %s11
    $region7: #{cellpose_sam_apply.26} parent=1 // loop_footer_branch
      %10 = sbr.rel target = $region3
    $region8: #{cellpose_sam_apply.26} parent=1 // loop_exit
      _

</llo_original>
